<compile_context>
chip_gen: v7x
topology: tpu7x:2x2x1
jax: 0.10.0
libtpu: 0.0.40
codegen_flags: <defaults>
</compile_context>

<pallas_src>
import math
import jax
import jax.numpy as jnp
from jax.experimental import pallas as pl
from jax.experimental.pallas import tpu as pltpu

LN_EPS = 1e-5
RSQRT_EPS = 1.0 / math.sqrt(LN_EPS)


def _erf(x):
    # Abramowitz & Stegun 7.1.26 — accurate to ~1.5e-7 (matches torch's exact-erf GELU closely).
    p = 0.3275911
    a1, a2, a3, a4, a5 = 0.254829592, -0.284496736, 1.421413741, -1.453152027, 1.061405429
    sgn = jnp.where(x < 0.0, -1.0, 1.0)
    ax = jnp.abs(x)
    t = 1.0 / (1.0 + p * ax)
    poly = ((((a5 * t + a4) * t + a3) * t + a2) * t + a1) * t
    return sgn * (1.0 - poly * jnp.exp(-ax * ax))


def _gelu(x):
    return 0.5 * x * (1.0 + _erf(x * 0.7071067811865476))


def _layer_norm(x, g, b):
    mu = jnp.mean(x, axis=-1, keepdims=True)
    var = jnp.mean(jnp.square(x - mu), axis=-1, keepdims=True)
    return (x - mu) * jax.lax.rsqrt(var + LN_EPS) * g + b


def build_kernel(hidden_dim, num_layers, num_heads, seq_len, batch):
    H = hidden_dim
    nh = num_heads
    dh = H // nh
    S, B = seq_len, batch
    M = S * B
    scale = 1.0 / math.sqrt(dh)
    bf16 = jnp.bfloat16

    def kernel(x_ref, in_g_ref, in_b_ref, emb_w_ref, emb_b_ref, emb_ln_g_ref, emb_ln_b_ref,
               ln1_g_ref, ln1_b_ref, wqkv_ref, bqkv_ref, wo_ref, bo_ref,
               ln2_g_ref, ln2_b_ref, w1_ref, b1_ref, w2_ref, b2_ref,
               hln_g_ref, hln_b_ref, hw1_ref, hb1_ref, hw2_ref, hb2_ref, hw3_ref, hb3_ref,
               out_ref, h_ref):
        l = pl.program_id(0)

        @pl.when(l == 0)
        def _embed():
            # LayerNorm over a size-1 feature: (x - mean) == 0 exactly for finite x, so the
            # normalized value is 0 * rsqrt(eps); NaN/Inf in x still propagates faithfully.
            xz = (x_ref[...] - x_ref[...]) * RSQRT_EPS                           # (M, 1)
            xn = xz * in_g_ref[...] + in_b_ref[...]                              # (M, 1)
            e0 = xn * emb_w_ref[...] + emb_b_ref[...]                            # (M, H)
            h_ref[...] = _gelu(_layer_norm(e0, emb_ln_g_ref[...], emb_ln_b_ref[...]))  # dropout = id

        # ----- TransformerEncoderLayer l (norm_first=True, GELU); this layer's weights streamed -----
        h = h_ref[...]                                                           # (M, H) f32
        hp = _layer_norm(h, ln1_g_ref[...], ln1_b_ref[...])
        qkv = jnp.dot(hp.astype(bf16), wqkv_ref[...],
                      preferred_element_type=jnp.float32) + bqkv_ref[...]        # (M, 3H) f32
        qkvb = qkv.astype(bf16).reshape(S, B, 3 * H)                             # single bf16 cast

        heads = []
        for hd in range(nh):  # static loop; each einsum is batched over all S positions
            lo = hd * dh
            qh = qkvb[:, :, lo:lo + dh]
            kh = qkvb[:, :, H + lo:H + lo + dh]
            vh = qkvb[:, :, 2 * H + lo:2 * H + lo + dh]
            sc = jnp.einsum('sbd,scd->sbc', qh, kh,
                            preferred_element_type=jnp.float32) * scale          # (S, B, B)
            m = jnp.max(sc, axis=-1, keepdims=True)
            e = jnp.exp(sc - m)
            p = e * pl.reciprocal(jnp.sum(e, axis=-1, keepdims=True), approx=True)
            heads.append(jnp.einsum('sbc,scd->sbd', p.astype(bf16), vh,
                                    preferred_element_type=jnp.float32))         # (S, B, dh)
        # concatenated head outputs feed ONE (M,H)@(H,H) output projection (no per-head partials)
        ao = jnp.concatenate(heads, axis=-1).reshape(M, H).astype(bf16)
        h = h + jnp.dot(ao, wo_ref[...], preferred_element_type=jnp.float32) + bo_ref[...]  # dropout1 = id

        hp2 = _layer_norm(h, ln2_g_ref[...], ln2_b_ref[...])
        f = _gelu(jnp.dot(hp2.astype(bf16), w1_ref[...],
                          preferred_element_type=jnp.float32) + b1_ref[...])     # (M, 4H)
        f = jnp.dot(f.astype(bf16), w2_ref[...],
                    preferred_element_type=jnp.float32) + b2_ref[...]
        h = h + f                                                                # dropout2 = id
        h_ref[...] = h

        @pl.when(l == num_layers - 1)
        def _head():
            # x[:, -1, :]  ==  rows [(S-1)*B, S*B) of the (M, H) state (rows ordered (s, b))
            y = h[M - B:, :]                                                     # (B, H)
            y = _layer_norm(y, hln_g_ref[...], hln_b_ref[...])
            y = _gelu(jnp.dot(y.astype(bf16), hw1_ref[...],
                              preferred_element_type=jnp.float32) + hb1_ref[...])
            y = _gelu(jnp.dot(y.astype(bf16), hw2_ref[...],
                              preferred_element_type=jnp.float32) + hb2_ref[...])
            # final (H/4 -> 1) projection: VPU multiply + lane reduction instead of an N=1 matmul
            z = jnp.sum(y * hw3_ref[...], axis=-1, keepdims=True) + hb3_ref[...]
            out_ref[...] = jnp.tanh(z)                                           # (B, 1)

    return kernel


def init_params(key, hidden_dim, num_layers, num_heads):
    """Deterministic synthetic parameters (shapes match the PyTorch module).

    Linear weights: xavier-uniform, stored pre-transposed for y = x @ W_T + b.
    LayerNorm gammas = 1; biases / betas = small random so the path is non-degenerate."""
    H = hidden_dim
    keys = iter(jax.random.split(key, 128))

    def xavier_t(shape_torch):  # (fan_out, fan_in) -> returns (fan_in, fan_out)
        fan_out, fan_in = shape_torch
        lim = math.sqrt(6.0 / (fan_in + fan_out))
        w = jax.random.uniform(next(keys), shape_torch, jnp.float32, -lim, lim)
        return w.T

    def small(shape):
        return 0.02 * jax.random.normal(next(keys), shape, jnp.float32)

    in_g = jnp.ones((1, 1), jnp.float32)
    in_b = small((1, 1))
    emb_w = xavier_t((H, 1))                         # (1, H)
    emb_b = small((1, H))
    emb_ln_g = jnp.ones((1, H), jnp.float32)
    emb_ln_b = small((1, H))

    ln1_g, ln1_b, wqkv, bqkv, wo, bo = [], [], [], [], [], []
    ln2_g, ln2_b, w1, b1, w2, b2 = [], [], [], [], [], []
    for _ in range(num_layers):
        ln1_g.append(jnp.ones((H,), jnp.float32))
        ln1_b.append(small((H,)))
        wqkv.append(xavier_t((3 * H, H)))            # (H, 3H)
        bqkv.append(small((3 * H,)))
        wo.append(xavier_t((H, H)))                  # (H, H)
        bo.append(small((H,)))
        ln2_g.append(jnp.ones((H,), jnp.float32))
        ln2_b.append(small((H,)))
        w1.append(xavier_t((4 * H, H)))              # (H, 4H)
        b1.append(small((4 * H,)))
        w2.append(xavier_t((H, 4 * H)))              # (4H, H)
        b2.append(small((H,)))

    hln_g = jnp.ones((1, H), jnp.float32)
    hln_b = small((1, H))
    hw1 = xavier_t((H // 2, H))                      # (H, H/2)
    hb1 = small((1, H // 2))
    hw2 = xavier_t((H // 4, H // 2))                 # (H/2, H/4)
    hb2 = small((1, H // 4))
    hw3 = xavier_t((1, H // 4))                      # (H/4, 1)
    hb3 = small((1, 1))

    return (in_g, in_b, emb_w, emb_b, emb_ln_g, emb_ln_b,
            jnp.stack(ln1_g), jnp.stack(ln1_b), jnp.stack(wqkv), jnp.stack(bqkv),
            jnp.stack(wo), jnp.stack(bo), jnp.stack(ln2_g), jnp.stack(ln2_b),
            jnp.stack(w1), jnp.stack(b1), jnp.stack(w2), jnp.stack(b2),
            hln_g, hln_b, hw1, hb1, hw2, hb2, hw3, hb3)


def forward(x, params, hidden_dim, num_layers, num_heads):
    """x: (B, S) float32 -> (B,) float32."""
    B, S = x.shape
    H = hidden_dim
    L = num_layers
    M = S * B
    bf16 = jnp.bfloat16

    (in_g, in_b, emb_w, emb_b, emb_ln_g, emb_ln_b,
     ln1_g, ln1_b, wqkv, bqkv, wo, bo, ln2_g, ln2_b, w1, b1, w2, b2,
     hln_g, hln_b, hw1, hb1, hw2, hb2, hw3, hb3) = params

    # Hidden state rows are ordered (s, b) — the PyTorch batch_first=False attention axes.
    x_col = jnp.asarray(x, jnp.float32).T.reshape(M, 1)

    args = (
        x_col, in_g, in_b, emb_w, emb_b, emb_ln_g, emb_ln_b,
        ln1_g[:, None, :], ln1_b[:, None, :],
        wqkv.astype(bf16), bqkv[:, None, :],
        wo.astype(bf16),                 # bf16 weights: half the per-layer DMA, no in-kernel cast
        bo[:, None, :],
        ln2_g[:, None, :], ln2_b[:, None, :],
        w1.astype(bf16), b1[:, None, :], w2.astype(bf16), b2[:, None, :],
        hln_g, hln_b,
        hw1.astype(bf16), hb1, hw2.astype(bf16), hb2,
        hw3.reshape(1, H // 4), hb3,
    )
    is_layer = (False,) * 7 + (True,) * 12 + (False,) * 8

    def const_spec(a):   # whole (small) array, resident; never re-fetched across layers
        nd = a.ndim
        return pl.BlockSpec(tuple(a.shape), lambda l, _n=nd: (0,) * _n)

    def layer_spec(a):   # stacked (L, ...) array: stream block l, leading dim squeezed
        nd = a.ndim
        return pl.BlockSpec((None,) + tuple(a.shape[1:]),
                            lambda l, _n=nd: (l,) + (0,) * (_n - 1))
        # TODO(synk): pipeline_mode=pl.Buffered(3) on the large weights once H grows and DMA is exposed.

    in_specs = [layer_spec(a) if lay else const_spec(a) for a, lay in zip(args, is_layer)]

    flops_layer = (2 * M * H * 3 * H            # qkv projection
                   + 4 * S * B * B * H          # scores + attn@v (all heads)
                   + 2 * M * H * H              # output projection
                   + 2 * M * H * 4 * H + 2 * M * 4 * H * H)   # FFN
    head_flops = 2 * B * (H * (H // 2) + (H // 2) * (H // 4) + (H // 4))
    cost = pl.CostEstimate(
        flops=int(L * flops_layer + head_flops),
        transcendentals=int(L * (M * 4 * H + num_heads * S * B * B)
                            + M * H + B * (H // 2 + H // 4 + 1)),
        bytes_accessed=int(sum(int(a.size) * a.dtype.itemsize for a in args) + B * 4),
    )

    # VMEM budget from the actual buffer sum (double-buffered streamed layer weights + resident
    # constants + hidden-state scratch + activation slack), clamped below v7x's 64 MiB.
    layer_bytes = sum(int(a.size) * a.dtype.itemsize for a, lay in zip(args, is_layer) if lay) // L
    const_bytes = sum(int(a.size) * a.dtype.itemsize for a, lay in zip(args, is_layer) if not lay)
    vmem_limit = const_bytes + 2 * layer_bytes + M * H * 4 + (8 << 20)
    vmem_limit = int(min(max(vmem_limit, 4 << 20), 56 << 20))

    kernel = build_kernel(H, L, num_heads, S, B)
    out = pl.pallas_call(
        kernel,
        grid=(L,),
        in_specs=in_specs,
        out_specs=pl.BlockSpec((B, 1), lambda l: (0, 0)),
        out_shape=jax.ShapeDtypeStruct((B, 1), jnp.float32),
        scratch_shapes=[pltpu.VMEM((M, H), jnp.float32)],   # hidden state, persists across layers
        compiler_params=pltpu.CompilerParams(
            dimension_semantics=("arbitrary",),
            vmem_limit_bytes=vmem_limit),
        cost_estimate=cost,
    )(*args)
    return out[:, 0]


def ref_forward(x, params, hidden_dim, num_layers, num_heads):
    """Faithful pure-JAX reference (full path from x), same bf16-at-MXU policy, exact softmax."""
    H = hidden_dim
    nh = num_heads
    dh = H // nh
    scale = 1.0 / math.sqrt(dh)
    bf16 = jnp.bfloat16
    (in_g, in_b, emb_w, emb_b, emb_ln_g, emb_ln_b,
     ln1_g, ln1_b, wqkv, bqkv, wo, bo, ln2_g, ln2_b, w1, b1, w2, b2,
     hln_g, hln_b, hw1, hb1, hw2, hb2, hw3, hb3) = params

    def bdot(a, w):
        return jnp.dot(a.astype(bf16), w.astype(bf16), preferred_element_type=jnp.float32)

    xt = jnp.asarray(x, jnp.float32).T               # (S, B): PyTorch attention axes
    S, B = xt.shape
    M = S * B
    xn = (xt - xt) * RSQRT_EPS * in_g + in_b         # LayerNorm over a size-1 feature -> beta
    h = xn[:, :, None] * emb_w + emb_b
    h = _gelu(_layer_norm(h, emb_ln_g, emb_ln_b))
    for l in range(num_layers):
        hp = _layer_norm(h, ln1_g[l], ln1_b[l])
        qkv = (bdot(hp.reshape(M, H), wqkv[l]) + bqkv[l]).reshape(S, B, 3 * H)
        q, k, v = qkv[..., :H], qkv[..., H:2 * H], qkv[..., 2 * H:]
        outs = []
        for hd in range(nh):
            sl = slice(hd * dh, (hd + 1) * dh)
            sc = jnp.einsum('sbd,scd->sbc', q[..., sl].astype(bf16), k[..., sl].astype(bf16),
                            preferred_element_type=jnp.float32) * scale
            p = jax.nn.softmax(sc, axis=-1)
            outs.append(jnp.einsum('sbc,scd->sbd', p.astype(bf16), v[..., sl].astype(bf16),
                                   preferred_element_type=jnp.float32))
        ao = jnp.concatenate(outs, -1)
        h = h + (bdot(ao.reshape(M, H), wo[l]) + bo[l]).reshape(S, B, H)
        hp2 = _layer_norm(h, ln2_g[l], ln2_b[l])
        f = bdot(_gelu(bdot(hp2.reshape(M, H), w1[l]) + b1[l]), w2[l]) + b2[l]
        h = h + f.reshape(S, B, H)
    y = _layer_norm(h[S - 1], hln_g, hln_b)
    y = _gelu(bdot(y, hw1) + hb1)
    y = _gelu(bdot(y, hw2) + hb2)
    y = jnp.tanh(y @ hw3 + hb3)
    return y[:, 0]


if __name__ == "__main__":
    HIDDEN_DIM, NUM_LAYERS, NUM_HEADS = 32, 2, 4
    BATCH, SEQ = 2, 8

    key = jax.random.PRNGKey(0)
    kx, kp = jax.random.split(key)
    x = jax.random.normal(kx, (BATCH, SEQ), jnp.float32)
    params = init_params(kp, HIDDEN_DIM, NUM_LAYERS, NUM_HEADS)

    out = forward(x, params, HIDDEN_DIM, NUM_LAYERS, NUM_HEADS)
    out = jax.block_until_ready(out)

    ref = ref_forward(x, params, HIDDEN_DIM, NUM_LAYERS, NUM_HEADS)
    assert out.shape == (BATCH,)
    # Tolerance covers the EUP-approx softmax reciprocal and bf16 accumulation-order differences
    # between the kernel and the reference; structural bugs would be orders of magnitude larger.
    if not bool(jnp.allclose(out, ref, atol=1e-2, rtol=1e-2)):
        raise AssertionError(f"Pallas kernel mismatch: {out} vs reference {ref}")
    print("KERNEL_OK")
</pallas_src>

<mosaic_0001>
module attributes {stable_mosaic.version = 11 : i64} {
  func.func @kernel(%arg0: i32, %arg1: memref<16x1xf32, #tpu.memory_space<vmem>>, %arg2: memref<1x1xf32, #tpu.memory_space<vmem>>, %arg3: memref<1x1xf32, #tpu.memory_space<vmem>>, %arg4: memref<1x32xf32, #tpu.memory_space<vmem>>, %arg5: memref<1x32xf32, #tpu.memory_space<vmem>>, %arg6: memref<1x32xf32, #tpu.memory_space<vmem>>, %arg7: memref<1x32xf32, #tpu.memory_space<vmem>>, %arg8: memref<1x1x32xf32, #tpu.memory_space<vmem>>, %arg9: memref<1x1x32xf32, #tpu.memory_space<vmem>>, %arg10: memref<1x32x96xbf16, #tpu.memory_space<vmem>>, %arg11: memref<1x1x96xf32, #tpu.memory_space<vmem>>, %arg12: memref<1x32x32xbf16, #tpu.memory_space<vmem>>, %arg13: memref<1x1x32xf32, #tpu.memory_space<vmem>>, %arg14: memref<1x1x32xf32, #tpu.memory_space<vmem>>, %arg15: memref<1x1x32xf32, #tpu.memory_space<vmem>>, %arg16: memref<1x32x128xbf16, #tpu.memory_space<vmem>>, %arg17: memref<1x1x128xf32, #tpu.memory_space<vmem>>, %arg18: memref<1x128x32xbf16, #tpu.memory_space<vmem>>, %arg19: memref<1x1x32xf32, #tpu.memory_space<vmem>>, %arg20: memref<1x32xf32, #tpu.memory_space<vmem>>, %arg21: memref<1x32xf32, #tpu.memory_space<vmem>>, %arg22: memref<32x16xbf16, #tpu.memory_space<vmem>>, %arg23: memref<1x16xf32, #tpu.memory_space<vmem>>, %arg24: memref<16x8xbf16, #tpu.memory_space<vmem>>, %arg25: memref<1x8xf32, #tpu.memory_space<vmem>>, %arg26: memref<1x8xf32, #tpu.memory_space<vmem>>, %arg27: memref<1x1xf32, #tpu.memory_space<vmem>>, %arg28: memref<2x1xf32, #tpu.memory_space<vmem>>, %arg29: memref<16x32xf32, #tpu.memory_space<vmem>>) attributes {dimension_semantics = [#tpu.dimension_semantics<arbitrary>], iteration_bounds = array<i64: 2>, scalar_prefetch = 0 : i64, scratch_operands = 1 : i64, tpu.core_type = #tpu.core_type<tc>, window_params = [{pipeline_mode = #tpu.pipeline_mode<synchronous>, transform_indices = @transform_0, window_bounds = array<i64: 16, 1>}, {pipeline_mode = #tpu.pipeline_mode<synchronous>, transform_indices = @transform_1, window_bounds = array<i64: 1, 1>}, {pipeline_mode = #tpu.pipeline_mode<synchronous>, transform_indices = @transform_2, window_bounds = array<i64: 1, 1>}, {pipeline_mode = #tpu.pipeline_mode<synchronous>, transform_indices = @transform_3, window_bounds = array<i64: 1, 32>}, {pipeline_mode = #tpu.pipeline_mode<synchronous>, transform_indices = @transform_4, window_bounds = array<i64: 1, 32>}, {pipeline_mode = #tpu.pipeline_mode<synchronous>, transform_indices = @transform_5, window_bounds = array<i64: 1, 32>}, {pipeline_mode = #tpu.pipeline_mode<synchronous>, transform_indices = @transform_6, window_bounds = array<i64: 1, 32>}, {transform_indices = @transform_7, window_bounds = array<i64: 1, 1, 32>}, {transform_indices = @transform_8, window_bounds = array<i64: 1, 1, 32>}, {transform_indices = @transform_9, window_bounds = array<i64: 1, 32, 96>}, {transform_indices = @transform_10, window_bounds = array<i64: 1, 1, 96>}, {transform_indices = @transform_11, window_bounds = array<i64: 1, 32, 32>}, {transform_indices = @transform_12, window_bounds = array<i64: 1, 1, 32>}, {transform_indices = @transform_13, window_bounds = array<i64: 1, 1, 32>}, {transform_indices = @transform_14, window_bounds = array<i64: 1, 1, 32>}, {transform_indices = @transform_15, window_bounds = array<i64: 1, 32, 128>}, {transform_indices = @transform_16, window_bounds = array<i64: 1, 1, 128>}, {transform_indices = @transform_17, window_bounds = array<i64: 1, 128, 32>}, {transform_indices = @transform_18, window_bounds = array<i64: 1, 1, 32>}, {pipeline_mode = #tpu.pipeline_mode<synchronous>, transform_indices = @transform_19, window_bounds = array<i64: 1, 32>}, {pipeline_mode = #tpu.pipeline_mode<synchronous>, transform_indices = @transform_20, window_bounds = array<i64: 1, 32>}, {pipeline_mode = #tpu.pipeline_mode<synchronous>, transform_indices = @transform_21, window_bounds = array<i64: 32, 16>}, {pipeline_mode = #tpu.pipeline_mode<synchronous>, transform_indices = @transform_22, window_bounds = array<i64: 1, 16>}, {pipeline_mode = #tpu.pipeline_mode<synchronous>, transform_indices = @transform_23, window_bounds = array<i64: 16, 8>}, {pipeline_mode = #tpu.pipeline_mode<synchronous>, transform_indices = @transform_24, window_bounds = array<i64: 1, 8>}, {pipeline_mode = #tpu.pipeline_mode<synchronous>, transform_indices = @transform_25, window_bounds = array<i64: 1, 8>}, {pipeline_mode = #tpu.pipeline_mode<synchronous>, transform_indices = @transform_26, window_bounds = array<i64: 1, 1>}, {pipeline_mode = #tpu.pipeline_mode<synchronous>, transform_indices = @transform_27, window_bounds = array<i64: 2, 1>}]} {
    %c0_i32 = arith.constant 0 : i32
    %0 = arith.cmpi eq, %arg0, %c0_i32 : i32
    %1 = arith.extui %0 : i1 to i32
    %c0_i32_0 = arith.constant 0 : i32
    %2 = arith.cmpi ne, %1, %c0_i32_0 : i32
    scf.if %2 {
      %c0_90 = arith.constant 0 : index
      %c0_91 = arith.constant 0 : index
      %211 = vector.load %arg1[%c0_90, %c0_91] : memref<16x1xf32, #tpu.memory_space<vmem>>, vector<16x1xf32>
      %c0_92 = arith.constant 0 : index
      %c0_93 = arith.constant 0 : index
      %212 = vector.load %arg1[%c0_92, %c0_93] : memref<16x1xf32, #tpu.memory_space<vmem>>, vector<16x1xf32>
      %213 = arith.subf %211, %212 : vector<16x1xf32>
      %cst_94 = arith.constant 316.227753 : f32
      %214 = vector.broadcast %cst_94 : f32 to vector<16x1xf32>
      %215 = arith.mulf %213, %214 : vector<16x1xf32>
      %c0_95 = arith.constant 0 : index
      %c0_96 = arith.constant 0 : index
      %216 = vector.load %arg2[%c0_95, %c0_96] : memref<1x1xf32, #tpu.memory_space<vmem>>, vector<1x1xf32>
      %217 = vector.broadcast %216 : vector<1x1xf32> to vector<16x1xf32>
      %218 = arith.mulf %215, %217 : vector<16x1xf32>
      %c0_97 = arith.constant 0 : index
      %c0_98 = arith.constant 0 : index
      %219 = vector.load %arg3[%c0_97, %c0_98] : memref<1x1xf32, #tpu.memory_space<vmem>>, vector<1x1xf32>
      %220 = vector.broadcast %219 : vector<1x1xf32> to vector<16x1xf32>
      %221 = arith.addf %218, %220 : vector<16x1xf32>
      %c0_99 = arith.constant 0 : index
      %c0_100 = arith.constant 0 : index
      %222 = vector.load %arg4[%c0_99, %c0_100] : memref<1x32xf32, #tpu.memory_space<vmem>>, vector<1x32xf32>
      %223 = vector.broadcast %221 : vector<16x1xf32> to vector<16x32xf32>
      %224 = vector.broadcast %222 : vector<1x32xf32> to vector<16x32xf32>
      %225 = arith.mulf %223, %224 : vector<16x32xf32>
      %c0_101 = arith.constant 0 : index
      %c0_102 = arith.constant 0 : index
      %226 = vector.load %arg5[%c0_101, %c0_102] : memref<1x32xf32, #tpu.memory_space<vmem>>, vector<1x32xf32>
      %227 = vector.broadcast %226 : vector<1x32xf32> to vector<16x32xf32>
      %228 = arith.addf %225, %227 : vector<16x32xf32>
      %c0_103 = arith.constant 0 : index
      %c0_104 = arith.constant 0 : index
      %229 = vector.load %arg6[%c0_103, %c0_104] : memref<1x32xf32, #tpu.memory_space<vmem>>, vector<1x32xf32>
      %c0_105 = arith.constant 0 : index
      %c0_106 = arith.constant 0 : index
      %230 = vector.load %arg7[%c0_105, %c0_106] : memref<1x32xf32, #tpu.memory_space<vmem>>, vector<1x32xf32>
      %cst_107 = arith.constant dense<0.000000e+00> : vector<16xf32>
      %231 = vector.multi_reduction <add>, %228, %cst_107 [1] : vector<16x32xf32> to vector<16xf32>
      %232 = vector.shape_cast %231 : vector<16xf32> to vector<16x1xf32>
      %cst_108 = arith.constant 3.200000e+01 : f32
      %233 = vector.broadcast %cst_108 : f32 to vector<16x1xf32>
      %234 = arith.divf %232, %233 : vector<16x1xf32>
      %235 = vector.broadcast %234 : vector<16x1xf32> to vector<16x32xf32>
      %236 = arith.subf %228, %235 : vector<16x32xf32>
      %237 = arith.mulf %236, %236 : vector<16x32xf32>
      %cst_109 = arith.constant dense<0.000000e+00> : vector<16xf32>
      %238 = vector.multi_reduction <add>, %237, %cst_109 [1] : vector<16x32xf32> to vector<16xf32>
      %239 = vector.shape_cast %238 : vector<16xf32> to vector<16x1xf32>
      %cst_110 = arith.constant 3.200000e+01 : f32
      %240 = vector.broadcast %cst_110 : f32 to vector<16x1xf32>
      %241 = arith.divf %239, %240 : vector<16x1xf32>
      %242 = vector.broadcast %234 : vector<16x1xf32> to vector<16x32xf32>
      %243 = arith.subf %228, %242 : vector<16x32xf32>
      %cst_111 = arith.constant 9.99999974E-6 : f32
      %244 = vector.broadcast %cst_111 : f32 to vector<16x1xf32>
      %245 = arith.addf %241, %244 : vector<16x1xf32>
      %246 = math.rsqrt %245 : vector<16x1xf32>
      %247 = vector.broadcast %246 : vector<16x1xf32> to vector<16x32xf32>
      %248 = arith.mulf %243, %247 : vector<16x32xf32>
      %249 = vector.broadcast %229 : vector<1x32xf32> to vector<16x32xf32>
      %250 = arith.mulf %248, %249 : vector<16x32xf32>
      %251 = vector.broadcast %230 : vector<1x32xf32> to vector<16x32xf32>
      %252 = arith.addf %250, %251 : vector<16x32xf32>
      %cst_112 = arith.constant 5.000000e-01 : f32
      %253 = vector.broadcast %cst_112 : f32 to vector<16x32xf32>
      %254 = arith.mulf %253, %252 : vector<16x32xf32>
      %cst_113 = arith.constant 0.707106769 : f32
      %255 = vector.broadcast %cst_113 : f32 to vector<16x32xf32>
      %256 = arith.mulf %252, %255 : vector<16x32xf32>
      %cst_114 = arith.constant 0.000000e+00 : f32
      %257 = vector.broadcast %cst_114 : f32 to vector<16x32xf32>
      %258 = arith.cmpf olt, %256, %257 : vector<16x32xf32>
      %cst_115 = arith.constant -1.000000e+00 : f32
      %cst_116 = arith.constant 1.000000e+00 : f32
      %259 = vector.broadcast %cst_115 : f32 to vector<16x32xf32>
      %260 = vector.broadcast %cst_116 : f32 to vector<16x32xf32>
      %261 = arith.select %258, %259, %260 : vector<16x32xi1>, vector<16x32xf32>
      %262 = math.absf %256 : vector<16x32xf32>
      %cst_117 = arith.constant 0.327591091 : f32
      %263 = vector.broadcast %cst_117 : f32 to vector<16x32xf32>
      %264 = arith.mulf %263, %262 : vector<16x32xf32>
      %cst_118 = arith.constant 1.000000e+00 : f32
      %265 = vector.broadcast %cst_118 : f32 to vector<16x32xf32>
      %266 = arith.addf %265, %264 : vector<16x32xf32>
      %cst_119 = arith.constant 1.000000e+00 : f32
      %267 = vector.broadcast %cst_119 : f32 to vector<16x32xf32>
      %268 = arith.divf %267, %266 : vector<16x32xf32>
      %cst_120 = arith.constant 1.06140542 : f32
      %269 = vector.broadcast %cst_120 : f32 to vector<16x32xf32>
      %270 = arith.mulf %269, %268 : vector<16x32xf32>
      %cst_121 = arith.constant -1.45315206 : f32
      %271 = vector.broadcast %cst_121 : f32 to vector<16x32xf32>
      %272 = arith.addf %270, %271 : vector<16x32xf32>
      %273 = arith.mulf %272, %268 : vector<16x32xf32>
      %cst_122 = arith.constant 1.42141378 : f32
      %274 = vector.broadcast %cst_122 : f32 to vector<16x32xf32>
      %275 = arith.addf %273, %274 : vector<16x32xf32>
      %276 = arith.mulf %275, %268 : vector<16x32xf32>
      %cst_123 = arith.constant -0.284496725 : f32
      %277 = vector.broadcast %cst_123 : f32 to vector<16x32xf32>
      %278 = arith.addf %276, %277 : vector<16x32xf32>
      %279 = arith.mulf %278, %268 : vector<16x32xf32>
      %cst_124 = arith.constant 0.254829586 : f32
      %280 = vector.broadcast %cst_124 : f32 to vector<16x32xf32>
      %281 = arith.addf %279, %280 : vector<16x32xf32>
      %282 = arith.mulf %281, %268 : vector<16x32xf32>
      %cst_125 = arith.constant 0.000000e+00 : f32
      %283 = vector.broadcast %cst_125 : f32 to vector<16x32xf32>
      %284 = arith.subf %283, %262 : vector<16x32xf32>
      %285 = arith.mulf %284, %262 : vector<16x32xf32>
      %286 = math.exp %285 : vector<16x32xf32>
      %287 = arith.mulf %282, %286 : vector<16x32xf32>
      %cst_126 = arith.constant 1.000000e+00 : f32
      %288 = vector.broadcast %cst_126 : f32 to vector<16x32xf32>
      %289 = arith.subf %288, %287 : vector<16x32xf32>
      %290 = arith.mulf %261, %289 : vector<16x32xf32>
      %cst_127 = arith.constant 1.000000e+00 : f32
      %291 = vector.broadcast %cst_127 : f32 to vector<16x32xf32>
      %292 = arith.addf %291, %290 : vector<16x32xf32>
      %293 = arith.mulf %254, %292 : vector<16x32xf32>
      %c0_128 = arith.constant 0 : index
      %c0_129 = arith.constant 0 : index
      %294 = vector.load %arg29[%c0_128, %c0_129] : memref<16x32xf32, #tpu.memory_space<vmem>>, vector<16x32xf32>
      tpu.vector_store %arg29[%c0_128, %c0_129], %293 {strides = array<i32>} : memref<16x32xf32, #tpu.memory_space<vmem>>, vector<16x32xf32>,
    } else {
    }
    %c0 = arith.constant 0 : index
    %c0_1 = arith.constant 0 : index
    %3 = vector.load %arg29[%c0, %c0_1] : memref<16x32xf32, #tpu.memory_space<vmem>>, vector<16x32xf32>
    %c0_2 = arith.constant 0 : index
    %c0_3 = arith.constant 0 : index
    %c0_4 = arith.constant 0 : index
    %4 = vector.load %arg8[%c0_2, %c0_3, %c0_4] : memref<1x1x32xf32, #tpu.memory_space<vmem>>, vector<1x1x32xf32>
    %5 = vector.shape_cast %4 : vector<1x1x32xf32> to vector<1x32xf32>
    %c0_5 = arith.constant 0 : index
    %c0_6 = arith.constant 0 : index
    %c0_7 = arith.constant 0 : index
    %6 = vector.load %arg9[%c0_5, %c0_6, %c0_7] : memref<1x1x32xf32, #tpu.memory_space<vmem>>, vector<1x1x32xf32>
    %7 = vector.shape_cast %6 : vector<1x1x32xf32> to vector<1x32xf32>
    %cst = arith.constant dense<0.000000e+00> : vector<16xf32>
    %8 = vector.multi_reduction <add>, %3, %cst [1] : vector<16x32xf32> to vector<16xf32>
    %9 = vector.shape_cast %8 : vector<16xf32> to vector<16x1xf32>
    %cst_8 = arith.constant 3.200000e+01 : f32
    %10 = vector.broadcast %cst_8 : f32 to vector<16x1xf32>
    %11 = arith.divf %9, %10 : vector<16x1xf32>
    %12 = vector.broadcast %11 : vector<16x1xf32> to vector<16x32xf32>
    %13 = arith.subf %3, %12 : vector<16x32xf32>
    %14 = arith.mulf %13, %13 : vector<16x32xf32>
    %cst_9 = arith.constant dense<0.000000e+00> : vector<16xf32>
    %15 = vector.multi_reduction <add>, %14, %cst_9 [1] : vector<16x32xf32> to vector<16xf32>
    %16 = vector.shape_cast %15 : vector<16xf32> to vector<16x1xf32>
    %cst_10 = arith.constant 3.200000e+01 : f32
    %17 = vector.broadcast %cst_10 : f32 to vector<16x1xf32>
    %18 = arith.divf %16, %17 : vector<16x1xf32>
    %19 = vector.broadcast %11 : vector<16x1xf32> to vector<16x32xf32>
    %20 = arith.subf %3, %19 : vector<16x32xf32>
    %cst_11 = arith.constant 9.99999974E-6 : f32
    %21 = vector.broadcast %cst_11 : f32 to vector<16x1xf32>
    %22 = arith.addf %18, %21 : vector<16x1xf32>
    %23 = math.rsqrt %22 : vector<16x1xf32>
    %24 = vector.broadcast %23 : vector<16x1xf32> to vector<16x32xf32>
    %25 = arith.mulf %20, %24 : vector<16x32xf32>
    %26 = vector.broadcast %5 : vector<1x32xf32> to vector<16x32xf32>
    %27 = arith.mulf %25, %26 : vector<16x32xf32>
    %28 = vector.broadcast %7 : vector<1x32xf32> to vector<16x32xf32>
    %29 = arith.addf %27, %28 : vector<16x32xf32>
    %30 = arith.truncf %29 : vector<16x32xf32> to vector<16x32xbf16>
    %c0_12 = arith.constant 0 : index
    %c0_13 = arith.constant 0 : index
    %c0_14 = arith.constant 0 : index
    %31 = vector.load %arg10[%c0_12, %c0_13, %c0_14] : memref<1x32x96xbf16, #tpu.memory_space<vmem>>, vector<1x32x96xbf16>
    %32 = vector.shape_cast %31 : vector<1x32x96xbf16> to vector<32x96xbf16>
    %cst_15 = arith.constant dense<0.000000e+00> : vector<16x96xf32>
    %33 = tpu.matmul %30, %32, %cst_15 {dimension_numbers = #tpu.dot_dimension_numbers<[1], [0], [0], [1], [0, 0, 1, 1], [], []>} : vector<16x32xbf16>, vector<32x96xbf16>, vector<16x96xf32> -> vector<16x96xf32>
    %c0_16 = arith.constant 0 : index
    %c0_17 = arith.constant 0 : index
    %c0_18 = arith.constant 0 : index
    %34 = vector.load %arg11[%c0_16, %c0_17, %c0_18] : memref<1x1x96xf32, #tpu.memory_space<vmem>>, vector<1x1x96xf32>
    %35 = vector.shape_cast %34 : vector<1x1x96xf32> to vector<1x96xf32>
    %36 = vector.broadcast %35 : vector<1x96xf32> to vector<16x96xf32>
    %37 = arith.addf %33, %36 : vector<16x96xf32>
    %38 = arith.truncf %37 : vector<16x96xf32> to vector<16x96xbf16>
    %39 = vector.shape_cast %38 : vector<16x96xbf16> to vector<8x2x96xbf16>
    %40 = vector.extract_strided_slice %39 {offsets = [0, 0, 0], sizes = [8, 2, 8], strides = [1, 1, 1]} : vector<8x2x96xbf16> to vector<8x2x8xbf16>
    %41 = vector.extract_strided_slice %39 {offsets = [0, 0, 32], sizes = [8, 2, 8], strides = [1, 1, 1]} : vector<8x2x96xbf16> to vector<8x2x8xbf16>
    %42 = vector.extract_strided_slice %39 {offsets = [0, 0, 64], sizes = [8, 2, 8], strides = [1, 1, 1]} : vector<8x2x96xbf16> to vector<8x2x8xbf16>
    "tpu.trace_start"() <{level = 10 : i32, message = "sbd,scd->sbc"}> : () -> ()
    %cst_19 = arith.constant dense<0.000000e+00> : vector<8x2x2xf32>
    %43 = tpu.matmul %40, %41, %cst_19 {dimension_numbers = #tpu.dot_dimension_numbers<[2], [2], [1], [1], [0, 0, 0, 1, 1, 1], [0], [0]>} : vector<8x2x8xbf16>, vector<8x2x8xbf16>, vector<8x2x2xf32> -> vector<8x2x2xf32>
    "tpu.trace_stop"() : () -> ()
    %cst_20 = arith.constant 0.353553385 : f32
    %44 = vector.broadcast %cst_20 : f32 to vector<8x2x2xf32>
    %45 = arith.mulf %43, %44 : vector<8x2x2xf32>
    %cst_21 = arith.constant dense<0xFF800000> : vector<8x2xf32>
    %46 = vector.multi_reduction <maximumf>, %45, %cst_21 [2] : vector<8x2x2xf32> to vector<8x2xf32>
    %47 = vector.shape_cast %46 : vector<8x2xf32> to vector<8x2x1xf32>
    %48 = vector.broadcast %47 : vector<8x2x1xf32> to vector<8x2x2xf32>
    %49 = arith.subf %45, %48 : vector<8x2x2xf32>
    %50 = math.exp %49 : vector<8x2x2xf32>
    %cst_22 = arith.constant dense<0.000000e+00> : vector<8x2xf32>
    %51 = vector.multi_reduction <add>, %50, %cst_22 [2] : vector<8x2x2xf32> to vector<8x2xf32>
    %52 = vector.shape_cast %51 : vector<8x2xf32> to vector<8x2x1xf32>
    %53 = tpu.reciprocal %52 {approx = true} : vector<8x2x1xf32> -> vector<8x2x1xf32>
    %54 = vector.broadcast %53 : vector<8x2x1xf32> to vector<8x2x2xf32>
    %55 = arith.mulf %50, %54 : vector<8x2x2xf32>
    %56 = arith.truncf %55 : vector<8x2x2xf32> to vector<8x2x2xbf16>
    "tpu.trace_start"() <{level = 10 : i32, message = "sbc,scd->sbd"}> : () -> ()
    %cst_23 = arith.constant dense<0.000000e+00> : vector<8x2x8xf32>
    %57 = tpu.matmul %56, %42, %cst_23 {dimension_numbers = #tpu.dot_dimension_numbers<[2], [1], [1], [2], [0, 0, 0, 1, 1, 2], [0], [0]>} : vector<8x2x2xbf16>, vector<8x2x8xbf16>, vector<8x2x8xf32> -> vector<8x2x8xf32>
    "tpu.trace_stop"() : () -> ()
    %58 = vector.extract_strided_slice %39 {offsets = [0, 0, 8], sizes = [8, 2, 8], strides = [1, 1, 1]} : vector<8x2x96xbf16> to vector<8x2x8xbf16>
    %59 = vector.extract_strided_slice %39 {offsets = [0, 0, 40], sizes = [8, 2, 8], strides = [1, 1, 1]} : vector<8x2x96xbf16> to vector<8x2x8xbf16>
    %60 = vector.extract_strided_slice %39 {offsets = [0, 0, 72], sizes = [8, 2, 8], strides = [1, 1, 1]} : vector<8x2x96xbf16> to vector<8x2x8xbf16>
    "tpu.trace_start"() <{level = 10 : i32, message = "sbd,scd->sbc"}> : () -> ()
    %cst_24 = arith.constant dense<0.000000e+00> : vector<8x2x2xf32>
    %61 = tpu.matmul %58, %59, %cst_24 {dimension_numbers = #tpu.dot_dimension_numbers<[2], [2], [1], [1], [0, 0, 0, 1, 1, 1], [0], [0]>} : vector<8x2x8xbf16>, vector<8x2x8xbf16>, vector<8x2x2xf32> -> vector<8x2x2xf32>
    "tpu.trace_stop"() : () -> ()
    %cst_25 = arith.constant 0.353553385 : f32
    %62 = vector.broadcast %cst_25 : f32 to vector<8x2x2xf32>
    %63 = arith.mulf %61, %62 : vector<8x2x2xf32>
    %cst_26 = arith.constant dense<0xFF800000> : vector<8x2xf32>
    %64 = vector.multi_reduction <maximumf>, %63, %cst_26 [2] : vector<8x2x2xf32> to vector<8x2xf32>
    %65 = vector.shape_cast %64 : vector<8x2xf32> to vector<8x2x1xf32>
    %66 = vector.broadcast %65 : vector<8x2x1xf32> to vector<8x2x2xf32>
    %67 = arith.subf %63, %66 : vector<8x2x2xf32>
    %68 = math.exp %67 : vector<8x2x2xf32>
    %cst_27 = arith.constant dense<0.000000e+00> : vector<8x2xf32>
    %69 = vector.multi_reduction <add>, %68, %cst_27 [2] : vector<8x2x2xf32> to vector<8x2xf32>
    %70 = vector.shape_cast %69 : vector<8x2xf32> to vector<8x2x1xf32>
    %71 = tpu.reciprocal %70 {approx = true} : vector<8x2x1xf32> -> vector<8x2x1xf32>
    %72 = vector.broadcast %71 : vector<8x2x1xf32> to vector<8x2x2xf32>
    %73 = arith.mulf %68, %72 : vector<8x2x2xf32>
    %74 = arith.truncf %73 : vector<8x2x2xf32> to vector<8x2x2xbf16>
    "tpu.trace_start"() <{level = 10 : i32, message = "sbc,scd->sbd"}> : () -> ()
    %cst_28 = arith.constant dense<0.000000e+00> : vector<8x2x8xf32>
    %75 = tpu.matmul %74, %60, %cst_28 {dimension_numbers = #tpu.dot_dimension_numbers<[2], [1], [1], [2], [0, 0, 0, 1, 1, 2], [0], [0]>} : vector<8x2x2xbf16>, vector<8x2x8xbf16>, vector<8x2x8xf32> -> vector<8x2x8xf32>
    "tpu.trace_stop"() : () -> ()
    %76 = vector.extract_strided_slice %39 {offsets = [0, 0, 16], sizes = [8, 2, 8], strides = [1, 1, 1]} : vector<8x2x96xbf16> to vector<8x2x8xbf16>
    %77 = vector.extract_strided_slice %39 {offsets = [0, 0, 48], sizes = [8, 2, 8], strides = [1, 1, 1]} : vector<8x2x96xbf16> to vector<8x2x8xbf16>
    %78 = vector.extract_strided_slice %39 {offsets = [0, 0, 80], sizes = [8, 2, 8], strides = [1, 1, 1]} : vector<8x2x96xbf16> to vector<8x2x8xbf16>
    "tpu.trace_start"() <{level = 10 : i32, message = "sbd,scd->sbc"}> : () -> ()
    %cst_29 = arith.constant dense<0.000000e+00> : vector<8x2x2xf32>
    %79 = tpu.matmul %76, %77, %cst_29 {dimension_numbers = #tpu.dot_dimension_numbers<[2], [2], [1], [1], [0, 0, 0, 1, 1, 1], [0], [0]>} : vector<8x2x8xbf16>, vector<8x2x8xbf16>, vector<8x2x2xf32> -> vector<8x2x2xf32>
    "tpu.trace_stop"() : () -> ()
    %cst_30 = arith.constant 0.353553385 : f32
    %80 = vector.broadcast %cst_30 : f32 to vector<8x2x2xf32>
    %81 = arith.mulf %79, %80 : vector<8x2x2xf32>
    %cst_31 = arith.constant dense<0xFF800000> : vector<8x2xf32>
    %82 = vector.multi_reduction <maximumf>, %81, %cst_31 [2] : vector<8x2x2xf32> to vector<8x2xf32>
    %83 = vector.shape_cast %82 : vector<8x2xf32> to vector<8x2x1xf32>
    %84 = vector.broadcast %83 : vector<8x2x1xf32> to vector<8x2x2xf32>
    %85 = arith.subf %81, %84 : vector<8x2x2xf32>
    %86 = math.exp %85 : vector<8x2x2xf32>
    %cst_32 = arith.constant dense<0.000000e+00> : vector<8x2xf32>
    %87 = vector.multi_reduction <add>, %86, %cst_32 [2] : vector<8x2x2xf32> to vector<8x2xf32>
    %88 = vector.shape_cast %87 : vector<8x2xf32> to vector<8x2x1xf32>
    %89 = tpu.reciprocal %88 {approx = true} : vector<8x2x1xf32> -> vector<8x2x1xf32>
    %90 = vector.broadcast %89 : vector<8x2x1xf32> to vector<8x2x2xf32>
    %91 = arith.mulf %86, %90 : vector<8x2x2xf32>
    %92 = arith.truncf %91 : vector<8x2x2xf32> to vector<8x2x2xbf16>
    "tpu.trace_start"() <{level = 10 : i32, message = "sbc,scd->sbd"}> : () -> ()
    %cst_33 = arith.constant dense<0.000000e+00> : vector<8x2x8xf32>
    %93 = tpu.matmul %92, %78, %cst_33 {dimension_numbers = #tpu.dot_dimension_numbers<[2], [1], [1], [2], [0, 0, 0, 1, 1, 2], [0], [0]>} : vector<8x2x2xbf16>, vector<8x2x8xbf16>, vector<8x2x8xf32> -> vector<8x2x8xf32>
    "tpu.trace_stop"() : () -> ()
    %94 = vector.extract_strided_slice %39 {offsets = [0, 0, 24], sizes = [8, 2, 8], strides = [1, 1, 1]} : vector<8x2x96xbf16> to vector<8x2x8xbf16>
    %95 = vector.extract_strided_slice %39 {offsets = [0, 0, 56], sizes = [8, 2, 8], strides = [1, 1, 1]} : vector<8x2x96xbf16> to vector<8x2x8xbf16>
    %96 = vector.extract_strided_slice %39 {offsets = [0, 0, 88], sizes = [8, 2, 8], strides = [1, 1, 1]} : vector<8x2x96xbf16> to vector<8x2x8xbf16>
    "tpu.trace_start"() <{level = 10 : i32, message = "sbd,scd->sbc"}> : () -> ()
    %cst_34 = arith.constant dense<0.000000e+00> : vector<8x2x2xf32>
    %97 = tpu.matmul %94, %95, %cst_34 {dimension_numbers = #tpu.dot_dimension_numbers<[2], [2], [1], [1], [0, 0, 0, 1, 1, 1], [0], [0]>} : vector<8x2x8xbf16>, vector<8x2x8xbf16>, vector<8x2x2xf32> -> vector<8x2x2xf32>
    "tpu.trace_stop"() : () -> ()
    %cst_35 = arith.constant 0.353553385 : f32
    %98 = vector.broadcast %cst_35 : f32 to vector<8x2x2xf32>
    %99 = arith.mulf %97, %98 : vector<8x2x2xf32>
    %cst_36 = arith.constant dense<0xFF800000> : vector<8x2xf32>
    %100 = vector.multi_reduction <maximumf>, %99, %cst_36 [2] : vector<8x2x2xf32> to vector<8x2xf32>
    %101 = vector.shape_cast %100 : vector<8x2xf32> to vector<8x2x1xf32>
    %102 = vector.broadcast %101 : vector<8x2x1xf32> to vector<8x2x2xf32>
    %103 = arith.subf %99, %102 : vector<8x2x2xf32>
    %104 = math.exp %103 : vector<8x2x2xf32>
    %cst_37 = arith.constant dense<0.000000e+00> : vector<8x2xf32>
    %105 = vector.multi_reduction <add>, %104, %cst_37 [2] : vector<8x2x2xf32> to vector<8x2xf32>
    %106 = vector.shape_cast %105 : vector<8x2xf32> to vector<8x2x1xf32>
    %107 = tpu.reciprocal %106 {approx = true} : vector<8x2x1xf32> -> vector<8x2x1xf32>
    %108 = vector.broadcast %107 : vector<8x2x1xf32> to vector<8x2x2xf32>
    %109 = arith.mulf %104, %108 : vector<8x2x2xf32>
    %110 = arith.truncf %109 : vector<8x2x2xf32> to vector<8x2x2xbf16>
    "tpu.trace_start"() <{level = 10 : i32, message = "sbc,scd->sbd"}> : () -> ()
    %cst_38 = arith.constant dense<0.000000e+00> : vector<8x2x8xf32>
    %111 = tpu.matmul %110, %96, %cst_38 {dimension_numbers = #tpu.dot_dimension_numbers<[2], [1], [1], [2], [0, 0, 0, 1, 1, 2], [0], [0]>} : vector<8x2x2xbf16>, vector<8x2x8xbf16>, vector<8x2x8xf32> -> vector<8x2x8xf32>
    "tpu.trace_stop"() : () -> ()
    %112 = tpu.concatenate %57, %75, %93, %111 in 2 : vector<8x2x8xf32>, vector<8x2x8xf32>, vector<8x2x8xf32>, vector<8x2x8xf32> -> vector<8x2x32xf32>
    %113 = vector.shape_cast %112 : vector<8x2x32xf32> to vector<16x32xf32>
    %114 = arith.truncf %113 : vector<16x32xf32> to vector<16x32xbf16>
    %c0_39 = arith.constant 0 : index
    %c0_40 = arith.constant 0 : index
    %c0_41 = arith.constant 0 : index
    %115 = vector.load %arg12[%c0_39, %c0_40, %c0_41] : memref<1x32x32xbf16, #tpu.memory_space<vmem>>, vector<1x32x32xbf16>
    %116 = vector.shape_cast %115 : vector<1x32x32xbf16> to vector<32x32xbf16>
    %cst_42 = arith.constant dense<0.000000e+00> : vector<16x32xf32>
    %117 = tpu.matmul %114, %116, %cst_42 {dimension_numbers = #tpu.dot_dimension_numbers<[1], [0], [0], [1], [0, 0, 1, 1], [], []>} : vector<16x32xbf16>, vector<32x32xbf16>, vector<16x32xf32> -> vector<16x32xf32>
    %118 = arith.addf %3, %117 : vector<16x32xf32>
    %c0_43 = arith.constant 0 : index
    %c0_44 = arith.constant 0 : index
    %c0_45 = arith.constant 0 : index
    %119 = vector.load %arg13[%c0_43, %c0_44, %c0_45] : memref<1x1x32xf32, #tpu.memory_space<vmem>>, vector<1x1x32xf32>
    %120 = vector.shape_cast %119 : vector<1x1x32xf32> to vector<1x32xf32>
    %121 = vector.broadcast %120 : vector<1x32xf32> to vector<16x32xf32>
    %122 = arith.addf %118, %121 : vector<16x32xf32>
    %c0_46 = arith.constant 0 : index
    %c0_47 = arith.constant 0 : index
    %c0_48 = arith.constant 0 : index
    %123 = vector.load %arg14[%c0_46, %c0_47, %c0_48] : memref<1x1x32xf32, #tpu.memory_space<vmem>>, vector<1x1x32xf32>
    %124 = vector.shape_cast %123 : vector<1x1x32xf32> to vector<1x32xf32>
    %c0_49 = arith.constant 0 : index
    %c0_50 = arith.constant 0 : index
    %c0_51 = arith.constant 0 : index
    %125 = vector.load %arg15[%c0_49, %c0_50, %c0_51] : memref<1x1x32xf32, #tpu.memory_space<vmem>>, vector<1x1x32xf32>
    %126 = vector.shape_cast %125 : vector<1x1x32xf32> to vector<1x32xf32>
    %cst_52 = arith.constant dense<0.000000e+00> : vector<16xf32>
    %127 = vector.multi_reduction <add>, %122, %cst_52 [1] : vector<16x32xf32> to vector<16xf32>
    %128 = vector.shape_cast %127 : vector<16xf32> to vector<16x1xf32>
    %cst_53 = arith.constant 3.200000e+01 : f32
    %129 = vector.broadcast %cst_53 : f32 to vector<16x1xf32>
    %130 = arith.divf %128, %129 : vector<16x1xf32>
    %131 = vector.broadcast %130 : vector<16x1xf32> to vector<16x32xf32>
    %132 = arith.subf %122, %131 : vector<16x32xf32>
    %133 = arith.mulf %132, %132 : vector<16x32xf32>
    %cst_54 = arith.constant dense<0.000000e+00> : vector<16xf32>
    %134 = vector.multi_reduction <add>, %133, %cst_54 [1] : vector<16x32xf32> to vector<16xf32>
    %135 = vector.shape_cast %134 : vector<16xf32> to vector<16x1xf32>
    %cst_55 = arith.constant 3.200000e+01 : f32
    %136 = vector.broadcast %cst_55 : f32 to vector<16x1xf32>
    %137 = arith.divf %135, %136 : vector<16x1xf32>
    %138 = vector.broadcast %130 : vector<16x1xf32> to vector<16x32xf32>
    %139 = arith.subf %122, %138 : vector<16x32xf32>
    %cst_56 = arith.constant 9.99999974E-6 : f32
    %140 = vector.broadcast %cst_56 : f32 to vector<16x1xf32>
    %141 = arith.addf %137, %140 : vector<16x1xf32>
    %142 = math.rsqrt %141 : vector<16x1xf32>
    %143 = vector.broadcast %142 : vector<16x1xf32> to vector<16x32xf32>
    %144 = arith.mulf %139, %143 : vector<16x32xf32>
    %145 = vector.broadcast %124 : vector<1x32xf32> to vector<16x32xf32>
    %146 = arith.mulf %144, %145 : vector<16x32xf32>
    %147 = vector.broadcast %126 : vector<1x32xf32> to vector<16x32xf32>
    %148 = arith.addf %146, %147 : vector<16x32xf32>
    %149 = arith.truncf %148 : vector<16x32xf32> to vector<16x32xbf16>
    %c0_57 = arith.constant 0 : index
    %c0_58 = arith.constant 0 : index
    %c0_59 = arith.constant 0 : index
    %150 = vector.load %arg16[%c0_57, %c0_58, %c0_59] : memref<1x32x128xbf16, #tpu.memory_space<vmem>>, vector<1x32x128xbf16>
    %151 = vector.shape_cast %150 : vector<1x32x128xbf16> to vector<32x128xbf16>
    %cst_60 = arith.constant dense<0.000000e+00> : vector<16x128xf32>
    %152 = tpu.matmul %149, %151, %cst_60 {dimension_numbers = #tpu.dot_dimension_numbers<[1], [0], [0], [1], [0, 0, 1, 1], [], []>} : vector<16x32xbf16>, vector<32x128xbf16>, vector<16x128xf32> -> vector<16x128xf32>
    %c0_61 = arith.constant 0 : index
    %c0_62 = arith.constant 0 : index
    %c0_63 = arith.constant 0 : index
    %153 = vector.load %arg17[%c0_61, %c0_62, %c0_63] : memref<1x1x128xf32, #tpu.memory_space<vmem>>, vector<1x1x128xf32>
    %154 = vector.shape_cast %153 : vector<1x1x128xf32> to vector<1x128xf32>
    %155 = vector.broadcast %154 : vector<1x128xf32> to vector<16x128xf32>
    %156 = arith.addf %152, %155 : vector<16x128xf32>
    %cst_64 = arith.constant 5.000000e-01 : f32
    %157 = vector.broadcast %cst_64 : f32 to vector<16x128xf32>
    %158 = arith.mulf %157, %156 : vector<16x128xf32>
    %cst_65 = arith.constant 0.707106769 : f32
    %159 = vector.broadcast %cst_65 : f32 to vector<16x128xf32>
    %160 = arith.mulf %156, %159 : vector<16x128xf32>
    %cst_66 = arith.constant 0.000000e+00 : f32
    %161 = vector.broadcast %cst_66 : f32 to vector<16x128xf32>
    %162 = arith.cmpf olt, %160, %161 : vector<16x128xf32>
    %cst_67 = arith.constant -1.000000e+00 : f32
    %cst_68 = arith.constant 1.000000e+00 : f32
    %163 = vector.broadcast %cst_67 : f32 to vector<16x128xf32>
    %164 = vector.broadcast %cst_68 : f32 to vector<16x128xf32>
    %165 = arith.select %162, %163, %164 : vector<16x128xi1>, vector<16x128xf32>
    %166 = math.absf %160 : vector<16x128xf32>
    %cst_69 = arith.constant 0.327591091 : f32
    %167 = vector.broadcast %cst_69 : f32 to vector<16x128xf32>
    %168 = arith.mulf %167, %166 : vector<16x128xf32>
    %cst_70 = arith.constant 1.000000e+00 : f32
    %169 = vector.broadcast %cst_70 : f32 to vector<16x128xf32>
    %170 = arith.addf %169, %168 : vector<16x128xf32>
    %cst_71 = arith.constant 1.000000e+00 : f32
    %171 = vector.broadcast %cst_71 : f32 to vector<16x128xf32>
    %172 = arith.divf %171, %170 : vector<16x128xf32>
    %cst_72 = arith.constant 1.06140542 : f32
    %173 = vector.broadcast %cst_72 : f32 to vector<16x128xf32>
    %174 = arith.mulf %173, %172 : vector<16x128xf32>
    %cst_73 = arith.constant -1.45315206 : f32
    %175 = vector.broadcast %cst_73 : f32 to vector<16x128xf32>
    %176 = arith.addf %174, %175 : vector<16x128xf32>
    %177 = arith.mulf %176, %172 : vector<16x128xf32>
    %cst_74 = arith.constant 1.42141378 : f32
    %178 = vector.broadcast %cst_74 : f32 to vector<16x128xf32>
    %179 = arith.addf %177, %178 : vector<16x128xf32>
    %180 = arith.mulf %179, %172 : vector<16x128xf32>
    %cst_75 = arith.constant -0.284496725 : f32
    %181 = vector.broadcast %cst_75 : f32 to vector<16x128xf32>
    %182 = arith.addf %180, %181 : vector<16x128xf32>
    %183 = arith.mulf %182, %172 : vector<16x128xf32>
    %cst_76 = arith.constant 0.254829586 : f32
    %184 = vector.broadcast %cst_76 : f32 to vector<16x128xf32>
    %185 = arith.addf %183, %184 : vector<16x128xf32>
    %186 = arith.mulf %185, %172 : vector<16x128xf32>
    %cst_77 = arith.constant 0.000000e+00 : f32
    %187 = vector.broadcast %cst_77 : f32 to vector<16x128xf32>
    %188 = arith.subf %187, %166 : vector<16x128xf32>
    %189 = arith.mulf %188, %166 : vector<16x128xf32>
    %190 = math.exp %189 : vector<16x128xf32>
    %191 = arith.mulf %186, %190 : vector<16x128xf32>
    %cst_78 = arith.constant 1.000000e+00 : f32
    %192 = vector.broadcast %cst_78 : f32 to vector<16x128xf32>
    %193 = arith.subf %192, %191 : vector<16x128xf32>
    %194 = arith.mulf %165, %193 : vector<16x128xf32>
    %cst_79 = arith.constant 1.000000e+00 : f32
    %195 = vector.broadcast %cst_79 : f32 to vector<16x128xf32>
    %196 = arith.addf %195, %194 : vector<16x128xf32>
    %197 = arith.mulf %158, %196 : vector<16x128xf32>
    %198 = arith.truncf %197 : vector<16x128xf32> to vector<16x128xbf16>
    %c0_80 = arith.constant 0 : index
    %c0_81 = arith.constant 0 : index
    %c0_82 = arith.constant 0 : index
    %199 = vector.load %arg18[%c0_80, %c0_81, %c0_82] : memref<1x128x32xbf16, #tpu.memory_space<vmem>>, vector<1x128x32xbf16>
    %200 = vector.shape_cast %199 : vector<1x128x32xbf16> to vector<128x32xbf16>
    %cst_83 = arith.constant dense<0.000000e+00> : vector<16x32xf32>
    %201 = tpu.matmul %198, %200, %cst_83 {dimension_numbers = #tpu.dot_dimension_numbers<[1], [0], [0], [1], [0, 0, 1, 1], [], []>} : vector<16x128xbf16>, vector<128x32xbf16>, vector<16x32xf32> -> vector<16x32xf32>
    %c0_84 = arith.constant 0 : index
    %c0_85 = arith.constant 0 : index
    %c0_86 = arith.constant 0 : index
    %202 = vector.load %arg19[%c0_84, %c0_85, %c0_86] : memref<1x1x32xf32, #tpu.memory_space<vmem>>, vector<1x1x32xf32>
    %203 = vector.shape_cast %202 : vector<1x1x32xf32> to vector<1x32xf32>
    %204 = vector.broadcast %203 : vector<1x32xf32> to vector<16x32xf32>
    %205 = arith.addf %201, %204 : vector<16x32xf32>
    %206 = arith.addf %122, %205 : vector<16x32xf32>
    %c0_87 = arith.constant 0 : index
    %c0_88 = arith.constant 0 : index
    %207 = vector.load %arg29[%c0_87, %c0_88] : memref<16x32xf32, #tpu.memory_space<vmem>>, vector<16x32xf32>
    tpu.vector_store %arg29[%c0_87, %c0_88], %206 {strides = array<i32>} : memref<16x32xf32, #tpu.memory_space<vmem>>, vector<16x32xf32>,
    %c1_i32 = arith.constant 1 : i32
    %208 = arith.cmpi eq, %arg0, %c1_i32 : i32
    %209 = arith.extui %208 : i1 to i32
    %c0_i32_89 = arith.constant 0 : i32
    %210 = arith.cmpi ne, %209, %c0_i32_89 : i32
    scf.if %210 {
      %211 = vector.extract_strided_slice %206 {offsets = [14, 0], sizes = [2, 32], strides = [1, 1]} : vector<16x32xf32> to vector<2x32xf32>
      %c0_90 = arith.constant 0 : index
      %c0_91 = arith.constant 0 : index
      %212 = vector.load %arg20[%c0_90, %c0_91] : memref<1x32xf32, #tpu.memory_space<vmem>>, vector<1x32xf32>
      %c0_92 = arith.constant 0 : index
      %c0_93 = arith.constant 0 : index
      %213 = vector.load %arg21[%c0_92, %c0_93] : memref<1x32xf32, #tpu.memory_space<vmem>>, vector<1x32xf32>
      %cst_94 = arith.constant dense<0.000000e+00> : vector<2xf32>
      %214 = vector.multi_reduction <add>, %211, %cst_94 [1] : vector<2x32xf32> to vector<2xf32>
      %215 = vector.shape_cast %214 : vector<2xf32> to vector<2x1xf32>
      %cst_95 = arith.constant 3.200000e+01 : f32
      %216 = vector.broadcast %cst_95 : f32 to vector<2x1xf32>
      %217 = arith.divf %215, %216 : vector<2x1xf32>
      %218 = vector.broadcast %217 : vector<2x1xf32> to vector<2x32xf32>
      %219 = arith.subf %211, %218 : vector<2x32xf32>
      %220 = arith.mulf %219, %219 : vector<2x32xf32>
      %cst_96 = arith.constant dense<0.000000e+00> : vector<2xf32>
      %221 = vector.multi_reduction <add>, %220, %cst_96 [1] : vector<2x32xf32> to vector<2xf32>
      %222 = vector.shape_cast %221 : vector<2xf32> to vector<2x1xf32>
      %cst_97 = arith.constant 3.200000e+01 : f32
      %223 = vector.broadcast %cst_97 : f32 to vector<2x1xf32>
      %224 = arith.divf %222, %223 : vector<2x1xf32>
      %225 = vector.broadcast %217 : vector<2x1xf32> to vector<2x32xf32>
      %226 = arith.subf %211, %225 : vector<2x32xf32>
      %cst_98 = arith.constant 9.99999974E-6 : f32
      %227 = vector.broadcast %cst_98 : f32 to vector<2x1xf32>
      %228 = arith.addf %224, %227 : vector<2x1xf32>
      %229 = math.rsqrt %228 : vector<2x1xf32>
      %230 = vector.broadcast %229 : vector<2x1xf32> to vector<2x32xf32>
      %231 = arith.mulf %226, %230 : vector<2x32xf32>
      %232 = vector.broadcast %212 : vector<1x32xf32> to vector<2x32xf32>
      %233 = arith.mulf %231, %232 : vector<2x32xf32>
      %234 = vector.broadcast %213 : vector<1x32xf32> to vector<2x32xf32>
      %235 = arith.addf %233, %234 : vector<2x32xf32>
      %236 = arith.truncf %235 : vector<2x32xf32> to vector<2x32xbf16>
      %c0_99 = arith.constant 0 : index
      %c0_100 = arith.constant 0 : index
      %237 = vector.load %arg22[%c0_99, %c0_100] : memref<32x16xbf16, #tpu.memory_space<vmem>>, vector<32x16xbf16>
      %cst_101 = arith.constant dense<0.000000e+00> : vector<2x16xf32>
      %238 = tpu.matmul %236, %237, %cst_101 {dimension_numbers = #tpu.dot_dimension_numbers<[1], [0], [0], [1], [0, 0, 1, 1], [], []>} : vector<2x32xbf16>, vector<32x16xbf16>, vector<2x16xf32> -> vector<2x16xf32>
      %c0_102 = arith.constant 0 : index
      %c0_103 = arith.constant 0 : index
      %239 = vector.load %arg23[%c0_102, %c0_103] : memref<1x16xf32, #tpu.memory_space<vmem>>, vector<1x16xf32>
      %240 = vector.broadcast %239 : vector<1x16xf32> to vector<2x16xf32>
      %241 = arith.addf %238, %240 : vector<2x16xf32>
      %cst_104 = arith.constant 5.000000e-01 : f32
      %242 = vector.broadcast %cst_104 : f32 to vector<2x16xf32>
      %243 = arith.mulf %242, %241 : vector<2x16xf32>
      %cst_105 = arith.constant 0.707106769 : f32
      %244 = vector.broadcast %cst_105 : f32 to vector<2x16xf32>
      %245 = arith.mulf %241, %244 : vector<2x16xf32>
      %cst_106 = arith.constant 0.000000e+00 : f32
      %246 = vector.broadcast %cst_106 : f32 to vector<2x16xf32>
      %247 = arith.cmpf olt, %245, %246 : vector<2x16xf32>
      %cst_107 = arith.constant -1.000000e+00 : f32
      %cst_108 = arith.constant 1.000000e+00 : f32
      %248 = vector.broadcast %cst_107 : f32 to vector<2x16xf32>
      %249 = vector.broadcast %cst_108 : f32 to vector<2x16xf32>
      %250 = arith.select %247, %248, %249 : vector<2x16xi1>, vector<2x16xf32>
      %251 = math.absf %245 : vector<2x16xf32>
      %cst_109 = arith.constant 0.327591091 : f32
      %252 = vector.broadcast %cst_109 : f32 to vector<2x16xf32>
      %253 = arith.mulf %252, %251 : vector<2x16xf32>
      %cst_110 = arith.constant 1.000000e+00 : f32
      %254 = vector.broadcast %cst_110 : f32 to vector<2x16xf32>
      %255 = arith.addf %254, %253 : vector<2x16xf32>
      %cst_111 = arith.constant 1.000000e+00 : f32
      %256 = vector.broadcast %cst_111 : f32 to vector<2x16xf32>
      %257 = arith.divf %256, %255 : vector<2x16xf32>
      %cst_112 = arith.constant 1.06140542 : f32
      %258 = vector.broadcast %cst_112 : f32 to vector<2x16xf32>
      %259 = arith.mulf %258, %257 : vector<2x16xf32>
      %cst_113 = arith.constant -1.45315206 : f32
      %260 = vector.broadcast %cst_113 : f32 to vector<2x16xf32>
      %261 = arith.addf %259, %260 : vector<2x16xf32>
      %262 = arith.mulf %261, %257 : vector<2x16xf32>
      %cst_114 = arith.constant 1.42141378 : f32
      %263 = vector.broadcast %cst_114 : f32 to vector<2x16xf32>
      %264 = arith.addf %262, %263 : vector<2x16xf32>
      %265 = arith.mulf %264, %257 : vector<2x16xf32>
      %cst_115 = arith.constant -0.284496725 : f32
      %266 = vector.broadcast %cst_115 : f32 to vector<2x16xf32>
      %267 = arith.addf %265, %266 : vector<2x16xf32>
      %268 = arith.mulf %267, %257 : vector<2x16xf32>
      %cst_116 = arith.constant 0.254829586 : f32
      %269 = vector.broadcast %cst_116 : f32 to vector<2x16xf32>
      %270 = arith.addf %268, %269 : vector<2x16xf32>
      %271 = arith.mulf %270, %257 : vector<2x16xf32>
      %cst_117 = arith.constant 0.000000e+00 : f32
      %272 = vector.broadcast %cst_117 : f32 to vector<2x16xf32>
      %273 = arith.subf %272, %251 : vector<2x16xf32>
      %274 = arith.mulf %273, %251 : vector<2x16xf32>
      %275 = math.exp %274 : vector<2x16xf32>
      %276 = arith.mulf %271, %275 : vector<2x16xf32>
      %cst_118 = arith.constant 1.000000e+00 : f32
      %277 = vector.broadcast %cst_118 : f32 to vector<2x16xf32>
      %278 = arith.subf %277, %276 : vector<2x16xf32>
      %279 = arith.mulf %250, %278 : vector<2x16xf32>
      %cst_119 = arith.constant 1.000000e+00 : f32
      %280 = vector.broadcast %cst_119 : f32 to vector<2x16xf32>
      %281 = arith.addf %280, %279 : vector<2x16xf32>
      %282 = arith.mulf %243, %281 : vector<2x16xf32>
      %283 = arith.truncf %282 : vector<2x16xf32> to vector<2x16xbf16>
      %c0_120 = arith.constant 0 : index
      %c0_121 = arith.constant 0 : index
      %284 = vector.load %arg24[%c0_120, %c0_121] : memref<16x8xbf16, #tpu.memory_space<vmem>>, vector<16x8xbf16>
      %cst_122 = arith.constant dense<0.000000e+00> : vector<2x8xf32>
      %285 = tpu.matmul %283, %284, %cst_122 {dimension_numbers = #tpu.dot_dimension_numbers<[1], [0], [0], [1], [0, 0, 1, 1], [], []>} : vector<2x16xbf16>, vector<16x8xbf16>, vector<2x8xf32> -> vector<2x8xf32>
      %c0_123 = arith.constant 0 : index
      %c0_124 = arith.constant 0 : index
      %286 = vector.load %arg25[%c0_123, %c0_124] : memref<1x8xf32, #tpu.memory_space<vmem>>, vector<1x8xf32>
      %287 = vector.broadcast %286 : vector<1x8xf32> to vector<2x8xf32>
      %288 = arith.addf %285, %287 : vector<2x8xf32>
      %cst_125 = arith.constant 5.000000e-01 : f32
      %289 = vector.broadcast %cst_125 : f32 to vector<2x8xf32>
      %290 = arith.mulf %289, %288 : vector<2x8xf32>
      %cst_126 = arith.constant 0.707106769 : f32
      %291 = vector.broadcast %cst_126 : f32 to vector<2x8xf32>
      %292 = arith.mulf %288, %291 : vector<2x8xf32>
      %cst_127 = arith.constant 0.000000e+00 : f32
      %293 = vector.broadcast %cst_127 : f32 to vector<2x8xf32>
      %294 = arith.cmpf olt, %292, %293 : vector<2x8xf32>
      %cst_128 = arith.constant -1.000000e+00 : f32
      %cst_129 = arith.constant 1.000000e+00 : f32
      %295 = vector.broadcast %cst_128 : f32 to vector<2x8xf32>
      %296 = vector.broadcast %cst_129 : f32 to vector<2x8xf32>
      %297 = arith.select %294, %295, %296 : vector<2x8xi1>, vector<2x8xf32>
      %298 = math.absf %292 : vector<2x8xf32>
      %cst_130 = arith.constant 0.327591091 : f32
      %299 = vector.broadcast %cst_130 : f32 to vector<2x8xf32>
      %300 = arith.mulf %299, %298 : vector<2x8xf32>
      %cst_131 = arith.constant 1.000000e+00 : f32
      %301 = vector.broadcast %cst_131 : f32 to vector<2x8xf32>
      %302 = arith.addf %301, %300 : vector<2x8xf32>
      %cst_132 = arith.constant 1.000000e+00 : f32
      %303 = vector.broadcast %cst_132 : f32 to vector<2x8xf32>
      %304 = arith.divf %303, %302 : vector<2x8xf32>
      %cst_133 = arith.constant 1.06140542 : f32
      %305 = vector.broadcast %cst_133 : f32 to vector<2x8xf32>
      %306 = arith.mulf %305, %304 : vector<2x8xf32>
      %cst_134 = arith.constant -1.45315206 : f32
      %307 = vector.broadcast %cst_134 : f32 to vector<2x8xf32>
      %308 = arith.addf %306, %307 : vector<2x8xf32>
      %309 = arith.mulf %308, %304 : vector<2x8xf32>
      %cst_135 = arith.constant 1.42141378 : f32
      %310 = vector.broadcast %cst_135 : f32 to vector<2x8xf32>
      %311 = arith.addf %309, %310 : vector<2x8xf32>
      %312 = arith.mulf %311, %304 : vector<2x8xf32>
      %cst_136 = arith.constant -0.284496725 : f32
      %313 = vector.broadcast %cst_136 : f32 to vector<2x8xf32>
      %314 = arith.addf %312, %313 : vector<2x8xf32>
      %315 = arith.mulf %314, %304 : vector<2x8xf32>
      %cst_137 = arith.constant 0.254829586 : f32
      %316 = vector.broadcast %cst_137 : f32 to vector<2x8xf32>
      %317 = arith.addf %315, %316 : vector<2x8xf32>
      %318 = arith.mulf %317, %304 : vector<2x8xf32>
      %cst_138 = arith.constant 0.000000e+00 : f32
      %319 = vector.broadcast %cst_138 : f32 to vector<2x8xf32>
      %320 = arith.subf %319, %298 : vector<2x8xf32>
      %321 = arith.mulf %320, %298 : vector<2x8xf32>
      %322 = math.exp %321 : vector<2x8xf32>
      %323 = arith.mulf %318, %322 : vector<2x8xf32>
      %cst_139 = arith.constant 1.000000e+00 : f32
      %324 = vector.broadcast %cst_139 : f32 to vector<2x8xf32>
      %325 = arith.subf %324, %323 : vector<2x8xf32>
      %326 = arith.mulf %297, %325 : vector<2x8xf32>
      %cst_140 = arith.constant 1.000000e+00 : f32
      %327 = vector.broadcast %cst_140 : f32 to vector<2x8xf32>
      %328 = arith.addf %327, %326 : vector<2x8xf32>
      %329 = arith.mulf %290, %328 : vector<2x8xf32>
      %c0_141 = arith.constant 0 : index
      %c0_142 = arith.constant 0 : index
      %330 = vector.load %arg26[%c0_141, %c0_142] : memref<1x8xf32, #tpu.memory_space<vmem>>, vector<1x8xf32>
      %331 = vector.broadcast %330 : vector<1x8xf32> to vector<2x8xf32>
      %332 = arith.mulf %329, %331 : vector<2x8xf32>
      %cst_143 = arith.constant dense<0.000000e+00> : vector<2xf32>
      %333 = vector.multi_reduction <add>, %332, %cst_143 [1] : vector<2x8xf32> to vector<2xf32>
      %334 = vector.shape_cast %333 : vector<2xf32> to vector<2x1xf32>
      %c0_144 = arith.constant 0 : index
      %c0_145 = arith.constant 0 : index
      %335 = vector.load %arg27[%c0_144, %c0_145] : memref<1x1xf32, #tpu.memory_space<vmem>>, vector<1x1xf32>
      %336 = vector.broadcast %335 : vector<1x1xf32> to vector<2x1xf32>
      %337 = arith.addf %334, %336 : vector<2x1xf32>
      %338 = math.tanh %337 : vector<2x1xf32>
      %c0_146 = arith.constant 0 : index
      %c0_147 = arith.constant 0 : index
      %339 = vector.load %arg28[%c0_146, %c0_147] : memref<2x1xf32, #tpu.memory_space<vmem>>, vector<2x1xf32>
      tpu.vector_store %arg28[%c0_146, %c0_147], %338 {strides = array<i32>} : memref<2x1xf32, #tpu.memory_space<vmem>>, vector<2x1xf32>,
    } else {
    }
    return
  }
  func.func @transform_0(%arg0: i32) -> (i32, i32) {
    %c0_i32 = arith.constant 0 : i32
    %c0_i32_0 = arith.constant 0 : i32
    %c0_i32_1 = arith.constant 0 : i32
    return %c0_i32, %c0_i32_0 : i32, i32
  }
  func.func @transform_1(%arg0: i32) -> (i32, i32) {
    %c0_i32 = arith.constant 0 : i32
    %c0_i32_0 = arith.constant 0 : i32
    %c0_i32_1 = arith.constant 0 : i32
    return %c0_i32, %c0_i32_0 : i32, i32
  }
  func.func @transform_2(%arg0: i32) -> (i32, i32) {
    %c0_i32 = arith.constant 0 : i32
    %c0_i32_0 = arith.constant 0 : i32
    %c0_i32_1 = arith.constant 0 : i32
    return %c0_i32, %c0_i32_0 : i32, i32
  }
  func.func @transform_3(%arg0: i32) -> (i32, i32) {
    %c0_i32 = arith.constant 0 : i32
    %c0_i32_0 = arith.constant 0 : i32
    %c0_i32_1 = arith.constant 0 : i32
    return %c0_i32, %c0_i32_0 : i32, i32
  }
  func.func @transform_4(%arg0: i32) -> (i32, i32) {
    %c0_i32 = arith.constant 0 : i32
    %c0_i32_0 = arith.constant 0 : i32
    %c0_i32_1 = arith.constant 0 : i32
    return %c0_i32, %c0_i32_0 : i32, i32
  }
  func.func @transform_5(%arg0: i32) -> (i32, i32) {
    %c0_i32 = arith.constant 0 : i32
    %c0_i32_0 = arith.constant 0 : i32
    %c0_i32_1 = arith.constant 0 : i32
    return %c0_i32, %c0_i32_0 : i32, i32
  }
  func.func @transform_6(%arg0: i32) -> (i32, i32) {
    %c0_i32 = arith.constant 0 : i32
    %c0_i32_0 = arith.constant 0 : i32
    %c0_i32_1 = arith.constant 0 : i32
    return %c0_i32, %c0_i32_0 : i32, i32
  }
  func.func @transform_7(%arg0: i32) -> (i32, i32, i32) {
    %c0_i32 = arith.constant 0 : i32
    %c0_i32_0 = arith.constant 0 : i32
    %c0_i32_1 = arith.constant 0 : i32
    return %arg0, %c0_i32, %c0_i32_0 : i32, i32, i32
  }
  func.func @transform_8(%arg0: i32) -> (i32, i32, i32) {
    %c0_i32 = arith.constant 0 : i32
    %c0_i32_0 = arith.constant 0 : i32
    %c0_i32_1 = arith.constant 0 : i32
    return %arg0, %c0_i32, %c0_i32_0 : i32, i32, i32
  }
  func.func @transform_9(%arg0: i32) -> (i32, i32, i32) {
    %c0_i32 = arith.constant 0 : i32
    %c0_i32_0 = arith.constant 0 : i32
    %c0_i32_1 = arith.constant 0 : i32
    return %arg0, %c0_i32, %c0_i32_0 : i32, i32, i32
  }
  func.func @transform_10(%arg0: i32) -> (i32, i32, i32) {
    %c0_i32 = arith.constant 0 : i32
    %c0_i32_0 = arith.constant 0 : i32
    %c0_i32_1 = arith.constant 0 : i32
    return %arg0, %c0_i32, %c0_i32_0 : i32, i32, i32
  }
  func.func @transform_11(%arg0: i32) -> (i32, i32, i32) {
    %c0_i32 = arith.constant 0 : i32
    %c0_i32_0 = arith.constant 0 : i32
    %c0_i32_1 = arith.constant 0 : i32
    return %arg0, %c0_i32, %c0_i32_0 : i32, i32, i32
  }
  func.func @transform_12(%arg0: i32) -> (i32, i32, i32) {
    %c0_i32 = arith.constant 0 : i32
    %c0_i32_0 = arith.constant 0 : i32
    %c0_i32_1 = arith.constant 0 : i32
    return %arg0, %c0_i32, %c0_i32_0 : i32, i32, i32
  }
  func.func @transform_13(%arg0: i32) -> (i32, i32, i32) {
    %c0_i32 = arith.constant 0 : i32
    %c0_i32_0 = arith.constant 0 : i32
    %c0_i32_1 = arith.constant 0 : i32
    return %arg0, %c0_i32, %c0_i32_0 : i32, i32, i32
  }
  func.func @transform_14(%arg0: i32) -> (i32, i32, i32) {
    %c0_i32 = arith.constant 0 : i32
    %c0_i32_0 = arith.constant 0 : i32
    %c0_i32_1 = arith.constant 0 : i32
    return %arg0, %c0_i32, %c0_i32_0 : i32, i32, i32
  }
  func.func @transform_15(%arg0: i32) -> (i32, i32, i32) {
    %c0_i32 = arith.constant 0 : i32
    %c0_i32_0 = arith.constant 0 : i32
    %c0_i32_1 = arith.constant 0 : i32
    return %arg0, %c0_i32, %c0_i32_0 : i32, i32, i32
  }
  func.func @transform_16(%arg0: i32) -> (i32, i32, i32) {
    %c0_i32 = arith.constant 0 : i32
    %c0_i32_0 = arith.constant 0 : i32
    %c0_i32_1 = arith.constant 0 : i32
    return %arg0, %c0_i32, %c0_i32_0 : i32, i32, i32
  }
  func.func @transform_17(%arg0: i32) -> (i32, i32, i32) {
    %c0_i32 = arith.constant 0 : i32
    %c0_i32_0 = arith.constant 0 : i32
    %c0_i32_1 = arith.constant 0 : i32
    return %arg0, %c0_i32, %c0_i32_0 : i32, i32, i32
  }
  func.func @transform_18(%arg0: i32) -> (i32, i32, i32) {
    %c0_i32 = arith.constant 0 : i32
    %c0_i32_0 = arith.constant 0 : i32
    %c0_i32_1 = arith.constant 0 : i32
    return %arg0, %c0_i32, %c0_i32_0 : i32, i32, i32
  }
  func.func @transform_19(%arg0: i32) -> (i32, i32) {
    %c0_i32 = arith.constant 0 : i32
    %c0_i32_0 = arith.constant 0 : i32
    %c0_i32_1 = arith.constant 0 : i32
    return %c0_i32, %c0_i32_0 : i32, i32
  }
  func.func @transform_20(%arg0: i32) -> (i32, i32) {
    %c0_i32 = arith.constant 0 : i32
    %c0_i32_0 = arith.constant 0 : i32
    %c0_i32_1 = arith.constant 0 : i32
    return %c0_i32, %c0_i32_0 : i32, i32
  }
  func.func @transform_21(%arg0: i32) -> (i32, i32) {
    %c0_i32 = arith.constant 0 : i32
    %c0_i32_0 = arith.constant 0 : i32
    %c0_i32_1 = arith.constant 0 : i32
    return %c0_i32, %c0_i32_0 : i32, i32
  }
  func.func @transform_22(%arg0: i32) -> (i32, i32) {
    %c0_i32 = arith.constant 0 : i32
    %c0_i32_0 = arith.constant 0 : i32
    %c0_i32_1 = arith.constant 0 : i32
    return %c0_i32, %c0_i32_0 : i32, i32
  }
  func.func @transform_23(%arg0: i32) -> (i32, i32) {
    %c0_i32 = arith.constant 0 : i32
    %c0_i32_0 = arith.constant 0 : i32
    %c0_i32_1 = arith.constant 0 : i32
    return %c0_i32, %c0_i32_0 : i32, i32
  }
  func.func @transform_24(%arg0: i32) -> (i32, i32) {
    %c0_i32 = arith.constant 0 : i32
    %c0_i32_0 = arith.constant 0 : i32
    %c0_i32_1 = arith.constant 0 : i32
    return %c0_i32, %c0_i32_0 : i32, i32
  }
  func.func @transform_25(%arg0: i32) -> (i32, i32) {
    %c0_i32 = arith.constant 0 : i32
    %c0_i32_0 = arith.constant 0 : i32
    %c0_i32_1 = arith.constant 0 : i32
    return %c0_i32, %c0_i32_0 : i32, i32
  }
  func.func @transform_26(%arg0: i32) -> (i32, i32) {
    %c0_i32 = arith.constant 0 : i32
    %c0_i32_0 = arith.constant 0 : i32
    %c0_i32_1 = arith.constant 0 : i32
    return %c0_i32, %c0_i32_0 : i32, i32
  }
  func.func @transform_27(%arg0: i32) -> (i32, i32) {
    %c0_i32 = arith.constant 0 : i32
    %c0_i32_0 = arith.constant 0 : i32
    %c0_i32_1 = arith.constant 0 : i32
    return %c0_i32, %c0_i32_0 : i32, i32
  }
}

</mosaic_0001>

<llo_original>
// kernel: tpu_custom_call.1
$region0: #{tpu_custom_call.1}
  #allocation0 [shape = 'u32[]', space=smem, size = 0x4, offset = 0x4, fixed_abs, tag = 'smem constant byte address 0x4 - core index']
  #allocation1 [shape = 'u32[144,128]{1,0:T(1,128)}', space=vmem, size = 0x12000, scoped, tag = 'internal scratch']
  #allocation2 [shape = 'f32[16,32]{1,0:T(8,128)}', space=vmem, size = 0x2000, scoped, tag = 'scratch operand']
  #allocation3 [shape = 'f32[1,1]{1,0:T(1,128)S(1)}', space=vmem, size = 0x200, scoped, tag = 'scoped memory for tpu_custom_call.1']
  #allocation4 [shape = 'f32[1,1]{1,0:T(1,128)S(1)}', space=vmem, size = 0x200, scoped, tag = 'scoped memory for tpu_custom_call.1']
  #allocation5 [shape = 'f32[1,1]{1,0:T(1,128)S(1)}', space=vmem, size = 0x200, scoped, tag = 'scoped memory for tpu_custom_call.1']
  %s0 = inlined_call_operand.vmem [shape: f32[16,1], index: 0, kind: input, shape index: {}]
  %s1 = inlined_call_operand.<no memory space> [shape: f32[1,1], index: 1, kind: input, shape index: {}]
  %s2 = inlined_call_operand.<no memory space> [shape: f32[1,1], index: 2, kind: input, shape index: {}]
  %s3 = inlined_call_operand.vmem [shape: f32[1,32], index: 3, kind: input, shape index: {}]
  %s4 = inlined_call_operand.vmem [shape: f32[1,32], index: 4, kind: input, shape index: {}]
  %s5 = inlined_call_operand.vmem [shape: f32[1,32], index: 5, kind: input, shape index: {}]
  %s6 = inlined_call_operand.vmem [shape: f32[1,32], index: 6, kind: input, shape index: {}]
  %s7 = inlined_call_operand.vmem [shape: f32[2,1,32], index: 7, kind: input, shape index: {}]
  %s8 = inlined_call_operand.vmem [shape: f32[2,1,32], index: 8, kind: input, shape index: {}]
  %s9 = inlined_call_operand.vmem [shape: bf16[2,32,96], index: 9, kind: input, shape index: {}]
  %s10 = inlined_call_operand.vmem [shape: f32[2,1,96], index: 10, kind: input, shape index: {}]
  %s11 = inlined_call_operand.vmem [shape: bf16[2,32,32], index: 11, kind: input, shape index: {}]
  %s12 = inlined_call_operand.vmem [shape: f32[2,1,32], index: 12, kind: input, shape index: {}]
  %s13 = inlined_call_operand.vmem [shape: f32[2,1,32], index: 13, kind: input, shape index: {}]
  %s14 = inlined_call_operand.vmem [shape: f32[2,1,32], index: 14, kind: input, shape index: {}]
  %s15 = inlined_call_operand.vmem [shape: bf16[2,32,128], index: 15, kind: input, shape index: {}]
  %s16 = inlined_call_operand.vmem [shape: f32[2,1,128], index: 16, kind: input, shape index: {}]
  %s17 = inlined_call_operand.vmem [shape: bf16[2,128,32], index: 17, kind: input, shape index: {}]
  %s18 = inlined_call_operand.vmem [shape: f32[2,1,32], index: 18, kind: input, shape index: {}]
  %s19 = inlined_call_operand.vmem [shape: f32[1,32], index: 19, kind: input, shape index: {}]
  %s20 = inlined_call_operand.vmem [shape: f32[1,32], index: 20, kind: input, shape index: {}]
  %s21 = inlined_call_operand.vmem [shape: bf16[32,16], index: 21, kind: input, shape index: {}]
  %s22 = inlined_call_operand.vmem [shape: f32[1,16], index: 22, kind: input, shape index: {}]
  %s23 = inlined_call_operand.vmem [shape: bf16[16,8], index: 23, kind: input, shape index: {}]
  %s24 = inlined_call_operand.vmem [shape: f32[1,8], index: 24, kind: input, shape index: {}]
  %s25 = inlined_call_operand.vmem [shape: f32[1,8], index: 25, kind: input, shape index: {}]
  %s26 = inlined_call_operand.<no memory space> [shape: f32[1,1], index: 26, kind: input, shape index: {}]
  %s27 = inlined_call_operand.vmem [shape: f32[2,1], index: 27, kind: output, shape index: {}]
  %s28 = sld [smem:[#allocation0]]
  $region149: #{tpu_custom_call.1} parent=0
    _
  %s30 = ssub.s32 1, %s28
  %s31 = scalar_select 0, %s30, %s28
  %v32 = vstv %s1
  %33 = vst [vmem:[#allocation3] sm:$0x1] %v32
  %v34 = vstv %s2
  %35 = vst [vmem:[#allocation4] sm:$0x1] %v34
  %v36 = vstv %s26
  %37 = vst [vmem:[#allocation5] sm:$0x1] %v36
  loop: start=0, step=1, limit=4
  $region2: #{tpu_custom_call.1} parent=0 // loop_pre_header
    _
  $region3: #{tpu_custom_call.1} parent=0 // loop_header
    %s39 = sphi 0, %s43
    %p40 = scmp.ge.s32.totalorder %s39, 4
    %s47 = sphi 0, %s47
    %s49 = sphi 0, %s47
    %s50 = sphi 0, %s49
    %s64 = sphi 0, %s50
    %s68 = sphi 0, %s68
    %s70 = sphi 0, %s68
    %s71 = sphi 0, %s70
    %s85 = sphi 0, %s71
    %s89 = sphi 0, %s89
    %s91 = sphi 0, %s89
    %s92 = sphi 0, %s91
    %s106 = sphi 0, %s92
    %s110 = sphi 0, %s110
    %s112 = sphi 0, %s110
    %s113 = sphi 0, %s112
    %s127 = sphi 0, %s113
    %s131 = sphi 0, %s131
    %s133 = sphi 0, %s131
    %s134 = sphi 0, %s133
    %s148 = sphi 0, %s134
    %s152 = sphi 0, %s152
    %s154 = sphi 0, %s152
    %s155 = sphi 0, %s154
    %s169 = sphi 0, %s155
    %s173 = sphi 0, %s173
    %s175 = sphi 0, %s173
    %s176 = sphi 0, %s175
    %s190 = sphi 0, %s176
    %s196 = sphi 0, %s198
    %s199 = sphi 0, %s196
    %s200 = sphi 0, %s199
    %s216 = sphi 0, %s200
    %s222 = sphi 0, %s224
    %s225 = sphi 0, %s222
    %s226 = sphi 0, %s225
    %s242 = sphi 0, %s226
    %s248 = sphi 0, %s250
    %s251 = sphi 0, %s248
    %s252 = sphi 0, %s251
    %s268 = sphi 0, %s252
    %s274 = sphi 0, %s276
    %s277 = sphi 0, %s274
    %s278 = sphi 0, %s277
    %s294 = sphi 0, %s278
    %s300 = sphi 0, %s302
    %s303 = sphi 0, %s300
    %s304 = sphi 0, %s303
    %s320 = sphi 0, %s304
    %s326 = sphi 0, %s328
    %s329 = sphi 0, %s326
    %s330 = sphi 0, %s329
    %s346 = sphi 0, %s330
    %s352 = sphi 0, %s354
    %s355 = sphi 0, %s352
    %s356 = sphi 0, %s355
    %s372 = sphi 0, %s356
    %s378 = sphi 0, %s380
    %s381 = sphi 0, %s378
    %s382 = sphi 0, %s381
    %s398 = sphi 0, %s382
    %s404 = sphi 0, %s406
    %s407 = sphi 0, %s404
    %s408 = sphi 0, %s407
    %s424 = sphi 0, %s408
    %s430 = sphi 0, %s432
    %s433 = sphi 0, %s430
    %s434 = sphi 0, %s433
    %s450 = sphi 0, %s434
    %s456 = sphi 0, %s458
    %s459 = sphi 0, %s456
    %s460 = sphi 0, %s459
    %s476 = sphi 0, %s460
    %s482 = sphi 0, %s484
    %s485 = sphi 0, %s482
    %s486 = sphi 0, %s485
    %s502 = sphi 0, %s486
    %s506 = sphi 0, %s506
    %s508 = sphi 0, %s506
    %s509 = sphi 0, %s508
    %s523 = sphi 0, %s509
    %s527 = sphi 0, %s527
    %s529 = sphi 0, %s527
    %s530 = sphi 0, %s529
    %s544 = sphi 0, %s530
    %s548 = sphi 0, %s548
    %s550 = sphi 0, %s548
    %s551 = sphi 0, %s550
    %s565 = sphi 0, %s551
    %s569 = sphi 0, %s569
    %s571 = sphi 0, %s569
    %s572 = sphi 0, %s571
    %s586 = sphi 0, %s572
    %s590 = sphi 0, %s590
    %s592 = sphi 0, %s590
    %s593 = sphi 0, %s592
    %s607 = sphi 0, %s593
    %s611 = sphi 0, %s611
    %s613 = sphi 0, %s611
    %s614 = sphi 0, %s613
    %s628 = sphi 0, %s614
    %s632 = sphi 0, %s632
    %s634 = sphi 0, %s632
    %s635 = sphi 0, %s634
    %s649 = sphi 0, %s635
    %s653 = sphi 0, %s653
    %s655 = sphi 0, %s653
    %s656 = sphi 0, %s655
    %s670 = sphi 0, %s656
    %s674 = sphi 0, %s674
    %s676 = sphi 0, %s674
    %s677 = sphi 0, %s676
    %s691 = sphi 0, %s677
  $region4: #{tpu_custom_call.1} parent=0 // loop_header_branch
    %42 = sbr.rel (%p40) target = $region8
  $region5: #{tpu_custom_call.1} parent=0 // loop_body
    %s44 = ssub.s32 %s39, 1
    %s45 = ssub.s32 %s39, 2
    %s46 = sadd.s32 %s39, 1
    %s48 = sadd.s32 %s47, 1
    %p51 = scmp.eq.s32.totalorder %s39, 1
    %p52 = scmp.ne.s32.totalorder %s47, %s49
    %p53 = scmp.eq.s32.totalorder %s39, 0
    %p54 = por %p52, %p53
    %p55 = scmp.ne.s32.totalorder %s47, %s49
    %p56 = scmp.eq.s32.totalorder %s44, 1
    %p57 = por %p55, %p56
    %p58 = scmp.ne.s32.totalorder %s49, %s50
    %p59 = scmp.eq.s32.totalorder %s44, 0
    %p60 = por %p58, %p59
    %p61 = scmp.ne.s32.totalorder %s49, %s50
    %p62 = scmp.eq.s32.totalorder %s45, 1
    %p63 = por %p61, %p62
    %p65 = scmp.ne.s32.totalorder %s50, %s64
    %p66 = scmp.eq.s32.totalorder %s45, 0
    %p67 = por %p65, %p66
    %s69 = sadd.s32 %s68, 1
    %p72 = scmp.eq.s32.totalorder %s39, 1
    %p73 = scmp.ne.s32.totalorder %s68, %s70
    %p74 = scmp.eq.s32.totalorder %s39, 0
    %p75 = por %p73, %p74
    %p76 = scmp.ne.s32.totalorder %s68, %s70
    %p77 = scmp.eq.s32.totalorder %s44, 1
    %p78 = por %p76, %p77
    %p79 = scmp.ne.s32.totalorder %s70, %s71
    %p80 = scmp.eq.s32.totalorder %s44, 0
    %p81 = por %p79, %p80
    %p82 = scmp.ne.s32.totalorder %s70, %s71
    %p83 = scmp.eq.s32.totalorder %s45, 1
    %p84 = por %p82, %p83
    %p86 = scmp.ne.s32.totalorder %s71, %s85
    %p87 = scmp.eq.s32.totalorder %s45, 0
    %p88 = por %p86, %p87
    %s90 = sadd.s32 %s89, 1
    %p93 = scmp.eq.s32.totalorder %s39, 1
    %p94 = scmp.ne.s32.totalorder %s89, %s91
    %p95 = scmp.eq.s32.totalorder %s39, 0
    %p96 = por %p94, %p95
    %p97 = scmp.ne.s32.totalorder %s89, %s91
    %p98 = scmp.eq.s32.totalorder %s44, 1
    %p99 = por %p97, %p98
    %p100 = scmp.ne.s32.totalorder %s91, %s92
    %p101 = scmp.eq.s32.totalorder %s44, 0
    %p102 = por %p100, %p101
    %p103 = scmp.ne.s32.totalorder %s91, %s92
    %p104 = scmp.eq.s32.totalorder %s45, 1
    %p105 = por %p103, %p104
    %p107 = scmp.ne.s32.totalorder %s92, %s106
    %p108 = scmp.eq.s32.totalorder %s45, 0
    %p109 = por %p107, %p108
    %s111 = sadd.s32 %s110, 1
    %p114 = scmp.eq.s32.totalorder %s39, 1
    %p115 = scmp.ne.s32.totalorder %s110, %s112
    %p116 = scmp.eq.s32.totalorder %s39, 0
    %p117 = por %p115, %p116
    %p118 = scmp.ne.s32.totalorder %s110, %s112
    %p119 = scmp.eq.s32.totalorder %s44, 1
    %p120 = por %p118, %p119
    %p121 = scmp.ne.s32.totalorder %s112, %s113
    %p122 = scmp.eq.s32.totalorder %s44, 0
    %p123 = por %p121, %p122
    %p124 = scmp.ne.s32.totalorder %s112, %s113
    %p125 = scmp.eq.s32.totalorder %s45, 1
    %p126 = por %p124, %p125
    %p128 = scmp.ne.s32.totalorder %s113, %s127
    %p129 = scmp.eq.s32.totalorder %s45, 0
    %p130 = por %p128, %p129
    %s132 = sadd.s32 %s131, 1
    %p135 = scmp.eq.s32.totalorder %s39, 1
    %p136 = scmp.ne.s32.totalorder %s131, %s133
    %p137 = scmp.eq.s32.totalorder %s39, 0
    %p138 = por %p136, %p137
    %p139 = scmp.ne.s32.totalorder %s131, %s133
    %p140 = scmp.eq.s32.totalorder %s44, 1
    %p141 = por %p139, %p140
    %p142 = scmp.ne.s32.totalorder %s133, %s134
    %p143 = scmp.eq.s32.totalorder %s44, 0
    %p144 = por %p142, %p143
    %p145 = scmp.ne.s32.totalorder %s133, %s134
    %p146 = scmp.eq.s32.totalorder %s45, 1
    %p147 = por %p145, %p146
    %p149 = scmp.ne.s32.totalorder %s134, %s148
    %p150 = scmp.eq.s32.totalorder %s45, 0
    %p151 = por %p149, %p150
    %s153 = sadd.s32 %s152, 1
    %p156 = scmp.eq.s32.totalorder %s39, 1
    %p157 = scmp.ne.s32.totalorder %s152, %s154
    %p158 = scmp.eq.s32.totalorder %s39, 0
    %p159 = por %p157, %p158
    %p160 = scmp.ne.s32.totalorder %s152, %s154
    %p161 = scmp.eq.s32.totalorder %s44, 1
    %p162 = por %p160, %p161
    %p163 = scmp.ne.s32.totalorder %s154, %s155
    %p164 = scmp.eq.s32.totalorder %s44, 0
    %p165 = por %p163, %p164
    %p166 = scmp.ne.s32.totalorder %s154, %s155
    %p167 = scmp.eq.s32.totalorder %s45, 1
    %p168 = por %p166, %p167
    %p170 = scmp.ne.s32.totalorder %s155, %s169
    %p171 = scmp.eq.s32.totalorder %s45, 0
    %p172 = por %p170, %p171
    %s174 = sadd.s32 %s173, 1
    %p177 = scmp.eq.s32.totalorder %s39, 1
    %p178 = scmp.ne.s32.totalorder %s173, %s175
    %p179 = scmp.eq.s32.totalorder %s39, 0
    %p180 = por %p178, %p179
    %p181 = scmp.ne.s32.totalorder %s173, %s175
    %p182 = scmp.eq.s32.totalorder %s44, 1
    %p183 = por %p181, %p182
    %p184 = scmp.ne.s32.totalorder %s175, %s176
    %p185 = scmp.eq.s32.totalorder %s44, 0
    %p186 = por %p184, %p185
    %p187 = scmp.ne.s32.totalorder %s175, %s176
    %p188 = scmp.eq.s32.totalorder %s45, 1
    %p189 = por %p187, %p188
    %p191 = scmp.ne.s32.totalorder %s176, %s190
    %p192 = scmp.eq.s32.totalorder %s45, 0
    %p193 = por %p191, %p192
    %s194 = ssub.s32 %s39, %s46
    %p195 = scmp.eq.s32.totalorder %s194, 0
    %s197 = sadd.s32 %s196, 1
    %s198 = scalar_select %p195, %s196, %s197
    %p201 = pneg %p195
    %p202 = scmp.eq.s32.totalorder %s39, 1
    %p203 = por %p201, %p202
    %p204 = scmp.ne.s32.totalorder %s196, %s199
    %p205 = scmp.eq.s32.totalorder %s39, 0
    %p206 = por %p204, %p205
    %p207 = scmp.ne.s32.totalorder %s196, %s199
    %p208 = scmp.eq.s32.totalorder %s44, 1
    %p209 = por %p207, %p208
    %p210 = scmp.ne.s32.totalorder %s199, %s200
    %p211 = scmp.eq.s32.totalorder %s44, 0
    %p212 = por %p210, %p211
    %p213 = scmp.ne.s32.totalorder %s199, %s200
    %p214 = scmp.eq.s32.totalorder %s45, 1
    %p215 = por %p213, %p214
    %p217 = scmp.ne.s32.totalorder %s200, %s216
    %p218 = scmp.eq.s32.totalorder %s45, 0
    %p219 = por %p217, %p218
    %s220 = ssub.s32 %s39, %s46
    %p221 = scmp.eq.s32.totalorder %s220, 0
    %s223 = sadd.s32 %s222, 1
    %s224 = scalar_select %p221, %s222, %s223
    %p227 = pneg %p221
    %p228 = scmp.eq.s32.totalorder %s39, 1
    %p229 = por %p227, %p228
    %p230 = scmp.ne.s32.totalorder %s222, %s225
    %p231 = scmp.eq.s32.totalorder %s39, 0
    %p232 = por %p230, %p231
    %p233 = scmp.ne.s32.totalorder %s222, %s225
    %p234 = scmp.eq.s32.totalorder %s44, 1
    %p235 = por %p233, %p234
    %p236 = scmp.ne.s32.totalorder %s225, %s226
    %p237 = scmp.eq.s32.totalorder %s44, 0
    %p238 = por %p236, %p237
    %p239 = scmp.ne.s32.totalorder %s225, %s226
    %p240 = scmp.eq.s32.totalorder %s45, 1
    %p241 = por %p239, %p240
    %p243 = scmp.ne.s32.totalorder %s226, %s242
    %p244 = scmp.eq.s32.totalorder %s45, 0
    %p245 = por %p243, %p244
    %s246 = ssub.s32 %s39, %s46
    %p247 = scmp.eq.s32.totalorder %s246, 0
    %s249 = sadd.s32 %s248, 1
    %s250 = scalar_select %p247, %s248, %s249
    %p253 = pneg %p247
    %p254 = scmp.eq.s32.totalorder %s39, 1
    %p255 = por %p253, %p254
    %p256 = scmp.ne.s32.totalorder %s248, %s251
    %p257 = scmp.eq.s32.totalorder %s39, 0
    %p258 = por %p256, %p257
    %p259 = scmp.ne.s32.totalorder %s248, %s251
    %p260 = scmp.eq.s32.totalorder %s44, 1
    %p261 = por %p259, %p260
    %p262 = scmp.ne.s32.totalorder %s251, %s252
    %p263 = scmp.eq.s32.totalorder %s44, 0
    %p264 = por %p262, %p263
    %p265 = scmp.ne.s32.totalorder %s251, %s252
    %p266 = scmp.eq.s32.totalorder %s45, 1
    %p267 = por %p265, %p266
    %p269 = scmp.ne.s32.totalorder %s252, %s268
    %p270 = scmp.eq.s32.totalorder %s45, 0
    %p271 = por %p269, %p270
    %s272 = ssub.s32 %s39, %s46
    %p273 = scmp.eq.s32.totalorder %s272, 0
    %s275 = sadd.s32 %s274, 1
    %s276 = scalar_select %p273, %s274, %s275
    %p279 = pneg %p273
    %p280 = scmp.eq.s32.totalorder %s39, 1
    %p281 = por %p279, %p280
    %p282 = scmp.ne.s32.totalorder %s274, %s277
    %p283 = scmp.eq.s32.totalorder %s39, 0
    %p284 = por %p282, %p283
    %p285 = scmp.ne.s32.totalorder %s274, %s277
    %p286 = scmp.eq.s32.totalorder %s44, 1
    %p287 = por %p285, %p286
    %p288 = scmp.ne.s32.totalorder %s277, %s278
    %p289 = scmp.eq.s32.totalorder %s44, 0
    %p290 = por %p288, %p289
    %p291 = scmp.ne.s32.totalorder %s277, %s278
    %p292 = scmp.eq.s32.totalorder %s45, 1
    %p293 = por %p291, %p292
    %p295 = scmp.ne.s32.totalorder %s278, %s294
    %p296 = scmp.eq.s32.totalorder %s45, 0
    %p297 = por %p295, %p296
    %s298 = ssub.s32 %s39, %s46
    %p299 = scmp.eq.s32.totalorder %s298, 0
    %s301 = sadd.s32 %s300, 1
    %s302 = scalar_select %p299, %s300, %s301
    %p305 = pneg %p299
    %p306 = scmp.eq.s32.totalorder %s39, 1
    %p307 = por %p305, %p306
    %p308 = scmp.ne.s32.totalorder %s300, %s303
    %p309 = scmp.eq.s32.totalorder %s39, 0
    %p310 = por %p308, %p309
    %p311 = scmp.ne.s32.totalorder %s300, %s303
    %p312 = scmp.eq.s32.totalorder %s44, 1
    %p313 = por %p311, %p312
    %p314 = scmp.ne.s32.totalorder %s303, %s304
    %p315 = scmp.eq.s32.totalorder %s44, 0
    %p316 = por %p314, %p315
    %p317 = scmp.ne.s32.totalorder %s303, %s304
    %p318 = scmp.eq.s32.totalorder %s45, 1
    %p319 = por %p317, %p318
    %p321 = scmp.ne.s32.totalorder %s304, %s320
    %p322 = scmp.eq.s32.totalorder %s45, 0
    %p323 = por %p321, %p322
    %s324 = ssub.s32 %s39, %s46
    %p325 = scmp.eq.s32.totalorder %s324, 0
    %s327 = sadd.s32 %s326, 1
    %s328 = scalar_select %p325, %s326, %s327
    %p331 = pneg %p325
    %p332 = scmp.eq.s32.totalorder %s39, 1
    %p333 = por %p331, %p332
    %p334 = scmp.ne.s32.totalorder %s326, %s329
    %p335 = scmp.eq.s32.totalorder %s39, 0
    %p336 = por %p334, %p335
    %p337 = scmp.ne.s32.totalorder %s326, %s329
    %p338 = scmp.eq.s32.totalorder %s44, 1
    %p339 = por %p337, %p338
    %p340 = scmp.ne.s32.totalorder %s329, %s330
    %p341 = scmp.eq.s32.totalorder %s44, 0
    %p342 = por %p340, %p341
    %p343 = scmp.ne.s32.totalorder %s329, %s330
    %p344 = scmp.eq.s32.totalorder %s45, 1
    %p345 = por %p343, %p344
    %p347 = scmp.ne.s32.totalorder %s330, %s346
    %p348 = scmp.eq.s32.totalorder %s45, 0
    %p349 = por %p347, %p348
    %s350 = ssub.s32 %s39, %s46
    %p351 = scmp.eq.s32.totalorder %s350, 0
    %s353 = sadd.s32 %s352, 1
    %s354 = scalar_select %p351, %s352, %s353
    %p357 = pneg %p351
    %p358 = scmp.eq.s32.totalorder %s39, 1
    %p359 = por %p357, %p358
    %p360 = scmp.ne.s32.totalorder %s352, %s355
    %p361 = scmp.eq.s32.totalorder %s39, 0
    %p362 = por %p360, %p361
    %p363 = scmp.ne.s32.totalorder %s352, %s355
    %p364 = scmp.eq.s32.totalorder %s44, 1
    %p365 = por %p363, %p364
    %p366 = scmp.ne.s32.totalorder %s355, %s356
    %p367 = scmp.eq.s32.totalorder %s44, 0
    %p368 = por %p366, %p367
    %p369 = scmp.ne.s32.totalorder %s355, %s356
    %p370 = scmp.eq.s32.totalorder %s45, 1
    %p371 = por %p369, %p370
    %p373 = scmp.ne.s32.totalorder %s356, %s372
    %p374 = scmp.eq.s32.totalorder %s45, 0
    %p375 = por %p373, %p374
    %s376 = ssub.s32 %s39, %s46
    %p377 = scmp.eq.s32.totalorder %s376, 0
    %s379 = sadd.s32 %s378, 1
    %s380 = scalar_select %p377, %s378, %s379
    %p383 = pneg %p377
    %p384 = scmp.eq.s32.totalorder %s39, 1
    %p385 = por %p383, %p384
    %p386 = scmp.ne.s32.totalorder %s378, %s381
    %p387 = scmp.eq.s32.totalorder %s39, 0
    %p388 = por %p386, %p387
    %p389 = scmp.ne.s32.totalorder %s378, %s381
    %p390 = scmp.eq.s32.totalorder %s44, 1
    %p391 = por %p389, %p390
    %p392 = scmp.ne.s32.totalorder %s381, %s382
    %p393 = scmp.eq.s32.totalorder %s44, 0
    %p394 = por %p392, %p393
    %p395 = scmp.ne.s32.totalorder %s381, %s382
    %p396 = scmp.eq.s32.totalorder %s45, 1
    %p397 = por %p395, %p396
    %p399 = scmp.ne.s32.totalorder %s382, %s398
    %p400 = scmp.eq.s32.totalorder %s45, 0
    %p401 = por %p399, %p400
    %s402 = ssub.s32 %s39, %s46
    %p403 = scmp.eq.s32.totalorder %s402, 0
    %s405 = sadd.s32 %s404, 1
    %s406 = scalar_select %p403, %s404, %s405
    %p409 = pneg %p403
    %p410 = scmp.eq.s32.totalorder %s39, 1
    %p411 = por %p409, %p410
    %p412 = scmp.ne.s32.totalorder %s404, %s407
    %p413 = scmp.eq.s32.totalorder %s39, 0
    %p414 = por %p412, %p413
    %p415 = scmp.ne.s32.totalorder %s404, %s407
    %p416 = scmp.eq.s32.totalorder %s44, 1
    %p417 = por %p415, %p416
    %p418 = scmp.ne.s32.totalorder %s407, %s408
    %p419 = scmp.eq.s32.totalorder %s44, 0
    %p420 = por %p418, %p419
    %p421 = scmp.ne.s32.totalorder %s407, %s408
    %p422 = scmp.eq.s32.totalorder %s45, 1
    %p423 = por %p421, %p422
    %p425 = scmp.ne.s32.totalorder %s408, %s424
    %p426 = scmp.eq.s32.totalorder %s45, 0
    %p427 = por %p425, %p426
    %s428 = ssub.s32 %s39, %s46
    %p429 = scmp.eq.s32.totalorder %s428, 0
    %s431 = sadd.s32 %s430, 1
    %s432 = scalar_select %p429, %s430, %s431
    %p435 = pneg %p429
    %p436 = scmp.eq.s32.totalorder %s39, 1
    %p437 = por %p435, %p436
    %p438 = scmp.ne.s32.totalorder %s430, %s433
    %p439 = scmp.eq.s32.totalorder %s39, 0
    %p440 = por %p438, %p439
    %p441 = scmp.ne.s32.totalorder %s430, %s433
    %p442 = scmp.eq.s32.totalorder %s44, 1
    %p443 = por %p441, %p442
    %p444 = scmp.ne.s32.totalorder %s433, %s434
    %p445 = scmp.eq.s32.totalorder %s44, 0
    %p446 = por %p444, %p445
    %p447 = scmp.ne.s32.totalorder %s433, %s434
    %p448 = scmp.eq.s32.totalorder %s45, 1
    %p449 = por %p447, %p448
    %p451 = scmp.ne.s32.totalorder %s434, %s450
    %p452 = scmp.eq.s32.totalorder %s45, 0
    %p453 = por %p451, %p452
    %s454 = ssub.s32 %s39, %s46
    %p455 = scmp.eq.s32.totalorder %s454, 0
    %s457 = sadd.s32 %s456, 1
    %s458 = scalar_select %p455, %s456, %s457
    %p461 = pneg %p455
    %p462 = scmp.eq.s32.totalorder %s39, 1
    %p463 = por %p461, %p462
    %p464 = scmp.ne.s32.totalorder %s456, %s459
    %p465 = scmp.eq.s32.totalorder %s39, 0
    %p466 = por %p464, %p465
    %p467 = scmp.ne.s32.totalorder %s456, %s459
    %p468 = scmp.eq.s32.totalorder %s44, 1
    %p469 = por %p467, %p468
    %p470 = scmp.ne.s32.totalorder %s459, %s460
    %p471 = scmp.eq.s32.totalorder %s44, 0
    %p472 = por %p470, %p471
    %p473 = scmp.ne.s32.totalorder %s459, %s460
    %p474 = scmp.eq.s32.totalorder %s45, 1
    %p475 = por %p473, %p474
    %p477 = scmp.ne.s32.totalorder %s460, %s476
    %p478 = scmp.eq.s32.totalorder %s45, 0
    %p479 = por %p477, %p478
    %s480 = ssub.s32 %s39, %s46
    %p481 = scmp.eq.s32.totalorder %s480, 0
    %s483 = sadd.s32 %s482, 1
    %s484 = scalar_select %p481, %s482, %s483
    %p487 = pneg %p481
    %p488 = scmp.eq.s32.totalorder %s39, 1
    %p489 = por %p487, %p488
    %p490 = scmp.ne.s32.totalorder %s482, %s485
    %p491 = scmp.eq.s32.totalorder %s39, 0
    %p492 = por %p490, %p491
    %p493 = scmp.ne.s32.totalorder %s482, %s485
    %p494 = scmp.eq.s32.totalorder %s44, 1
    %p495 = por %p493, %p494
    %p496 = scmp.ne.s32.totalorder %s485, %s486
    %p497 = scmp.eq.s32.totalorder %s44, 0
    %p498 = por %p496, %p497
    %p499 = scmp.ne.s32.totalorder %s485, %s486
    %p500 = scmp.eq.s32.totalorder %s45, 1
    %p501 = por %p499, %p500
    %p503 = scmp.ne.s32.totalorder %s486, %s502
    %p504 = scmp.eq.s32.totalorder %s45, 0
    %p505 = por %p503, %p504
    %s507 = sadd.s32 %s506, 1
    %p510 = scmp.eq.s32.totalorder %s39, 1
    %p511 = scmp.ne.s32.totalorder %s506, %s508
    %p512 = scmp.eq.s32.totalorder %s39, 0
    %p513 = por %p511, %p512
    %p514 = scmp.ne.s32.totalorder %s506, %s508
    %p515 = scmp.eq.s32.totalorder %s44, 1
    %p516 = por %p514, %p515
    %p517 = scmp.ne.s32.totalorder %s508, %s509
    %p518 = scmp.eq.s32.totalorder %s44, 0
    %p519 = por %p517, %p518
    %p520 = scmp.ne.s32.totalorder %s508, %s509
    %p521 = scmp.eq.s32.totalorder %s45, 1
    %p522 = por %p520, %p521
    %p524 = scmp.ne.s32.totalorder %s509, %s523
    %p525 = scmp.eq.s32.totalorder %s45, 0
    %p526 = por %p524, %p525
    %s528 = sadd.s32 %s527, 1
    %p531 = scmp.eq.s32.totalorder %s39, 1
    %p532 = scmp.ne.s32.totalorder %s527, %s529
    %p533 = scmp.eq.s32.totalorder %s39, 0
    %p534 = por %p532, %p533
    %p535 = scmp.ne.s32.totalorder %s527, %s529
    %p536 = scmp.eq.s32.totalorder %s44, 1
    %p537 = por %p535, %p536
    %p538 = scmp.ne.s32.totalorder %s529, %s530
    %p539 = scmp.eq.s32.totalorder %s44, 0
    %p540 = por %p538, %p539
    %p541 = scmp.ne.s32.totalorder %s529, %s530
    %p542 = scmp.eq.s32.totalorder %s45, 1
    %p543 = por %p541, %p542
    %p545 = scmp.ne.s32.totalorder %s530, %s544
    %p546 = scmp.eq.s32.totalorder %s45, 0
    %p547 = por %p545, %p546
    %s549 = sadd.s32 %s548, 1
    %p552 = scmp.eq.s32.totalorder %s39, 1
    %p553 = scmp.ne.s32.totalorder %s548, %s550
    %p554 = scmp.eq.s32.totalorder %s39, 0
    %p555 = por %p553, %p554
    %p556 = scmp.ne.s32.totalorder %s548, %s550
    %p557 = scmp.eq.s32.totalorder %s44, 1
    %p558 = por %p556, %p557
    %p559 = scmp.ne.s32.totalorder %s550, %s551
    %p560 = scmp.eq.s32.totalorder %s44, 0
    %p561 = por %p559, %p560
    %p562 = scmp.ne.s32.totalorder %s550, %s551
    %p563 = scmp.eq.s32.totalorder %s45, 1
    %p564 = por %p562, %p563
    %p566 = scmp.ne.s32.totalorder %s551, %s565
    %p567 = scmp.eq.s32.totalorder %s45, 0
    %p568 = por %p566, %p567
    %s570 = sadd.s32 %s569, 1
    %p573 = scmp.eq.s32.totalorder %s39, 1
    %p574 = scmp.ne.s32.totalorder %s569, %s571
    %p575 = scmp.eq.s32.totalorder %s39, 0
    %p576 = por %p574, %p575
    %p577 = scmp.ne.s32.totalorder %s569, %s571
    %p578 = scmp.eq.s32.totalorder %s44, 1
    %p579 = por %p577, %p578
    %p580 = scmp.ne.s32.totalorder %s571, %s572
    %p581 = scmp.eq.s32.totalorder %s44, 0
    %p582 = por %p580, %p581
    %p583 = scmp.ne.s32.totalorder %s571, %s572
    %p584 = scmp.eq.s32.totalorder %s45, 1
    %p585 = por %p583, %p584
    %p587 = scmp.ne.s32.totalorder %s572, %s586
    %p588 = scmp.eq.s32.totalorder %s45, 0
    %p589 = por %p587, %p588
    %s591 = sadd.s32 %s590, 1
    %p594 = scmp.eq.s32.totalorder %s39, 1
    %p595 = scmp.ne.s32.totalorder %s590, %s592
    %p596 = scmp.eq.s32.totalorder %s39, 0
    %p597 = por %p595, %p596
    %p598 = scmp.ne.s32.totalorder %s590, %s592
    %p599 = scmp.eq.s32.totalorder %s44, 1
    %p600 = por %p598, %p599
    %p601 = scmp.ne.s32.totalorder %s592, %s593
    %p602 = scmp.eq.s32.totalorder %s44, 0
    %p603 = por %p601, %p602
    %p604 = scmp.ne.s32.totalorder %s592, %s593
    %p605 = scmp.eq.s32.totalorder %s45, 1
    %p606 = por %p604, %p605
    %p608 = scmp.ne.s32.totalorder %s593, %s607
    %p609 = scmp.eq.s32.totalorder %s45, 0
    %p610 = por %p608, %p609
    %s612 = sadd.s32 %s611, 1
    %p615 = scmp.eq.s32.totalorder %s39, 1
    %p616 = scmp.ne.s32.totalorder %s611, %s613
    %p617 = scmp.eq.s32.totalorder %s39, 0
    %p618 = por %p616, %p617
    %p619 = scmp.ne.s32.totalorder %s611, %s613
    %p620 = scmp.eq.s32.totalorder %s44, 1
    %p621 = por %p619, %p620
    %p622 = scmp.ne.s32.totalorder %s613, %s614
    %p623 = scmp.eq.s32.totalorder %s44, 0
    %p624 = por %p622, %p623
    %p625 = scmp.ne.s32.totalorder %s613, %s614
    %p626 = scmp.eq.s32.totalorder %s45, 1
    %p627 = por %p625, %p626
    %p629 = scmp.ne.s32.totalorder %s614, %s628
    %p630 = scmp.eq.s32.totalorder %s45, 0
    %p631 = por %p629, %p630
    %s633 = sadd.s32 %s632, 1
    %p636 = scmp.eq.s32.totalorder %s39, 1
    %p637 = scmp.ne.s32.totalorder %s632, %s634
    %p638 = scmp.eq.s32.totalorder %s39, 0
    %p639 = por %p637, %p638
    %p640 = scmp.ne.s32.totalorder %s632, %s634
    %p641 = scmp.eq.s32.totalorder %s44, 1
    %p642 = por %p640, %p641
    %p643 = scmp.ne.s32.totalorder %s634, %s635
    %p644 = scmp.eq.s32.totalorder %s44, 0
    %p645 = por %p643, %p644
    %p646 = scmp.ne.s32.totalorder %s634, %s635
    %p647 = scmp.eq.s32.totalorder %s45, 1
    %p648 = por %p646, %p647
    %p650 = scmp.ne.s32.totalorder %s635, %s649
    %p651 = scmp.eq.s32.totalorder %s45, 0
    %p652 = por %p650, %p651
    %s654 = sadd.s32 %s653, 1
    %p657 = scmp.eq.s32.totalorder %s39, 1
    %p658 = scmp.ne.s32.totalorder %s653, %s655
    %p659 = scmp.eq.s32.totalorder %s39, 0
    %p660 = por %p658, %p659
    %p661 = scmp.ne.s32.totalorder %s653, %s655
    %p662 = scmp.eq.s32.totalorder %s44, 1
    %p663 = por %p661, %p662
    %p664 = scmp.ne.s32.totalorder %s655, %s656
    %p665 = scmp.eq.s32.totalorder %s44, 0
    %p666 = por %p664, %p665
    %p667 = scmp.ne.s32.totalorder %s655, %s656
    %p668 = scmp.eq.s32.totalorder %s45, 1
    %p669 = por %p667, %p668
    %p671 = scmp.ne.s32.totalorder %s656, %s670
    %p672 = scmp.eq.s32.totalorder %s45, 0
    %p673 = por %p671, %p672
    %s675 = sadd.s32 %s674, 1
    %p678 = scmp.eq.s32.totalorder %s39, 1
    %p679 = scmp.ne.s32.totalorder %s674, %s676
    %p680 = scmp.eq.s32.totalorder %s39, 0
    %p681 = por %p679, %p680
    %p682 = scmp.ne.s32.totalorder %s674, %s676
    %p683 = scmp.eq.s32.totalorder %s44, 1
    %p684 = por %p682, %p683
    %p685 = scmp.ne.s32.totalorder %s676, %s677
    %p686 = scmp.eq.s32.totalorder %s44, 0
    %p687 = por %p685, %p686
    %p688 = scmp.ne.s32.totalorder %s676, %s677
    %p689 = scmp.eq.s32.totalorder %s45, 1
    %p690 = por %p688, %p689
    %p692 = scmp.ne.s32.totalorder %s677, %s691
    %p693 = scmp.eq.s32.totalorder %s45, 0
    %p694 = por %p692, %p693
    %p695 = scmp.le.s32.totalorder 1, %s39
    %p696 = scmp.lt.s32.totalorder %s39, 3
    %p697 = pnand %p695, %p696
    %p698 = pneg %p697
    // Predicated region
    $region9: #{tpu_custom_call.1} parent=5 // pred_check
      _
    $region10: #{tpu_custom_call.1} parent=5 // pred_check_branch
      %700 = sbr.rel (%p697) target = $region12
    $region11: #{tpu_custom_call.1} parent=5 // pred_region
      %s701 = ssub.s32 %s39, 1
      // Predicated region
      $region13: #{tpu_custom_call.1} parent=11 // pred_check
        %p702 = pneg %p60
      $region14: #{tpu_custom_call.1} parent=11 // pred_check_branch
        %704 = sbr.rel (%p702) target = $region16
      $region15: #{tpu_custom_call.1} parent=11 // pred_region
        _
      $region16: #{tpu_custom_call.1} parent=11 // pred_fallthru
        _
      // Predicated region
      $region17: #{tpu_custom_call.1} parent=11 // pred_check
        %p705 = pneg %p81
      $region18: #{tpu_custom_call.1} parent=11 // pred_check_branch
        %707 = sbr.rel (%p705) target = $region20
      $region19: #{tpu_custom_call.1} parent=11 // pred_region
        _
      $region20: #{tpu_custom_call.1} parent=11 // pred_fallthru
        _
      // Predicated region
      $region21: #{tpu_custom_call.1} parent=11 // pred_check
        %p708 = pneg %p102
      $region22: #{tpu_custom_call.1} parent=11 // pred_check_branch
        %710 = sbr.rel (%p708) target = $region24
      $region23: #{tpu_custom_call.1} parent=11 // pred_region
        _
      $region24: #{tpu_custom_call.1} parent=11 // pred_fallthru
        _
      // Predicated region
      $region25: #{tpu_custom_call.1} parent=11 // pred_check
        %p711 = pneg %p123
      $region26: #{tpu_custom_call.1} parent=11 // pred_check_branch
        %713 = sbr.rel (%p711) target = $region28
      $region27: #{tpu_custom_call.1} parent=11 // pred_region
        _
      $region28: #{tpu_custom_call.1} parent=11 // pred_fallthru
        _
      // Predicated region
      $region29: #{tpu_custom_call.1} parent=11 // pred_check
        %p714 = pneg %p144
      $region30: #{tpu_custom_call.1} parent=11 // pred_check_branch
        %716 = sbr.rel (%p714) target = $region32
      $region31: #{tpu_custom_call.1} parent=11 // pred_region
        _
      $region32: #{tpu_custom_call.1} parent=11 // pred_fallthru
        _
      // Predicated region
      $region33: #{tpu_custom_call.1} parent=11 // pred_check
        %p717 = pneg %p165
      $region34: #{tpu_custom_call.1} parent=11 // pred_check_branch
        %719 = sbr.rel (%p717) target = $region36
      $region35: #{tpu_custom_call.1} parent=11 // pred_region
        _
      $region36: #{tpu_custom_call.1} parent=11 // pred_fallthru
        _
      // Predicated region
      $region37: #{tpu_custom_call.1} parent=11 // pred_check
        %p720 = pneg %p186
      $region38: #{tpu_custom_call.1} parent=11 // pred_check_branch
        %722 = sbr.rel (%p720) target = $region40
      $region39: #{tpu_custom_call.1} parent=11 // pred_region
        _
      $region40: #{tpu_custom_call.1} parent=11 // pred_fallthru
        _
      // Predicated region
      $region41: #{tpu_custom_call.1} parent=11 // pred_check
        %p723 = pneg %p519
      $region42: #{tpu_custom_call.1} parent=11 // pred_check_branch
        %725 = sbr.rel (%p723) target = $region44
      $region43: #{tpu_custom_call.1} parent=11 // pred_region
        _
      $region44: #{tpu_custom_call.1} parent=11 // pred_fallthru
        _
      // Predicated region
      $region45: #{tpu_custom_call.1} parent=11 // pred_check
        %p726 = pneg %p540
      $region46: #{tpu_custom_call.1} parent=11 // pred_check_branch
        %728 = sbr.rel (%p726) target = $region48
      $region47: #{tpu_custom_call.1} parent=11 // pred_region
        _
      $region48: #{tpu_custom_call.1} parent=11 // pred_fallthru
        _
      // Predicated region
      $region49: #{tpu_custom_call.1} parent=11 // pred_check
        %p729 = pneg %p561
      $region50: #{tpu_custom_call.1} parent=11 // pred_check_branch
        %731 = sbr.rel (%p729) target = $region52
      $region51: #{tpu_custom_call.1} parent=11 // pred_region
        _
      $region52: #{tpu_custom_call.1} parent=11 // pred_fallthru
        _
      // Predicated region
      $region53: #{tpu_custom_call.1} parent=11 // pred_check
        %p732 = pneg %p582
      $region54: #{tpu_custom_call.1} parent=11 // pred_check_branch
        %734 = sbr.rel (%p732) target = $region56
      $region55: #{tpu_custom_call.1} parent=11 // pred_region
        _
      $region56: #{tpu_custom_call.1} parent=11 // pred_fallthru
        _
      // Predicated region
      $region57: #{tpu_custom_call.1} parent=11 // pred_check
        %p735 = pneg %p603
      $region58: #{tpu_custom_call.1} parent=11 // pred_check_branch
        %737 = sbr.rel (%p735) target = $region60
      $region59: #{tpu_custom_call.1} parent=11 // pred_region
        _
      $region60: #{tpu_custom_call.1} parent=11 // pred_fallthru
        _
      // Predicated region
      $region61: #{tpu_custom_call.1} parent=11 // pred_check
        %p738 = pneg %p624
      $region62: #{tpu_custom_call.1} parent=11 // pred_check_branch
        %740 = sbr.rel (%p738) target = $region64
      $region63: #{tpu_custom_call.1} parent=11 // pred_region
        _
      $region64: #{tpu_custom_call.1} parent=11 // pred_fallthru
        _
      // Predicated region
      $region65: #{tpu_custom_call.1} parent=11 // pred_check
        %p741 = pneg %p645
      $region66: #{tpu_custom_call.1} parent=11 // pred_check_branch
        %743 = sbr.rel (%p741) target = $region68
      $region67: #{tpu_custom_call.1} parent=11 // pred_region
        _
      $region68: #{tpu_custom_call.1} parent=11 // pred_fallthru
        _
      // Predicated region
      $region69: #{tpu_custom_call.1} parent=11 // pred_check
        %p744 = pneg %p666
      $region70: #{tpu_custom_call.1} parent=11 // pred_check_branch
        %746 = sbr.rel (%p744) target = $region72
      $region71: #{tpu_custom_call.1} parent=11 // pred_region
        _
      $region72: #{tpu_custom_call.1} parent=11 // pred_fallthru
        _
    $region12: #{tpu_custom_call.1} parent=5 // pred_fallthru
      _
    %p747 = scmp.lt.s32.totalorder %s39, 2
    // Predicated region
    $region73: #{tpu_custom_call.1} parent=5 // pred_check
      %p748 = pneg %p747
    $region74: #{tpu_custom_call.1} parent=5 // pred_check_branch
      %750 = sbr.rel (%p748) target = $region76
    $region75: #{tpu_custom_call.1} parent=5 // pred_region
      // Predicated region
      $region77: #{tpu_custom_call.1} parent=75 // pred_check
        %p751 = pneg %p206
      $region78: #{tpu_custom_call.1} parent=75 // pred_check_branch
        %753 = sbr.rel (%p751) target = $region80
      $region79: #{tpu_custom_call.1} parent=75 // pred_region
        %p754 = scmp.lt.s32.totalorder %s39, 1
        %s755 = scalar_select %p754, %s39, 1
        %s756 = scalar_lea.vmem %s7, %s755
      $region80: #{tpu_custom_call.1} parent=75 // pred_fallthru
        _
      // Predicated region
      $region81: #{tpu_custom_call.1} parent=75 // pred_check
        %p757 = pneg %p232
      $region82: #{tpu_custom_call.1} parent=75 // pred_check_branch
        %759 = sbr.rel (%p757) target = $region84
      $region83: #{tpu_custom_call.1} parent=75 // pred_region
        %p760 = scmp.lt.s32.totalorder %s39, 1
        %s761 = scalar_select %p760, %s39, 1
        %s762 = scalar_lea.vmem %s8, %s761
      $region84: #{tpu_custom_call.1} parent=75 // pred_fallthru
        _
      // Predicated region
      $region85: #{tpu_custom_call.1} parent=75 // pred_check
        %p763 = pneg %p258
      $region86: #{tpu_custom_call.1} parent=75 // pred_check_branch
        %765 = sbr.rel (%p763) target = $region88
      $region87: #{tpu_custom_call.1} parent=75 // pred_region
        %p766 = scmp.lt.s32.totalorder %s39, 1
        %s767 = scalar_select %p766, %s39, 1
        %s768 = smul.addr %s767, 4
        %s769 = smul.addr %s768, 4
        %s770 = scalar_lea.vmem %s9, %s769
      $region88: #{tpu_custom_call.1} parent=75 // pred_fallthru
        _
      // Predicated region
      $region89: #{tpu_custom_call.1} parent=75 // pred_check
        %p771 = pneg %p284
      $region90: #{tpu_custom_call.1} parent=75 // pred_check_branch
        %773 = sbr.rel (%p771) target = $region92
      $region91: #{tpu_custom_call.1} parent=75 // pred_region
        %p774 = scmp.lt.s32.totalorder %s39, 1
        %s775 = scalar_select %p774, %s39, 1
        %s776 = scalar_lea.vmem %s10, %s775
      $region92: #{tpu_custom_call.1} parent=75 // pred_fallthru
        _
      // Predicated region
      $region93: #{tpu_custom_call.1} parent=75 // pred_check
        %p777 = pneg %p310
      $region94: #{tpu_custom_call.1} parent=75 // pred_check_branch
        %779 = sbr.rel (%p777) target = $region96
      $region95: #{tpu_custom_call.1} parent=75 // pred_region
        %p780 = scmp.lt.s32.totalorder %s39, 1
        %s781 = scalar_select %p780, %s39, 1
        %s782 = smul.addr %s781, 4
        %s783 = smul.addr %s782, 4
        %s784 = scalar_lea.vmem %s11, %s783
      $region96: #{tpu_custom_call.1} parent=75 // pred_fallthru
        _
      // Predicated region
      $region97: #{tpu_custom_call.1} parent=75 // pred_check
        %p785 = pneg %p336
      $region98: #{tpu_custom_call.1} parent=75 // pred_check_branch
        %787 = sbr.rel (%p785) target = $region100
      $region99: #{tpu_custom_call.1} parent=75 // pred_region
        %p788 = scmp.lt.s32.totalorder %s39, 1
        %s789 = scalar_select %p788, %s39, 1
        %s790 = scalar_lea.vmem %s12, %s789
      $region100: #{tpu_custom_call.1} parent=75 // pred_fallthru
        _
      // Predicated region
      $region101: #{tpu_custom_call.1} parent=75 // pred_check
        %p791 = pneg %p362
      $region102: #{tpu_custom_call.1} parent=75 // pred_check_branch
        %793 = sbr.rel (%p791) target = $region104
      $region103: #{tpu_custom_call.1} parent=75 // pred_region
        %p794 = scmp.lt.s32.totalorder %s39, 1
        %s795 = scalar_select %p794, %s39, 1
        %s796 = scalar_lea.vmem %s13, %s795
      $region104: #{tpu_custom_call.1} parent=75 // pred_fallthru
        _
      // Predicated region
      $region105: #{tpu_custom_call.1} parent=75 // pred_check
        %p797 = pneg %p388
      $region106: #{tpu_custom_call.1} parent=75 // pred_check_branch
        %799 = sbr.rel (%p797) target = $region108
      $region107: #{tpu_custom_call.1} parent=75 // pred_region
        %p800 = scmp.lt.s32.totalorder %s39, 1
        %s801 = scalar_select %p800, %s39, 1
        %s802 = scalar_lea.vmem %s14, %s801
      $region108: #{tpu_custom_call.1} parent=75 // pred_fallthru
        _
      // Predicated region
      $region109: #{tpu_custom_call.1} parent=75 // pred_check
        %p803 = pneg %p414
      $region110: #{tpu_custom_call.1} parent=75 // pred_check_branch
        %805 = sbr.rel (%p803) target = $region112
      $region111: #{tpu_custom_call.1} parent=75 // pred_region
        %p806 = scmp.lt.s32.totalorder %s39, 1
        %s807 = scalar_select %p806, %s39, 1
        %s808 = smul.addr %s807, 4
        %s809 = smul.addr %s808, 4
        %s810 = scalar_lea.vmem %s15, %s809
      $region112: #{tpu_custom_call.1} parent=75 // pred_fallthru
        _
      // Predicated region
      $region113: #{tpu_custom_call.1} parent=75 // pred_check
        %p811 = pneg %p440
      $region114: #{tpu_custom_call.1} parent=75 // pred_check_branch
        %813 = sbr.rel (%p811) target = $region116
      $region115: #{tpu_custom_call.1} parent=75 // pred_region
        %p814 = scmp.lt.s32.totalorder %s39, 1
        %s815 = scalar_select %p814, %s39, 1
        %s816 = scalar_lea.vmem %s16, %s815
      $region116: #{tpu_custom_call.1} parent=75 // pred_fallthru
        _
      // Predicated region
      $region117: #{tpu_custom_call.1} parent=75 // pred_check
        %p817 = pneg %p466
      $region118: #{tpu_custom_call.1} parent=75 // pred_check_branch
        %819 = sbr.rel (%p817) target = $region120
      $region119: #{tpu_custom_call.1} parent=75 // pred_region
        %p820 = scmp.lt.s32.totalorder %s39, 1
        %s821 = scalar_select %p820, %s39, 1
        %s822 = smul.addr %s821, 16
        %s823 = smul.addr %s822, 4
        %s824 = scalar_lea.vmem %s17, %s823
      $region120: #{tpu_custom_call.1} parent=75 // pred_fallthru
        _
      // Predicated region
      $region121: #{tpu_custom_call.1} parent=75 // pred_check
        %p825 = pneg %p492
      $region122: #{tpu_custom_call.1} parent=75 // pred_check_branch
        %827 = sbr.rel (%p825) target = $region124
      $region123: #{tpu_custom_call.1} parent=75 // pred_region
        %p828 = scmp.lt.s32.totalorder %s39, 1
        %s829 = scalar_select %p828, %s39, 1
        %s830 = scalar_lea.vmem %s18, %s829
      $region124: #{tpu_custom_call.1} parent=75 // pred_fallthru
        _
    $region76: #{tpu_custom_call.1} parent=5 // pred_fallthru
      _
    %p831 = scmp.le.s32.totalorder 1, %s39
    %p832 = scmp.lt.s32.totalorder %s39, 3
    %p833 = pnand %p831, %p832
    %p834 = pneg %p833
    // Predicated region
    $region125: #{tpu_custom_call.1} parent=5 // pred_check
      _
    $region126: #{tpu_custom_call.1} parent=5 // pred_check_branch
      %836 = sbr.rel (%p833) target = $region128
    $region127: #{tpu_custom_call.1} parent=5 // pred_region
      %s837 = ssub.s32 %s39, 1
      %p838 = pneg %p60
      %p839 = pneg %p57
      %p840 = pneg %p81
      %p841 = pneg %p78
      %p842 = pneg %p102
      %p843 = pneg %p99
      %p844 = pneg %p123
      %p845 = pneg %p120
      %p846 = pneg %p144
      %p847 = pneg %p141
      %p848 = pneg %p165
      %p849 = pneg %p162
      %p850 = pneg %p186
      %p851 = pneg %p183
      %p852 = scmp.lt.s32.totalorder %s44, 1
      %s853 = scalar_select %p852, %s44, 1
      %s854 = scalar_lea.vmem %s7, %s853
      %p855 = pneg %p212
      %p856 = pneg %p209
      %p857 = scmp.lt.s32.totalorder %s44, 1
      %s858 = scalar_select %p857, %s44, 1
      %s859 = scalar_lea.vmem %s8, %s858
      %p860 = pneg %p238
      %p861 = pneg %p235
      %p862 = scmp.lt.s32.totalorder %s44, 1
      %s863 = scalar_select %p862, %s44, 1
      %s864 = smul.addr %s863, 4
      %s865 = smul.addr %s864, 4
      %s866 = scalar_lea.vmem %s9, %s865
      %p867 = pneg %p264
      %p868 = pneg %p261
      %p869 = scmp.lt.s32.totalorder %s44, 1
      %s870 = scalar_select %p869, %s44, 1
      %s871 = scalar_lea.vmem %s10, %s870
      %p872 = pneg %p290
      %p873 = pneg %p287
      %p874 = scmp.lt.s32.totalorder %s44, 1
      %s875 = scalar_select %p874, %s44, 1
      %s876 = smul.addr %s875, 4
      %s877 = smul.addr %s876, 4
      %s878 = scalar_lea.vmem %s11, %s877
      %p879 = pneg %p316
      %p880 = pneg %p313
      %p881 = scmp.lt.s32.totalorder %s44, 1
      %s882 = scalar_select %p881, %s44, 1
      %s883 = scalar_lea.vmem %s12, %s882
      %p884 = pneg %p342
      %p885 = pneg %p339
      %p886 = scmp.lt.s32.totalorder %s44, 1
      %s887 = scalar_select %p886, %s44, 1
      %s888 = scalar_lea.vmem %s13, %s887
      %p889 = pneg %p368
      %p890 = pneg %p365
      %p891 = scmp.lt.s32.totalorder %s44, 1
      %s892 = scalar_select %p891, %s44, 1
      %s893 = scalar_lea.vmem %s14, %s892
      %p894 = pneg %p394
      %p895 = pneg %p391
      %p896 = scmp.lt.s32.totalorder %s44, 1
      %s897 = scalar_select %p896, %s44, 1
      %s898 = smul.addr %s897, 4
      %s899 = smul.addr %s898, 4
      %s900 = scalar_lea.vmem %s15, %s899
      %p901 = pneg %p420
      %p902 = pneg %p417
      %p903 = scmp.lt.s32.totalorder %s44, 1
      %s904 = scalar_select %p903, %s44, 1
      %s905 = scalar_lea.vmem %s16, %s904
      %p906 = pneg %p446
      %p907 = pneg %p443
      %p908 = scmp.lt.s32.totalorder %s44, 1
      %s909 = scalar_select %p908, %s44, 1
      %s910 = smul.addr %s909, 16
      %s911 = smul.addr %s910, 4
      %s912 = scalar_lea.vmem %s17, %s911
      %p913 = pneg %p472
      %p914 = pneg %p469
      %p915 = scmp.lt.s32.totalorder %s44, 1
      %s916 = scalar_select %p915, %s44, 1
      %s917 = scalar_lea.vmem %s18, %s916
      %p918 = pneg %p498
      %p919 = pneg %p495
      %p920 = pneg %p519
      %p921 = pneg %p516
      %p922 = pneg %p540
      %p923 = pneg %p537
      %p924 = pneg %p561
      %p925 = pneg %p558
      %p926 = pneg %p582
      %p927 = pneg %p579
      %p928 = pneg %p603
      %p929 = pneg %p600
      %p930 = pneg %p624
      %p931 = pneg %p621
      %p932 = pneg %p645
      %p933 = pneg %p642
      %p934 = pneg %p666
      %p935 = pneg %p663
      %p936 = pneg %p687
      %p937 = pneg %p684
      %p938 = scmp.lt.s32.totalorder %s44, 1
      %s939 = scalar_select %p938, %s44, 1
      %s940 = scalar_lea.vmem %s7, %s939
      %p941 = scmp.lt.s32.totalorder %s44, 1
      %s942 = scalar_select %p941, %s44, 1
      %s943 = scalar_lea.vmem %s8, %s942
      %p944 = scmp.lt.s32.totalorder %s44, 1
      %s945 = scalar_select %p944, %s44, 1
      %s946 = smul.addr %s945, 4
      %s947 = smul.addr %s946, 4
      %s948 = scalar_lea.vmem %s9, %s947
      %p949 = scmp.lt.s32.totalorder %s44, 1
      %s950 = scalar_select %p949, %s44, 1
      %s951 = scalar_lea.vmem %s10, %s950
      %p952 = scmp.lt.s32.totalorder %s44, 1
      %s953 = scalar_select %p952, %s44, 1
      %s954 = smul.addr %s953, 4
      %s955 = smul.addr %s954, 4
      %s956 = scalar_lea.vmem %s11, %s955
      %p957 = scmp.lt.s32.totalorder %s44, 1
      %s958 = scalar_select %p957, %s44, 1
      %s959 = scalar_lea.vmem %s12, %s958
      %p960 = scmp.lt.s32.totalorder %s44, 1
      %s961 = scalar_select %p960, %s44, 1
      %s962 = scalar_lea.vmem %s13, %s961
      %p963 = scmp.lt.s32.totalorder %s44, 1
      %s964 = scalar_select %p963, %s44, 1
      %s965 = scalar_lea.vmem %s14, %s964
      %p966 = scmp.lt.s32.totalorder %s44, 1
      %s967 = scalar_select %p966, %s44, 1
      %s968 = smul.addr %s967, 4
      %s969 = smul.addr %s968, 4
      %s970 = scalar_lea.vmem %s15, %s969
      %p971 = scmp.lt.s32.totalorder %s44, 1
      %s972 = scalar_select %p971, %s44, 1
      %s973 = scalar_lea.vmem %s16, %s972
      %p974 = scmp.lt.s32.totalorder %s44, 1
      %s975 = scalar_select %p974, %s44, 1
      %s976 = smul.addr %s975, 16
      %s977 = smul.addr %s976, 4
      %s978 = scalar_lea.vmem %s17, %s977
      %p979 = scmp.lt.s32.totalorder %s44, 1
      %s980 = scalar_select %p979, %s44, 1
      %s981 = scalar_lea.vmem %s18, %s980
      %p983 = scmp.eq.s32.totalorder %s44, 0
      // Predicated region
      $region129: #{tpu_custom_call.1} parent=127 // pred_check
        %p984 = pneg %p983
      $region130: #{tpu_custom_call.1} parent=127 // pred_check_branch
        %986 = sbr.rel (%p984) target = $region132
      $region131: #{tpu_custom_call.1} parent=127 // pred_region
        %v987 = vld [vmem:[%s0] sm:$0xff]
        %v988 = vld [vmem:[%s0 + $0x8] sm:$0xff]
        %v989 = vsub.f32 %v987, %v987
        %v990 = vsub.f32 %v988, %v988
        %v991 = vmul.f32 %v989, 316.22775
        %v992 = vmul.f32 %v990, 316.22775
        %v993 = vld [vmem:[#allocation3] sm:$0x1]
        %v995 = vlaneseq
        %v996 = vshrl.u32 %v995, 7
        %v997 = vsub.s32 0, %v996
        %v998 = vrot.slane %v993, %v997
        %v1000 = vmul.f32 %v991, %v998
        %v1001 = vmul.f32 %v992, %v998
        %v1002 = vld [vmem:[#allocation4] sm:$0x1]
        %v1004 = vlaneseq
        %v1005 = vshrl.u32 %v1004, 7
        %v1006 = vsub.s32 0, %v1005
        %v1007 = vrot.slane %v1002, %v1006
        %v1009 = vadd.f32 %v1000, %v1007
        %v1010 = vadd.f32 %v1001, %v1007
        %v1011 = vld [vmem:[%s3] sm:$0x1]
        %1013 = vset.pattern.permute.xlu0 0
        %1014 = vperm.xlu0 %1013, %v1009
        %v1015 = vpop.permute.xlu0 %1014
        %1018 = vset.pattern.permute.xlu0 0
        %1019 = vperm.xlu0 %1018, %v1010
        %v1020 = vpop.permute.xlu0 %1019
        %v1023 = vlaneseq
        %v1024 = vshrl.u32 %v1023, 7
        %v1025 = vsub.s32 0, %v1024
        %v1026 = vrot.slane %v1011, %v1025
        %v1028 = vmul.f32 %v1015, %v1026
        %v1029 = vmul.f32 %v1020, %v1026
        %v1030 = vld [vmem:[%s4] sm:$0x1]
        %v1032 = vlaneseq
        %v1033 = vshrl.u32 %v1032, 7
        %v1034 = vsub.s32 0, %v1033
        %v1035 = vrot.slane %v1030, %v1034
        %v1037 = vadd.f32 %v1028, %v1035
        %v1038 = vadd.f32 %v1029, %v1035
        %v1039 = vld [vmem:[%s5] sm:$0x1]
        %v1040 = vld [vmem:[%s6] sm:$0x1]
        %vm1041 = vcmask 261120
        %v1042 = vsel %vm1041, %v1037, 0.0
        %1043 = vadd.xlane.f32.xlu0 %v1042
        %v1044 = vpop.xlane.xlu0 %1043
        %v1045 = vsel %vm1041, %v1038, 0.0
        %1046 = vadd.xlane.f32.xlu0 %v1045
        %v1047 = vpop.xlane.xlu0 %1046
        %v1048 = vrcp.pop 32.0
        %v1049 = vmul.f32 %v1044, %v1048
        %v1050 = vmul.f32 %v1047, %v1048
        %v1051 = vsub.f32 %v1037, %v1049
        %v1052 = vsub.f32 %v1038, %v1050
        %v1053 = vmul.f32 %v1051, %v1051
        %v1054 = vmul.f32 %v1052, %v1052
        %v1055 = vsel %vm1041, %v1053, 0.0
        %1056 = vadd.xlane.f32.xlu0 %v1055
        %v1057 = vpop.xlane.xlu0 %1056
        %v1058 = vsel %vm1041, %v1054, 0.0
        %1059 = vadd.xlane.f32.xlu0 %v1058
        %v1060 = vpop.xlane.xlu0 %1059
        %v1061 = vmul.f32 %v1057, %v1048
        %v1062 = vmul.f32 %v1060, %v1048
        %v1063 = vadd.f32 %v1061, 1e-05
        %v1064 = vadd.f32 %v1062, 1e-05
        %v1065 = vrsqrt.pop %v1063
        %v1066 = vrsqrt.pop %v1064
        %v1067 = vmul.f32 %v1051, %v1065
        %v1068 = vmul.f32 %v1052, %v1066
        %v1070 = vlaneseq
        %v1071 = vshrl.u32 %v1070, 7
        %v1072 = vsub.s32 0, %v1071
        %v1073 = vrot.slane %v1039, %v1072
        %v1075 = vmul.f32 %v1067, %v1073
        %v1076 = vmul.f32 %v1068, %v1073
        %v1078 = vlaneseq
        %v1079 = vshrl.u32 %v1078, 7
        %v1080 = vsub.s32 0, %v1079
        %v1081 = vrot.slane %v1040, %v1080
        %v1083 = vadd.f32 %v1075, %v1081
        %v1084 = vadd.f32 %v1076, %v1081
        %v1085 = vmul.f32 %v1083, 0.5
        %v1086 = vmul.f32 %v1084, 0.5
        %v1087 = vmul.f32 %v1083, 0.70710677
        %v1088 = vmul.f32 %v1084, 0.70710677
        %vm1089 = vcmp.lt.f32.partialorder %v1087, 0.0
        %vm1090 = vcmp.lt.f32.partialorder %v1088, 0.0
        %v1091 = vsel %vm1089, -1.0, 1.0
        %v1092 = vsel %vm1090, -1.0, 1.0
        %v1093 = vand.u32 2147483647, %v1087
        %v1094 = vand.u32 2147483647, %v1088
        %v1095 = vmul.f32 %v1093, 0.3275911
        %v1096 = vmul.f32 %v1094, 0.3275911
        %v1097 = vadd.f32 %v1095, 1.0
        %v1098 = vadd.f32 %v1096, 1.0
        %v1099 = vrcp.pop %v1097
        %v1100 = vmul.f32 1.0, %v1099
        %v1101 = vrcp.pop %v1098
        %v1102 = vmul.f32 1.0, %v1101
        %v1103 = vmul.f32 %v1100, 1.0614054
        %v1104 = vmul.f32 %v1102, 1.0614054
        %v1105 = vadd.f32 %v1103, -1.4531521
        %v1106 = vadd.f32 %v1104, -1.4531521
        %v1107 = vmul.f32 %v1105, %v1100
        %v1108 = vmul.f32 %v1106, %v1102
        %v1109 = vadd.f32 %v1107, 1.4214138
        %v1110 = vadd.f32 %v1108, 1.4214138
        %v1111 = vmul.f32 %v1109, %v1100
        %v1112 = vmul.f32 %v1110, %v1102
        %v1113 = vadd.f32 %v1111, -0.28449672
        %v1114 = vadd.f32 %v1112, -0.28449672
        %v1115 = vmul.f32 %v1113, %v1100
        %v1116 = vmul.f32 %v1114, %v1102
        %v1117 = vadd.f32 %v1115, 0.2548296
        %v1118 = vadd.f32 %v1116, 0.2548296
        %v1119 = vmul.f32 %v1117, %v1100
        %v1120 = vmul.f32 %v1118, %v1102
        %v1121 = vsub.f32 0.0, %v1093
        %v1122 = vsub.f32 0.0, %v1094
        %v1123 = vmul.f32 %v1121, %v1093
        %v1124 = vmul.f32 %v1122, %v1094
        %v1125 = vmul.f32 %v1123, 1.442695
        %v1126 = vpow.pop %v1125
        %v1127 = vmul.f32 %v1124, 1.442695
        %v1128 = vpow.pop %v1127
        %v1129 = vmul.f32 %v1119, %v1126
        %v1130 = vmul.f32 %v1120, %v1128
        %v1131 = vsub.f32 1.0, %v1129
        %v1132 = vsub.f32 1.0, %v1130
        %v1133 = vmul.f32 %v1091, %v1131
        %v1134 = vmul.f32 %v1092, %v1132
        %v1135 = vadd.f32 %v1133, 1.0
        %v1136 = vadd.f32 %v1134, 1.0
        %v1137 = vmul.f32 %v1085, %v1135
        %v1138 = vmul.f32 %v1086, %v1136
        %1139 = vst.msk [vmem:[#allocation2] sm:$0xff] %vm1041, %v1137
        %1140 = vst.msk [vmem:[#allocation2 + $0x8] sm:$0xff] %vm1041, %v1138
      $region132: #{tpu_custom_call.1} parent=127 // pred_fallthru
        _
      %v1141 = vld [vmem:[#allocation2] sm:$0xff]
      %v1142 = vld [vmem:[#allocation2 + $0x8] sm:$0xff]
      %v1143 = vld [vmem:[%s940] sm:$0x1]
      %v1144 = vld [vmem:[%s943] sm:$0x1]
      %vm1145 = vcmask 261120
      %v1146 = vsel %vm1145, %v1141, 0.0
      %1147 = vadd.xlane.f32.xlu0 %v1146
      %v1148 = vpop.xlane.xlu0 %1147
      %v1149 = vsel %vm1145, %v1142, 0.0
      %1150 = vadd.xlane.f32.xlu0 %v1149
      %v1151 = vpop.xlane.xlu0 %1150
      %v1152 = vrcp.pop 32.0
      %v1153 = vmul.f32 %v1148, %v1152
      %v1154 = vmul.f32 %v1151, %v1152
      %v1155 = vsub.f32 %v1141, %v1153
      %v1156 = vsub.f32 %v1142, %v1154
      %v1157 = vmul.f32 %v1155, %v1155
      %v1158 = vmul.f32 %v1156, %v1156
      %v1159 = vsel %vm1145, %v1157, 0.0
      %1160 = vadd.xlane.f32.xlu0 %v1159
      %v1161 = vpop.xlane.xlu0 %1160
      %v1162 = vsel %vm1145, %v1158, 0.0
      %1163 = vadd.xlane.f32.xlu0 %v1162
      %v1164 = vpop.xlane.xlu0 %1163
      %v1165 = vmul.f32 %v1161, %v1152
      %v1166 = vmul.f32 %v1164, %v1152
      %v1167 = vadd.f32 %v1165, 1e-05
      %v1168 = vadd.f32 %v1166, 1e-05
      %v1169 = vrsqrt.pop %v1167
      %v1170 = vrsqrt.pop %v1168
      %v1171 = vmul.f32 %v1155, %v1169
      %v1172 = vmul.f32 %v1156, %v1170
      %v1174 = vlaneseq
      %v1175 = vshrl.u32 %v1174, 7
      %v1176 = vsub.s32 0, %v1175
      %v1177 = vrot.slane %v1143, %v1176
      %v1179 = vmul.f32 %v1171, %v1177
      %v1180 = vmul.f32 %v1172, %v1177
      %v1182 = vlaneseq
      %v1183 = vshrl.u32 %v1182, 7
      %v1184 = vsub.s32 0, %v1183
      %v1185 = vrot.slane %v1144, %v1184
      %v1187 = vadd.f32 %v1179, %v1185
      %v1188 = vadd.f32 %v1180, %v1185
      %v1189 = vpack.c.bf16 %v1188, %v1187
      %v1190 = vld [vmem:[%s948] sm:$0xf]
      %v1191 = vld [vmem:[%s948 + $0x4] sm:$0xf]
      %v1192 = vld [vmem:[%s948 + $0x8] sm:$0xf]
      %v1193 = vld [vmem:[%s948 + $0xc] sm:$0xf]
      %v1194 = vld [vmem:[%s951] sm:$0x1]
      %v1196 = vlaneseq
      %v1197 = vshrl.u32 %v1196, 7
      %v1198 = vsub.s32 0, %v1197
      %v1199 = vrot.slane %v1194, %v1198
      %v1205 = vunpack.c.l.b16 %v1190
      %v1206 = vunpack.c.l.b16 %v1191
      %v1207 = vunpack.c.l.b16 %v1192
      %v1208 = vunpack.c.l.b16 %v1193
      %v1209 = vpack.c.b16 %v1206, %v1205
      %v1210 = vpack.c.b16 %v1208, %v1207
      %v1214 = vsel %vm1145, %v1189, 0
      %1216 = vmatprep.subr.bf16.mxu0 0
      %1217 = vmatpush1.bf16.msra.mxu0 %v1209
      %1218 = vmatprep.subr.bf16.mxu0 0
      %1219 = vmatpush1.bf16.msra.mxu0 %v1210
      %1220 = vmatprep.subr.bf16.mxu0 0
      %1221 = vmatpush1.bf16.msra.mxu0 0
      %1222 = vmatprep.subr.bf16.mxu0 0
      %1223 = vmatpush1.bf16.msra.mxu0 0
      %1224 = vmatprep.subr.bf16.mxu0 0
      %1225 = vmatpush1.bf16.msra.mxu0 0
      %1226 = vmatprep.subr.bf16.mxu0 0
      %1227 = vmatpush1.bf16.msra.mxu0 0
      %1228 = vmatprep.subr.bf16.mxu0 0
      %1229 = vmatpush1.bf16.msra.mxu0 0
      %1230 = vmatprep.subr.bf16.mxu0 0
      %1231 = vmatpush1.bf16.msra.mxu0 0
      %1232 = vmatprep.subr.bf16.mxu0 0
      %1233 = vmatpush1.bf16.msra.mxu0 0
      %1234 = vmatprep.subr.bf16.mxu0 0
      %1235 = vmatpush1.bf16.msra.mxu0 0
      %1236 = vmatprep.subr.bf16.mxu0 0
      %1237 = vmatpush1.bf16.msra.mxu0 0
      %1238 = vmatprep.subr.bf16.mxu0 0
      %1239 = vmatpush1.bf16.msra.mxu0 0
      %1240 = vmatprep.subr.bf16.mxu0 0
      %1241 = vmatpush1.bf16.msra.mxu0 0
      %1242 = vmatprep.subr.bf16.mxu0 0
      %1243 = vmatpush1.bf16.msra.mxu0 0
      %1244 = vmatprep.subr.bf16.mxu0 0
      %1245 = vmatpush1.bf16.msra.mxu0 0
      %1246 = vmatprep.subr.bf16.mxu0 0
      %1247 = vmatpush1.bf16.msra.mxu0 0
      %1248 = vmatprep.mubr.bf16.mxu0 0
      %1249 = vmatmul.mubr.bf16.gmra.mrb[0].mxu0 %v1214
      %v1250 = vpop.f32.mrb[0].mxu0
      %v1251 = vadd.f32 %v1199, %v1250
      %v1252 = vpop.f32.mrb[0].mxu0
      %v1253 = vpop.f32.mrb[0].mxu0
      %v1254 = vadd.f32 %v1199, %v1253
      %v1255 = vpop.f32.mrb[0].mxu0
      %1256 = vdwg.mxu0
      %v1257 = vpack.c.bf16 %v1254, %v1251
      %v1259 = vcombine.high %v1257, %v1257
      %v1261 = vunpack.c.l.s4 1966171168
      %v1262 = vunpack.c.0.s8 %v1261
      %v1263 = vlaneseq
      %v1264 = vshrl.u32 %v1263, 7
      %v1265 = vsub.s32 %v1262, %v1264
      %v1266 = vrot.slane %v1257, %v1265
      %v1268 = vunpack.c.l.s4 1966171168
      %v1269 = vunpack.c.0.s8 %v1268
      %v1270 = vlaneseq
      %v1271 = vshrl.u32 %v1270, 7
      %v1272 = vsub.s32 %v1269, %v1271
      %v1273 = vrot.slane %v1259, %v1272
      %v1274 = vcombine.high %v1266, %v1266
      %v1275 = vcombine.high %v1273, %v1273
      %v1277 = vunpack.c.l.s4 1966171168
      %v1278 = vunpack.c.0.s8 %v1277
      %v1279 = vlaneseq
      %v1280 = vshrl.u32 %v1279, 7
      %v1281 = vsub.s32 %v1278, %v1280
      %v1282 = vrot.slane %v1266, %v1281
      %v1284 = vunpack.c.l.s4 1966171168
      %v1285 = vunpack.c.0.s8 %v1284
      %v1286 = vlaneseq
      %v1287 = vshrl.u32 %v1286, 7
      %v1288 = vsub.s32 %v1285, %v1287
      %v1289 = vrot.slane %v1273, %v1288
      %v1291 = vunpack.c.l.s4 1966171168
      %v1292 = vunpack.c.0.s8 %v1291
      %v1293 = vlaneseq
      %v1294 = vshrl.u32 %v1293, 7
      %v1295 = vsub.s32 %v1292, %v1294
      %v1296 = vrot.slane %v1274, %v1295
      %v1298 = vunpack.c.l.s4 1966171168
      %v1299 = vunpack.c.0.s8 %v1298
      %v1300 = vlaneseq
      %v1301 = vshrl.u32 %v1300, 7
      %v1302 = vsub.s32 %v1299, %v1301
      %v1303 = vrot.slane %v1275, %v1302
      %v1304 = vcombine.high %v1282, %v1282
      %v1305 = vcombine.high %v1289, %v1289
      %v1306 = vcombine.high %v1296, %v1296
      %v1307 = vcombine.high %v1303, %v1303
      %v1309 = vunpack.c.l.s4 1966171168
      %v1310 = vunpack.c.0.s8 %v1309
      %v1311 = vlaneseq
      %v1312 = vshrl.u32 %v1311, 7
      %v1313 = vsub.s32 %v1310, %v1312
      %v1314 = vrot.slane %v1282, %v1313
      %v1316 = vunpack.c.l.s4 1966171168
      %v1317 = vunpack.c.0.s8 %v1316
      %v1318 = vlaneseq
      %v1319 = vshrl.u32 %v1318, 7
      %v1320 = vsub.s32 %v1317, %v1319
      %v1321 = vrot.slane %v1314, %v1320
      %1322 = vrot.lane.b32.xlu0 %v1321, 96
      %v1323 = vpop.permute.xlu0 %1322
      %vm1324 = vcmask 64512
      %v1326 = vsel %vm1324, %v1282, 0
      %v1329 = vsel %vm1324, %v1323, 0
      %1331 = vmatprep.subr.bf16.mxu0 0
      %1332 = vmatpush1.bf16.xpose.msra.mxu0 %v1329
      %1333 = vmatprep.subr.bf16.mxu0 0
      %1334 = vmatpush1.bf16.xpose.msra.mxu0 0
      %1335 = vmatprep.subr.bf16.mxu0 0
      %1336 = vmatpush1.bf16.xpose.msra.mxu0 0
      %1337 = vmatprep.subr.bf16.mxu0 0
      %1338 = vmatpush1.bf16.xpose.msra.mxu0 0
      %1339 = vmatprep.subr.bf16.mxu0 0
      %1340 = vmatpush1.bf16.xpose.msra.mxu0 0
      %1341 = vmatprep.subr.bf16.mxu0 0
      %1342 = vmatpush1.bf16.xpose.msra.mxu0 0
      %1343 = vmatprep.subr.bf16.mxu0 0
      %1344 = vmatpush1.bf16.xpose.msra.mxu0 0
      %1345 = vmatprep.subr.bf16.mxu0 0
      %1346 = vmatpush1.bf16.xpose.msra.mxu0 0
      %1347 = vmatprep.subr.bf16.mxu0 0
      %1348 = vmatpush1.bf16.xpose.msra.mxu0 0
      %1349 = vmatprep.subr.bf16.mxu0 0
      %1350 = vmatpush1.bf16.xpose.msra.mxu0 0
      %1351 = vmatprep.subr.bf16.mxu0 0
      %1352 = vmatpush1.bf16.xpose.msra.mxu0 0
      %1353 = vmatprep.subr.bf16.mxu0 0
      %1354 = vmatpush1.bf16.xpose.msra.mxu0 0
      %1355 = vmatprep.subr.bf16.mxu0 0
      %1356 = vmatpush1.bf16.xpose.msra.mxu0 0
      %1357 = vmatprep.subr.bf16.mxu0 0
      %1358 = vmatpush1.bf16.xpose.msra.mxu0 0
      %1359 = vmatprep.subr.bf16.mxu0 0
      %1360 = vmatpush1.bf16.xpose.msra.mxu0 0
      %1361 = vmatprep.subr.bf16.mxu0 0
      %1362 = vmatpush1.bf16.xpose.msra.mxu0 0
      %1363 = vmatprep.mubr.bf16.mxu0 0
      %1364 = vmatmul.mubr.bf16.gmra.mrb[0].mxu0 %v1326
      %v1365 = vpop.f32.mrb[0].mxu0
      %v1366 = vadd.f32 0.0, %v1365
      %v1367 = vpop.f32.mrb[0].mxu0
      %v1368 = vpop.f32.mrb[0].mxu0
      %v1369 = vpop.f32.mrb[0].mxu0
      %1370 = vdwg.mxu0
      %v1372 = vunpack.c.l.s4 1966171168
      %v1373 = vunpack.c.0.s8 %v1372
      %v1374 = vlaneseq
      %v1375 = vshrl.u32 %v1374, 7
      %v1376 = vsub.s32 %v1373, %v1375
      %v1377 = vrot.slane %v1296, %v1376
      %v1379 = vunpack.c.l.s4 1966171168
      %v1380 = vunpack.c.0.s8 %v1379
      %v1381 = vlaneseq
      %v1382 = vshrl.u32 %v1381, 7
      %v1383 = vsub.s32 %v1380, %v1382
      %v1384 = vrot.slane %v1377, %v1383
      %1385 = vrot.lane.b32.xlu0 %v1384, 96
      %v1386 = vpop.permute.xlu0 %1385
      %v1388 = vsel %vm1324, %v1296, 0
      %v1391 = vsel %vm1324, %v1386, 0
      %1393 = vmatprep.subr.bf16.mxu0 0
      %1394 = vmatpush1.bf16.xpose.msra.mxu0 %v1391
      %1395 = vmatprep.subr.bf16.mxu0 0
      %1396 = vmatpush1.bf16.xpose.msra.mxu0 0
      %1397 = vmatprep.subr.bf16.mxu0 0
      %1398 = vmatpush1.bf16.xpose.msra.mxu0 0
      %1399 = vmatprep.subr.bf16.mxu0 0
      %1400 = vmatpush1.bf16.xpose.msra.mxu0 0
      %1401 = vmatprep.subr.bf16.mxu0 0
      %1402 = vmatpush1.bf16.xpose.msra.mxu0 0
      %1403 = vmatprep.subr.bf16.mxu0 0
      %1404 = vmatpush1.bf16.xpose.msra.mxu0 0
      %1405 = vmatprep.subr.bf16.mxu0 0
      %1406 = vmatpush1.bf16.xpose.msra.mxu0 0
      %1407 = vmatprep.subr.bf16.mxu0 0
      %1408 = vmatpush1.bf16.xpose.msra.mxu0 0
      %1409 = vmatprep.subr.bf16.mxu0 0
      %1410 = vmatpush1.bf16.xpose.msra.mxu0 0
      %1411 = vmatprep.subr.bf16.mxu0 0
      %1412 = vmatpush1.bf16.xpose.msra.mxu0 0
      %1413 = vmatprep.subr.bf16.mxu0 0
      %1414 = vmatpush1.bf16.xpose.msra.mxu0 0
      %1415 = vmatprep.subr.bf16.mxu0 0
      %1416 = vmatpush1.bf16.xpose.msra.mxu0 0
      %1417 = vmatprep.subr.bf16.mxu0 0
      %1418 = vmatpush1.bf16.xpose.msra.mxu0 0
      %1419 = vmatprep.subr.bf16.mxu0 0
      %1420 = vmatpush1.bf16.xpose.msra.mxu0 0
      %1421 = vmatprep.subr.bf16.mxu0 0
      %1422 = vmatpush1.bf16.xpose.msra.mxu0 0
      %1423 = vmatprep.subr.bf16.mxu0 0
      %1424 = vmatpush1.bf16.xpose.msra.mxu0 0
      %1425 = vmatprep.mubr.bf16.mxu0 0
      %1426 = vmatmul.mubr.bf16.gmra.mrb[0].mxu0 %v1388
      %v1427 = vpop.f32.mrb[0].mxu0
      %v1428 = vadd.f32 0.0, %v1427
      %v1429 = vpop.f32.mrb[0].mxu0
      %v1430 = vpop.f32.mrb[0].mxu0
      %v1431 = vpop.f32.mrb[0].mxu0
      %1432 = vdwg.mxu0
      %v1434 = vunpack.c.l.s4 1966171168
      %v1435 = vunpack.c.0.s8 %v1434
      %v1436 = vlaneseq
      %v1437 = vshrl.u32 %v1436, 7
      %v1438 = vsub.s32 %v1435, %v1437
      %v1439 = vrot.slane %v1304, %v1438
      %v1441 = vunpack.c.l.s4 1966171168
      %v1442 = vunpack.c.0.s8 %v1441
      %v1443 = vlaneseq
      %v1444 = vshrl.u32 %v1443, 7
      %v1445 = vsub.s32 %v1442, %v1444
      %v1446 = vrot.slane %v1439, %v1445
      %1447 = vrot.lane.b32.xlu0 %v1446, 96
      %v1448 = vpop.permute.xlu0 %1447
      %v1450 = vsel %vm1324, %v1304, 0
      %v1453 = vsel %vm1324, %v1448, 0
      %1455 = vmatprep.subr.bf16.mxu0 0
      %1456 = vmatpush1.bf16.xpose.msra.mxu0 %v1453
      %1457 = vmatprep.subr.bf16.mxu0 0
      %1458 = vmatpush1.bf16.xpose.msra.mxu0 0
      %1459 = vmatprep.subr.bf16.mxu0 0
      %1460 = vmatpush1.bf16.xpose.msra.mxu0 0
      %1461 = vmatprep.subr.bf16.mxu0 0
      %1462 = vmatpush1.bf16.xpose.msra.mxu0 0
      %1463 = vmatprep.subr.bf16.mxu0 0
      %1464 = vmatpush1.bf16.xpose.msra.mxu0 0
      %1465 = vmatprep.subr.bf16.mxu0 0
      %1466 = vmatpush1.bf16.xpose.msra.mxu0 0
      %1467 = vmatprep.subr.bf16.mxu0 0
      %1468 = vmatpush1.bf16.xpose.msra.mxu0 0
      %1469 = vmatprep.subr.bf16.mxu0 0
      %1470 = vmatpush1.bf16.xpose.msra.mxu0 0
      %1471 = vmatprep.subr.bf16.mxu0 0
      %1472 = vmatpush1.bf16.xpose.msra.mxu0 0
      %1473 = vmatprep.subr.bf16.mxu0 0
      %1474 = vmatpush1.bf16.xpose.msra.mxu0 0
      %1475 = vmatprep.subr.bf16.mxu0 0
      %1476 = vmatpush1.bf16.xpose.msra.mxu0 0
      %1477 = vmatprep.subr.bf16.mxu0 0
      %1478 = vmatpush1.bf16.xpose.msra.mxu0 0
      %1479 = vmatprep.subr.bf16.mxu0 0
      %1480 = vmatpush1.bf16.xpose.msra.mxu0 0
      %1481 = vmatprep.subr.bf16.mxu0 0
      %1482 = vmatpush1.bf16.xpose.msra.mxu0 0
      %1483 = vmatprep.subr.bf16.mxu0 0
      %1484 = vmatpush1.bf16.xpose.msra.mxu0 0
      %1485 = vmatprep.subr.bf16.mxu0 0
      %1486 = vmatpush1.bf16.xpose.msra.mxu0 0
      %1487 = vmatprep.mubr.bf16.mxu0 0
      %1488 = vmatmul.mubr.bf16.gmra.mrb[0].mxu0 %v1450
      %v1489 = vpop.f32.mrb[0].mxu0
      %v1490 = vadd.f32 0.0, %v1489
      %v1491 = vpop.f32.mrb[0].mxu0
      %v1492 = vpop.f32.mrb[0].mxu0
      %v1493 = vpop.f32.mrb[0].mxu0
      %1494 = vdwg.mxu0
      %v1496 = vunpack.c.l.s4 1966171168
      %v1497 = vunpack.c.0.s8 %v1496
      %v1498 = vlaneseq
      %v1499 = vshrl.u32 %v1498, 7
      %v1500 = vsub.s32 %v1497, %v1499
      %v1501 = vrot.slane %v1306, %v1500
      %v1503 = vunpack.c.l.s4 1966171168
      %v1504 = vunpack.c.0.s8 %v1503
      %v1505 = vlaneseq
      %v1506 = vshrl.u32 %v1505, 7
      %v1507 = vsub.s32 %v1504, %v1506
      %v1508 = vrot.slane %v1501, %v1507
      %1509 = vrot.lane.b32.xlu0 %v1508, 96
      %v1510 = vpop.permute.xlu0 %1509
      %v1512 = vsel %vm1324, %v1306, 0
      %v1515 = vsel %vm1324, %v1510, 0
      %1517 = vmatprep.subr.bf16.mxu0 0
      %1518 = vmatpush1.bf16.xpose.msra.mxu0 %v1515
      %1519 = vmatprep.subr.bf16.mxu0 0
      %1520 = vmatpush1.bf16.xpose.msra.mxu0 0
      %1521 = vmatprep.subr.bf16.mxu0 0
      %1522 = vmatpush1.bf16.xpose.msra.mxu0 0
      %1523 = vmatprep.subr.bf16.mxu0 0
      %1524 = vmatpush1.bf16.xpose.msra.mxu0 0
      %1525 = vmatprep.subr.bf16.mxu0 0
      %1526 = vmatpush1.bf16.xpose.msra.mxu0 0
      %1527 = vmatprep.subr.bf16.mxu0 0
      %1528 = vmatpush1.bf16.xpose.msra.mxu0 0
      %1529 = vmatprep.subr.bf16.mxu0 0
      %1530 = vmatpush1.bf16.xpose.msra.mxu0 0
      %1531 = vmatprep.subr.bf16.mxu0 0
      %1532 = vmatpush1.bf16.xpose.msra.mxu0 0
      %1533 = vmatprep.subr.bf16.mxu0 0
      %1534 = vmatpush1.bf16.xpose.msra.mxu0 0
      %1535 = vmatprep.subr.bf16.mxu0 0
      %1536 = vmatpush1.bf16.xpose.msra.mxu0 0
      %1537 = vmatprep.subr.bf16.mxu0 0
      %1538 = vmatpush1.bf16.xpose.msra.mxu0 0
      %1539 = vmatprep.subr.bf16.mxu0 0
      %1540 = vmatpush1.bf16.xpose.msra.mxu0 0
      %1541 = vmatprep.subr.bf16.mxu0 0
      %1542 = vmatpush1.bf16.xpose.msra.mxu0 0
      %1543 = vmatprep.subr.bf16.mxu0 0
      %1544 = vmatpush1.bf16.xpose.msra.mxu0 0
      %1545 = vmatprep.subr.bf16.mxu0 0
      %1546 = vmatpush1.bf16.xpose.msra.mxu0 0
      %1547 = vmatprep.subr.bf16.mxu0 0
      %1548 = vmatpush1.bf16.xpose.msra.mxu0 0
      %1549 = vmatprep.mubr.bf16.mxu0 0
      %1550 = vmatmul.mubr.bf16.gmra.mrb[0].mxu0 %v1512
      %v1551 = vpop.f32.mrb[0].mxu0
      %v1552 = vadd.f32 0.0, %v1551
      %v1553 = vpop.f32.mrb[0].mxu0
      %v1554 = vpop.f32.mrb[0].mxu0
      %v1555 = vpop.f32.mrb[0].mxu0
      %1556 = vdwg.mxu0
      %v1558 = vunpack.c.l.s4 1966171168
      %v1559 = vunpack.c.0.s8 %v1558
      %v1560 = vlaneseq
      %v1561 = vshrl.u32 %v1560, 7
      %v1562 = vsub.s32 %v1559, %v1561
      %v1563 = vrot.slane %v1289, %v1562
      %v1565 = vunpack.c.l.s4 1966171168
      %v1566 = vunpack.c.0.s8 %v1565
      %v1567 = vlaneseq
      %v1568 = vshrl.u32 %v1567, 7
      %v1569 = vsub.s32 %v1566, %v1568
      %v1570 = vrot.slane %v1563, %v1569
      %1571 = vrot.lane.b32.xlu0 %v1570, 96
      %v1572 = vpop.permute.xlu0 %1571
      %v1574 = vsel %vm1324, %v1289, 0
      %v1577 = vsel %vm1324, %v1572, 0
      %1579 = vmatprep.subr.bf16.mxu0 0
      %1580 = vmatpush1.bf16.xpose.msra.mxu0 %v1577
      %1581 = vmatprep.subr.bf16.mxu0 0
      %1582 = vmatpush1.bf16.xpose.msra.mxu0 0
      %1583 = vmatprep.subr.bf16.mxu0 0
      %1584 = vmatpush1.bf16.xpose.msra.mxu0 0
      %1585 = vmatprep.subr.bf16.mxu0 0
      %1586 = vmatpush1.bf16.xpose.msra.mxu0 0
      %1587 = vmatprep.subr.bf16.mxu0 0
      %1588 = vmatpush1.bf16.xpose.msra.mxu0 0
      %1589 = vmatprep.subr.bf16.mxu0 0
      %1590 = vmatpush1.bf16.xpose.msra.mxu0 0
      %1591 = vmatprep.subr.bf16.mxu0 0
      %1592 = vmatpush1.bf16.xpose.msra.mxu0 0
      %1593 = vmatprep.subr.bf16.mxu0 0
      %1594 = vmatpush1.bf16.xpose.msra.mxu0 0
      %1595 = vmatprep.subr.bf16.mxu0 0
      %1596 = vmatpush1.bf16.xpose.msra.mxu0 0
      %1597 = vmatprep.subr.bf16.mxu0 0
      %1598 = vmatpush1.bf16.xpose.msra.mxu0 0
      %1599 = vmatprep.subr.bf16.mxu0 0
      %1600 = vmatpush1.bf16.xpose.msra.mxu0 0
      %1601 = vmatprep.subr.bf16.mxu0 0
      %1602 = vmatpush1.bf16.xpose.msra.mxu0 0
      %1603 = vmatprep.subr.bf16.mxu0 0
      %1604 = vmatpush1.bf16.xpose.msra.mxu0 0
      %1605 = vmatprep.subr.bf16.mxu0 0
      %1606 = vmatpush1.bf16.xpose.msra.mxu0 0
      %1607 = vmatprep.subr.bf16.mxu0 0
      %1608 = vmatpush1.bf16.xpose.msra.mxu0 0
      %1609 = vmatprep.subr.bf16.mxu0 0
      %1610 = vmatpush1.bf16.xpose.msra.mxu0 0
      %1611 = vmatprep.mubr.bf16.mxu0 0
      %1612 = vmatmul.mubr.bf16.gmra.mrb[0].mxu0 %v1574
      %v1613 = vpop.f32.mrb[0].mxu0
      %v1614 = vadd.f32 0.0, %v1613
      %v1615 = vpop.f32.mrb[0].mxu0
      %v1616 = vpop.f32.mrb[0].mxu0
      %v1617 = vpop.f32.mrb[0].mxu0
      %1618 = vdwg.mxu0
      %v1620 = vunpack.c.l.s4 1966171168
      %v1621 = vunpack.c.0.s8 %v1620
      %v1622 = vlaneseq
      %v1623 = vshrl.u32 %v1622, 7
      %v1624 = vsub.s32 %v1621, %v1623
      %v1625 = vrot.slane %v1303, %v1624
      %v1627 = vunpack.c.l.s4 1966171168
      %v1628 = vunpack.c.0.s8 %v1627
      %v1629 = vlaneseq
      %v1630 = vshrl.u32 %v1629, 7
      %v1631 = vsub.s32 %v1628, %v1630
      %v1632 = vrot.slane %v1625, %v1631
      %1633 = vrot.lane.b32.xlu0 %v1632, 96
      %v1634 = vpop.permute.xlu0 %1633
      %v1636 = vsel %vm1324, %v1303, 0
      %v1639 = vsel %vm1324, %v1634, 0
      %1641 = vmatprep.subr.bf16.mxu0 0
      %1642 = vmatpush1.bf16.xpose.msra.mxu0 %v1639
      %1643 = vmatprep.subr.bf16.mxu0 0
      %1644 = vmatpush1.bf16.xpose.msra.mxu0 0
      %1645 = vmatprep.subr.bf16.mxu0 0
      %1646 = vmatpush1.bf16.xpose.msra.mxu0 0
      %1647 = vmatprep.subr.bf16.mxu0 0
      %1648 = vmatpush1.bf16.xpose.msra.mxu0 0
      %1649 = vmatprep.subr.bf16.mxu0 0
      %1650 = vmatpush1.bf16.xpose.msra.mxu0 0
      %1651 = vmatprep.subr.bf16.mxu0 0
      %1652 = vmatpush1.bf16.xpose.msra.mxu0 0
      %1653 = vmatprep.subr.bf16.mxu0 0
      %1654 = vmatpush1.bf16.xpose.msra.mxu0 0
      %1655 = vmatprep.subr.bf16.mxu0 0
      %1656 = vmatpush1.bf16.xpose.msra.mxu0 0
      %1657 = vmatprep.subr.bf16.mxu0 0
      %1658 = vmatpush1.bf16.xpose.msra.mxu0 0
      %1659 = vmatprep.subr.bf16.mxu0 0
      %1660 = vmatpush1.bf16.xpose.msra.mxu0 0
      %1661 = vmatprep.subr.bf16.mxu0 0
      %1662 = vmatpush1.bf16.xpose.msra.mxu0 0
      %1663 = vmatprep.subr.bf16.mxu0 0
      %1664 = vmatpush1.bf16.xpose.msra.mxu0 0
      %1665 = vmatprep.subr.bf16.mxu0 0
      %1666 = vmatpush1.bf16.xpose.msra.mxu0 0
      %1667 = vmatprep.subr.bf16.mxu0 0
      %1668 = vmatpush1.bf16.xpose.msra.mxu0 0
      %1669 = vmatprep.subr.bf16.mxu0 0
      %1670 = vmatpush1.bf16.xpose.msra.mxu0 0
      %1671 = vmatprep.subr.bf16.mxu0 0
      %1672 = vmatpush1.bf16.xpose.msra.mxu0 0
      %1673 = vmatprep.mubr.bf16.mxu0 0
      %1674 = vmatmul.mubr.bf16.gmra.mrb[0].mxu0 %v1636
      %v1675 = vpop.f32.mrb[0].mxu0
      %v1676 = vadd.f32 0.0, %v1675
      %v1677 = vpop.f32.mrb[0].mxu0
      %v1678 = vpop.f32.mrb[0].mxu0
      %v1679 = vpop.f32.mrb[0].mxu0
      %1680 = vdwg.mxu0
      %v1682 = vunpack.c.l.s4 1966171168
      %v1683 = vunpack.c.0.s8 %v1682
      %v1684 = vlaneseq
      %v1685 = vshrl.u32 %v1684, 7
      %v1686 = vsub.s32 %v1683, %v1685
      %v1687 = vrot.slane %v1305, %v1686
      %v1689 = vunpack.c.l.s4 1966171168
      %v1690 = vunpack.c.0.s8 %v1689
      %v1691 = vlaneseq
      %v1692 = vshrl.u32 %v1691, 7
      %v1693 = vsub.s32 %v1690, %v1692
      %v1694 = vrot.slane %v1687, %v1693
      %1695 = vrot.lane.b32.xlu0 %v1694, 96
      %v1696 = vpop.permute.xlu0 %1695
      %v1698 = vsel %vm1324, %v1305, 0
      %v1701 = vsel %vm1324, %v1696, 0
      %1703 = vmatprep.subr.bf16.mxu0 0
      %1704 = vmatpush1.bf16.xpose.msra.mxu0 %v1701
      %1705 = vmatprep.subr.bf16.mxu0 0
      %1706 = vmatpush1.bf16.xpose.msra.mxu0 0
      %1707 = vmatprep.subr.bf16.mxu0 0
      %1708 = vmatpush1.bf16.xpose.msra.mxu0 0
      %1709 = vmatprep.subr.bf16.mxu0 0
      %1710 = vmatpush1.bf16.xpose.msra.mxu0 0
      %1711 = vmatprep.subr.bf16.mxu0 0
      %1712 = vmatpush1.bf16.xpose.msra.mxu0 0
      %1713 = vmatprep.subr.bf16.mxu0 0
      %1714 = vmatpush1.bf16.xpose.msra.mxu0 0
      %1715 = vmatprep.subr.bf16.mxu0 0
      %1716 = vmatpush1.bf16.xpose.msra.mxu0 0
      %1717 = vmatprep.subr.bf16.mxu0 0
      %1718 = vmatpush1.bf16.xpose.msra.mxu0 0
      %1719 = vmatprep.subr.bf16.mxu0 0
      %1720 = vmatpush1.bf16.xpose.msra.mxu0 0
      %1721 = vmatprep.subr.bf16.mxu0 0
      %1722 = vmatpush1.bf16.xpose.msra.mxu0 0
      %1723 = vmatprep.subr.bf16.mxu0 0
      %1724 = vmatpush1.bf16.xpose.msra.mxu0 0
      %1725 = vmatprep.subr.bf16.mxu0 0
      %1726 = vmatpush1.bf16.xpose.msra.mxu0 0
      %1727 = vmatprep.subr.bf16.mxu0 0
      %1728 = vmatpush1.bf16.xpose.msra.mxu0 0
      %1729 = vmatprep.subr.bf16.mxu0 0
      %1730 = vmatpush1.bf16.xpose.msra.mxu0 0
      %1731 = vmatprep.subr.bf16.mxu0 0
      %1732 = vmatpush1.bf16.xpose.msra.mxu0 0
      %1733 = vmatprep.subr.bf16.mxu0 0
      %1734 = vmatpush1.bf16.xpose.msra.mxu0 0
      %1735 = vmatprep.mubr.bf16.mxu0 0
      %1736 = vmatmul.mubr.bf16.gmra.mrb[0].mxu0 %v1698
      %v1737 = vpop.f32.mrb[0].mxu0
      %v1738 = vadd.f32 0.0, %v1737
      %v1739 = vpop.f32.mrb[0].mxu0
      %v1740 = vpop.f32.mrb[0].mxu0
      %v1741 = vpop.f32.mrb[0].mxu0
      %1742 = vdwg.mxu0
      %v1744 = vunpack.c.l.s4 1966171168
      %v1745 = vunpack.c.0.s8 %v1744
      %v1746 = vlaneseq
      %v1747 = vshrl.u32 %v1746, 7
      %v1748 = vsub.s32 %v1745, %v1747
      %v1749 = vrot.slane %v1307, %v1748
      %v1751 = vunpack.c.l.s4 1966171168
      %v1752 = vunpack.c.0.s8 %v1751
      %v1753 = vlaneseq
      %v1754 = vshrl.u32 %v1753, 7
      %v1755 = vsub.s32 %v1752, %v1754
      %v1756 = vrot.slane %v1749, %v1755
      %1757 = vrot.lane.b32.xlu0 %v1756, 96
      %v1758 = vpop.permute.xlu0 %1757
      %v1760 = vsel %vm1324, %v1307, 0
      %v1763 = vsel %vm1324, %v1758, 0
      %1765 = vmatprep.subr.bf16.mxu0 0
      %1766 = vmatpush1.bf16.xpose.msra.mxu0 %v1763
      %1767 = vmatprep.subr.bf16.mxu0 0
      %1768 = vmatpush1.bf16.xpose.msra.mxu0 0
      %1769 = vmatprep.subr.bf16.mxu0 0
      %1770 = vmatpush1.bf16.xpose.msra.mxu0 0
      %1771 = vmatprep.subr.bf16.mxu0 0
      %1772 = vmatpush1.bf16.xpose.msra.mxu0 0
      %1773 = vmatprep.subr.bf16.mxu0 0
      %1774 = vmatpush1.bf16.xpose.msra.mxu0 0
      %1775 = vmatprep.subr.bf16.mxu0 0
      %1776 = vmatpush1.bf16.xpose.msra.mxu0 0
      %1777 = vmatprep.subr.bf16.mxu0 0
      %1778 = vmatpush1.bf16.xpose.msra.mxu0 0
      %1779 = vmatprep.subr.bf16.mxu0 0
      %1780 = vmatpush1.bf16.xpose.msra.mxu0 0
      %1781 = vmatprep.subr.bf16.mxu0 0
      %1782 = vmatpush1.bf16.xpose.msra.mxu0 0
      %1783 = vmatprep.subr.bf16.mxu0 0
      %1784 = vmatpush1.bf16.xpose.msra.mxu0 0
      %1785 = vmatprep.subr.bf16.mxu0 0
      %1786 = vmatpush1.bf16.xpose.msra.mxu0 0
      %1787 = vmatprep.subr.bf16.mxu0 0
      %1788 = vmatpush1.bf16.xpose.msra.mxu0 0
      %1789 = vmatprep.subr.bf16.mxu0 0
      %1790 = vmatpush1.bf16.xpose.msra.mxu0 0
      %1791 = vmatprep.subr.bf16.mxu0 0
      %1792 = vmatpush1.bf16.xpose.msra.mxu0 0
      %1793 = vmatprep.subr.bf16.mxu0 0
      %1794 = vmatpush1.bf16.xpose.msra.mxu0 0
      %1795 = vmatprep.subr.bf16.mxu0 0
      %1796 = vmatpush1.bf16.xpose.msra.mxu0 0
      %1797 = vmatprep.mubr.bf16.mxu0 0
      %1798 = vmatmul.mubr.bf16.gmra.mrb[0].mxu0 %v1760
      %v1799 = vpop.f32.mrb[0].mxu0
      %v1800 = vadd.f32 0.0, %v1799
      %v1801 = vpop.f32.mrb[0].mxu0
      %v1802 = vpop.f32.mrb[0].mxu0
      %v1803 = vpop.f32.mrb[0].mxu0
      %1804 = vdwg.mxu0
      %v1805 = vmul.f32 %v1366, 0.35355338
      %v1806 = vmul.f32 %v1428, 0.35355338
      %v1807 = vmul.f32 %v1490, 0.35355338
      %v1808 = vmul.f32 %v1552, 0.35355338
      %v1809 = vmul.f32 %v1614, 0.35355338
      %v1810 = vmul.f32 %v1676, 0.35355338
      %v1811 = vmul.f32 %v1738, 0.35355338
      %v1812 = vmul.f32 %v1800, 0.35355338
      %vm1813 = vcmask 9216
      %v1814 = vsel %vm1813, %v1805, -inf
      %1815 = vmax.xlane.f32.xlu0 %v1814
      %v1816 = vpop.xlane.xlu0 %1815
      %v1817 = vsel %vm1813, %v1806, -inf
      %1818 = vmax.xlane.f32.xlu0 %v1817
      %v1819 = vpop.xlane.xlu0 %1818
      %v1820 = vsel %vm1813, %v1807, -inf
      %1821 = vmax.xlane.f32.xlu0 %v1820
      %v1822 = vpop.xlane.xlu0 %1821
      %v1823 = vsel %vm1813, %v1808, -inf
      %1824 = vmax.xlane.f32.xlu0 %v1823
      %v1825 = vpop.xlane.xlu0 %1824
      %v1826 = vsel %vm1813, %v1809, -inf
      %1827 = vmax.xlane.f32.xlu0 %v1826
      %v1828 = vpop.xlane.xlu0 %1827
      %v1829 = vsel %vm1813, %v1810, -inf
      %1830 = vmax.xlane.f32.xlu0 %v1829
      %v1831 = vpop.xlane.xlu0 %1830
      %v1832 = vsel %vm1813, %v1811, -inf
      %1833 = vmax.xlane.f32.xlu0 %v1832
      %v1834 = vpop.xlane.xlu0 %1833
      %v1835 = vsel %vm1813, %v1812, -inf
      %1836 = vmax.xlane.f32.xlu0 %v1835
      %v1837 = vpop.xlane.xlu0 %1836
      %v1838 = vsub.f32 %v1805, %v1816
      %v1839 = vsub.f32 %v1806, %v1819
      %v1840 = vsub.f32 %v1807, %v1822
      %v1841 = vsub.f32 %v1808, %v1825
      %v1842 = vsub.f32 %v1809, %v1828
      %v1843 = vsub.f32 %v1810, %v1831
      %v1844 = vsub.f32 %v1811, %v1834
      %v1845 = vsub.f32 %v1812, %v1837
      %v1846 = vmul.f32 %v1838, 1.442695
      %v1847 = vpow.pop %v1846
      %v1848 = vmul.f32 %v1839, 1.442695
      %v1849 = vpow.pop %v1848
      %v1850 = vmul.f32 %v1840, 1.442695
      %v1851 = vpow.pop %v1850
      %v1852 = vmul.f32 %v1841, 1.442695
      %v1853 = vpow.pop %v1852
      %v1854 = vmul.f32 %v1842, 1.442695
      %v1855 = vpow.pop %v1854
      %v1856 = vmul.f32 %v1843, 1.442695
      %v1857 = vpow.pop %v1856
      %v1858 = vmul.f32 %v1844, 1.442695
      %v1859 = vpow.pop %v1858
      %v1860 = vmul.f32 %v1845, 1.442695
      %v1861 = vpow.pop %v1860
      %v1862 = vsel %vm1813, %v1847, 0.0
      %1863 = vadd.xlane.f32.xlu0 %v1862
      %v1864 = vpop.xlane.xlu0 %1863
      %v1865 = vsel %vm1813, %v1849, 0.0
      %1866 = vadd.xlane.f32.xlu0 %v1865
      %v1867 = vpop.xlane.xlu0 %1866
      %v1868 = vsel %vm1813, %v1851, 0.0
      %1869 = vadd.xlane.f32.xlu0 %v1868
      %v1870 = vpop.xlane.xlu0 %1869
      %v1871 = vsel %vm1813, %v1853, 0.0
      %1872 = vadd.xlane.f32.xlu0 %v1871
      %v1873 = vpop.xlane.xlu0 %1872
      %v1874 = vsel %vm1813, %v1855, 0.0
      %1875 = vadd.xlane.f32.xlu0 %v1874
      %v1876 = vpop.xlane.xlu0 %1875
      %v1877 = vsel %vm1813, %v1857, 0.0
      %1878 = vadd.xlane.f32.xlu0 %v1877
      %v1879 = vpop.xlane.xlu0 %1878
      %v1880 = vsel %vm1813, %v1859, 0.0
      %1881 = vadd.xlane.f32.xlu0 %v1880
      %v1882 = vpop.xlane.xlu0 %1881
      %v1883 = vsel %vm1813, %v1861, 0.0
      %1884 = vadd.xlane.f32.xlu0 %v1883
      %v1885 = vpop.xlane.xlu0 %1884
      %v1886 = vrcp.pop %v1864
      %v1887 = vrcp.pop %v1867
      %v1888 = vrcp.pop %v1870
      %v1889 = vrcp.pop %v1873
      %v1890 = vrcp.pop %v1876
      %v1891 = vrcp.pop %v1879
      %v1892 = vrcp.pop %v1882
      %v1893 = vrcp.pop %v1885
      %v1894 = vmul.f32 %v1847, %v1886
      %v1895 = vmul.f32 %v1849, %v1887
      %v1896 = vmul.f32 %v1851, %v1888
      %v1897 = vmul.f32 %v1853, %v1889
      %v1898 = vmul.f32 %v1855, %v1890
      %v1899 = vmul.f32 %v1857, %v1891
      %v1900 = vmul.f32 %v1859, %v1892
      %v1901 = vmul.f32 %v1861, %v1893
      %v1902 = vpack.c.bf16 %v1894, %v1894
      %v1903 = vpack.c.bf16 %v1895, %v1895
      %v1904 = vpack.c.bf16 %v1896, %v1896
      %v1905 = vpack.c.bf16 %v1897, %v1897
      %v1906 = vpack.c.bf16 %v1898, %v1898
      %v1907 = vpack.c.bf16 %v1899, %v1899
      %v1908 = vpack.c.bf16 %v1900, %v1900
      %v1909 = vpack.c.bf16 %v1901, %v1901
      %1910 = vrot.lane.b32.xlu0 %v1321, 64
      %v1911 = vpop.permute.xlu0 %1910
      %vm1912 = vcmask 15360
      %v1914 = vsel %vm1912, %v1902, 0
      %vm1916 = vcmask 1040384
      %v1918 = vsel %vm1916, %v1911, 0
      %1920 = vmatprep.subr.bf16.mxu0 0
      %1921 = vmatpush1.bf16.msra.mxu0 %v1918
      %1922 = vmatprep.subr.bf16.mxu0 0
      %1923 = vmatpush1.bf16.msra.mxu0 0
      %1924 = vmatprep.subr.bf16.mxu0 0
      %1925 = vmatpush1.bf16.msra.mxu0 0
      %1926 = vmatprep.subr.bf16.mxu0 0
      %1927 = vmatpush1.bf16.msra.mxu0 0
      %1928 = vmatprep.subr.bf16.mxu0 0
      %1929 = vmatpush1.bf16.msra.mxu0 0
      %1930 = vmatprep.subr.bf16.mxu0 0
      %1931 = vmatpush1.bf16.msra.mxu0 0
      %1932 = vmatprep.subr.bf16.mxu0 0
      %1933 = vmatpush1.bf16.msra.mxu0 0
      %1934 = vmatprep.subr.bf16.mxu0 0
      %1935 = vmatpush1.bf16.msra.mxu0 0
      %1936 = vmatprep.subr.bf16.mxu0 0
      %1937 = vmatpush1.bf16.msra.mxu0 0
      %1938 = vmatprep.subr.bf16.mxu0 0
      %1939 = vmatpush1.bf16.msra.mxu0 0
      %1940 = vmatprep.subr.bf16.mxu0 0
      %1941 = vmatpush1.bf16.msra.mxu0 0
      %1942 = vmatprep.subr.bf16.mxu0 0
      %1943 = vmatpush1.bf16.msra.mxu0 0
      %1944 = vmatprep.subr.bf16.mxu0 0
      %1945 = vmatpush1.bf16.msra.mxu0 0
      %1946 = vmatprep.subr.bf16.mxu0 0
      %1947 = vmatpush1.bf16.msra.mxu0 0
      %1948 = vmatprep.subr.bf16.mxu0 0
      %1949 = vmatpush1.bf16.msra.mxu0 0
      %1950 = vmatprep.subr.bf16.mxu0 0
      %1951 = vmatpush1.bf16.msra.mxu0 0
      %1952 = vmatprep.mubr.bf16.mxu0 0
      %1953 = vmatmul.mubr.bf16.gmra.mrb[0].mxu0 %v1914
      %v1954 = vpop.f32.mrb[0].mxu0
      %v1955 = vadd.f32 0.0, %v1954
      %v1956 = vpop.f32.mrb[0].mxu0
      %v1957 = vpop.f32.mrb[0].mxu0
      %v1958 = vpop.f32.mrb[0].mxu0
      %1959 = vdwg.mxu0
      %1960 = vrot.lane.b32.xlu0 %v1384, 64
      %v1961 = vpop.permute.xlu0 %1960
      %v1963 = vsel %vm1912, %v1903, 0
      %v1966 = vsel %vm1916, %v1961, 0
      %1968 = vmatprep.subr.bf16.mxu0 0
      %1969 = vmatpush1.bf16.msra.mxu0 %v1966
      %1970 = vmatprep.subr.bf16.mxu0 0
      %1971 = vmatpush1.bf16.msra.mxu0 0
      %1972 = vmatprep.subr.bf16.mxu0 0
      %1973 = vmatpush1.bf16.msra.mxu0 0
      %1974 = vmatprep.subr.bf16.mxu0 0
      %1975 = vmatpush1.bf16.msra.mxu0 0
      %1976 = vmatprep.subr.bf16.mxu0 0
      %1977 = vmatpush1.bf16.msra.mxu0 0
      %1978 = vmatprep.subr.bf16.mxu0 0
      %1979 = vmatpush1.bf16.msra.mxu0 0
      %1980 = vmatprep.subr.bf16.mxu0 0
      %1981 = vmatpush1.bf16.msra.mxu0 0
      %1982 = vmatprep.subr.bf16.mxu0 0
      %1983 = vmatpush1.bf16.msra.mxu0 0
      %1984 = vmatprep.subr.bf16.mxu0 0
      %1985 = vmatpush1.bf16.msra.mxu0 0
      %1986 = vmatprep.subr.bf16.mxu0 0
      %1987 = vmatpush1.bf16.msra.mxu0 0
      %1988 = vmatprep.subr.bf16.mxu0 0
      %1989 = vmatpush1.bf16.msra.mxu0 0
      %1990 = vmatprep.subr.bf16.mxu0 0
      %1991 = vmatpush1.bf16.msra.mxu0 0
      %1992 = vmatprep.subr.bf16.mxu0 0
      %1993 = vmatpush1.bf16.msra.mxu0 0
      %1994 = vmatprep.subr.bf16.mxu0 0
      %1995 = vmatpush1.bf16.msra.mxu0 0
      %1996 = vmatprep.subr.bf16.mxu0 0
      %1997 = vmatpush1.bf16.msra.mxu0 0
      %1998 = vmatprep.subr.bf16.mxu0 0
      %1999 = vmatpush1.bf16.msra.mxu0 0
      %2000 = vmatprep.mubr.bf16.mxu0 0
      %2001 = vmatmul.mubr.bf16.gmra.mrb[0].mxu0 %v1963
      %v2002 = vpop.f32.mrb[0].mxu0
      %v2003 = vadd.f32 0.0, %v2002
      %v2004 = vpop.f32.mrb[0].mxu0
      %v2005 = vpop.f32.mrb[0].mxu0
      %v2006 = vpop.f32.mrb[0].mxu0
      %2007 = vdwg.mxu0
      %2008 = vrot.lane.b32.xlu0 %v1446, 64
      %v2009 = vpop.permute.xlu0 %2008
      %v2011 = vsel %vm1912, %v1904, 0
      %v2014 = vsel %vm1916, %v2009, 0
      %2016 = vmatprep.subr.bf16.mxu0 0
      %2017 = vmatpush1.bf16.msra.mxu0 %v2014
      %2018 = vmatprep.subr.bf16.mxu0 0
      %2019 = vmatpush1.bf16.msra.mxu0 0
      %2020 = vmatprep.subr.bf16.mxu0 0
      %2021 = vmatpush1.bf16.msra.mxu0 0
      %2022 = vmatprep.subr.bf16.mxu0 0
      %2023 = vmatpush1.bf16.msra.mxu0 0
      %2024 = vmatprep.subr.bf16.mxu0 0
      %2025 = vmatpush1.bf16.msra.mxu0 0
      %2026 = vmatprep.subr.bf16.mxu0 0
      %2027 = vmatpush1.bf16.msra.mxu0 0
      %2028 = vmatprep.subr.bf16.mxu0 0
      %2029 = vmatpush1.bf16.msra.mxu0 0
      %2030 = vmatprep.subr.bf16.mxu0 0
      %2031 = vmatpush1.bf16.msra.mxu0 0
      %2032 = vmatprep.subr.bf16.mxu0 0
      %2033 = vmatpush1.bf16.msra.mxu0 0
      %2034 = vmatprep.subr.bf16.mxu0 0
      %2035 = vmatpush1.bf16.msra.mxu0 0
      %2036 = vmatprep.subr.bf16.mxu0 0
      %2037 = vmatpush1.bf16.msra.mxu0 0
      %2038 = vmatprep.subr.bf16.mxu0 0
      %2039 = vmatpush1.bf16.msra.mxu0 0
      %2040 = vmatprep.subr.bf16.mxu0 0
      %2041 = vmatpush1.bf16.msra.mxu0 0
      %2042 = vmatprep.subr.bf16.mxu0 0
      %2043 = vmatpush1.bf16.msra.mxu0 0
      %2044 = vmatprep.subr.bf16.mxu0 0
      %2045 = vmatpush1.bf16.msra.mxu0 0
      %2046 = vmatprep.subr.bf16.mxu0 0
      %2047 = vmatpush1.bf16.msra.mxu0 0
      %2048 = vmatprep.mubr.bf16.mxu0 0
      %2049 = vmatmul.mubr.bf16.gmra.mrb[0].mxu0 %v2011
      %v2050 = vpop.f32.mrb[0].mxu0
      %v2051 = vadd.f32 0.0, %v2050
      %v2052 = vpop.f32.mrb[0].mxu0
      %v2053 = vpop.f32.mrb[0].mxu0
      %v2054 = vpop.f32.mrb[0].mxu0
      %2055 = vdwg.mxu0
      %2056 = vrot.lane.b32.xlu0 %v1508, 64
      %v2057 = vpop.permute.xlu0 %2056
      %v2059 = vsel %vm1912, %v1905, 0
      %v2062 = vsel %vm1916, %v2057, 0
      %2064 = vmatprep.subr.bf16.mxu0 0
      %2065 = vmatpush1.bf16.msra.mxu0 %v2062
      %2066 = vmatprep.subr.bf16.mxu0 0
      %2067 = vmatpush1.bf16.msra.mxu0 0
      %2068 = vmatprep.subr.bf16.mxu0 0
      %2069 = vmatpush1.bf16.msra.mxu0 0
      %2070 = vmatprep.subr.bf16.mxu0 0
      %2071 = vmatpush1.bf16.msra.mxu0 0
      %2072 = vmatprep.subr.bf16.mxu0 0
      %2073 = vmatpush1.bf16.msra.mxu0 0
      %2074 = vmatprep.subr.bf16.mxu0 0
      %2075 = vmatpush1.bf16.msra.mxu0 0
      %2076 = vmatprep.subr.bf16.mxu0 0
      %2077 = vmatpush1.bf16.msra.mxu0 0
      %2078 = vmatprep.subr.bf16.mxu0 0
      %2079 = vmatpush1.bf16.msra.mxu0 0
      %2080 = vmatprep.subr.bf16.mxu0 0
      %2081 = vmatpush1.bf16.msra.mxu0 0
      %2082 = vmatprep.subr.bf16.mxu0 0
      %2083 = vmatpush1.bf16.msra.mxu0 0
      %2084 = vmatprep.subr.bf16.mxu0 0
      %2085 = vmatpush1.bf16.msra.mxu0 0
      %2086 = vmatprep.subr.bf16.mxu0 0
      %2087 = vmatpush1.bf16.msra.mxu0 0
      %2088 = vmatprep.subr.bf16.mxu0 0
      %2089 = vmatpush1.bf16.msra.mxu0 0
      %2090 = vmatprep.subr.bf16.mxu0 0
      %2091 = vmatpush1.bf16.msra.mxu0 0
      %2092 = vmatprep.subr.bf16.mxu0 0
      %2093 = vmatpush1.bf16.msra.mxu0 0
      %2094 = vmatprep.subr.bf16.mxu0 0
      %2095 = vmatpush1.bf16.msra.mxu0 0
      %2096 = vmatprep.mubr.bf16.mxu0 0
      %2097 = vmatmul.mubr.bf16.gmra.mrb[0].mxu0 %v2059
      %v2098 = vpop.f32.mrb[0].mxu0
      %v2099 = vadd.f32 0.0, %v2098
      %v2100 = vpop.f32.mrb[0].mxu0
      %v2101 = vpop.f32.mrb[0].mxu0
      %v2102 = vpop.f32.mrb[0].mxu0
      %2103 = vdwg.mxu0
      %2104 = vrot.lane.b32.xlu0 %v1570, 64
      %v2105 = vpop.permute.xlu0 %2104
      %v2107 = vsel %vm1912, %v1906, 0
      %v2110 = vsel %vm1916, %v2105, 0
      %2112 = vmatprep.subr.bf16.mxu0 0
      %2113 = vmatpush1.bf16.msra.mxu0 %v2110
      %2114 = vmatprep.subr.bf16.mxu0 0
      %2115 = vmatpush1.bf16.msra.mxu0 0
      %2116 = vmatprep.subr.bf16.mxu0 0
      %2117 = vmatpush1.bf16.msra.mxu0 0
      %2118 = vmatprep.subr.bf16.mxu0 0
      %2119 = vmatpush1.bf16.msra.mxu0 0
      %2120 = vmatprep.subr.bf16.mxu0 0
      %2121 = vmatpush1.bf16.msra.mxu0 0
      %2122 = vmatprep.subr.bf16.mxu0 0
      %2123 = vmatpush1.bf16.msra.mxu0 0
      %2124 = vmatprep.subr.bf16.mxu0 0
      %2125 = vmatpush1.bf16.msra.mxu0 0
      %2126 = vmatprep.subr.bf16.mxu0 0
      %2127 = vmatpush1.bf16.msra.mxu0 0
      %2128 = vmatprep.subr.bf16.mxu0 0
      %2129 = vmatpush1.bf16.msra.mxu0 0
      %2130 = vmatprep.subr.bf16.mxu0 0
      %2131 = vmatpush1.bf16.msra.mxu0 0
      %2132 = vmatprep.subr.bf16.mxu0 0
      %2133 = vmatpush1.bf16.msra.mxu0 0
      %2134 = vmatprep.subr.bf16.mxu0 0
      %2135 = vmatpush1.bf16.msra.mxu0 0
      %2136 = vmatprep.subr.bf16.mxu0 0
      %2137 = vmatpush1.bf16.msra.mxu0 0
      %2138 = vmatprep.subr.bf16.mxu0 0
      %2139 = vmatpush1.bf16.msra.mxu0 0
      %2140 = vmatprep.subr.bf16.mxu0 0
      %2141 = vmatpush1.bf16.msra.mxu0 0
      %2142 = vmatprep.subr.bf16.mxu0 0
      %2143 = vmatpush1.bf16.msra.mxu0 0
      %2144 = vmatprep.mubr.bf16.mxu0 0
      %2145 = vmatmul.mubr.bf16.gmra.mrb[0].mxu0 %v2107
      %v2146 = vpop.f32.mrb[0].mxu0
      %v2147 = vadd.f32 0.0, %v2146
      %v2148 = vpop.f32.mrb[0].mxu0
      %v2149 = vpop.f32.mrb[0].mxu0
      %v2150 = vpop.f32.mrb[0].mxu0
      %2151 = vdwg.mxu0
      %2152 = vrot.lane.b32.xlu0 %v1632, 64
      %v2153 = vpop.permute.xlu0 %2152
      %v2155 = vsel %vm1912, %v1907, 0
      %v2158 = vsel %vm1916, %v2153, 0
      %2160 = vmatprep.subr.bf16.mxu0 0
      %2161 = vmatpush1.bf16.msra.mxu0 %v2158
      %2162 = vmatprep.subr.bf16.mxu0 0
      %2163 = vmatpush1.bf16.msra.mxu0 0
      %2164 = vmatprep.subr.bf16.mxu0 0
      %2165 = vmatpush1.bf16.msra.mxu0 0
      %2166 = vmatprep.subr.bf16.mxu0 0
      %2167 = vmatpush1.bf16.msra.mxu0 0
      %2168 = vmatprep.subr.bf16.mxu0 0
      %2169 = vmatpush1.bf16.msra.mxu0 0
      %2170 = vmatprep.subr.bf16.mxu0 0
      %2171 = vmatpush1.bf16.msra.mxu0 0
      %2172 = vmatprep.subr.bf16.mxu0 0
      %2173 = vmatpush1.bf16.msra.mxu0 0
      %2174 = vmatprep.subr.bf16.mxu0 0
      %2175 = vmatpush1.bf16.msra.mxu0 0
      %2176 = vmatprep.subr.bf16.mxu0 0
      %2177 = vmatpush1.bf16.msra.mxu0 0
      %2178 = vmatprep.subr.bf16.mxu0 0
      %2179 = vmatpush1.bf16.msra.mxu0 0
      %2180 = vmatprep.subr.bf16.mxu0 0
      %2181 = vmatpush1.bf16.msra.mxu0 0
      %2182 = vmatprep.subr.bf16.mxu0 0
      %2183 = vmatpush1.bf16.msra.mxu0 0
      %2184 = vmatprep.subr.bf16.mxu0 0
      %2185 = vmatpush1.bf16.msra.mxu0 0
      %2186 = vmatprep.subr.bf16.mxu0 0
      %2187 = vmatpush1.bf16.msra.mxu0 0
      %2188 = vmatprep.subr.bf16.mxu0 0
      %2189 = vmatpush1.bf16.msra.mxu0 0
      %2190 = vmatprep.subr.bf16.mxu0 0
      %2191 = vmatpush1.bf16.msra.mxu0 0
      %2192 = vmatprep.mubr.bf16.mxu0 0
      %2193 = vmatmul.mubr.bf16.gmra.mrb[0].mxu0 %v2155
      %v2194 = vpop.f32.mrb[0].mxu0
      %v2195 = vadd.f32 0.0, %v2194
      %v2196 = vpop.f32.mrb[0].mxu0
      %v2197 = vpop.f32.mrb[0].mxu0
      %v2198 = vpop.f32.mrb[0].mxu0
      %2199 = vdwg.mxu0
      %2200 = vrot.lane.b32.xlu0 %v1694, 64
      %v2201 = vpop.permute.xlu0 %2200
      %v2203 = vsel %vm1912, %v1908, 0
      %v2206 = vsel %vm1916, %v2201, 0
      %2208 = vmatprep.subr.bf16.mxu0 0
      %2209 = vmatpush1.bf16.msra.mxu0 %v2206
      %2210 = vmatprep.subr.bf16.mxu0 0
      %2211 = vmatpush1.bf16.msra.mxu0 0
      %2212 = vmatprep.subr.bf16.mxu0 0
      %2213 = vmatpush1.bf16.msra.mxu0 0
      %2214 = vmatprep.subr.bf16.mxu0 0
      %2215 = vmatpush1.bf16.msra.mxu0 0
      %2216 = vmatprep.subr.bf16.mxu0 0
      %2217 = vmatpush1.bf16.msra.mxu0 0
      %2218 = vmatprep.subr.bf16.mxu0 0
      %2219 = vmatpush1.bf16.msra.mxu0 0
      %2220 = vmatprep.subr.bf16.mxu0 0
      %2221 = vmatpush1.bf16.msra.mxu0 0
      %2222 = vmatprep.subr.bf16.mxu0 0
      %2223 = vmatpush1.bf16.msra.mxu0 0
      %2224 = vmatprep.subr.bf16.mxu0 0
      %2225 = vmatpush1.bf16.msra.mxu0 0
      %2226 = vmatprep.subr.bf16.mxu0 0
      %2227 = vmatpush1.bf16.msra.mxu0 0
      %2228 = vmatprep.subr.bf16.mxu0 0
      %2229 = vmatpush1.bf16.msra.mxu0 0
      %2230 = vmatprep.subr.bf16.mxu0 0
      %2231 = vmatpush1.bf16.msra.mxu0 0
      %2232 = vmatprep.subr.bf16.mxu0 0
      %2233 = vmatpush1.bf16.msra.mxu0 0
      %2234 = vmatprep.subr.bf16.mxu0 0
      %2235 = vmatpush1.bf16.msra.mxu0 0
      %2236 = vmatprep.subr.bf16.mxu0 0
      %2237 = vmatpush1.bf16.msra.mxu0 0
      %2238 = vmatprep.subr.bf16.mxu0 0
      %2239 = vmatpush1.bf16.msra.mxu0 0
      %2240 = vmatprep.mubr.bf16.mxu0 0
      %2241 = vmatmul.mubr.bf16.gmra.mrb[0].mxu0 %v2203
      %v2242 = vpop.f32.mrb[0].mxu0
      %v2243 = vadd.f32 0.0, %v2242
      %v2244 = vpop.f32.mrb[0].mxu0
      %v2245 = vpop.f32.mrb[0].mxu0
      %v2246 = vpop.f32.mrb[0].mxu0
      %2247 = vdwg.mxu0
      %2248 = vrot.lane.b32.xlu0 %v1756, 64
      %v2249 = vpop.permute.xlu0 %2248
      %v2251 = vsel %vm1912, %v1909, 0
      %v2254 = vsel %vm1916, %v2249, 0
      %2256 = vmatprep.subr.bf16.mxu0 0
      %2257 = vmatpush1.bf16.msra.mxu0 %v2254
      %2258 = vmatprep.subr.bf16.mxu0 0
      %2259 = vmatpush1.bf16.msra.mxu0 0
      %2260 = vmatprep.subr.bf16.mxu0 0
      %2261 = vmatpush1.bf16.msra.mxu0 0
      %2262 = vmatprep.subr.bf16.mxu0 0
      %2263 = vmatpush1.bf16.msra.mxu0 0
      %2264 = vmatprep.subr.bf16.mxu0 0
      %2265 = vmatpush1.bf16.msra.mxu0 0
      %2266 = vmatprep.subr.bf16.mxu0 0
      %2267 = vmatpush1.bf16.msra.mxu0 0
      %2268 = vmatprep.subr.bf16.mxu0 0
      %2269 = vmatpush1.bf16.msra.mxu0 0
      %2270 = vmatprep.subr.bf16.mxu0 0
      %2271 = vmatpush1.bf16.msra.mxu0 0
      %2272 = vmatprep.subr.bf16.mxu0 0
      %2273 = vmatpush1.bf16.msra.mxu0 0
      %2274 = vmatprep.subr.bf16.mxu0 0
      %2275 = vmatpush1.bf16.msra.mxu0 0
      %2276 = vmatprep.subr.bf16.mxu0 0
      %2277 = vmatpush1.bf16.msra.mxu0 0
      %2278 = vmatprep.subr.bf16.mxu0 0
      %2279 = vmatpush1.bf16.msra.mxu0 0
      %2280 = vmatprep.subr.bf16.mxu0 0
      %2281 = vmatpush1.bf16.msra.mxu0 0
      %2282 = vmatprep.subr.bf16.mxu0 0
      %2283 = vmatpush1.bf16.msra.mxu0 0
      %2284 = vmatprep.subr.bf16.mxu0 0
      %2285 = vmatpush1.bf16.msra.mxu0 0
      %2286 = vmatprep.subr.bf16.mxu0 0
      %2287 = vmatpush1.bf16.msra.mxu0 0
      %2288 = vmatprep.mubr.bf16.mxu0 0
      %2289 = vmatmul.mubr.bf16.gmra.mrb[0].mxu0 %v2251
      %v2290 = vpop.f32.mrb[0].mxu0
      %v2291 = vadd.f32 0.0, %v2290
      %v2292 = vpop.f32.mrb[0].mxu0
      %v2293 = vpop.f32.mrb[0].mxu0
      %v2294 = vpop.f32.mrb[0].mxu0
      %2295 = vdwg.mxu0
      %2296 = vrot.lane.b32.xlu0 %v1321, 120
      %v2297 = vpop.permute.xlu0 %2296
      %2298 = vrot.lane.b32.xlu0 %v1321, 88
      %v2299 = vpop.permute.xlu0 %2298
      %v2301 = vsel %vm1324, %v2297, 0
      %v2304 = vsel %vm1324, %v2299, 0
      %2306 = vmatprep.subr.bf16.mxu0 0
      %2307 = vmatpush1.bf16.xpose.msra.mxu0 %v2304
      %2308 = vmatprep.subr.bf16.mxu0 0
      %2309 = vmatpush1.bf16.xpose.msra.mxu0 0
      %2310 = vmatprep.subr.bf16.mxu0 0
      %2311 = vmatpush1.bf16.xpose.msra.mxu0 0
      %2312 = vmatprep.subr.bf16.mxu0 0
      %2313 = vmatpush1.bf16.xpose.msra.mxu0 0
      %2314 = vmatprep.subr.bf16.mxu0 0
      %2315 = vmatpush1.bf16.xpose.msra.mxu0 0
      %2316 = vmatprep.subr.bf16.mxu0 0
      %2317 = vmatpush1.bf16.xpose.msra.mxu0 0
      %2318 = vmatprep.subr.bf16.mxu0 0
      %2319 = vmatpush1.bf16.xpose.msra.mxu0 0
      %2320 = vmatprep.subr.bf16.mxu0 0
      %2321 = vmatpush1.bf16.xpose.msra.mxu0 0
      %2322 = vmatprep.subr.bf16.mxu0 0
      %2323 = vmatpush1.bf16.xpose.msra.mxu0 0
      %2324 = vmatprep.subr.bf16.mxu0 0
      %2325 = vmatpush1.bf16.xpose.msra.mxu0 0
      %2326 = vmatprep.subr.bf16.mxu0 0
      %2327 = vmatpush1.bf16.xpose.msra.mxu0 0
      %2328 = vmatprep.subr.bf16.mxu0 0
      %2329 = vmatpush1.bf16.xpose.msra.mxu0 0
      %2330 = vmatprep.subr.bf16.mxu0 0
      %2331 = vmatpush1.bf16.xpose.msra.mxu0 0
      %2332 = vmatprep.subr.bf16.mxu0 0
      %2333 = vmatpush1.bf16.xpose.msra.mxu0 0
      %2334 = vmatprep.subr.bf16.mxu0 0
      %2335 = vmatpush1.bf16.xpose.msra.mxu0 0
      %2336 = vmatprep.subr.bf16.mxu0 0
      %2337 = vmatpush1.bf16.xpose.msra.mxu0 0
      %2338 = vmatprep.mubr.bf16.mxu0 0
      %2339 = vmatmul.mubr.bf16.gmra.mrb[0].mxu0 %v2301
      %v2340 = vpop.f32.mrb[0].mxu0
      %v2341 = vadd.f32 0.0, %v2340
      %v2342 = vpop.f32.mrb[0].mxu0
      %v2343 = vpop.f32.mrb[0].mxu0
      %v2344 = vpop.f32.mrb[0].mxu0
      %2345 = vdwg.mxu0
      %2346 = vrot.lane.b32.xlu0 %v1384, 120
      %v2347 = vpop.permute.xlu0 %2346
      %2348 = vrot.lane.b32.xlu0 %v1384, 88
      %v2349 = vpop.permute.xlu0 %2348
      %v2351 = vsel %vm1324, %v2347, 0
      %v2354 = vsel %vm1324, %v2349, 0
      %2356 = vmatprep.subr.bf16.mxu0 0
      %2357 = vmatpush1.bf16.xpose.msra.mxu0 %v2354
      %2358 = vmatprep.subr.bf16.mxu0 0
      %2359 = vmatpush1.bf16.xpose.msra.mxu0 0
      %2360 = vmatprep.subr.bf16.mxu0 0
      %2361 = vmatpush1.bf16.xpose.msra.mxu0 0
      %2362 = vmatprep.subr.bf16.mxu0 0
      %2363 = vmatpush1.bf16.xpose.msra.mxu0 0
      %2364 = vmatprep.subr.bf16.mxu0 0
      %2365 = vmatpush1.bf16.xpose.msra.mxu0 0
      %2366 = vmatprep.subr.bf16.mxu0 0
      %2367 = vmatpush1.bf16.xpose.msra.mxu0 0
      %2368 = vmatprep.subr.bf16.mxu0 0
      %2369 = vmatpush1.bf16.xpose.msra.mxu0 0
      %2370 = vmatprep.subr.bf16.mxu0 0
      %2371 = vmatpush1.bf16.xpose.msra.mxu0 0
      %2372 = vmatprep.subr.bf16.mxu0 0
      %2373 = vmatpush1.bf16.xpose.msra.mxu0 0
      %2374 = vmatprep.subr.bf16.mxu0 0
      %2375 = vmatpush1.bf16.xpose.msra.mxu0 0
      %2376 = vmatprep.subr.bf16.mxu0 0
      %2377 = vmatpush1.bf16.xpose.msra.mxu0 0
      %2378 = vmatprep.subr.bf16.mxu0 0
      %2379 = vmatpush1.bf16.xpose.msra.mxu0 0
      %2380 = vmatprep.subr.bf16.mxu0 0
      %2381 = vmatpush1.bf16.xpose.msra.mxu0 0
      %2382 = vmatprep.subr.bf16.mxu0 0
      %2383 = vmatpush1.bf16.xpose.msra.mxu0 0
      %2384 = vmatprep.subr.bf16.mxu0 0
      %2385 = vmatpush1.bf16.xpose.msra.mxu0 0
      %2386 = vmatprep.subr.bf16.mxu0 0
      %2387 = vmatpush1.bf16.xpose.msra.mxu0 0
      %2388 = vmatprep.mubr.bf16.mxu0 0
      %2389 = vmatmul.mubr.bf16.gmra.mrb[0].mxu0 %v2351
      %v2390 = vpop.f32.mrb[0].mxu0
      %v2391 = vadd.f32 0.0, %v2390
      %v2392 = vpop.f32.mrb[0].mxu0
      %v2393 = vpop.f32.mrb[0].mxu0
      %v2394 = vpop.f32.mrb[0].mxu0
      %2395 = vdwg.mxu0
      %2396 = vrot.lane.b32.xlu0 %v1446, 120
      %v2397 = vpop.permute.xlu0 %2396
      %2398 = vrot.lane.b32.xlu0 %v1446, 88
      %v2399 = vpop.permute.xlu0 %2398
      %v2401 = vsel %vm1324, %v2397, 0
      %v2404 = vsel %vm1324, %v2399, 0
      %2406 = vmatprep.subr.bf16.mxu0 0
      %2407 = vmatpush1.bf16.xpose.msra.mxu0 %v2404
      %2408 = vmatprep.subr.bf16.mxu0 0
      %2409 = vmatpush1.bf16.xpose.msra.mxu0 0
      %2410 = vmatprep.subr.bf16.mxu0 0
      %2411 = vmatpush1.bf16.xpose.msra.mxu0 0
      %2412 = vmatprep.subr.bf16.mxu0 0
      %2413 = vmatpush1.bf16.xpose.msra.mxu0 0
      %2414 = vmatprep.subr.bf16.mxu0 0
      %2415 = vmatpush1.bf16.xpose.msra.mxu0 0
      %2416 = vmatprep.subr.bf16.mxu0 0
      %2417 = vmatpush1.bf16.xpose.msra.mxu0 0
      %2418 = vmatprep.subr.bf16.mxu0 0
      %2419 = vmatpush1.bf16.xpose.msra.mxu0 0
      %2420 = vmatprep.subr.bf16.mxu0 0
      %2421 = vmatpush1.bf16.xpose.msra.mxu0 0
      %2422 = vmatprep.subr.bf16.mxu0 0
      %2423 = vmatpush1.bf16.xpose.msra.mxu0 0
      %2424 = vmatprep.subr.bf16.mxu0 0
      %2425 = vmatpush1.bf16.xpose.msra.mxu0 0
      %2426 = vmatprep.subr.bf16.mxu0 0
      %2427 = vmatpush1.bf16.xpose.msra.mxu0 0
      %2428 = vmatprep.subr.bf16.mxu0 0
      %2429 = vmatpush1.bf16.xpose.msra.mxu0 0
      %2430 = vmatprep.subr.bf16.mxu0 0
      %2431 = vmatpush1.bf16.xpose.msra.mxu0 0
      %2432 = vmatprep.subr.bf16.mxu0 0
      %2433 = vmatpush1.bf16.xpose.msra.mxu0 0
      %2434 = vmatprep.subr.bf16.mxu0 0
      %2435 = vmatpush1.bf16.xpose.msra.mxu0 0
      %2436 = vmatprep.subr.bf16.mxu0 0
      %2437 = vmatpush1.bf16.xpose.msra.mxu0 0
      %2438 = vmatprep.mubr.bf16.mxu0 0
      %2439 = vmatmul.mubr.bf16.gmra.mrb[0].mxu0 %v2401
      %v2440 = vpop.f32.mrb[0].mxu0
      %v2441 = vadd.f32 0.0, %v2440
      %v2442 = vpop.f32.mrb[0].mxu0
      %v2443 = vpop.f32.mrb[0].mxu0
      %v2444 = vpop.f32.mrb[0].mxu0
      %2445 = vdwg.mxu0
      %2446 = vrot.lane.b32.xlu0 %v1508, 120
      %v2447 = vpop.permute.xlu0 %2446
      %2448 = vrot.lane.b32.xlu0 %v1508, 88
      %v2449 = vpop.permute.xlu0 %2448
      %v2451 = vsel %vm1324, %v2447, 0
      %v2454 = vsel %vm1324, %v2449, 0
      %2456 = vmatprep.subr.bf16.mxu0 0
      %2457 = vmatpush1.bf16.xpose.msra.mxu0 %v2454
      %2458 = vmatprep.subr.bf16.mxu0 0
      %2459 = vmatpush1.bf16.xpose.msra.mxu0 0
      %2460 = vmatprep.subr.bf16.mxu0 0
      %2461 = vmatpush1.bf16.xpose.msra.mxu0 0
      %2462 = vmatprep.subr.bf16.mxu0 0
      %2463 = vmatpush1.bf16.xpose.msra.mxu0 0
      %2464 = vmatprep.subr.bf16.mxu0 0
      %2465 = vmatpush1.bf16.xpose.msra.mxu0 0
      %2466 = vmatprep.subr.bf16.mxu0 0
      %2467 = vmatpush1.bf16.xpose.msra.mxu0 0
      %2468 = vmatprep.subr.bf16.mxu0 0
      %2469 = vmatpush1.bf16.xpose.msra.mxu0 0
      %2470 = vmatprep.subr.bf16.mxu0 0
      %2471 = vmatpush1.bf16.xpose.msra.mxu0 0
      %2472 = vmatprep.subr.bf16.mxu0 0
      %2473 = vmatpush1.bf16.xpose.msra.mxu0 0
      %2474 = vmatprep.subr.bf16.mxu0 0
      %2475 = vmatpush1.bf16.xpose.msra.mxu0 0
      %2476 = vmatprep.subr.bf16.mxu0 0
      %2477 = vmatpush1.bf16.xpose.msra.mxu0 0
      %2478 = vmatprep.subr.bf16.mxu0 0
      %2479 = vmatpush1.bf16.xpose.msra.mxu0 0
      %2480 = vmatprep.subr.bf16.mxu0 0
      %2481 = vmatpush1.bf16.xpose.msra.mxu0 0
      %2482 = vmatprep.subr.bf16.mxu0 0
      %2483 = vmatpush1.bf16.xpose.msra.mxu0 0
      %2484 = vmatprep.subr.bf16.mxu0 0
      %2485 = vmatpush1.bf16.xpose.msra.mxu0 0
      %2486 = vmatprep.subr.bf16.mxu0 0
      %2487 = vmatpush1.bf16.xpose.msra.mxu0 0
      %2488 = vmatprep.mubr.bf16.mxu0 0
      %2489 = vmatmul.mubr.bf16.gmra.mrb[0].mxu0 %v2451
      %v2490 = vpop.f32.mrb[0].mxu0
      %v2491 = vadd.f32 0.0, %v2490
      %v2492 = vpop.f32.mrb[0].mxu0
      %v2493 = vpop.f32.mrb[0].mxu0
      %v2494 = vpop.f32.mrb[0].mxu0
      %2495 = vdwg.mxu0
      %2496 = vrot.lane.b32.xlu0 %v1570, 120
      %v2497 = vpop.permute.xlu0 %2496
      %2498 = vrot.lane.b32.xlu0 %v1570, 88
      %v2499 = vpop.permute.xlu0 %2498
      %v2501 = vsel %vm1324, %v2497, 0
      %v2504 = vsel %vm1324, %v2499, 0
      %2506 = vmatprep.subr.bf16.mxu0 0
      %2507 = vmatpush1.bf16.xpose.msra.mxu0 %v2504
      %2508 = vmatprep.subr.bf16.mxu0 0
      %2509 = vmatpush1.bf16.xpose.msra.mxu0 0
      %2510 = vmatprep.subr.bf16.mxu0 0
      %2511 = vmatpush1.bf16.xpose.msra.mxu0 0
      %2512 = vmatprep.subr.bf16.mxu0 0
      %2513 = vmatpush1.bf16.xpose.msra.mxu0 0
      %2514 = vmatprep.subr.bf16.mxu0 0
      %2515 = vmatpush1.bf16.xpose.msra.mxu0 0
      %2516 = vmatprep.subr.bf16.mxu0 0
      %2517 = vmatpush1.bf16.xpose.msra.mxu0 0
      %2518 = vmatprep.subr.bf16.mxu0 0
      %2519 = vmatpush1.bf16.xpose.msra.mxu0 0
      %2520 = vmatprep.subr.bf16.mxu0 0
      %2521 = vmatpush1.bf16.xpose.msra.mxu0 0
      %2522 = vmatprep.subr.bf16.mxu0 0
      %2523 = vmatpush1.bf16.xpose.msra.mxu0 0
      %2524 = vmatprep.subr.bf16.mxu0 0
      %2525 = vmatpush1.bf16.xpose.msra.mxu0 0
      %2526 = vmatprep.subr.bf16.mxu0 0
      %2527 = vmatpush1.bf16.xpose.msra.mxu0 0
      %2528 = vmatprep.subr.bf16.mxu0 0
      %2529 = vmatpush1.bf16.xpose.msra.mxu0 0
      %2530 = vmatprep.subr.bf16.mxu0 0
      %2531 = vmatpush1.bf16.xpose.msra.mxu0 0
      %2532 = vmatprep.subr.bf16.mxu0 0
      %2533 = vmatpush1.bf16.xpose.msra.mxu0 0
      %2534 = vmatprep.subr.bf16.mxu0 0
      %2535 = vmatpush1.bf16.xpose.msra.mxu0 0
      %2536 = vmatprep.subr.bf16.mxu0 0
      %2537 = vmatpush1.bf16.xpose.msra.mxu0 0
      %2538 = vmatprep.mubr.bf16.mxu0 0
      %2539 = vmatmul.mubr.bf16.gmra.mrb[0].mxu0 %v2501
      %v2540 = vpop.f32.mrb[0].mxu0
      %v2541 = vadd.f32 0.0, %v2540
      %v2542 = vpop.f32.mrb[0].mxu0
      %v2543 = vpop.f32.mrb[0].mxu0
      %v2544 = vpop.f32.mrb[0].mxu0
      %2545 = vdwg.mxu0
      %2546 = vrot.lane.b32.xlu0 %v1632, 120
      %v2547 = vpop.permute.xlu0 %2546
      %2548 = vrot.lane.b32.xlu0 %v1632, 88
      %v2549 = vpop.permute.xlu0 %2548
      %v2551 = vsel %vm1324, %v2547, 0
      %v2554 = vsel %vm1324, %v2549, 0
      %2556 = vmatprep.subr.bf16.mxu0 0
      %2557 = vmatpush1.bf16.xpose.msra.mxu0 %v2554
      %2558 = vmatprep.subr.bf16.mxu0 0
      %2559 = vmatpush1.bf16.xpose.msra.mxu0 0
      %2560 = vmatprep.subr.bf16.mxu0 0
      %2561 = vmatpush1.bf16.xpose.msra.mxu0 0
      %2562 = vmatprep.subr.bf16.mxu0 0
      %2563 = vmatpush1.bf16.xpose.msra.mxu0 0
      %2564 = vmatprep.subr.bf16.mxu0 0
      %2565 = vmatpush1.bf16.xpose.msra.mxu0 0
      %2566 = vmatprep.subr.bf16.mxu0 0
      %2567 = vmatpush1.bf16.xpose.msra.mxu0 0
      %2568 = vmatprep.subr.bf16.mxu0 0
      %2569 = vmatpush1.bf16.xpose.msra.mxu0 0
      %2570 = vmatprep.subr.bf16.mxu0 0
      %2571 = vmatpush1.bf16.xpose.msra.mxu0 0
      %2572 = vmatprep.subr.bf16.mxu0 0
      %2573 = vmatpush1.bf16.xpose.msra.mxu0 0
      %2574 = vmatprep.subr.bf16.mxu0 0
      %2575 = vmatpush1.bf16.xpose.msra.mxu0 0
      %2576 = vmatprep.subr.bf16.mxu0 0
      %2577 = vmatpush1.bf16.xpose.msra.mxu0 0
      %2578 = vmatprep.subr.bf16.mxu0 0
      %2579 = vmatpush1.bf16.xpose.msra.mxu0 0
      %2580 = vmatprep.subr.bf16.mxu0 0
      %2581 = vmatpush1.bf16.xpose.msra.mxu0 0
      %2582 = vmatprep.subr.bf16.mxu0 0
      %2583 = vmatpush1.bf16.xpose.msra.mxu0 0
      %2584 = vmatprep.subr.bf16.mxu0 0
      %2585 = vmatpush1.bf16.xpose.msra.mxu0 0
      %2586 = vmatprep.subr.bf16.mxu0 0
      %2587 = vmatpush1.bf16.xpose.msra.mxu0 0
      %2588 = vmatprep.mubr.bf16.mxu0 0
      %2589 = vmatmul.mubr.bf16.gmra.mrb[0].mxu0 %v2551
      %v2590 = vpop.f32.mrb[0].mxu0
      %v2591 = vadd.f32 0.0, %v2590
      %v2592 = vpop.f32.mrb[0].mxu0
      %v2593 = vpop.f32.mrb[0].mxu0
      %v2594 = vpop.f32.mrb[0].mxu0
      %2595 = vdwg.mxu0
      %2596 = vrot.lane.b32.xlu0 %v1694, 120
      %v2597 = vpop.permute.xlu0 %2596
      %2598 = vrot.lane.b32.xlu0 %v1694, 88
      %v2599 = vpop.permute.xlu0 %2598
      %v2601 = vsel %vm1324, %v2597, 0
      %v2604 = vsel %vm1324, %v2599, 0
      %2606 = vmatprep.subr.bf16.mxu0 0
      %2607 = vmatpush1.bf16.xpose.msra.mxu0 %v2604
      %2608 = vmatprep.subr.bf16.mxu0 0
      %2609 = vmatpush1.bf16.xpose.msra.mxu0 0
      %2610 = vmatprep.subr.bf16.mxu0 0
      %2611 = vmatpush1.bf16.xpose.msra.mxu0 0
      %2612 = vmatprep.subr.bf16.mxu0 0
      %2613 = vmatpush1.bf16.xpose.msra.mxu0 0
      %2614 = vmatprep.subr.bf16.mxu0 0
      %2615 = vmatpush1.bf16.xpose.msra.mxu0 0
      %2616 = vmatprep.subr.bf16.mxu0 0
      %2617 = vmatpush1.bf16.xpose.msra.mxu0 0
      %2618 = vmatprep.subr.bf16.mxu0 0
      %2619 = vmatpush1.bf16.xpose.msra.mxu0 0
      %2620 = vmatprep.subr.bf16.mxu0 0
      %2621 = vmatpush1.bf16.xpose.msra.mxu0 0
      %2622 = vmatprep.subr.bf16.mxu0 0
      %2623 = vmatpush1.bf16.xpose.msra.mxu0 0
      %2624 = vmatprep.subr.bf16.mxu0 0
      %2625 = vmatpush1.bf16.xpose.msra.mxu0 0
      %2626 = vmatprep.subr.bf16.mxu0 0
      %2627 = vmatpush1.bf16.xpose.msra.mxu0 0
      %2628 = vmatprep.subr.bf16.mxu0 0
      %2629 = vmatpush1.bf16.xpose.msra.mxu0 0
      %2630 = vmatprep.subr.bf16.mxu0 0
      %2631 = vmatpush1.bf16.xpose.msra.mxu0 0
      %2632 = vmatprep.subr.bf16.mxu0 0
      %2633 = vmatpush1.bf16.xpose.msra.mxu0 0
      %2634 = vmatprep.subr.bf16.mxu0 0
      %2635 = vmatpush1.bf16.xpose.msra.mxu0 0
      %2636 = vmatprep.subr.bf16.mxu0 0
      %2637 = vmatpush1.bf16.xpose.msra.mxu0 0
      %2638 = vmatprep.mubr.bf16.mxu0 0
      %2639 = vmatmul.mubr.bf16.gmra.mrb[0].mxu0 %v2601
      %v2640 = vpop.f32.mrb[0].mxu0
      %v2641 = vadd.f32 0.0, %v2640
      %v2642 = vpop.f32.mrb[0].mxu0
      %v2643 = vpop.f32.mrb[0].mxu0
      %v2644 = vpop.f32.mrb[0].mxu0
      %2645 = vdwg.mxu0
      %2646 = vrot.lane.b32.xlu0 %v1756, 120
      %v2647 = vpop.permute.xlu0 %2646
      %2648 = vrot.lane.b32.xlu0 %v1756, 88
      %v2649 = vpop.permute.xlu0 %2648
      %v2651 = vsel %vm1324, %v2647, 0
      %v2654 = vsel %vm1324, %v2649, 0
      %2656 = vmatprep.subr.bf16.mxu0 0
      %2657 = vmatpush1.bf16.xpose.msra.mxu0 %v2654
      %2658 = vmatprep.subr.bf16.mxu0 0
      %2659 = vmatpush1.bf16.xpose.msra.mxu0 0
      %2660 = vmatprep.subr.bf16.mxu0 0
      %2661 = vmatpush1.bf16.xpose.msra.mxu0 0
      %2662 = vmatprep.subr.bf16.mxu0 0
      %2663 = vmatpush1.bf16.xpose.msra.mxu0 0
      %2664 = vmatprep.subr.bf16.mxu0 0
      %2665 = vmatpush1.bf16.xpose.msra.mxu0 0
      %2666 = vmatprep.subr.bf16.mxu0 0
      %2667 = vmatpush1.bf16.xpose.msra.mxu0 0
      %2668 = vmatprep.subr.bf16.mxu0 0
      %2669 = vmatpush1.bf16.xpose.msra.mxu0 0
      %2670 = vmatprep.subr.bf16.mxu0 0
      %2671 = vmatpush1.bf16.xpose.msra.mxu0 0
      %2672 = vmatprep.subr.bf16.mxu0 0
      %2673 = vmatpush1.bf16.xpose.msra.mxu0 0
      %2674 = vmatprep.subr.bf16.mxu0 0
      %2675 = vmatpush1.bf16.xpose.msra.mxu0 0
      %2676 = vmatprep.subr.bf16.mxu0 0
      %2677 = vmatpush1.bf16.xpose.msra.mxu0 0
      %2678 = vmatprep.subr.bf16.mxu0 0
      %2679 = vmatpush1.bf16.xpose.msra.mxu0 0
      %2680 = vmatprep.subr.bf16.mxu0 0
      %2681 = vmatpush1.bf16.xpose.msra.mxu0 0
      %2682 = vmatprep.subr.bf16.mxu0 0
      %2683 = vmatpush1.bf16.xpose.msra.mxu0 0
      %2684 = vmatprep.subr.bf16.mxu0 0
      %2685 = vmatpush1.bf16.xpose.msra.mxu0 0
      %2686 = vmatprep.subr.bf16.mxu0 0
      %2687 = vmatpush1.bf16.xpose.msra.mxu0 0
      %2688 = vmatprep.mubr.bf16.mxu0 0
      %2689 = vmatmul.mubr.bf16.gmra.mrb[0].mxu0 %v2651
      %v2690 = vpop.f32.mrb[0].mxu0
      %v2691 = vadd.f32 0.0, %v2690
      %v2692 = vpop.f32.mrb[0].mxu0
      %v2693 = vpop.f32.mrb[0].mxu0
      %v2694 = vpop.f32.mrb[0].mxu0
      %2695 = vdwg.mxu0
      %v2696 = vmul.f32 %v2341, 0.35355338
      %v2697 = vmul.f32 %v2391, 0.35355338
      %v2698 = vmul.f32 %v2441, 0.35355338
      %v2699 = vmul.f32 %v2491, 0.35355338
      %v2700 = vmul.f32 %v2541, 0.35355338
      %v2701 = vmul.f32 %v2591, 0.35355338
      %v2702 = vmul.f32 %v2641, 0.35355338
      %v2703 = vmul.f32 %v2691, 0.35355338
      %v2704 = vsel %vm1813, %v2696, -inf
      %2705 = vmax.xlane.f32.xlu0 %v2704
      %v2706 = vpop.xlane.xlu0 %2705
      %v2707 = vsel %vm1813, %v2697, -inf
      %2708 = vmax.xlane.f32.xlu0 %v2707
      %v2709 = vpop.xlane.xlu0 %2708
      %v2710 = vsel %vm1813, %v2698, -inf
      %2711 = vmax.xlane.f32.xlu0 %v2710
      %v2712 = vpop.xlane.xlu0 %2711
      %v2713 = vsel %vm1813, %v2699, -inf
      %2714 = vmax.xlane.f32.xlu0 %v2713
      %v2715 = vpop.xlane.xlu0 %2714
      %v2716 = vsel %vm1813, %v2700, -inf
      %2717 = vmax.xlane.f32.xlu0 %v2716
      %v2718 = vpop.xlane.xlu0 %2717
      %v2719 = vsel %vm1813, %v2701, -inf
      %2720 = vmax.xlane.f32.xlu0 %v2719
      %v2721 = vpop.xlane.xlu0 %2720
      %v2722 = vsel %vm1813, %v2702, -inf
      %2723 = vmax.xlane.f32.xlu0 %v2722
      %v2724 = vpop.xlane.xlu0 %2723
      %v2725 = vsel %vm1813, %v2703, -inf
      %2726 = vmax.xlane.f32.xlu0 %v2725
      %v2727 = vpop.xlane.xlu0 %2726
      %v2728 = vsub.f32 %v2696, %v2706
      %v2729 = vsub.f32 %v2697, %v2709
      %v2730 = vsub.f32 %v2698, %v2712
      %v2731 = vsub.f32 %v2699, %v2715
      %v2732 = vsub.f32 %v2700, %v2718
      %v2733 = vsub.f32 %v2701, %v2721
      %v2734 = vsub.f32 %v2702, %v2724
      %v2735 = vsub.f32 %v2703, %v2727
      %v2736 = vmul.f32 %v2728, 1.442695
      %v2737 = vpow.pop %v2736
      %v2738 = vmul.f32 %v2729, 1.442695
      %v2739 = vpow.pop %v2738
      %v2740 = vmul.f32 %v2730, 1.442695
      %v2741 = vpow.pop %v2740
      %v2742 = vmul.f32 %v2731, 1.442695
      %v2743 = vpow.pop %v2742
      %v2744 = vmul.f32 %v2732, 1.442695
      %v2745 = vpow.pop %v2744
      %v2746 = vmul.f32 %v2733, 1.442695
      %v2747 = vpow.pop %v2746
      %v2748 = vmul.f32 %v2734, 1.442695
      %v2749 = vpow.pop %v2748
      %v2750 = vmul.f32 %v2735, 1.442695
      %v2751 = vpow.pop %v2750
      %v2752 = vsel %vm1813, %v2737, 0.0
      %2753 = vadd.xlane.f32.xlu0 %v2752
      %v2754 = vpop.xlane.xlu0 %2753
      %v2755 = vsel %vm1813, %v2739, 0.0
      %2756 = vadd.xlane.f32.xlu0 %v2755
      %v2757 = vpop.xlane.xlu0 %2756
      %v2758 = vsel %vm1813, %v2741, 0.0
      %2759 = vadd.xlane.f32.xlu0 %v2758
      %v2760 = vpop.xlane.xlu0 %2759
      %v2761 = vsel %vm1813, %v2743, 0.0
      %2762 = vadd.xlane.f32.xlu0 %v2761
      %v2763 = vpop.xlane.xlu0 %2762
      %v2764 = vsel %vm1813, %v2745, 0.0
      %2765 = vadd.xlane.f32.xlu0 %v2764
      %v2766 = vpop.xlane.xlu0 %2765
      %v2767 = vsel %vm1813, %v2747, 0.0
      %2768 = vadd.xlane.f32.xlu0 %v2767
      %v2769 = vpop.xlane.xlu0 %2768
      %v2770 = vsel %vm1813, %v2749, 0.0
      %2771 = vadd.xlane.f32.xlu0 %v2770
      %v2772 = vpop.xlane.xlu0 %2771
      %v2773 = vsel %vm1813, %v2751, 0.0
      %2774 = vadd.xlane.f32.xlu0 %v2773
      %v2775 = vpop.xlane.xlu0 %2774
      %v2776 = vrcp.pop %v2754
      %v2777 = vrcp.pop %v2757
      %v2778 = vrcp.pop %v2760
      %v2779 = vrcp.pop %v2763
      %v2780 = vrcp.pop %v2766
      %v2781 = vrcp.pop %v2769
      %v2782 = vrcp.pop %v2772
      %v2783 = vrcp.pop %v2775
      %v2784 = vmul.f32 %v2737, %v2776
      %v2785 = vmul.f32 %v2739, %v2777
      %v2786 = vmul.f32 %v2741, %v2778
      %v2787 = vmul.f32 %v2743, %v2779
      %v2788 = vmul.f32 %v2745, %v2780
      %v2789 = vmul.f32 %v2747, %v2781
      %v2790 = vmul.f32 %v2749, %v2782
      %v2791 = vmul.f32 %v2751, %v2783
      %v2792 = vpack.c.bf16 %v2784, %v2784
      %v2793 = vpack.c.bf16 %v2785, %v2785
      %v2794 = vpack.c.bf16 %v2786, %v2786
      %v2795 = vpack.c.bf16 %v2787, %v2787
      %v2796 = vpack.c.bf16 %v2788, %v2788
      %v2797 = vpack.c.bf16 %v2789, %v2789
      %v2798 = vpack.c.bf16 %v2790, %v2790
      %v2799 = vpack.c.bf16 %v2791, %v2791
      %2800 = vrot.lane.b32.xlu0 %v1321, 56
      %v2801 = vpop.permute.xlu0 %2800
      %v2803 = vsel %vm1912, %v2792, 0
      %v2806 = vsel %vm1916, %v2801, 0
      %2808 = vmatprep.subr.bf16.mxu0 0
      %2809 = vmatpush1.bf16.msra.mxu0 %v2806
      %2810 = vmatprep.subr.bf16.mxu0 0
      %2811 = vmatpush1.bf16.msra.mxu0 0
      %2812 = vmatprep.subr.bf16.mxu0 0
      %2813 = vmatpush1.bf16.msra.mxu0 0
      %2814 = vmatprep.subr.bf16.mxu0 0
      %2815 = vmatpush1.bf16.msra.mxu0 0
      %2816 = vmatprep.subr.bf16.mxu0 0
      %2817 = vmatpush1.bf16.msra.mxu0 0
      %2818 = vmatprep.subr.bf16.mxu0 0
      %2819 = vmatpush1.bf16.msra.mxu0 0
      %2820 = vmatprep.subr.bf16.mxu0 0
      %2821 = vmatpush1.bf16.msra.mxu0 0
      %2822 = vmatprep.subr.bf16.mxu0 0
      %2823 = vmatpush1.bf16.msra.mxu0 0
      %2824 = vmatprep.subr.bf16.mxu0 0
      %2825 = vmatpush1.bf16.msra.mxu0 0
      %2826 = vmatprep.subr.bf16.mxu0 0
      %2827 = vmatpush1.bf16.msra.mxu0 0
      %2828 = vmatprep.subr.bf16.mxu0 0
      %2829 = vmatpush1.bf16.msra.mxu0 0
      %2830 = vmatprep.subr.bf16.mxu0 0
      %2831 = vmatpush1.bf16.msra.mxu0 0
      %2832 = vmatprep.subr.bf16.mxu0 0
      %2833 = vmatpush1.bf16.msra.mxu0 0
      %2834 = vmatprep.subr.bf16.mxu0 0
      %2835 = vmatpush1.bf16.msra.mxu0 0
      %2836 = vmatprep.subr.bf16.mxu0 0
      %2837 = vmatpush1.bf16.msra.mxu0 0
      %2838 = vmatprep.subr.bf16.mxu0 0
      %2839 = vmatpush1.bf16.msra.mxu0 0
      %2840 = vmatprep.mubr.bf16.mxu0 0
      %2841 = vmatmul.mubr.bf16.gmra.mrb[0].mxu0 %v2803
      %v2842 = vpop.f32.mrb[0].mxu0
      %v2843 = vadd.f32 0.0, %v2842
      %v2844 = vpop.f32.mrb[0].mxu0
      %v2845 = vpop.f32.mrb[0].mxu0
      %v2846 = vpop.f32.mrb[0].mxu0
      %2847 = vdwg.mxu0
      %2848 = vrot.lane.b32.xlu0 %v1384, 56
      %v2849 = vpop.permute.xlu0 %2848
      %v2851 = vsel %vm1912, %v2793, 0
      %v2854 = vsel %vm1916, %v2849, 0
      %2856 = vmatprep.subr.bf16.mxu0 0
      %2857 = vmatpush1.bf16.msra.mxu0 %v2854
      %2858 = vmatprep.subr.bf16.mxu0 0
      %2859 = vmatpush1.bf16.msra.mxu0 0
      %2860 = vmatprep.subr.bf16.mxu0 0
      %2861 = vmatpush1.bf16.msra.mxu0 0
      %2862 = vmatprep.subr.bf16.mxu0 0
      %2863 = vmatpush1.bf16.msra.mxu0 0
      %2864 = vmatprep.subr.bf16.mxu0 0
      %2865 = vmatpush1.bf16.msra.mxu0 0
      %2866 = vmatprep.subr.bf16.mxu0 0
      %2867 = vmatpush1.bf16.msra.mxu0 0
      %2868 = vmatprep.subr.bf16.mxu0 0
      %2869 = vmatpush1.bf16.msra.mxu0 0
      %2870 = vmatprep.subr.bf16.mxu0 0
      %2871 = vmatpush1.bf16.msra.mxu0 0
      %2872 = vmatprep.subr.bf16.mxu0 0
      %2873 = vmatpush1.bf16.msra.mxu0 0
      %2874 = vmatprep.subr.bf16.mxu0 0
      %2875 = vmatpush1.bf16.msra.mxu0 0
      %2876 = vmatprep.subr.bf16.mxu0 0
      %2877 = vmatpush1.bf16.msra.mxu0 0
      %2878 = vmatprep.subr.bf16.mxu0 0
      %2879 = vmatpush1.bf16.msra.mxu0 0
      %2880 = vmatprep.subr.bf16.mxu0 0
      %2881 = vmatpush1.bf16.msra.mxu0 0
      %2882 = vmatprep.subr.bf16.mxu0 0
      %2883 = vmatpush1.bf16.msra.mxu0 0
      %2884 = vmatprep.subr.bf16.mxu0 0
      %2885 = vmatpush1.bf16.msra.mxu0 0
      %2886 = vmatprep.subr.bf16.mxu0 0
      %2887 = vmatpush1.bf16.msra.mxu0 0
      %2888 = vmatprep.mubr.bf16.mxu0 0
      %2889 = vmatmul.mubr.bf16.gmra.mrb[0].mxu0 %v2851
      %v2890 = vpop.f32.mrb[0].mxu0
      %v2891 = vadd.f32 0.0, %v2890
      %v2892 = vpop.f32.mrb[0].mxu0
      %v2893 = vpop.f32.mrb[0].mxu0
      %v2894 = vpop.f32.mrb[0].mxu0
      %2895 = vdwg.mxu0
      %2896 = vrot.lane.b32.xlu0 %v1446, 56
      %v2897 = vpop.permute.xlu0 %2896
      %v2899 = vsel %vm1912, %v2794, 0
      %v2902 = vsel %vm1916, %v2897, 0
      %2904 = vmatprep.subr.bf16.mxu0 0
      %2905 = vmatpush1.bf16.msra.mxu0 %v2902
      %2906 = vmatprep.subr.bf16.mxu0 0
      %2907 = vmatpush1.bf16.msra.mxu0 0
      %2908 = vmatprep.subr.bf16.mxu0 0
      %2909 = vmatpush1.bf16.msra.mxu0 0
      %2910 = vmatprep.subr.bf16.mxu0 0
      %2911 = vmatpush1.bf16.msra.mxu0 0
      %2912 = vmatprep.subr.bf16.mxu0 0
      %2913 = vmatpush1.bf16.msra.mxu0 0
      %2914 = vmatprep.subr.bf16.mxu0 0
      %2915 = vmatpush1.bf16.msra.mxu0 0
      %2916 = vmatprep.subr.bf16.mxu0 0
      %2917 = vmatpush1.bf16.msra.mxu0 0
      %2918 = vmatprep.subr.bf16.mxu0 0
      %2919 = vmatpush1.bf16.msra.mxu0 0
      %2920 = vmatprep.subr.bf16.mxu0 0
      %2921 = vmatpush1.bf16.msra.mxu0 0
      %2922 = vmatprep.subr.bf16.mxu0 0
      %2923 = vmatpush1.bf16.msra.mxu0 0
      %2924 = vmatprep.subr.bf16.mxu0 0
      %2925 = vmatpush1.bf16.msra.mxu0 0
      %2926 = vmatprep.subr.bf16.mxu0 0
      %2927 = vmatpush1.bf16.msra.mxu0 0
      %2928 = vmatprep.subr.bf16.mxu0 0
      %2929 = vmatpush1.bf16.msra.mxu0 0
      %2930 = vmatprep.subr.bf16.mxu0 0
      %2931 = vmatpush1.bf16.msra.mxu0 0
      %2932 = vmatprep.subr.bf16.mxu0 0
      %2933 = vmatpush1.bf16.msra.mxu0 0
      %2934 = vmatprep.subr.bf16.mxu0 0
      %2935 = vmatpush1.bf16.msra.mxu0 0
      %2936 = vmatprep.mubr.bf16.mxu0 0
      %2937 = vmatmul.mubr.bf16.gmra.mrb[0].mxu0 %v2899
      %v2938 = vpop.f32.mrb[0].mxu0
      %v2939 = vadd.f32 0.0, %v2938
      %v2940 = vpop.f32.mrb[0].mxu0
      %v2941 = vpop.f32.mrb[0].mxu0
      %v2942 = vpop.f32.mrb[0].mxu0
      %2943 = vdwg.mxu0
      %2944 = vrot.lane.b32.xlu0 %v1508, 56
      %v2945 = vpop.permute.xlu0 %2944
      %v2947 = vsel %vm1912, %v2795, 0
      %v2950 = vsel %vm1916, %v2945, 0
      %2952 = vmatprep.subr.bf16.mxu0 0
      %2953 = vmatpush1.bf16.msra.mxu0 %v2950
      %2954 = vmatprep.subr.bf16.mxu0 0
      %2955 = vmatpush1.bf16.msra.mxu0 0
      %2956 = vmatprep.subr.bf16.mxu0 0
      %2957 = vmatpush1.bf16.msra.mxu0 0
      %2958 = vmatprep.subr.bf16.mxu0 0
      %2959 = vmatpush1.bf16.msra.mxu0 0
      %2960 = vmatprep.subr.bf16.mxu0 0
      %2961 = vmatpush1.bf16.msra.mxu0 0
      %2962 = vmatprep.subr.bf16.mxu0 0
      %2963 = vmatpush1.bf16.msra.mxu0 0
      %2964 = vmatprep.subr.bf16.mxu0 0
      %2965 = vmatpush1.bf16.msra.mxu0 0
      %2966 = vmatprep.subr.bf16.mxu0 0
      %2967 = vmatpush1.bf16.msra.mxu0 0
      %2968 = vmatprep.subr.bf16.mxu0 0
      %2969 = vmatpush1.bf16.msra.mxu0 0
      %2970 = vmatprep.subr.bf16.mxu0 0
      %2971 = vmatpush1.bf16.msra.mxu0 0
      %2972 = vmatprep.subr.bf16.mxu0 0
      %2973 = vmatpush1.bf16.msra.mxu0 0
      %2974 = vmatprep.subr.bf16.mxu0 0
      %2975 = vmatpush1.bf16.msra.mxu0 0
      %2976 = vmatprep.subr.bf16.mxu0 0
      %2977 = vmatpush1.bf16.msra.mxu0 0
      %2978 = vmatprep.subr.bf16.mxu0 0
      %2979 = vmatpush1.bf16.msra.mxu0 0
      %2980 = vmatprep.subr.bf16.mxu0 0
      %2981 = vmatpush1.bf16.msra.mxu0 0
      %2982 = vmatprep.subr.bf16.mxu0 0
      %2983 = vmatpush1.bf16.msra.mxu0 0
      %2984 = vmatprep.mubr.bf16.mxu0 0
      %2985 = vmatmul.mubr.bf16.gmra.mrb[0].mxu0 %v2947
      %v2986 = vpop.f32.mrb[0].mxu0
      %v2987 = vadd.f32 0.0, %v2986
      %v2988 = vpop.f32.mrb[0].mxu0
      %v2989 = vpop.f32.mrb[0].mxu0
      %v2990 = vpop.f32.mrb[0].mxu0
      %2991 = vdwg.mxu0
      %2992 = vrot.lane.b32.xlu0 %v1570, 56
      %v2993 = vpop.permute.xlu0 %2992
      %v2995 = vsel %vm1912, %v2796, 0
      %v2998 = vsel %vm1916, %v2993, 0
      %3000 = vmatprep.subr.bf16.mxu0 0
      %3001 = vmatpush1.bf16.msra.mxu0 %v2998
      %3002 = vmatprep.subr.bf16.mxu0 0
      %3003 = vmatpush1.bf16.msra.mxu0 0
      %3004 = vmatprep.subr.bf16.mxu0 0
      %3005 = vmatpush1.bf16.msra.mxu0 0
      %3006 = vmatprep.subr.bf16.mxu0 0
      %3007 = vmatpush1.bf16.msra.mxu0 0
      %3008 = vmatprep.subr.bf16.mxu0 0
      %3009 = vmatpush1.bf16.msra.mxu0 0
      %3010 = vmatprep.subr.bf16.mxu0 0
      %3011 = vmatpush1.bf16.msra.mxu0 0
      %3012 = vmatprep.subr.bf16.mxu0 0
      %3013 = vmatpush1.bf16.msra.mxu0 0
      %3014 = vmatprep.subr.bf16.mxu0 0
      %3015 = vmatpush1.bf16.msra.mxu0 0
      %3016 = vmatprep.subr.bf16.mxu0 0
      %3017 = vmatpush1.bf16.msra.mxu0 0
      %3018 = vmatprep.subr.bf16.mxu0 0
      %3019 = vmatpush1.bf16.msra.mxu0 0
      %3020 = vmatprep.subr.bf16.mxu0 0
      %3021 = vmatpush1.bf16.msra.mxu0 0
      %3022 = vmatprep.subr.bf16.mxu0 0
      %3023 = vmatpush1.bf16.msra.mxu0 0
      %3024 = vmatprep.subr.bf16.mxu0 0
      %3025 = vmatpush1.bf16.msra.mxu0 0
      %3026 = vmatprep.subr.bf16.mxu0 0
      %3027 = vmatpush1.bf16.msra.mxu0 0
      %3028 = vmatprep.subr.bf16.mxu0 0
      %3029 = vmatpush1.bf16.msra.mxu0 0
      %3030 = vmatprep.subr.bf16.mxu0 0
      %3031 = vmatpush1.bf16.msra.mxu0 0
      %3032 = vmatprep.mubr.bf16.mxu0 0
      %3033 = vmatmul.mubr.bf16.gmra.mrb[0].mxu0 %v2995
      %v3034 = vpop.f32.mrb[0].mxu0
      %v3035 = vadd.f32 0.0, %v3034
      %v3036 = vpop.f32.mrb[0].mxu0
      %v3037 = vpop.f32.mrb[0].mxu0
      %v3038 = vpop.f32.mrb[0].mxu0
      %3039 = vdwg.mxu0
      %3040 = vrot.lane.b32.xlu0 %v1632, 56
      %v3041 = vpop.permute.xlu0 %3040
      %v3043 = vsel %vm1912, %v2797, 0
      %v3046 = vsel %vm1916, %v3041, 0
      %3048 = vmatprep.subr.bf16.mxu0 0
      %3049 = vmatpush1.bf16.msra.mxu0 %v3046
      %3050 = vmatprep.subr.bf16.mxu0 0
      %3051 = vmatpush1.bf16.msra.mxu0 0
      %3052 = vmatprep.subr.bf16.mxu0 0
      %3053 = vmatpush1.bf16.msra.mxu0 0
      %3054 = vmatprep.subr.bf16.mxu0 0
      %3055 = vmatpush1.bf16.msra.mxu0 0
      %3056 = vmatprep.subr.bf16.mxu0 0
      %3057 = vmatpush1.bf16.msra.mxu0 0
      %3058 = vmatprep.subr.bf16.mxu0 0
      %3059 = vmatpush1.bf16.msra.mxu0 0
      %3060 = vmatprep.subr.bf16.mxu0 0
      %3061 = vmatpush1.bf16.msra.mxu0 0
      %3062 = vmatprep.subr.bf16.mxu0 0
      %3063 = vmatpush1.bf16.msra.mxu0 0
      %3064 = vmatprep.subr.bf16.mxu0 0
      %3065 = vmatpush1.bf16.msra.mxu0 0
      %3066 = vmatprep.subr.bf16.mxu0 0
      %3067 = vmatpush1.bf16.msra.mxu0 0
      %3068 = vmatprep.subr.bf16.mxu0 0
      %3069 = vmatpush1.bf16.msra.mxu0 0
      %3070 = vmatprep.subr.bf16.mxu0 0
      %3071 = vmatpush1.bf16.msra.mxu0 0
      %3072 = vmatprep.subr.bf16.mxu0 0
      %3073 = vmatpush1.bf16.msra.mxu0 0
      %3074 = vmatprep.subr.bf16.mxu0 0
      %3075 = vmatpush1.bf16.msra.mxu0 0
      %3076 = vmatprep.subr.bf16.mxu0 0
      %3077 = vmatpush1.bf16.msra.mxu0 0
      %3078 = vmatprep.subr.bf16.mxu0 0
      %3079 = vmatpush1.bf16.msra.mxu0 0
      %3080 = vmatprep.mubr.bf16.mxu0 0
      %3081 = vmatmul.mubr.bf16.gmra.mrb[0].mxu0 %v3043
      %v3082 = vpop.f32.mrb[0].mxu0
      %v3083 = vadd.f32 0.0, %v3082
      %v3084 = vpop.f32.mrb[0].mxu0
      %v3085 = vpop.f32.mrb[0].mxu0
      %v3086 = vpop.f32.mrb[0].mxu0
      %3087 = vdwg.mxu0
      %3088 = vrot.lane.b32.xlu0 %v1694, 56
      %v3089 = vpop.permute.xlu0 %3088
      %v3091 = vsel %vm1912, %v2798, 0
      %v3094 = vsel %vm1916, %v3089, 0
      %3096 = vmatprep.subr.bf16.mxu0 0
      %3097 = vmatpush1.bf16.msra.mxu0 %v3094
      %3098 = vmatprep.subr.bf16.mxu0 0
      %3099 = vmatpush1.bf16.msra.mxu0 0
      %3100 = vmatprep.subr.bf16.mxu0 0
      %3101 = vmatpush1.bf16.msra.mxu0 0
      %3102 = vmatprep.subr.bf16.mxu0 0
      %3103 = vmatpush1.bf16.msra.mxu0 0
      %3104 = vmatprep.subr.bf16.mxu0 0
      %3105 = vmatpush1.bf16.msra.mxu0 0
      %3106 = vmatprep.subr.bf16.mxu0 0
      %3107 = vmatpush1.bf16.msra.mxu0 0
      %3108 = vmatprep.subr.bf16.mxu0 0
      %3109 = vmatpush1.bf16.msra.mxu0 0
      %3110 = vmatprep.subr.bf16.mxu0 0
      %3111 = vmatpush1.bf16.msra.mxu0 0
      %3112 = vmatprep.subr.bf16.mxu0 0
      %3113 = vmatpush1.bf16.msra.mxu0 0
      %3114 = vmatprep.subr.bf16.mxu0 0
      %3115 = vmatpush1.bf16.msra.mxu0 0
      %3116 = vmatprep.subr.bf16.mxu0 0
      %3117 = vmatpush1.bf16.msra.mxu0 0
      %3118 = vmatprep.subr.bf16.mxu0 0
      %3119 = vmatpush1.bf16.msra.mxu0 0
      %3120 = vmatprep.subr.bf16.mxu0 0
      %3121 = vmatpush1.bf16.msra.mxu0 0
      %3122 = vmatprep.subr.bf16.mxu0 0
      %3123 = vmatpush1.bf16.msra.mxu0 0
      %3124 = vmatprep.subr.bf16.mxu0 0
      %3125 = vmatpush1.bf16.msra.mxu0 0
      %3126 = vmatprep.subr.bf16.mxu0 0
      %3127 = vmatpush1.bf16.msra.mxu0 0
      %3128 = vmatprep.mubr.bf16.mxu0 0
      %3129 = vmatmul.mubr.bf16.gmra.mrb[0].mxu0 %v3091
      %v3130 = vpop.f32.mrb[0].mxu0
      %v3131 = vadd.f32 0.0, %v3130
      %v3132 = vpop.f32.mrb[0].mxu0
      %v3133 = vpop.f32.mrb[0].mxu0
      %v3134 = vpop.f32.mrb[0].mxu0
      %3135 = vdwg.mxu0
      %3136 = vrot.lane.b32.xlu0 %v1756, 56
      %v3137 = vpop.permute.xlu0 %3136
      %v3139 = vsel %vm1912, %v2799, 0
      %v3142 = vsel %vm1916, %v3137, 0
      %3144 = vmatprep.subr.bf16.mxu0 0
      %3145 = vmatpush1.bf16.msra.mxu0 %v3142
      %3146 = vmatprep.subr.bf16.mxu0 0
      %3147 = vmatpush1.bf16.msra.mxu0 0
      %3148 = vmatprep.subr.bf16.mxu0 0
      %3149 = vmatpush1.bf16.msra.mxu0 0
      %3150 = vmatprep.subr.bf16.mxu0 0
      %3151 = vmatpush1.bf16.msra.mxu0 0
      %3152 = vmatprep.subr.bf16.mxu0 0
      %3153 = vmatpush1.bf16.msra.mxu0 0
      %3154 = vmatprep.subr.bf16.mxu0 0
      %3155 = vmatpush1.bf16.msra.mxu0 0
      %3156 = vmatprep.subr.bf16.mxu0 0
      %3157 = vmatpush1.bf16.msra.mxu0 0
      %3158 = vmatprep.subr.bf16.mxu0 0
      %3159 = vmatpush1.bf16.msra.mxu0 0
      %3160 = vmatprep.subr.bf16.mxu0 0
      %3161 = vmatpush1.bf16.msra.mxu0 0
      %3162 = vmatprep.subr.bf16.mxu0 0
      %3163 = vmatpush1.bf16.msra.mxu0 0
      %3164 = vmatprep.subr.bf16.mxu0 0
      %3165 = vmatpush1.bf16.msra.mxu0 0
      %3166 = vmatprep.subr.bf16.mxu0 0
      %3167 = vmatpush1.bf16.msra.mxu0 0
      %3168 = vmatprep.subr.bf16.mxu0 0
      %3169 = vmatpush1.bf16.msra.mxu0 0
      %3170 = vmatprep.subr.bf16.mxu0 0
      %3171 = vmatpush1.bf16.msra.mxu0 0
      %3172 = vmatprep.subr.bf16.mxu0 0
      %3173 = vmatpush1.bf16.msra.mxu0 0
      %3174 = vmatprep.subr.bf16.mxu0 0
      %3175 = vmatpush1.bf16.msra.mxu0 0
      %3176 = vmatprep.mubr.bf16.mxu0 0
      %3177 = vmatmul.mubr.bf16.gmra.mrb[0].mxu0 %v3139
      %v3178 = vpop.f32.mrb[0].mxu0
      %v3179 = vadd.f32 0.0, %v3178
      %v3180 = vpop.f32.mrb[0].mxu0
      %v3181 = vpop.f32.mrb[0].mxu0
      %v3182 = vpop.f32.mrb[0].mxu0
      %3183 = vdwg.mxu0
      %3184 = vrot.lane.b32.xlu0 %v1321, 112
      %v3185 = vpop.permute.xlu0 %3184
      %3186 = vrot.lane.b32.xlu0 %v1321, 80
      %v3187 = vpop.permute.xlu0 %3186
      %v3189 = vsel %vm1324, %v3185, 0
      %v3192 = vsel %vm1324, %v3187, 0
      %3194 = vmatprep.subr.bf16.mxu0 0
      %3195 = vmatpush1.bf16.xpose.msra.mxu0 %v3192
      %3196 = vmatprep.subr.bf16.mxu0 0
      %3197 = vmatpush1.bf16.xpose.msra.mxu0 0
      %3198 = vmatprep.subr.bf16.mxu0 0
      %3199 = vmatpush1.bf16.xpose.msra.mxu0 0
      %3200 = vmatprep.subr.bf16.mxu0 0
      %3201 = vmatpush1.bf16.xpose.msra.mxu0 0
      %3202 = vmatprep.subr.bf16.mxu0 0
      %3203 = vmatpush1.bf16.xpose.msra.mxu0 0
      %3204 = vmatprep.subr.bf16.mxu0 0
      %3205 = vmatpush1.bf16.xpose.msra.mxu0 0
      %3206 = vmatprep.subr.bf16.mxu0 0
      %3207 = vmatpush1.bf16.xpose.msra.mxu0 0
      %3208 = vmatprep.subr.bf16.mxu0 0
      %3209 = vmatpush1.bf16.xpose.msra.mxu0 0
      %3210 = vmatprep.subr.bf16.mxu0 0
      %3211 = vmatpush1.bf16.xpose.msra.mxu0 0
      %3212 = vmatprep.subr.bf16.mxu0 0
      %3213 = vmatpush1.bf16.xpose.msra.mxu0 0
      %3214 = vmatprep.subr.bf16.mxu0 0
      %3215 = vmatpush1.bf16.xpose.msra.mxu0 0
      %3216 = vmatprep.subr.bf16.mxu0 0
      %3217 = vmatpush1.bf16.xpose.msra.mxu0 0
      %3218 = vmatprep.subr.bf16.mxu0 0
      %3219 = vmatpush1.bf16.xpose.msra.mxu0 0
      %3220 = vmatprep.subr.bf16.mxu0 0
      %3221 = vmatpush1.bf16.xpose.msra.mxu0 0
      %3222 = vmatprep.subr.bf16.mxu0 0
      %3223 = vmatpush1.bf16.xpose.msra.mxu0 0
      %3224 = vmatprep.subr.bf16.mxu0 0
      %3225 = vmatpush1.bf16.xpose.msra.mxu0 0
      %3226 = vmatprep.mubr.bf16.mxu0 0
      %3227 = vmatmul.mubr.bf16.gmra.mrb[0].mxu0 %v3189
      %v3228 = vpop.f32.mrb[0].mxu0
      %v3229 = vadd.f32 0.0, %v3228
      %v3230 = vpop.f32.mrb[0].mxu0
      %v3231 = vpop.f32.mrb[0].mxu0
      %v3232 = vpop.f32.mrb[0].mxu0
      %3233 = vdwg.mxu0
      %3234 = vrot.lane.b32.xlu0 %v1384, 112
      %v3235 = vpop.permute.xlu0 %3234
      %3236 = vrot.lane.b32.xlu0 %v1384, 80
      %v3237 = vpop.permute.xlu0 %3236
      %v3239 = vsel %vm1324, %v3235, 0
      %v3242 = vsel %vm1324, %v3237, 0
      %3244 = vmatprep.subr.bf16.mxu0 0
      %3245 = vmatpush1.bf16.xpose.msra.mxu0 %v3242
      %3246 = vmatprep.subr.bf16.mxu0 0
      %3247 = vmatpush1.bf16.xpose.msra.mxu0 0
      %3248 = vmatprep.subr.bf16.mxu0 0
      %3249 = vmatpush1.bf16.xpose.msra.mxu0 0
      %3250 = vmatprep.subr.bf16.mxu0 0
      %3251 = vmatpush1.bf16.xpose.msra.mxu0 0
      %3252 = vmatprep.subr.bf16.mxu0 0
      %3253 = vmatpush1.bf16.xpose.msra.mxu0 0
      %3254 = vmatprep.subr.bf16.mxu0 0
      %3255 = vmatpush1.bf16.xpose.msra.mxu0 0
      %3256 = vmatprep.subr.bf16.mxu0 0
      %3257 = vmatpush1.bf16.xpose.msra.mxu0 0
      %3258 = vmatprep.subr.bf16.mxu0 0
      %3259 = vmatpush1.bf16.xpose.msra.mxu0 0
      %3260 = vmatprep.subr.bf16.mxu0 0
      %3261 = vmatpush1.bf16.xpose.msra.mxu0 0
      %3262 = vmatprep.subr.bf16.mxu0 0
      %3263 = vmatpush1.bf16.xpose.msra.mxu0 0
      %3264 = vmatprep.subr.bf16.mxu0 0
      %3265 = vmatpush1.bf16.xpose.msra.mxu0 0
      %3266 = vmatprep.subr.bf16.mxu0 0
      %3267 = vmatpush1.bf16.xpose.msra.mxu0 0
      %3268 = vmatprep.subr.bf16.mxu0 0
      %3269 = vmatpush1.bf16.xpose.msra.mxu0 0
      %3270 = vmatprep.subr.bf16.mxu0 0
      %3271 = vmatpush1.bf16.xpose.msra.mxu0 0
      %3272 = vmatprep.subr.bf16.mxu0 0
      %3273 = vmatpush1.bf16.xpose.msra.mxu0 0
      %3274 = vmatprep.subr.bf16.mxu0 0
      %3275 = vmatpush1.bf16.xpose.msra.mxu0 0
      %3276 = vmatprep.mubr.bf16.mxu0 0
      %3277 = vmatmul.mubr.bf16.gmra.mrb[0].mxu0 %v3239
      %v3278 = vpop.f32.mrb[0].mxu0
      %v3279 = vadd.f32 0.0, %v3278
      %v3280 = vpop.f32.mrb[0].mxu0
      %v3281 = vpop.f32.mrb[0].mxu0
      %v3282 = vpop.f32.mrb[0].mxu0
      %3283 = vdwg.mxu0
      %3284 = vrot.lane.b32.xlu0 %v1446, 112
      %v3285 = vpop.permute.xlu0 %3284
      %3286 = vrot.lane.b32.xlu0 %v1446, 80
      %v3287 = vpop.permute.xlu0 %3286
      %v3289 = vsel %vm1324, %v3285, 0
      %v3292 = vsel %vm1324, %v3287, 0
      %3294 = vmatprep.subr.bf16.mxu0 0
      %3295 = vmatpush1.bf16.xpose.msra.mxu0 %v3292
      %3296 = vmatprep.subr.bf16.mxu0 0
      %3297 = vmatpush1.bf16.xpose.msra.mxu0 0
      %3298 = vmatprep.subr.bf16.mxu0 0
      %3299 = vmatpush1.bf16.xpose.msra.mxu0 0
      %3300 = vmatprep.subr.bf16.mxu0 0
      %3301 = vmatpush1.bf16.xpose.msra.mxu0 0
      %3302 = vmatprep.subr.bf16.mxu0 0
      %3303 = vmatpush1.bf16.xpose.msra.mxu0 0
      %3304 = vmatprep.subr.bf16.mxu0 0
      %3305 = vmatpush1.bf16.xpose.msra.mxu0 0
      %3306 = vmatprep.subr.bf16.mxu0 0
      %3307 = vmatpush1.bf16.xpose.msra.mxu0 0
      %3308 = vmatprep.subr.bf16.mxu0 0
      %3309 = vmatpush1.bf16.xpose.msra.mxu0 0
      %3310 = vmatprep.subr.bf16.mxu0 0
      %3311 = vmatpush1.bf16.xpose.msra.mxu0 0
      %3312 = vmatprep.subr.bf16.mxu0 0
      %3313 = vmatpush1.bf16.xpose.msra.mxu0 0
      %3314 = vmatprep.subr.bf16.mxu0 0
      %3315 = vmatpush1.bf16.xpose.msra.mxu0 0
      %3316 = vmatprep.subr.bf16.mxu0 0
      %3317 = vmatpush1.bf16.xpose.msra.mxu0 0
      %3318 = vmatprep.subr.bf16.mxu0 0
      %3319 = vmatpush1.bf16.xpose.msra.mxu0 0
      %3320 = vmatprep.subr.bf16.mxu0 0
      %3321 = vmatpush1.bf16.xpose.msra.mxu0 0
      %3322 = vmatprep.subr.bf16.mxu0 0
      %3323 = vmatpush1.bf16.xpose.msra.mxu0 0
      %3324 = vmatprep.subr.bf16.mxu0 0
      %3325 = vmatpush1.bf16.xpose.msra.mxu0 0
      %3326 = vmatprep.mubr.bf16.mxu0 0
      %3327 = vmatmul.mubr.bf16.gmra.mrb[0].mxu0 %v3289
      %v3328 = vpop.f32.mrb[0].mxu0
      %v3329 = vadd.f32 0.0, %v3328
      %v3330 = vpop.f32.mrb[0].mxu0
      %v3331 = vpop.f32.mrb[0].mxu0
      %v3332 = vpop.f32.mrb[0].mxu0
      %3333 = vdwg.mxu0
      %3334 = vrot.lane.b32.xlu0 %v1508, 112
      %v3335 = vpop.permute.xlu0 %3334
      %3336 = vrot.lane.b32.xlu0 %v1508, 80
      %v3337 = vpop.permute.xlu0 %3336
      %v3339 = vsel %vm1324, %v3335, 0
      %v3342 = vsel %vm1324, %v3337, 0
      %3344 = vmatprep.subr.bf16.mxu0 0
      %3345 = vmatpush1.bf16.xpose.msra.mxu0 %v3342
      %3346 = vmatprep.subr.bf16.mxu0 0
      %3347 = vmatpush1.bf16.xpose.msra.mxu0 0
      %3348 = vmatprep.subr.bf16.mxu0 0
      %3349 = vmatpush1.bf16.xpose.msra.mxu0 0
      %3350 = vmatprep.subr.bf16.mxu0 0
      %3351 = vmatpush1.bf16.xpose.msra.mxu0 0
      %3352 = vmatprep.subr.bf16.mxu0 0
      %3353 = vmatpush1.bf16.xpose.msra.mxu0 0
      %3354 = vmatprep.subr.bf16.mxu0 0
      %3355 = vmatpush1.bf16.xpose.msra.mxu0 0
      %3356 = vmatprep.subr.bf16.mxu0 0
      %3357 = vmatpush1.bf16.xpose.msra.mxu0 0
      %3358 = vmatprep.subr.bf16.mxu0 0
      %3359 = vmatpush1.bf16.xpose.msra.mxu0 0
      %3360 = vmatprep.subr.bf16.mxu0 0
      %3361 = vmatpush1.bf16.xpose.msra.mxu0 0
      %3362 = vmatprep.subr.bf16.mxu0 0
      %3363 = vmatpush1.bf16.xpose.msra.mxu0 0
      %3364 = vmatprep.subr.bf16.mxu0 0
      %3365 = vmatpush1.bf16.xpose.msra.mxu0 0
      %3366 = vmatprep.subr.bf16.mxu0 0
      %3367 = vmatpush1.bf16.xpose.msra.mxu0 0
      %3368 = vmatprep.subr.bf16.mxu0 0
      %3369 = vmatpush1.bf16.xpose.msra.mxu0 0
      %3370 = vmatprep.subr.bf16.mxu0 0
      %3371 = vmatpush1.bf16.xpose.msra.mxu0 0
      %3372 = vmatprep.subr.bf16.mxu0 0
      %3373 = vmatpush1.bf16.xpose.msra.mxu0 0
      %3374 = vmatprep.subr.bf16.mxu0 0
      %3375 = vmatpush1.bf16.xpose.msra.mxu0 0
      %3376 = vmatprep.mubr.bf16.mxu0 0
      %3377 = vmatmul.mubr.bf16.gmra.mrb[0].mxu0 %v3339
      %v3378 = vpop.f32.mrb[0].mxu0
      %v3379 = vadd.f32 0.0, %v3378
      %v3380 = vpop.f32.mrb[0].mxu0
      %v3381 = vpop.f32.mrb[0].mxu0
      %v3382 = vpop.f32.mrb[0].mxu0
      %3383 = vdwg.mxu0
      %3384 = vrot.lane.b32.xlu0 %v1570, 112
      %v3385 = vpop.permute.xlu0 %3384
      %3386 = vrot.lane.b32.xlu0 %v1570, 80
      %v3387 = vpop.permute.xlu0 %3386
      %v3389 = vsel %vm1324, %v3385, 0
      %v3392 = vsel %vm1324, %v3387, 0
      %3394 = vmatprep.subr.bf16.mxu0 0
      %3395 = vmatpush1.bf16.xpose.msra.mxu0 %v3392
      %3396 = vmatprep.subr.bf16.mxu0 0
      %3397 = vmatpush1.bf16.xpose.msra.mxu0 0
      %3398 = vmatprep.subr.bf16.mxu0 0
      %3399 = vmatpush1.bf16.xpose.msra.mxu0 0
      %3400 = vmatprep.subr.bf16.mxu0 0
      %3401 = vmatpush1.bf16.xpose.msra.mxu0 0
      %3402 = vmatprep.subr.bf16.mxu0 0
      %3403 = vmatpush1.bf16.xpose.msra.mxu0 0
      %3404 = vmatprep.subr.bf16.mxu0 0
      %3405 = vmatpush1.bf16.xpose.msra.mxu0 0
      %3406 = vmatprep.subr.bf16.mxu0 0
      %3407 = vmatpush1.bf16.xpose.msra.mxu0 0
      %3408 = vmatprep.subr.bf16.mxu0 0
      %3409 = vmatpush1.bf16.xpose.msra.mxu0 0
      %3410 = vmatprep.subr.bf16.mxu0 0
      %3411 = vmatpush1.bf16.xpose.msra.mxu0 0
      %3412 = vmatprep.subr.bf16.mxu0 0
      %3413 = vmatpush1.bf16.xpose.msra.mxu0 0
      %3414 = vmatprep.subr.bf16.mxu0 0
      %3415 = vmatpush1.bf16.xpose.msra.mxu0 0
      %3416 = vmatprep.subr.bf16.mxu0 0
      %3417 = vmatpush1.bf16.xpose.msra.mxu0 0
      %3418 = vmatprep.subr.bf16.mxu0 0
      %3419 = vmatpush1.bf16.xpose.msra.mxu0 0
      %3420 = vmatprep.subr.bf16.mxu0 0
      %3421 = vmatpush1.bf16.xpose.msra.mxu0 0
      %3422 = vmatprep.subr.bf16.mxu0 0
      %3423 = vmatpush1.bf16.xpose.msra.mxu0 0
      %3424 = vmatprep.subr.bf16.mxu0 0
      %3425 = vmatpush1.bf16.xpose.msra.mxu0 0
      %3426 = vmatprep.mubr.bf16.mxu0 0
      %3427 = vmatmul.mubr.bf16.gmra.mrb[0].mxu0 %v3389
      %v3428 = vpop.f32.mrb[0].mxu0
      %v3429 = vadd.f32 0.0, %v3428
      %v3430 = vpop.f32.mrb[0].mxu0
      %v3431 = vpop.f32.mrb[0].mxu0
      %v3432 = vpop.f32.mrb[0].mxu0
      %3433 = vdwg.mxu0
      %3434 = vrot.lane.b32.xlu0 %v1632, 112
      %v3435 = vpop.permute.xlu0 %3434
      %3436 = vrot.lane.b32.xlu0 %v1632, 80
      %v3437 = vpop.permute.xlu0 %3436
      %v3439 = vsel %vm1324, %v3435, 0
      %v3442 = vsel %vm1324, %v3437, 0
      %3444 = vmatprep.subr.bf16.mxu0 0
      %3445 = vmatpush1.bf16.xpose.msra.mxu0 %v3442
      %3446 = vmatprep.subr.bf16.mxu0 0
      %3447 = vmatpush1.bf16.xpose.msra.mxu0 0
      %3448 = vmatprep.subr.bf16.mxu0 0
      %3449 = vmatpush1.bf16.xpose.msra.mxu0 0
      %3450 = vmatprep.subr.bf16.mxu0 0
      %3451 = vmatpush1.bf16.xpose.msra.mxu0 0
      %3452 = vmatprep.subr.bf16.mxu0 0
      %3453 = vmatpush1.bf16.xpose.msra.mxu0 0
      %3454 = vmatprep.subr.bf16.mxu0 0
      %3455 = vmatpush1.bf16.xpose.msra.mxu0 0
      %3456 = vmatprep.subr.bf16.mxu0 0
      %3457 = vmatpush1.bf16.xpose.msra.mxu0 0
      %3458 = vmatprep.subr.bf16.mxu0 0
      %3459 = vmatpush1.bf16.xpose.msra.mxu0 0
      %3460 = vmatprep.subr.bf16.mxu0 0
      %3461 = vmatpush1.bf16.xpose.msra.mxu0 0
      %3462 = vmatprep.subr.bf16.mxu0 0
      %3463 = vmatpush1.bf16.xpose.msra.mxu0 0
      %3464 = vmatprep.subr.bf16.mxu0 0
      %3465 = vmatpush1.bf16.xpose.msra.mxu0 0
      %3466 = vmatprep.subr.bf16.mxu0 0
      %3467 = vmatpush1.bf16.xpose.msra.mxu0 0
      %3468 = vmatprep.subr.bf16.mxu0 0
      %3469 = vmatpush1.bf16.xpose.msra.mxu0 0
      %3470 = vmatprep.subr.bf16.mxu0 0
      %3471 = vmatpush1.bf16.xpose.msra.mxu0 0
      %3472 = vmatprep.subr.bf16.mxu0 0
      %3473 = vmatpush1.bf16.xpose.msra.mxu0 0
      %3474 = vmatprep.subr.bf16.mxu0 0
      %3475 = vmatpush1.bf16.xpose.msra.mxu0 0
      %3476 = vmatprep.mubr.bf16.mxu0 0
      %3477 = vmatmul.mubr.bf16.gmra.mrb[0].mxu0 %v3439
      %v3478 = vpop.f32.mrb[0].mxu0
      %v3479 = vadd.f32 0.0, %v3478
      %v3480 = vpop.f32.mrb[0].mxu0
      %v3481 = vpop.f32.mrb[0].mxu0
      %v3482 = vpop.f32.mrb[0].mxu0
      %3483 = vdwg.mxu0
      %3484 = vrot.lane.b32.xlu0 %v1694, 112
      %v3485 = vpop.permute.xlu0 %3484
      %3486 = vrot.lane.b32.xlu0 %v1694, 80
      %v3487 = vpop.permute.xlu0 %3486
      %v3489 = vsel %vm1324, %v3485, 0
      %v3492 = vsel %vm1324, %v3487, 0
      %3494 = vmatprep.subr.bf16.mxu0 0
      %3495 = vmatpush1.bf16.xpose.msra.mxu0 %v3492
      %3496 = vmatprep.subr.bf16.mxu0 0
      %3497 = vmatpush1.bf16.xpose.msra.mxu0 0
      %3498 = vmatprep.subr.bf16.mxu0 0
      %3499 = vmatpush1.bf16.xpose.msra.mxu0 0
      %3500 = vmatprep.subr.bf16.mxu0 0
      %3501 = vmatpush1.bf16.xpose.msra.mxu0 0
      %3502 = vmatprep.subr.bf16.mxu0 0
      %3503 = vmatpush1.bf16.xpose.msra.mxu0 0
      %3504 = vmatprep.subr.bf16.mxu0 0
      %3505 = vmatpush1.bf16.xpose.msra.mxu0 0
      %3506 = vmatprep.subr.bf16.mxu0 0
      %3507 = vmatpush1.bf16.xpose.msra.mxu0 0
      %3508 = vmatprep.subr.bf16.mxu0 0
      %3509 = vmatpush1.bf16.xpose.msra.mxu0 0
      %3510 = vmatprep.subr.bf16.mxu0 0
      %3511 = vmatpush1.bf16.xpose.msra.mxu0 0
      %3512 = vmatprep.subr.bf16.mxu0 0
      %3513 = vmatpush1.bf16.xpose.msra.mxu0 0
      %3514 = vmatprep.subr.bf16.mxu0 0
      %3515 = vmatpush1.bf16.xpose.msra.mxu0 0
      %3516 = vmatprep.subr.bf16.mxu0 0
      %3517 = vmatpush1.bf16.xpose.msra.mxu0 0
      %3518 = vmatprep.subr.bf16.mxu0 0
      %3519 = vmatpush1.bf16.xpose.msra.mxu0 0
      %3520 = vmatprep.subr.bf16.mxu0 0
      %3521 = vmatpush1.bf16.xpose.msra.mxu0 0
      %3522 = vmatprep.subr.bf16.mxu0 0
      %3523 = vmatpush1.bf16.xpose.msra.mxu0 0
      %3524 = vmatprep.subr.bf16.mxu0 0
      %3525 = vmatpush1.bf16.xpose.msra.mxu0 0
      %3526 = vmatprep.mubr.bf16.mxu0 0
      %3527 = vmatmul.mubr.bf16.gmra.mrb[0].mxu0 %v3489
      %v3528 = vpop.f32.mrb[0].mxu0
      %v3529 = vadd.f32 0.0, %v3528
      %v3530 = vpop.f32.mrb[0].mxu0
      %v3531 = vpop.f32.mrb[0].mxu0
      %v3532 = vpop.f32.mrb[0].mxu0
      %3533 = vdwg.mxu0
      %3534 = vrot.lane.b32.xlu0 %v1756, 112
      %v3535 = vpop.permute.xlu0 %3534
      %3536 = vrot.lane.b32.xlu0 %v1756, 80
      %v3537 = vpop.permute.xlu0 %3536
      %v3539 = vsel %vm1324, %v3535, 0
      %v3542 = vsel %vm1324, %v3537, 0
      %3544 = vmatprep.subr.bf16.mxu0 0
      %3545 = vmatpush1.bf16.xpose.msra.mxu0 %v3542
      %3546 = vmatprep.subr.bf16.mxu0 0
      %3547 = vmatpush1.bf16.xpose.msra.mxu0 0
      %3548 = vmatprep.subr.bf16.mxu0 0
      %3549 = vmatpush1.bf16.xpose.msra.mxu0 0
      %3550 = vmatprep.subr.bf16.mxu0 0
      %3551 = vmatpush1.bf16.xpose.msra.mxu0 0
      %3552 = vmatprep.subr.bf16.mxu0 0
      %3553 = vmatpush1.bf16.xpose.msra.mxu0 0
      %3554 = vmatprep.subr.bf16.mxu0 0
      %3555 = vmatpush1.bf16.xpose.msra.mxu0 0
      %3556 = vmatprep.subr.bf16.mxu0 0
      %3557 = vmatpush1.bf16.xpose.msra.mxu0 0
      %3558 = vmatprep.subr.bf16.mxu0 0
      %3559 = vmatpush1.bf16.xpose.msra.mxu0 0
      %3560 = vmatprep.subr.bf16.mxu0 0
      %3561 = vmatpush1.bf16.xpose.msra.mxu0 0
      %3562 = vmatprep.subr.bf16.mxu0 0
      %3563 = vmatpush1.bf16.xpose.msra.mxu0 0
      %3564 = vmatprep.subr.bf16.mxu0 0
      %3565 = vmatpush1.bf16.xpose.msra.mxu0 0
      %3566 = vmatprep.subr.bf16.mxu0 0
      %3567 = vmatpush1.bf16.xpose.msra.mxu0 0
      %3568 = vmatprep.subr.bf16.mxu0 0
      %3569 = vmatpush1.bf16.xpose.msra.mxu0 0
      %3570 = vmatprep.subr.bf16.mxu0 0
      %3571 = vmatpush1.bf16.xpose.msra.mxu0 0
      %3572 = vmatprep.subr.bf16.mxu0 0
      %3573 = vmatpush1.bf16.xpose.msra.mxu0 0
      %3574 = vmatprep.subr.bf16.mxu0 0
      %3575 = vmatpush1.bf16.xpose.msra.mxu0 0
      %3576 = vmatprep.mubr.bf16.mxu0 0
      %3577 = vmatmul.mubr.bf16.gmra.mrb[0].mxu0 %v3539
      %v3578 = vpop.f32.mrb[0].mxu0
      %v3579 = vadd.f32 0.0, %v3578
      %v3580 = vpop.f32.mrb[0].mxu0
      %v3581 = vpop.f32.mrb[0].mxu0
      %v3582 = vpop.f32.mrb[0].mxu0
      %3583 = vdwg.mxu0
      %v3584 = vmul.f32 %v3229, 0.35355338
      %v3585 = vmul.f32 %v3279, 0.35355338
      %v3586 = vmul.f32 %v3329, 0.35355338
      %v3587 = vmul.f32 %v3379, 0.35355338
      %v3588 = vmul.f32 %v3429, 0.35355338
      %v3589 = vmul.f32 %v3479, 0.35355338
      %v3590 = vmul.f32 %v3529, 0.35355338
      %v3591 = vmul.f32 %v3579, 0.35355338
      %v3592 = vsel %vm1813, %v3584, -inf
      %3593 = vmax.xlane.f32.xlu0 %v3592
      %v3594 = vpop.xlane.xlu0 %3593
      %v3595 = vsel %vm1813, %v3585, -inf
      %3596 = vmax.xlane.f32.xlu0 %v3595
      %v3597 = vpop.xlane.xlu0 %3596
      %v3598 = vsel %vm1813, %v3586, -inf
      %3599 = vmax.xlane.f32.xlu0 %v3598
      %v3600 = vpop.xlane.xlu0 %3599
      %v3601 = vsel %vm1813, %v3587, -inf
      %3602 = vmax.xlane.f32.xlu0 %v3601
      %v3603 = vpop.xlane.xlu0 %3602
      %v3604 = vsel %vm1813, %v3588, -inf
      %3605 = vmax.xlane.f32.xlu0 %v3604
      %v3606 = vpop.xlane.xlu0 %3605
      %v3607 = vsel %vm1813, %v3589, -inf
      %3608 = vmax.xlane.f32.xlu0 %v3607
      %v3609 = vpop.xlane.xlu0 %3608
      %v3610 = vsel %vm1813, %v3590, -inf
      %3611 = vmax.xlane.f32.xlu0 %v3610
      %v3612 = vpop.xlane.xlu0 %3611
      %v3613 = vsel %vm1813, %v3591, -inf
      %3614 = vmax.xlane.f32.xlu0 %v3613
      %v3615 = vpop.xlane.xlu0 %3614
      %v3616 = vsub.f32 %v3584, %v3594
      %v3617 = vsub.f32 %v3585, %v3597
      %v3618 = vsub.f32 %v3586, %v3600
      %v3619 = vsub.f32 %v3587, %v3603
      %v3620 = vsub.f32 %v3588, %v3606
      %v3621 = vsub.f32 %v3589, %v3609
      %v3622 = vsub.f32 %v3590, %v3612
      %v3623 = vsub.f32 %v3591, %v3615
      %v3624 = vmul.f32 %v3616, 1.442695
      %v3625 = vpow.pop %v3624
      %v3626 = vmul.f32 %v3617, 1.442695
      %v3627 = vpow.pop %v3626
      %v3628 = vmul.f32 %v3618, 1.442695
      %v3629 = vpow.pop %v3628
      %v3630 = vmul.f32 %v3619, 1.442695
      %v3631 = vpow.pop %v3630
      %v3632 = vmul.f32 %v3620, 1.442695
      %v3633 = vpow.pop %v3632
      %v3634 = vmul.f32 %v3621, 1.442695
      %v3635 = vpow.pop %v3634
      %v3636 = vmul.f32 %v3622, 1.442695
      %v3637 = vpow.pop %v3636
      %v3638 = vmul.f32 %v3623, 1.442695
      %v3639 = vpow.pop %v3638
      %v3640 = vsel %vm1813, %v3625, 0.0
      %3641 = vadd.xlane.f32.xlu0 %v3640
      %v3642 = vpop.xlane.xlu0 %3641
      %v3643 = vsel %vm1813, %v3627, 0.0
      %3644 = vadd.xlane.f32.xlu0 %v3643
      %v3645 = vpop.xlane.xlu0 %3644
      %v3646 = vsel %vm1813, %v3629, 0.0
      %3647 = vadd.xlane.f32.xlu0 %v3646
      %v3648 = vpop.xlane.xlu0 %3647
      %v3649 = vsel %vm1813, %v3631, 0.0
      %3650 = vadd.xlane.f32.xlu0 %v3649
      %v3651 = vpop.xlane.xlu0 %3650
      %v3652 = vsel %vm1813, %v3633, 0.0
      %3653 = vadd.xlane.f32.xlu0 %v3652
      %v3654 = vpop.xlane.xlu0 %3653
      %v3655 = vsel %vm1813, %v3635, 0.0
      %3656 = vadd.xlane.f32.xlu0 %v3655
      %v3657 = vpop.xlane.xlu0 %3656
      %v3658 = vsel %vm1813, %v3637, 0.0
      %3659 = vadd.xlane.f32.xlu0 %v3658
      %v3660 = vpop.xlane.xlu0 %3659
      %v3661 = vsel %vm1813, %v3639, 0.0
      %3662 = vadd.xlane.f32.xlu0 %v3661
      %v3663 = vpop.xlane.xlu0 %3662
      %v3664 = vrcp.pop %v3642
      %v3665 = vrcp.pop %v3645
      %v3666 = vrcp.pop %v3648
      %v3667 = vrcp.pop %v3651
      %v3668 = vrcp.pop %v3654
      %v3669 = vrcp.pop %v3657
      %v3670 = vrcp.pop %v3660
      %v3671 = vrcp.pop %v3663
      %v3672 = vmul.f32 %v3625, %v3664
      %v3673 = vmul.f32 %v3627, %v3665
      %v3674 = vmul.f32 %v3629, %v3666
      %v3675 = vmul.f32 %v3631, %v3667
      %v3676 = vmul.f32 %v3633, %v3668
      %v3677 = vmul.f32 %v3635, %v3669
      %v3678 = vmul.f32 %v3637, %v3670
      %v3679 = vmul.f32 %v3639, %v3671
      %v3680 = vpack.c.bf16 %v3672, %v3672
      %v3681 = vpack.c.bf16 %v3673, %v3673
      %v3682 = vpack.c.bf16 %v3674, %v3674
      %v3683 = vpack.c.bf16 %v3675, %v3675
      %v3684 = vpack.c.bf16 %v3676, %v3676
      %v3685 = vpack.c.bf16 %v3677, %v3677
      %v3686 = vpack.c.bf16 %v3678, %v3678
      %v3687 = vpack.c.bf16 %v3679, %v3679
      %3688 = vrot.lane.b32.xlu0 %v1321, 48
      %v3689 = vpop.permute.xlu0 %3688
      %v3691 = vsel %vm1912, %v3680, 0
      %v3694 = vsel %vm1916, %v3689, 0
      %3696 = vmatprep.subr.bf16.mxu0 0
      %3697 = vmatpush1.bf16.msra.mxu0 %v3694
      %3698 = vmatprep.subr.bf16.mxu0 0
      %3699 = vmatpush1.bf16.msra.mxu0 0
      %3700 = vmatprep.subr.bf16.mxu0 0
      %3701 = vmatpush1.bf16.msra.mxu0 0
      %3702 = vmatprep.subr.bf16.mxu0 0
      %3703 = vmatpush1.bf16.msra.mxu0 0
      %3704 = vmatprep.subr.bf16.mxu0 0
      %3705 = vmatpush1.bf16.msra.mxu0 0
      %3706 = vmatprep.subr.bf16.mxu0 0
      %3707 = vmatpush1.bf16.msra.mxu0 0
      %3708 = vmatprep.subr.bf16.mxu0 0
      %3709 = vmatpush1.bf16.msra.mxu0 0
      %3710 = vmatprep.subr.bf16.mxu0 0
      %3711 = vmatpush1.bf16.msra.mxu0 0
      %3712 = vmatprep.subr.bf16.mxu0 0
      %3713 = vmatpush1.bf16.msra.mxu0 0
      %3714 = vmatprep.subr.bf16.mxu0 0
      %3715 = vmatpush1.bf16.msra.mxu0 0
      %3716 = vmatprep.subr.bf16.mxu0 0
      %3717 = vmatpush1.bf16.msra.mxu0 0
      %3718 = vmatprep.subr.bf16.mxu0 0
      %3719 = vmatpush1.bf16.msra.mxu0 0
      %3720 = vmatprep.subr.bf16.mxu0 0
      %3721 = vmatpush1.bf16.msra.mxu0 0
      %3722 = vmatprep.subr.bf16.mxu0 0
      %3723 = vmatpush1.bf16.msra.mxu0 0
      %3724 = vmatprep.subr.bf16.mxu0 0
      %3725 = vmatpush1.bf16.msra.mxu0 0
      %3726 = vmatprep.subr.bf16.mxu0 0
      %3727 = vmatpush1.bf16.msra.mxu0 0
      %3728 = vmatprep.mubr.bf16.mxu0 0
      %3729 = vmatmul.mubr.bf16.gmra.mrb[0].mxu0 %v3691
      %v3730 = vpop.f32.mrb[0].mxu0
      %v3731 = vadd.f32 0.0, %v3730
      %v3732 = vpop.f32.mrb[0].mxu0
      %v3733 = vpop.f32.mrb[0].mxu0
      %v3734 = vpop.f32.mrb[0].mxu0
      %3735 = vdwg.mxu0
      %3736 = vrot.lane.b32.xlu0 %v1384, 48
      %v3737 = vpop.permute.xlu0 %3736
      %v3739 = vsel %vm1912, %v3681, 0
      %v3742 = vsel %vm1916, %v3737, 0
      %3744 = vmatprep.subr.bf16.mxu0 0
      %3745 = vmatpush1.bf16.msra.mxu0 %v3742
      %3746 = vmatprep.subr.bf16.mxu0 0
      %3747 = vmatpush1.bf16.msra.mxu0 0
      %3748 = vmatprep.subr.bf16.mxu0 0
      %3749 = vmatpush1.bf16.msra.mxu0 0
      %3750 = vmatprep.subr.bf16.mxu0 0
      %3751 = vmatpush1.bf16.msra.mxu0 0
      %3752 = vmatprep.subr.bf16.mxu0 0
      %3753 = vmatpush1.bf16.msra.mxu0 0
      %3754 = vmatprep.subr.bf16.mxu0 0
      %3755 = vmatpush1.bf16.msra.mxu0 0
      %3756 = vmatprep.subr.bf16.mxu0 0
      %3757 = vmatpush1.bf16.msra.mxu0 0
      %3758 = vmatprep.subr.bf16.mxu0 0
      %3759 = vmatpush1.bf16.msra.mxu0 0
      %3760 = vmatprep.subr.bf16.mxu0 0
      %3761 = vmatpush1.bf16.msra.mxu0 0
      %3762 = vmatprep.subr.bf16.mxu0 0
      %3763 = vmatpush1.bf16.msra.mxu0 0
      %3764 = vmatprep.subr.bf16.mxu0 0
      %3765 = vmatpush1.bf16.msra.mxu0 0
      %3766 = vmatprep.subr.bf16.mxu0 0
      %3767 = vmatpush1.bf16.msra.mxu0 0
      %3768 = vmatprep.subr.bf16.mxu0 0
      %3769 = vmatpush1.bf16.msra.mxu0 0
      %3770 = vmatprep.subr.bf16.mxu0 0
      %3771 = vmatpush1.bf16.msra.mxu0 0
      %3772 = vmatprep.subr.bf16.mxu0 0
      %3773 = vmatpush1.bf16.msra.mxu0 0
      %3774 = vmatprep.subr.bf16.mxu0 0
      %3775 = vmatpush1.bf16.msra.mxu0 0
      %3776 = vmatprep.mubr.bf16.mxu0 0
      %3777 = vmatmul.mubr.bf16.gmra.mrb[0].mxu0 %v3739
      %v3778 = vpop.f32.mrb[0].mxu0
      %v3779 = vadd.f32 0.0, %v3778
      %v3780 = vpop.f32.mrb[0].mxu0
      %v3781 = vpop.f32.mrb[0].mxu0
      %v3782 = vpop.f32.mrb[0].mxu0
      %3783 = vdwg.mxu0
      %3784 = vrot.lane.b32.xlu0 %v1446, 48
      %v3785 = vpop.permute.xlu0 %3784
      %v3787 = vsel %vm1912, %v3682, 0
      %v3790 = vsel %vm1916, %v3785, 0
      %3792 = vmatprep.subr.bf16.mxu0 0
      %3793 = vmatpush1.bf16.msra.mxu0 %v3790
      %3794 = vmatprep.subr.bf16.mxu0 0
      %3795 = vmatpush1.bf16.msra.mxu0 0
      %3796 = vmatprep.subr.bf16.mxu0 0
      %3797 = vmatpush1.bf16.msra.mxu0 0
      %3798 = vmatprep.subr.bf16.mxu0 0
      %3799 = vmatpush1.bf16.msra.mxu0 0
      %3800 = vmatprep.subr.bf16.mxu0 0
      %3801 = vmatpush1.bf16.msra.mxu0 0
      %3802 = vmatprep.subr.bf16.mxu0 0
      %3803 = vmatpush1.bf16.msra.mxu0 0
      %3804 = vmatprep.subr.bf16.mxu0 0
      %3805 = vmatpush1.bf16.msra.mxu0 0
      %3806 = vmatprep.subr.bf16.mxu0 0
      %3807 = vmatpush1.bf16.msra.mxu0 0
      %3808 = vmatprep.subr.bf16.mxu0 0
      %3809 = vmatpush1.bf16.msra.mxu0 0
      %3810 = vmatprep.subr.bf16.mxu0 0
      %3811 = vmatpush1.bf16.msra.mxu0 0
      %3812 = vmatprep.subr.bf16.mxu0 0
      %3813 = vmatpush1.bf16.msra.mxu0 0
      %3814 = vmatprep.subr.bf16.mxu0 0
      %3815 = vmatpush1.bf16.msra.mxu0 0
      %3816 = vmatprep.subr.bf16.mxu0 0
      %3817 = vmatpush1.bf16.msra.mxu0 0
      %3818 = vmatprep.subr.bf16.mxu0 0
      %3819 = vmatpush1.bf16.msra.mxu0 0
      %3820 = vmatprep.subr.bf16.mxu0 0
      %3821 = vmatpush1.bf16.msra.mxu0 0
      %3822 = vmatprep.subr.bf16.mxu0 0
      %3823 = vmatpush1.bf16.msra.mxu0 0
      %3824 = vmatprep.mubr.bf16.mxu0 0
      %3825 = vmatmul.mubr.bf16.gmra.mrb[0].mxu0 %v3787
      %v3826 = vpop.f32.mrb[0].mxu0
      %v3827 = vadd.f32 0.0, %v3826
      %v3828 = vpop.f32.mrb[0].mxu0
      %v3829 = vpop.f32.mrb[0].mxu0
      %v3830 = vpop.f32.mrb[0].mxu0
      %3831 = vdwg.mxu0
      %3832 = vrot.lane.b32.xlu0 %v1508, 48
      %v3833 = vpop.permute.xlu0 %3832
      %v3835 = vsel %vm1912, %v3683, 0
      %v3838 = vsel %vm1916, %v3833, 0
      %3840 = vmatprep.subr.bf16.mxu0 0
      %3841 = vmatpush1.bf16.msra.mxu0 %v3838
      %3842 = vmatprep.subr.bf16.mxu0 0
      %3843 = vmatpush1.bf16.msra.mxu0 0
      %3844 = vmatprep.subr.bf16.mxu0 0
      %3845 = vmatpush1.bf16.msra.mxu0 0
      %3846 = vmatprep.subr.bf16.mxu0 0
      %3847 = vmatpush1.bf16.msra.mxu0 0
      %3848 = vmatprep.subr.bf16.mxu0 0
      %3849 = vmatpush1.bf16.msra.mxu0 0
      %3850 = vmatprep.subr.bf16.mxu0 0
      %3851 = vmatpush1.bf16.msra.mxu0 0
      %3852 = vmatprep.subr.bf16.mxu0 0
      %3853 = vmatpush1.bf16.msra.mxu0 0
      %3854 = vmatprep.subr.bf16.mxu0 0
      %3855 = vmatpush1.bf16.msra.mxu0 0
      %3856 = vmatprep.subr.bf16.mxu0 0
      %3857 = vmatpush1.bf16.msra.mxu0 0
      %3858 = vmatprep.subr.bf16.mxu0 0
      %3859 = vmatpush1.bf16.msra.mxu0 0
      %3860 = vmatprep.subr.bf16.mxu0 0
      %3861 = vmatpush1.bf16.msra.mxu0 0
      %3862 = vmatprep.subr.bf16.mxu0 0
      %3863 = vmatpush1.bf16.msra.mxu0 0
      %3864 = vmatprep.subr.bf16.mxu0 0
      %3865 = vmatpush1.bf16.msra.mxu0 0
      %3866 = vmatprep.subr.bf16.mxu0 0
      %3867 = vmatpush1.bf16.msra.mxu0 0
      %3868 = vmatprep.subr.bf16.mxu0 0
      %3869 = vmatpush1.bf16.msra.mxu0 0
      %3870 = vmatprep.subr.bf16.mxu0 0
      %3871 = vmatpush1.bf16.msra.mxu0 0
      %3872 = vmatprep.mubr.bf16.mxu0 0
      %3873 = vmatmul.mubr.bf16.gmra.mrb[0].mxu0 %v3835
      %v3874 = vpop.f32.mrb[0].mxu0
      %v3875 = vadd.f32 0.0, %v3874
      %v3876 = vpop.f32.mrb[0].mxu0
      %v3877 = vpop.f32.mrb[0].mxu0
      %v3878 = vpop.f32.mrb[0].mxu0
      %3879 = vdwg.mxu0
      %3880 = vrot.lane.b32.xlu0 %v1570, 48
      %v3881 = vpop.permute.xlu0 %3880
      %v3883 = vsel %vm1912, %v3684, 0
      %v3886 = vsel %vm1916, %v3881, 0
      %3888 = vmatprep.subr.bf16.mxu0 0
      %3889 = vmatpush1.bf16.msra.mxu0 %v3886
      %3890 = vmatprep.subr.bf16.mxu0 0
      %3891 = vmatpush1.bf16.msra.mxu0 0
      %3892 = vmatprep.subr.bf16.mxu0 0
      %3893 = vmatpush1.bf16.msra.mxu0 0
      %3894 = vmatprep.subr.bf16.mxu0 0
      %3895 = vmatpush1.bf16.msra.mxu0 0
      %3896 = vmatprep.subr.bf16.mxu0 0
      %3897 = vmatpush1.bf16.msra.mxu0 0
      %3898 = vmatprep.subr.bf16.mxu0 0
      %3899 = vmatpush1.bf16.msra.mxu0 0
      %3900 = vmatprep.subr.bf16.mxu0 0
      %3901 = vmatpush1.bf16.msra.mxu0 0
      %3902 = vmatprep.subr.bf16.mxu0 0
      %3903 = vmatpush1.bf16.msra.mxu0 0
      %3904 = vmatprep.subr.bf16.mxu0 0
      %3905 = vmatpush1.bf16.msra.mxu0 0
      %3906 = vmatprep.subr.bf16.mxu0 0
      %3907 = vmatpush1.bf16.msra.mxu0 0
      %3908 = vmatprep.subr.bf16.mxu0 0
      %3909 = vmatpush1.bf16.msra.mxu0 0
      %3910 = vmatprep.subr.bf16.mxu0 0
      %3911 = vmatpush1.bf16.msra.mxu0 0
      %3912 = vmatprep.subr.bf16.mxu0 0
      %3913 = vmatpush1.bf16.msra.mxu0 0
      %3914 = vmatprep.subr.bf16.mxu0 0
      %3915 = vmatpush1.bf16.msra.mxu0 0
      %3916 = vmatprep.subr.bf16.mxu0 0
      %3917 = vmatpush1.bf16.msra.mxu0 0
      %3918 = vmatprep.subr.bf16.mxu0 0
      %3919 = vmatpush1.bf16.msra.mxu0 0
      %3920 = vmatprep.mubr.bf16.mxu0 0
      %3921 = vmatmul.mubr.bf16.gmra.mrb[0].mxu0 %v3883
      %v3922 = vpop.f32.mrb[0].mxu0
      %v3923 = vadd.f32 0.0, %v3922
      %v3924 = vpop.f32.mrb[0].mxu0
      %v3925 = vpop.f32.mrb[0].mxu0
      %v3926 = vpop.f32.mrb[0].mxu0
      %3927 = vdwg.mxu0
      %3928 = vrot.lane.b32.xlu0 %v1632, 48
      %v3929 = vpop.permute.xlu0 %3928
      %v3931 = vsel %vm1912, %v3685, 0
      %v3934 = vsel %vm1916, %v3929, 0
      %3936 = vmatprep.subr.bf16.mxu0 0
      %3937 = vmatpush1.bf16.msra.mxu0 %v3934
      %3938 = vmatprep.subr.bf16.mxu0 0
      %3939 = vmatpush1.bf16.msra.mxu0 0
      %3940 = vmatprep.subr.bf16.mxu0 0
      %3941 = vmatpush1.bf16.msra.mxu0 0
      %3942 = vmatprep.subr.bf16.mxu0 0
      %3943 = vmatpush1.bf16.msra.mxu0 0
      %3944 = vmatprep.subr.bf16.mxu0 0
      %3945 = vmatpush1.bf16.msra.mxu0 0
      %3946 = vmatprep.subr.bf16.mxu0 0
      %3947 = vmatpush1.bf16.msra.mxu0 0
      %3948 = vmatprep.subr.bf16.mxu0 0
      %3949 = vmatpush1.bf16.msra.mxu0 0
      %3950 = vmatprep.subr.bf16.mxu0 0
      %3951 = vmatpush1.bf16.msra.mxu0 0
      %3952 = vmatprep.subr.bf16.mxu0 0
      %3953 = vmatpush1.bf16.msra.mxu0 0
      %3954 = vmatprep.subr.bf16.mxu0 0
      %3955 = vmatpush1.bf16.msra.mxu0 0
      %3956 = vmatprep.subr.bf16.mxu0 0
      %3957 = vmatpush1.bf16.msra.mxu0 0
      %3958 = vmatprep.subr.bf16.mxu0 0
      %3959 = vmatpush1.bf16.msra.mxu0 0
      %3960 = vmatprep.subr.bf16.mxu0 0
      %3961 = vmatpush1.bf16.msra.mxu0 0
      %3962 = vmatprep.subr.bf16.mxu0 0
      %3963 = vmatpush1.bf16.msra.mxu0 0
      %3964 = vmatprep.subr.bf16.mxu0 0
      %3965 = vmatpush1.bf16.msra.mxu0 0
      %3966 = vmatprep.subr.bf16.mxu0 0
      %3967 = vmatpush1.bf16.msra.mxu0 0
      %3968 = vmatprep.mubr.bf16.mxu0 0
      %3969 = vmatmul.mubr.bf16.gmra.mrb[0].mxu0 %v3931
      %v3970 = vpop.f32.mrb[0].mxu0
      %v3971 = vadd.f32 0.0, %v3970
      %v3972 = vpop.f32.mrb[0].mxu0
      %v3973 = vpop.f32.mrb[0].mxu0
      %v3974 = vpop.f32.mrb[0].mxu0
      %3975 = vdwg.mxu0
      %3976 = vrot.lane.b32.xlu0 %v1694, 48
      %v3977 = vpop.permute.xlu0 %3976
      %v3979 = vsel %vm1912, %v3686, 0
      %v3982 = vsel %vm1916, %v3977, 0
      %3984 = vmatprep.subr.bf16.mxu0 0
      %3985 = vmatpush1.bf16.msra.mxu0 %v3982
      %3986 = vmatprep.subr.bf16.mxu0 0
      %3987 = vmatpush1.bf16.msra.mxu0 0
      %3988 = vmatprep.subr.bf16.mxu0 0
      %3989 = vmatpush1.bf16.msra.mxu0 0
      %3990 = vmatprep.subr.bf16.mxu0 0
      %3991 = vmatpush1.bf16.msra.mxu0 0
      %3992 = vmatprep.subr.bf16.mxu0 0
      %3993 = vmatpush1.bf16.msra.mxu0 0
      %3994 = vmatprep.subr.bf16.mxu0 0
      %3995 = vmatpush1.bf16.msra.mxu0 0
      %3996 = vmatprep.subr.bf16.mxu0 0
      %3997 = vmatpush1.bf16.msra.mxu0 0
      %3998 = vmatprep.subr.bf16.mxu0 0
      %3999 = vmatpush1.bf16.msra.mxu0 0
      %4000 = vmatprep.subr.bf16.mxu0 0
      %4001 = vmatpush1.bf16.msra.mxu0 0
      %4002 = vmatprep.subr.bf16.mxu0 0
      %4003 = vmatpush1.bf16.msra.mxu0 0
      %4004 = vmatprep.subr.bf16.mxu0 0
      %4005 = vmatpush1.bf16.msra.mxu0 0
      %4006 = vmatprep.subr.bf16.mxu0 0
      %4007 = vmatpush1.bf16.msra.mxu0 0
      %4008 = vmatprep.subr.bf16.mxu0 0
      %4009 = vmatpush1.bf16.msra.mxu0 0
      %4010 = vmatprep.subr.bf16.mxu0 0
      %4011 = vmatpush1.bf16.msra.mxu0 0
      %4012 = vmatprep.subr.bf16.mxu0 0
      %4013 = vmatpush1.bf16.msra.mxu0 0
      %4014 = vmatprep.subr.bf16.mxu0 0
      %4015 = vmatpush1.bf16.msra.mxu0 0
      %4016 = vmatprep.mubr.bf16.mxu0 0
      %4017 = vmatmul.mubr.bf16.gmra.mrb[0].mxu0 %v3979
      %v4018 = vpop.f32.mrb[0].mxu0
      %v4019 = vadd.f32 0.0, %v4018
      %v4020 = vpop.f32.mrb[0].mxu0
      %v4021 = vpop.f32.mrb[0].mxu0
      %v4022 = vpop.f32.mrb[0].mxu0
      %4023 = vdwg.mxu0
      %4024 = vrot.lane.b32.xlu0 %v1756, 48
      %v4025 = vpop.permute.xlu0 %4024
      %v4027 = vsel %vm1912, %v3687, 0
      %v4030 = vsel %vm1916, %v4025, 0
      %4032 = vmatprep.subr.bf16.mxu0 0
      %4033 = vmatpush1.bf16.msra.mxu0 %v4030
      %4034 = vmatprep.subr.bf16.mxu0 0
      %4035 = vmatpush1.bf16.msra.mxu0 0
      %4036 = vmatprep.subr.bf16.mxu0 0
      %4037 = vmatpush1.bf16.msra.mxu0 0
      %4038 = vmatprep.subr.bf16.mxu0 0
      %4039 = vmatpush1.bf16.msra.mxu0 0
      %4040 = vmatprep.subr.bf16.mxu0 0
      %4041 = vmatpush1.bf16.msra.mxu0 0
      %4042 = vmatprep.subr.bf16.mxu0 0
      %4043 = vmatpush1.bf16.msra.mxu0 0
      %4044 = vmatprep.subr.bf16.mxu0 0
      %4045 = vmatpush1.bf16.msra.mxu0 0
      %4046 = vmatprep.subr.bf16.mxu0 0
      %4047 = vmatpush1.bf16.msra.mxu0 0
      %4048 = vmatprep.subr.bf16.mxu0 0
      %4049 = vmatpush1.bf16.msra.mxu0 0
      %4050 = vmatprep.subr.bf16.mxu0 0
      %4051 = vmatpush1.bf16.msra.mxu0 0
      %4052 = vmatprep.subr.bf16.mxu0 0
      %4053 = vmatpush1.bf16.msra.mxu0 0
      %4054 = vmatprep.subr.bf16.mxu0 0
      %4055 = vmatpush1.bf16.msra.mxu0 0
      %4056 = vmatprep.subr.bf16.mxu0 0
      %4057 = vmatpush1.bf16.msra.mxu0 0
      %4058 = vmatprep.subr.bf16.mxu0 0
      %4059 = vmatpush1.bf16.msra.mxu0 0
      %4060 = vmatprep.subr.bf16.mxu0 0
      %4061 = vmatpush1.bf16.msra.mxu0 0
      %4062 = vmatprep.subr.bf16.mxu0 0
      %4063 = vmatpush1.bf16.msra.mxu0 0
      %4064 = vmatprep.mubr.bf16.mxu0 0
      %4065 = vmatmul.mubr.bf16.gmra.mrb[0].mxu0 %v4027
      %v4066 = vpop.f32.mrb[0].mxu0
      %v4067 = vadd.f32 0.0, %v4066
      %v4068 = vpop.f32.mrb[0].mxu0
      %v4069 = vpop.f32.mrb[0].mxu0
      %v4070 = vpop.f32.mrb[0].mxu0
      %4071 = vdwg.mxu0
      %4072 = vrot.lane.b32.xlu0 %v1321, 104
      %v4073 = vpop.permute.xlu0 %4072
      %4074 = vrot.lane.b32.xlu0 %v1321, 72
      %v4075 = vpop.permute.xlu0 %4074
      %v4077 = vsel %vm1324, %v4073, 0
      %v4080 = vsel %vm1324, %v4075, 0
      %4082 = vmatprep.subr.bf16.mxu0 0
      %4083 = vmatpush1.bf16.xpose.msra.mxu0 %v4080
      %4084 = vmatprep.subr.bf16.mxu0 0
      %4085 = vmatpush1.bf16.xpose.msra.mxu0 0
      %4086 = vmatprep.subr.bf16.mxu0 0
      %4087 = vmatpush1.bf16.xpose.msra.mxu0 0
      %4088 = vmatprep.subr.bf16.mxu0 0
      %4089 = vmatpush1.bf16.xpose.msra.mxu0 0
      %4090 = vmatprep.subr.bf16.mxu0 0
      %4091 = vmatpush1.bf16.xpose.msra.mxu0 0
      %4092 = vmatprep.subr.bf16.mxu0 0
      %4093 = vmatpush1.bf16.xpose.msra.mxu0 0
      %4094 = vmatprep.subr.bf16.mxu0 0
      %4095 = vmatpush1.bf16.xpose.msra.mxu0 0
      %4096 = vmatprep.subr.bf16.mxu0 0
      %4097 = vmatpush1.bf16.xpose.msra.mxu0 0
      %4098 = vmatprep.subr.bf16.mxu0 0
      %4099 = vmatpush1.bf16.xpose.msra.mxu0 0
      %4100 = vmatprep.subr.bf16.mxu0 0
      %4101 = vmatpush1.bf16.xpose.msra.mxu0 0
      %4102 = vmatprep.subr.bf16.mxu0 0
      %4103 = vmatpush1.bf16.xpose.msra.mxu0 0
      %4104 = vmatprep.subr.bf16.mxu0 0
      %4105 = vmatpush1.bf16.xpose.msra.mxu0 0
      %4106 = vmatprep.subr.bf16.mxu0 0
      %4107 = vmatpush1.bf16.xpose.msra.mxu0 0
      %4108 = vmatprep.subr.bf16.mxu0 0
      %4109 = vmatpush1.bf16.xpose.msra.mxu0 0
      %4110 = vmatprep.subr.bf16.mxu0 0
      %4111 = vmatpush1.bf16.xpose.msra.mxu0 0
      %4112 = vmatprep.subr.bf16.mxu0 0
      %4113 = vmatpush1.bf16.xpose.msra.mxu0 0
      %4114 = vmatprep.mubr.bf16.mxu0 0
      %4115 = vmatmul.mubr.bf16.gmra.mrb[0].mxu0 %v4077
      %v4116 = vpop.f32.mrb[0].mxu0
      %v4117 = vadd.f32 0.0, %v4116
      %v4118 = vpop.f32.mrb[0].mxu0
      %v4119 = vpop.f32.mrb[0].mxu0
      %v4120 = vpop.f32.mrb[0].mxu0
      %4121 = vdwg.mxu0
      %4122 = vrot.lane.b32.xlu0 %v1384, 104
      %v4123 = vpop.permute.xlu0 %4122
      %4124 = vrot.lane.b32.xlu0 %v1384, 72
      %v4125 = vpop.permute.xlu0 %4124
      %v4127 = vsel %vm1324, %v4123, 0
      %v4130 = vsel %vm1324, %v4125, 0
      %4132 = vmatprep.subr.bf16.mxu0 0
      %4133 = vmatpush1.bf16.xpose.msra.mxu0 %v4130
      %4134 = vmatprep.subr.bf16.mxu0 0
      %4135 = vmatpush1.bf16.xpose.msra.mxu0 0
      %4136 = vmatprep.subr.bf16.mxu0 0
      %4137 = vmatpush1.bf16.xpose.msra.mxu0 0
      %4138 = vmatprep.subr.bf16.mxu0 0
      %4139 = vmatpush1.bf16.xpose.msra.mxu0 0
      %4140 = vmatprep.subr.bf16.mxu0 0
      %4141 = vmatpush1.bf16.xpose.msra.mxu0 0
      %4142 = vmatprep.subr.bf16.mxu0 0
      %4143 = vmatpush1.bf16.xpose.msra.mxu0 0
      %4144 = vmatprep.subr.bf16.mxu0 0
      %4145 = vmatpush1.bf16.xpose.msra.mxu0 0
      %4146 = vmatprep.subr.bf16.mxu0 0
      %4147 = vmatpush1.bf16.xpose.msra.mxu0 0
      %4148 = vmatprep.subr.bf16.mxu0 0
      %4149 = vmatpush1.bf16.xpose.msra.mxu0 0
      %4150 = vmatprep.subr.bf16.mxu0 0
      %4151 = vmatpush1.bf16.xpose.msra.mxu0 0
      %4152 = vmatprep.subr.bf16.mxu0 0
      %4153 = vmatpush1.bf16.xpose.msra.mxu0 0
      %4154 = vmatprep.subr.bf16.mxu0 0
      %4155 = vmatpush1.bf16.xpose.msra.mxu0 0
      %4156 = vmatprep.subr.bf16.mxu0 0
      %4157 = vmatpush1.bf16.xpose.msra.mxu0 0
      %4158 = vmatprep.subr.bf16.mxu0 0
      %4159 = vmatpush1.bf16.xpose.msra.mxu0 0
      %4160 = vmatprep.subr.bf16.mxu0 0
      %4161 = vmatpush1.bf16.xpose.msra.mxu0 0
      %4162 = vmatprep.subr.bf16.mxu0 0
      %4163 = vmatpush1.bf16.xpose.msra.mxu0 0
      %4164 = vmatprep.mubr.bf16.mxu0 0
      %4165 = vmatmul.mubr.bf16.gmra.mrb[0].mxu0 %v4127
      %v4166 = vpop.f32.mrb[0].mxu0
      %v4167 = vadd.f32 0.0, %v4166
      %v4168 = vpop.f32.mrb[0].mxu0
      %v4169 = vpop.f32.mrb[0].mxu0
      %v4170 = vpop.f32.mrb[0].mxu0
      %4171 = vdwg.mxu0
      %4172 = vrot.lane.b32.xlu0 %v1446, 104
      %v4173 = vpop.permute.xlu0 %4172
      %4174 = vrot.lane.b32.xlu0 %v1446, 72
      %v4175 = vpop.permute.xlu0 %4174
      %v4177 = vsel %vm1324, %v4173, 0
      %v4180 = vsel %vm1324, %v4175, 0
      %4182 = vmatprep.subr.bf16.mxu0 0
      %4183 = vmatpush1.bf16.xpose.msra.mxu0 %v4180
      %4184 = vmatprep.subr.bf16.mxu0 0
      %4185 = vmatpush1.bf16.xpose.msra.mxu0 0
      %4186 = vmatprep.subr.bf16.mxu0 0
      %4187 = vmatpush1.bf16.xpose.msra.mxu0 0
      %4188 = vmatprep.subr.bf16.mxu0 0
      %4189 = vmatpush1.bf16.xpose.msra.mxu0 0
      %4190 = vmatprep.subr.bf16.mxu0 0
      %4191 = vmatpush1.bf16.xpose.msra.mxu0 0
      %4192 = vmatprep.subr.bf16.mxu0 0
      %4193 = vmatpush1.bf16.xpose.msra.mxu0 0
      %4194 = vmatprep.subr.bf16.mxu0 0
      %4195 = vmatpush1.bf16.xpose.msra.mxu0 0
      %4196 = vmatprep.subr.bf16.mxu0 0
      %4197 = vmatpush1.bf16.xpose.msra.mxu0 0
      %4198 = vmatprep.subr.bf16.mxu0 0
      %4199 = vmatpush1.bf16.xpose.msra.mxu0 0
      %4200 = vmatprep.subr.bf16.mxu0 0
      %4201 = vmatpush1.bf16.xpose.msra.mxu0 0
      %4202 = vmatprep.subr.bf16.mxu0 0
      %4203 = vmatpush1.bf16.xpose.msra.mxu0 0
      %4204 = vmatprep.subr.bf16.mxu0 0
      %4205 = vmatpush1.bf16.xpose.msra.mxu0 0
      %4206 = vmatprep.subr.bf16.mxu0 0
      %4207 = vmatpush1.bf16.xpose.msra.mxu0 0
      %4208 = vmatprep.subr.bf16.mxu0 0
      %4209 = vmatpush1.bf16.xpose.msra.mxu0 0
      %4210 = vmatprep.subr.bf16.mxu0 0
      %4211 = vmatpush1.bf16.xpose.msra.mxu0 0
      %4212 = vmatprep.subr.bf16.mxu0 0
      %4213 = vmatpush1.bf16.xpose.msra.mxu0 0
      %4214 = vmatprep.mubr.bf16.mxu0 0
      %4215 = vmatmul.mubr.bf16.gmra.mrb[0].mxu0 %v4177
      %v4216 = vpop.f32.mrb[0].mxu0
      %v4217 = vadd.f32 0.0, %v4216
      %v4218 = vpop.f32.mrb[0].mxu0
      %v4219 = vpop.f32.mrb[0].mxu0
      %v4220 = vpop.f32.mrb[0].mxu0
      %4221 = vdwg.mxu0
      %4222 = vrot.lane.b32.xlu0 %v1508, 104
      %v4223 = vpop.permute.xlu0 %4222
      %4224 = vrot.lane.b32.xlu0 %v1508, 72
      %v4225 = vpop.permute.xlu0 %4224
      %v4227 = vsel %vm1324, %v4223, 0
      %v4230 = vsel %vm1324, %v4225, 0
      %4232 = vmatprep.subr.bf16.mxu0 0
      %4233 = vmatpush1.bf16.xpose.msra.mxu0 %v4230
      %4234 = vmatprep.subr.bf16.mxu0 0
      %4235 = vmatpush1.bf16.xpose.msra.mxu0 0
      %4236 = vmatprep.subr.bf16.mxu0 0
      %4237 = vmatpush1.bf16.xpose.msra.mxu0 0
      %4238 = vmatprep.subr.bf16.mxu0 0
      %4239 = vmatpush1.bf16.xpose.msra.mxu0 0
      %4240 = vmatprep.subr.bf16.mxu0 0
      %4241 = vmatpush1.bf16.xpose.msra.mxu0 0
      %4242 = vmatprep.subr.bf16.mxu0 0
      %4243 = vmatpush1.bf16.xpose.msra.mxu0 0
      %4244 = vmatprep.subr.bf16.mxu0 0
      %4245 = vmatpush1.bf16.xpose.msra.mxu0 0
      %4246 = vmatprep.subr.bf16.mxu0 0
      %4247 = vmatpush1.bf16.xpose.msra.mxu0 0
      %4248 = vmatprep.subr.bf16.mxu0 0
      %4249 = vmatpush1.bf16.xpose.msra.mxu0 0
      %4250 = vmatprep.subr.bf16.mxu0 0
      %4251 = vmatpush1.bf16.xpose.msra.mxu0 0
      %4252 = vmatprep.subr.bf16.mxu0 0
      %4253 = vmatpush1.bf16.xpose.msra.mxu0 0
      %4254 = vmatprep.subr.bf16.mxu0 0
      %4255 = vmatpush1.bf16.xpose.msra.mxu0 0
      %4256 = vmatprep.subr.bf16.mxu0 0
      %4257 = vmatpush1.bf16.xpose.msra.mxu0 0
      %4258 = vmatprep.subr.bf16.mxu0 0
      %4259 = vmatpush1.bf16.xpose.msra.mxu0 0
      %4260 = vmatprep.subr.bf16.mxu0 0
      %4261 = vmatpush1.bf16.xpose.msra.mxu0 0
      %4262 = vmatprep.subr.bf16.mxu0 0
      %4263 = vmatpush1.bf16.xpose.msra.mxu0 0
      %4264 = vmatprep.mubr.bf16.mxu0 0
      %4265 = vmatmul.mubr.bf16.gmra.mrb[0].mxu0 %v4227
      %v4266 = vpop.f32.mrb[0].mxu0
      %v4267 = vadd.f32 0.0, %v4266
      %v4268 = vpop.f32.mrb[0].mxu0
      %v4269 = vpop.f32.mrb[0].mxu0
      %v4270 = vpop.f32.mrb[0].mxu0
      %4271 = vdwg.mxu0
      %4272 = vrot.lane.b32.xlu0 %v1570, 104
      %v4273 = vpop.permute.xlu0 %4272
      %4274 = vrot.lane.b32.xlu0 %v1570, 72
      %v4275 = vpop.permute.xlu0 %4274
      %v4277 = vsel %vm1324, %v4273, 0
      %v4280 = vsel %vm1324, %v4275, 0
      %4282 = vmatprep.subr.bf16.mxu0 0
      %4283 = vmatpush1.bf16.xpose.msra.mxu0 %v4280
      %4284 = vmatprep.subr.bf16.mxu0 0
      %4285 = vmatpush1.bf16.xpose.msra.mxu0 0
      %4286 = vmatprep.subr.bf16.mxu0 0
      %4287 = vmatpush1.bf16.xpose.msra.mxu0 0
      %4288 = vmatprep.subr.bf16.mxu0 0
      %4289 = vmatpush1.bf16.xpose.msra.mxu0 0
      %4290 = vmatprep.subr.bf16.mxu0 0
      %4291 = vmatpush1.bf16.xpose.msra.mxu0 0
      %4292 = vmatprep.subr.bf16.mxu0 0
      %4293 = vmatpush1.bf16.xpose.msra.mxu0 0
      %4294 = vmatprep.subr.bf16.mxu0 0
      %4295 = vmatpush1.bf16.xpose.msra.mxu0 0
      %4296 = vmatprep.subr.bf16.mxu0 0
      %4297 = vmatpush1.bf16.xpose.msra.mxu0 0
      %4298 = vmatprep.subr.bf16.mxu0 0
      %4299 = vmatpush1.bf16.xpose.msra.mxu0 0
      %4300 = vmatprep.subr.bf16.mxu0 0
      %4301 = vmatpush1.bf16.xpose.msra.mxu0 0
      %4302 = vmatprep.subr.bf16.mxu0 0
      %4303 = vmatpush1.bf16.xpose.msra.mxu0 0
      %4304 = vmatprep.subr.bf16.mxu0 0
      %4305 = vmatpush1.bf16.xpose.msra.mxu0 0
      %4306 = vmatprep.subr.bf16.mxu0 0
      %4307 = vmatpush1.bf16.xpose.msra.mxu0 0
      %4308 = vmatprep.subr.bf16.mxu0 0
      %4309 = vmatpush1.bf16.xpose.msra.mxu0 0
      %4310 = vmatprep.subr.bf16.mxu0 0
      %4311 = vmatpush1.bf16.xpose.msra.mxu0 0
      %4312 = vmatprep.subr.bf16.mxu0 0
      %4313 = vmatpush1.bf16.xpose.msra.mxu0 0
      %4314 = vmatprep.mubr.bf16.mxu0 0
      %4315 = vmatmul.mubr.bf16.gmra.mrb[0].mxu0 %v4277
      %v4316 = vpop.f32.mrb[0].mxu0
      %v4317 = vadd.f32 0.0, %v4316
      %v4318 = vpop.f32.mrb[0].mxu0
      %v4319 = vpop.f32.mrb[0].mxu0
      %v4320 = vpop.f32.mrb[0].mxu0
      %4321 = vdwg.mxu0
      %4322 = vrot.lane.b32.xlu0 %v1632, 104
      %v4323 = vpop.permute.xlu0 %4322
      %4324 = vrot.lane.b32.xlu0 %v1632, 72
      %v4325 = vpop.permute.xlu0 %4324
      %v4327 = vsel %vm1324, %v4323, 0
      %v4330 = vsel %vm1324, %v4325, 0
      %4332 = vmatprep.subr.bf16.mxu0 0
      %4333 = vmatpush1.bf16.xpose.msra.mxu0 %v4330
      %4334 = vmatprep.subr.bf16.mxu0 0
      %4335 = vmatpush1.bf16.xpose.msra.mxu0 0
      %4336 = vmatprep.subr.bf16.mxu0 0
      %4337 = vmatpush1.bf16.xpose.msra.mxu0 0
      %4338 = vmatprep.subr.bf16.mxu0 0
      %4339 = vmatpush1.bf16.xpose.msra.mxu0 0
      %4340 = vmatprep.subr.bf16.mxu0 0
      %4341 = vmatpush1.bf16.xpose.msra.mxu0 0
      %4342 = vmatprep.subr.bf16.mxu0 0
      %4343 = vmatpush1.bf16.xpose.msra.mxu0 0
      %4344 = vmatprep.subr.bf16.mxu0 0
      %4345 = vmatpush1.bf16.xpose.msra.mxu0 0
      %4346 = vmatprep.subr.bf16.mxu0 0
      %4347 = vmatpush1.bf16.xpose.msra.mxu0 0
      %4348 = vmatprep.subr.bf16.mxu0 0
      %4349 = vmatpush1.bf16.xpose.msra.mxu0 0
      %4350 = vmatprep.subr.bf16.mxu0 0
      %4351 = vmatpush1.bf16.xpose.msra.mxu0 0
      %4352 = vmatprep.subr.bf16.mxu0 0
      %4353 = vmatpush1.bf16.xpose.msra.mxu0 0
      %4354 = vmatprep.subr.bf16.mxu0 0
      %4355 = vmatpush1.bf16.xpose.msra.mxu0 0
      %4356 = vmatprep.subr.bf16.mxu0 0
      %4357 = vmatpush1.bf16.xpose.msra.mxu0 0
      %4358 = vmatprep.subr.bf16.mxu0 0
      %4359 = vmatpush1.bf16.xpose.msra.mxu0 0
      %4360 = vmatprep.subr.bf16.mxu0 0
      %4361 = vmatpush1.bf16.xpose.msra.mxu0 0
      %4362 = vmatprep.subr.bf16.mxu0 0
      %4363 = vmatpush1.bf16.xpose.msra.mxu0 0
      %4364 = vmatprep.mubr.bf16.mxu0 0
      %4365 = vmatmul.mubr.bf16.gmra.mrb[0].mxu0 %v4327
      %v4366 = vpop.f32.mrb[0].mxu0
      %v4367 = vadd.f32 0.0, %v4366
      %v4368 = vpop.f32.mrb[0].mxu0
      %v4369 = vpop.f32.mrb[0].mxu0
      %v4370 = vpop.f32.mrb[0].mxu0
      %4371 = vdwg.mxu0
      %4372 = vrot.lane.b32.xlu0 %v1694, 104
      %v4373 = vpop.permute.xlu0 %4372
      %4374 = vrot.lane.b32.xlu0 %v1694, 72
      %v4375 = vpop.permute.xlu0 %4374
      %v4377 = vsel %vm1324, %v4373, 0
      %v4380 = vsel %vm1324, %v4375, 0
      %4382 = vmatprep.subr.bf16.mxu0 0
      %4383 = vmatpush1.bf16.xpose.msra.mxu0 %v4380
      %4384 = vmatprep.subr.bf16.mxu0 0
      %4385 = vmatpush1.bf16.xpose.msra.mxu0 0
      %4386 = vmatprep.subr.bf16.mxu0 0
      %4387 = vmatpush1.bf16.xpose.msra.mxu0 0
      %4388 = vmatprep.subr.bf16.mxu0 0
      %4389 = vmatpush1.bf16.xpose.msra.mxu0 0
      %4390 = vmatprep.subr.bf16.mxu0 0
      %4391 = vmatpush1.bf16.xpose.msra.mxu0 0
      %4392 = vmatprep.subr.bf16.mxu0 0
      %4393 = vmatpush1.bf16.xpose.msra.mxu0 0
      %4394 = vmatprep.subr.bf16.mxu0 0
      %4395 = vmatpush1.bf16.xpose.msra.mxu0 0
      %4396 = vmatprep.subr.bf16.mxu0 0
      %4397 = vmatpush1.bf16.xpose.msra.mxu0 0
      %4398 = vmatprep.subr.bf16.mxu0 0
      %4399 = vmatpush1.bf16.xpose.msra.mxu0 0
      %4400 = vmatprep.subr.bf16.mxu0 0
      %4401 = vmatpush1.bf16.xpose.msra.mxu0 0
      %4402 = vmatprep.subr.bf16.mxu0 0
      %4403 = vmatpush1.bf16.xpose.msra.mxu0 0
      %4404 = vmatprep.subr.bf16.mxu0 0
      %4405 = vmatpush1.bf16.xpose.msra.mxu0 0
      %4406 = vmatprep.subr.bf16.mxu0 0
      %4407 = vmatpush1.bf16.xpose.msra.mxu0 0
      %4408 = vmatprep.subr.bf16.mxu0 0
      %4409 = vmatpush1.bf16.xpose.msra.mxu0 0
      %4410 = vmatprep.subr.bf16.mxu0 0
      %4411 = vmatpush1.bf16.xpose.msra.mxu0 0
      %4412 = vmatprep.subr.bf16.mxu0 0
      %4413 = vmatpush1.bf16.xpose.msra.mxu0 0
      %4414 = vmatprep.mubr.bf16.mxu0 0
      %4415 = vmatmul.mubr.bf16.gmra.mrb[0].mxu0 %v4377
      %v4416 = vpop.f32.mrb[0].mxu0
      %v4417 = vadd.f32 0.0, %v4416
      %v4418 = vpop.f32.mrb[0].mxu0
      %v4419 = vpop.f32.mrb[0].mxu0
      %v4420 = vpop.f32.mrb[0].mxu0
      %4421 = vdwg.mxu0
      %4422 = vrot.lane.b32.xlu0 %v1756, 104
      %v4423 = vpop.permute.xlu0 %4422
      %4424 = vrot.lane.b32.xlu0 %v1756, 72
      %v4425 = vpop.permute.xlu0 %4424
      %v4427 = vsel %vm1324, %v4423, 0
      %v4430 = vsel %vm1324, %v4425, 0
      %4432 = vmatprep.subr.bf16.mxu0 0
      %4433 = vmatpush1.bf16.xpose.msra.mxu0 %v4430
      %4434 = vmatprep.subr.bf16.mxu0 0
      %4435 = vmatpush1.bf16.xpose.msra.mxu0 0
      %4436 = vmatprep.subr.bf16.mxu0 0
      %4437 = vmatpush1.bf16.xpose.msra.mxu0 0
      %4438 = vmatprep.subr.bf16.mxu0 0
      %4439 = vmatpush1.bf16.xpose.msra.mxu0 0
      %4440 = vmatprep.subr.bf16.mxu0 0
      %4441 = vmatpush1.bf16.xpose.msra.mxu0 0
      %4442 = vmatprep.subr.bf16.mxu0 0
      %4443 = vmatpush1.bf16.xpose.msra.mxu0 0
      %4444 = vmatprep.subr.bf16.mxu0 0
      %4445 = vmatpush1.bf16.xpose.msra.mxu0 0
      %4446 = vmatprep.subr.bf16.mxu0 0
      %4447 = vmatpush1.bf16.xpose.msra.mxu0 0
      %4448 = vmatprep.subr.bf16.mxu0 0
      %4449 = vmatpush1.bf16.xpose.msra.mxu0 0
      %4450 = vmatprep.subr.bf16.mxu0 0
      %4451 = vmatpush1.bf16.xpose.msra.mxu0 0
      %4452 = vmatprep.subr.bf16.mxu0 0
      %4453 = vmatpush1.bf16.xpose.msra.mxu0 0
      %4454 = vmatprep.subr.bf16.mxu0 0
      %4455 = vmatpush1.bf16.xpose.msra.mxu0 0
      %4456 = vmatprep.subr.bf16.mxu0 0
      %4457 = vmatpush1.bf16.xpose.msra.mxu0 0
      %4458 = vmatprep.subr.bf16.mxu0 0
      %4459 = vmatpush1.bf16.xpose.msra.mxu0 0
      %4460 = vmatprep.subr.bf16.mxu0 0
      %4461 = vmatpush1.bf16.xpose.msra.mxu0 0
      %4462 = vmatprep.subr.bf16.mxu0 0
      %4463 = vmatpush1.bf16.xpose.msra.mxu0 0
      %4464 = vmatprep.mubr.bf16.mxu0 0
      %4465 = vmatmul.mubr.bf16.gmra.mrb[0].mxu0 %v4427
      %v4466 = vpop.f32.mrb[0].mxu0
      %v4467 = vadd.f32 0.0, %v4466
      %v4468 = vpop.f32.mrb[0].mxu0
      %v4469 = vpop.f32.mrb[0].mxu0
      %v4470 = vpop.f32.mrb[0].mxu0
      %4471 = vdwg.mxu0
      %v4472 = vmul.f32 %v4117, 0.35355338
      %v4473 = vmul.f32 %v4167, 0.35355338
      %v4474 = vmul.f32 %v4217, 0.35355338
      %v4475 = vmul.f32 %v4267, 0.35355338
      %v4476 = vmul.f32 %v4317, 0.35355338
      %v4477 = vmul.f32 %v4367, 0.35355338
      %v4478 = vmul.f32 %v4417, 0.35355338
      %v4479 = vmul.f32 %v4467, 0.35355338
      %v4480 = vsel %vm1813, %v4472, -inf
      %4481 = vmax.xlane.f32.xlu0 %v4480
      %v4482 = vpop.xlane.xlu0 %4481
      %v4483 = vsel %vm1813, %v4473, -inf
      %4484 = vmax.xlane.f32.xlu0 %v4483
      %v4485 = vpop.xlane.xlu0 %4484
      %v4486 = vsel %vm1813, %v4474, -inf
      %4487 = vmax.xlane.f32.xlu0 %v4486
      %v4488 = vpop.xlane.xlu0 %4487
      %v4489 = vsel %vm1813, %v4475, -inf
      %4490 = vmax.xlane.f32.xlu0 %v4489
      %v4491 = vpop.xlane.xlu0 %4490
      %v4492 = vsel %vm1813, %v4476, -inf
      %4493 = vmax.xlane.f32.xlu0 %v4492
      %v4494 = vpop.xlane.xlu0 %4493
      %v4495 = vsel %vm1813, %v4477, -inf
      %4496 = vmax.xlane.f32.xlu0 %v4495
      %v4497 = vpop.xlane.xlu0 %4496
      %v4498 = vsel %vm1813, %v4478, -inf
      %4499 = vmax.xlane.f32.xlu0 %v4498
      %v4500 = vpop.xlane.xlu0 %4499
      %v4501 = vsel %vm1813, %v4479, -inf
      %4502 = vmax.xlane.f32.xlu0 %v4501
      %v4503 = vpop.xlane.xlu0 %4502
      %v4504 = vsub.f32 %v4472, %v4482
      %v4505 = vsub.f32 %v4473, %v4485
      %v4506 = vsub.f32 %v4474, %v4488
      %v4507 = vsub.f32 %v4475, %v4491
      %v4508 = vsub.f32 %v4476, %v4494
      %v4509 = vsub.f32 %v4477, %v4497
      %v4510 = vsub.f32 %v4478, %v4500
      %v4511 = vsub.f32 %v4479, %v4503
      %v4512 = vmul.f32 %v4504, 1.442695
      %v4513 = vpow.pop %v4512
      %v4514 = vmul.f32 %v4505, 1.442695
      %v4515 = vpow.pop %v4514
      %v4516 = vmul.f32 %v4506, 1.442695
      %v4517 = vpow.pop %v4516
      %v4518 = vmul.f32 %v4507, 1.442695
      %v4519 = vpow.pop %v4518
      %v4520 = vmul.f32 %v4508, 1.442695
      %v4521 = vpow.pop %v4520
      %v4522 = vmul.f32 %v4509, 1.442695
      %v4523 = vpow.pop %v4522
      %v4524 = vmul.f32 %v4510, 1.442695
      %v4525 = vpow.pop %v4524
      %v4526 = vmul.f32 %v4511, 1.442695
      %v4527 = vpow.pop %v4526
      %v4528 = vsel %vm1813, %v4513, 0.0
      %4529 = vadd.xlane.f32.xlu0 %v4528
      %v4530 = vpop.xlane.xlu0 %4529
      %v4531 = vsel %vm1813, %v4515, 0.0
      %4532 = vadd.xlane.f32.xlu0 %v4531
      %v4533 = vpop.xlane.xlu0 %4532
      %v4534 = vsel %vm1813, %v4517, 0.0
      %4535 = vadd.xlane.f32.xlu0 %v4534
      %v4536 = vpop.xlane.xlu0 %4535
      %v4537 = vsel %vm1813, %v4519, 0.0
      %4538 = vadd.xlane.f32.xlu0 %v4537
      %v4539 = vpop.xlane.xlu0 %4538
      %v4540 = vsel %vm1813, %v4521, 0.0
      %4541 = vadd.xlane.f32.xlu0 %v4540
      %v4542 = vpop.xlane.xlu0 %4541
      %v4543 = vsel %vm1813, %v4523, 0.0
      %4544 = vadd.xlane.f32.xlu0 %v4543
      %v4545 = vpop.xlane.xlu0 %4544
      %v4546 = vsel %vm1813, %v4525, 0.0
      %4547 = vadd.xlane.f32.xlu0 %v4546
      %v4548 = vpop.xlane.xlu0 %4547
      %v4549 = vsel %vm1813, %v4527, 0.0
      %4550 = vadd.xlane.f32.xlu0 %v4549
      %v4551 = vpop.xlane.xlu0 %4550
      %v4552 = vrcp.pop %v4530
      %v4553 = vrcp.pop %v4533
      %v4554 = vrcp.pop %v4536
      %v4555 = vrcp.pop %v4539
      %v4556 = vrcp.pop %v4542
      %v4557 = vrcp.pop %v4545
      %v4558 = vrcp.pop %v4548
      %v4559 = vrcp.pop %v4551
      %v4560 = vmul.f32 %v4513, %v4552
      %v4561 = vmul.f32 %v4515, %v4553
      %v4562 = vmul.f32 %v4517, %v4554
      %v4563 = vmul.f32 %v4519, %v4555
      %v4564 = vmul.f32 %v4521, %v4556
      %v4565 = vmul.f32 %v4523, %v4557
      %v4566 = vmul.f32 %v4525, %v4558
      %v4567 = vmul.f32 %v4527, %v4559
      %v4568 = vpack.c.bf16 %v4560, %v4560
      %v4569 = vpack.c.bf16 %v4561, %v4561
      %v4570 = vpack.c.bf16 %v4562, %v4562
      %v4571 = vpack.c.bf16 %v4563, %v4563
      %v4572 = vpack.c.bf16 %v4564, %v4564
      %v4573 = vpack.c.bf16 %v4565, %v4565
      %v4574 = vpack.c.bf16 %v4566, %v4566
      %v4575 = vpack.c.bf16 %v4567, %v4567
      %4576 = vrot.lane.b32.xlu0 %v1321, 40
      %v4577 = vpop.permute.xlu0 %4576
      %v4579 = vsel %vm1912, %v4568, 0
      %v4582 = vsel %vm1916, %v4577, 0
      %4584 = vmatprep.subr.bf16.mxu0 0
      %4585 = vmatpush1.bf16.msra.mxu0 %v4582
      %4586 = vmatprep.subr.bf16.mxu0 0
      %4587 = vmatpush1.bf16.msra.mxu0 0
      %4588 = vmatprep.subr.bf16.mxu0 0
      %4589 = vmatpush1.bf16.msra.mxu0 0
      %4590 = vmatprep.subr.bf16.mxu0 0
      %4591 = vmatpush1.bf16.msra.mxu0 0
      %4592 = vmatprep.subr.bf16.mxu0 0
      %4593 = vmatpush1.bf16.msra.mxu0 0
      %4594 = vmatprep.subr.bf16.mxu0 0
      %4595 = vmatpush1.bf16.msra.mxu0 0
      %4596 = vmatprep.subr.bf16.mxu0 0
      %4597 = vmatpush1.bf16.msra.mxu0 0
      %4598 = vmatprep.subr.bf16.mxu0 0
      %4599 = vmatpush1.bf16.msra.mxu0 0
      %4600 = vmatprep.subr.bf16.mxu0 0
      %4601 = vmatpush1.bf16.msra.mxu0 0
      %4602 = vmatprep.subr.bf16.mxu0 0
      %4603 = vmatpush1.bf16.msra.mxu0 0
      %4604 = vmatprep.subr.bf16.mxu0 0
      %4605 = vmatpush1.bf16.msra.mxu0 0
      %4606 = vmatprep.subr.bf16.mxu0 0
      %4607 = vmatpush1.bf16.msra.mxu0 0
      %4608 = vmatprep.subr.bf16.mxu0 0
      %4609 = vmatpush1.bf16.msra.mxu0 0
      %4610 = vmatprep.subr.bf16.mxu0 0
      %4611 = vmatpush1.bf16.msra.mxu0 0
      %4612 = vmatprep.subr.bf16.mxu0 0
      %4613 = vmatpush1.bf16.msra.mxu0 0
      %4614 = vmatprep.subr.bf16.mxu0 0
      %4615 = vmatpush1.bf16.msra.mxu0 0
      %4616 = vmatprep.mubr.bf16.mxu0 0
      %4617 = vmatmul.mubr.bf16.gmra.mrb[0].mxu0 %v4579
      %v4618 = vpop.f32.mrb[0].mxu0
      %v4619 = vadd.f32 0.0, %v4618
      %v4620 = vpop.f32.mrb[0].mxu0
      %v4621 = vpop.f32.mrb[0].mxu0
      %v4622 = vpop.f32.mrb[0].mxu0
      %4623 = vdwg.mxu0
      %4624 = vrot.lane.b32.xlu0 %v1384, 40
      %v4625 = vpop.permute.xlu0 %4624
      %v4627 = vsel %vm1912, %v4569, 0
      %v4630 = vsel %vm1916, %v4625, 0
      %4632 = vmatprep.subr.bf16.mxu0 0
      %4633 = vmatpush1.bf16.msra.mxu0 %v4630
      %4634 = vmatprep.subr.bf16.mxu0 0
      %4635 = vmatpush1.bf16.msra.mxu0 0
      %4636 = vmatprep.subr.bf16.mxu0 0
      %4637 = vmatpush1.bf16.msra.mxu0 0
      %4638 = vmatprep.subr.bf16.mxu0 0
      %4639 = vmatpush1.bf16.msra.mxu0 0
      %4640 = vmatprep.subr.bf16.mxu0 0
      %4641 = vmatpush1.bf16.msra.mxu0 0
      %4642 = vmatprep.subr.bf16.mxu0 0
      %4643 = vmatpush1.bf16.msra.mxu0 0
      %4644 = vmatprep.subr.bf16.mxu0 0
      %4645 = vmatpush1.bf16.msra.mxu0 0
      %4646 = vmatprep.subr.bf16.mxu0 0
      %4647 = vmatpush1.bf16.msra.mxu0 0
      %4648 = vmatprep.subr.bf16.mxu0 0
      %4649 = vmatpush1.bf16.msra.mxu0 0
      %4650 = vmatprep.subr.bf16.mxu0 0
      %4651 = vmatpush1.bf16.msra.mxu0 0
      %4652 = vmatprep.subr.bf16.mxu0 0
      %4653 = vmatpush1.bf16.msra.mxu0 0
      %4654 = vmatprep.subr.bf16.mxu0 0
      %4655 = vmatpush1.bf16.msra.mxu0 0
      %4656 = vmatprep.subr.bf16.mxu0 0
      %4657 = vmatpush1.bf16.msra.mxu0 0
      %4658 = vmatprep.subr.bf16.mxu0 0
      %4659 = vmatpush1.bf16.msra.mxu0 0
      %4660 = vmatprep.subr.bf16.mxu0 0
      %4661 = vmatpush1.bf16.msra.mxu0 0
      %4662 = vmatprep.subr.bf16.mxu0 0
      %4663 = vmatpush1.bf16.msra.mxu0 0
      %4664 = vmatprep.mubr.bf16.mxu0 0
      %4665 = vmatmul.mubr.bf16.gmra.mrb[0].mxu0 %v4627
      %v4666 = vpop.f32.mrb[0].mxu0
      %v4667 = vadd.f32 0.0, %v4666
      %v4668 = vpop.f32.mrb[0].mxu0
      %v4669 = vpop.f32.mrb[0].mxu0
      %v4670 = vpop.f32.mrb[0].mxu0
      %4671 = vdwg.mxu0
      %4672 = vrot.lane.b32.xlu0 %v1446, 40
      %v4673 = vpop.permute.xlu0 %4672
      %v4675 = vsel %vm1912, %v4570, 0
      %v4678 = vsel %vm1916, %v4673, 0
      %4680 = vmatprep.subr.bf16.mxu0 0
      %4681 = vmatpush1.bf16.msra.mxu0 %v4678
      %4682 = vmatprep.subr.bf16.mxu0 0
      %4683 = vmatpush1.bf16.msra.mxu0 0
      %4684 = vmatprep.subr.bf16.mxu0 0
      %4685 = vmatpush1.bf16.msra.mxu0 0
      %4686 = vmatprep.subr.bf16.mxu0 0
      %4687 = vmatpush1.bf16.msra.mxu0 0
      %4688 = vmatprep.subr.bf16.mxu0 0
      %4689 = vmatpush1.bf16.msra.mxu0 0
      %4690 = vmatprep.subr.bf16.mxu0 0
      %4691 = vmatpush1.bf16.msra.mxu0 0
      %4692 = vmatprep.subr.bf16.mxu0 0
      %4693 = vmatpush1.bf16.msra.mxu0 0
      %4694 = vmatprep.subr.bf16.mxu0 0
      %4695 = vmatpush1.bf16.msra.mxu0 0
      %4696 = vmatprep.subr.bf16.mxu0 0
      %4697 = vmatpush1.bf16.msra.mxu0 0
      %4698 = vmatprep.subr.bf16.mxu0 0
      %4699 = vmatpush1.bf16.msra.mxu0 0
      %4700 = vmatprep.subr.bf16.mxu0 0
      %4701 = vmatpush1.bf16.msra.mxu0 0
      %4702 = vmatprep.subr.bf16.mxu0 0
      %4703 = vmatpush1.bf16.msra.mxu0 0
      %4704 = vmatprep.subr.bf16.mxu0 0
      %4705 = vmatpush1.bf16.msra.mxu0 0
      %4706 = vmatprep.subr.bf16.mxu0 0
      %4707 = vmatpush1.bf16.msra.mxu0 0
      %4708 = vmatprep.subr.bf16.mxu0 0
      %4709 = vmatpush1.bf16.msra.mxu0 0
      %4710 = vmatprep.subr.bf16.mxu0 0
      %4711 = vmatpush1.bf16.msra.mxu0 0
      %4712 = vmatprep.mubr.bf16.mxu0 0
      %4713 = vmatmul.mubr.bf16.gmra.mrb[0].mxu0 %v4675
      %v4714 = vpop.f32.mrb[0].mxu0
      %v4715 = vadd.f32 0.0, %v4714
      %v4716 = vpop.f32.mrb[0].mxu0
      %v4717 = vpop.f32.mrb[0].mxu0
      %v4718 = vpop.f32.mrb[0].mxu0
      %4719 = vdwg.mxu0
      %4720 = vrot.lane.b32.xlu0 %v1508, 40
      %v4721 = vpop.permute.xlu0 %4720
      %v4723 = vsel %vm1912, %v4571, 0
      %v4726 = vsel %vm1916, %v4721, 0
      %4728 = vmatprep.subr.bf16.mxu0 0
      %4729 = vmatpush1.bf16.msra.mxu0 %v4726
      %4730 = vmatprep.subr.bf16.mxu0 0
      %4731 = vmatpush1.bf16.msra.mxu0 0
      %4732 = vmatprep.subr.bf16.mxu0 0
      %4733 = vmatpush1.bf16.msra.mxu0 0
      %4734 = vmatprep.subr.bf16.mxu0 0
      %4735 = vmatpush1.bf16.msra.mxu0 0
      %4736 = vmatprep.subr.bf16.mxu0 0
      %4737 = vmatpush1.bf16.msra.mxu0 0
      %4738 = vmatprep.subr.bf16.mxu0 0
      %4739 = vmatpush1.bf16.msra.mxu0 0
      %4740 = vmatprep.subr.bf16.mxu0 0
      %4741 = vmatpush1.bf16.msra.mxu0 0
      %4742 = vmatprep.subr.bf16.mxu0 0
      %4743 = vmatpush1.bf16.msra.mxu0 0
      %4744 = vmatprep.subr.bf16.mxu0 0
      %4745 = vmatpush1.bf16.msra.mxu0 0
      %4746 = vmatprep.subr.bf16.mxu0 0
      %4747 = vmatpush1.bf16.msra.mxu0 0
      %4748 = vmatprep.subr.bf16.mxu0 0
      %4749 = vmatpush1.bf16.msra.mxu0 0
      %4750 = vmatprep.subr.bf16.mxu0 0
      %4751 = vmatpush1.bf16.msra.mxu0 0
      %4752 = vmatprep.subr.bf16.mxu0 0
      %4753 = vmatpush1.bf16.msra.mxu0 0
      %4754 = vmatprep.subr.bf16.mxu0 0
      %4755 = vmatpush1.bf16.msra.mxu0 0
      %4756 = vmatprep.subr.bf16.mxu0 0
      %4757 = vmatpush1.bf16.msra.mxu0 0
      %4758 = vmatprep.subr.bf16.mxu0 0
      %4759 = vmatpush1.bf16.msra.mxu0 0
      %4760 = vmatprep.mubr.bf16.mxu0 0
      %4761 = vmatmul.mubr.bf16.gmra.mrb[0].mxu0 %v4723
      %v4762 = vpop.f32.mrb[0].mxu0
      %v4763 = vadd.f32 0.0, %v4762
      %v4764 = vpop.f32.mrb[0].mxu0
      %v4765 = vpop.f32.mrb[0].mxu0
      %v4766 = vpop.f32.mrb[0].mxu0
      %4767 = vdwg.mxu0
      %4768 = vrot.lane.b32.xlu0 %v1570, 40
      %v4769 = vpop.permute.xlu0 %4768
      %v4771 = vsel %vm1912, %v4572, 0
      %v4774 = vsel %vm1916, %v4769, 0
      %4776 = vmatprep.subr.bf16.mxu0 0
      %4777 = vmatpush1.bf16.msra.mxu0 %v4774
      %4778 = vmatprep.subr.bf16.mxu0 0
      %4779 = vmatpush1.bf16.msra.mxu0 0
      %4780 = vmatprep.subr.bf16.mxu0 0
      %4781 = vmatpush1.bf16.msra.mxu0 0
      %4782 = vmatprep.subr.bf16.mxu0 0
      %4783 = vmatpush1.bf16.msra.mxu0 0
      %4784 = vmatprep.subr.bf16.mxu0 0
      %4785 = vmatpush1.bf16.msra.mxu0 0
      %4786 = vmatprep.subr.bf16.mxu0 0
      %4787 = vmatpush1.bf16.msra.mxu0 0
      %4788 = vmatprep.subr.bf16.mxu0 0
      %4789 = vmatpush1.bf16.msra.mxu0 0
      %4790 = vmatprep.subr.bf16.mxu0 0
      %4791 = vmatpush1.bf16.msra.mxu0 0
      %4792 = vmatprep.subr.bf16.mxu0 0
      %4793 = vmatpush1.bf16.msra.mxu0 0
      %4794 = vmatprep.subr.bf16.mxu0 0
      %4795 = vmatpush1.bf16.msra.mxu0 0
      %4796 = vmatprep.subr.bf16.mxu0 0
      %4797 = vmatpush1.bf16.msra.mxu0 0
      %4798 = vmatprep.subr.bf16.mxu0 0
      %4799 = vmatpush1.bf16.msra.mxu0 0
      %4800 = vmatprep.subr.bf16.mxu0 0
      %4801 = vmatpush1.bf16.msra.mxu0 0
      %4802 = vmatprep.subr.bf16.mxu0 0
      %4803 = vmatpush1.bf16.msra.mxu0 0
      %4804 = vmatprep.subr.bf16.mxu0 0
      %4805 = vmatpush1.bf16.msra.mxu0 0
      %4806 = vmatprep.subr.bf16.mxu0 0
      %4807 = vmatpush1.bf16.msra.mxu0 0
      %4808 = vmatprep.mubr.bf16.mxu0 0
      %4809 = vmatmul.mubr.bf16.gmra.mrb[0].mxu0 %v4771
      %v4810 = vpop.f32.mrb[0].mxu0
      %v4811 = vadd.f32 0.0, %v4810
      %v4812 = vpop.f32.mrb[0].mxu0
      %v4813 = vpop.f32.mrb[0].mxu0
      %v4814 = vpop.f32.mrb[0].mxu0
      %4815 = vdwg.mxu0
      %4816 = vrot.lane.b32.xlu0 %v1632, 40
      %v4817 = vpop.permute.xlu0 %4816
      %v4819 = vsel %vm1912, %v4573, 0
      %v4822 = vsel %vm1916, %v4817, 0
      %4824 = vmatprep.subr.bf16.mxu0 0
      %4825 = vmatpush1.bf16.msra.mxu0 %v4822
      %4826 = vmatprep.subr.bf16.mxu0 0
      %4827 = vmatpush1.bf16.msra.mxu0 0
      %4828 = vmatprep.subr.bf16.mxu0 0
      %4829 = vmatpush1.bf16.msra.mxu0 0
      %4830 = vmatprep.subr.bf16.mxu0 0
      %4831 = vmatpush1.bf16.msra.mxu0 0
      %4832 = vmatprep.subr.bf16.mxu0 0
      %4833 = vmatpush1.bf16.msra.mxu0 0
      %4834 = vmatprep.subr.bf16.mxu0 0
      %4835 = vmatpush1.bf16.msra.mxu0 0
      %4836 = vmatprep.subr.bf16.mxu0 0
      %4837 = vmatpush1.bf16.msra.mxu0 0
      %4838 = vmatprep.subr.bf16.mxu0 0
      %4839 = vmatpush1.bf16.msra.mxu0 0
      %4840 = vmatprep.subr.bf16.mxu0 0
      %4841 = vmatpush1.bf16.msra.mxu0 0
      %4842 = vmatprep.subr.bf16.mxu0 0
      %4843 = vmatpush1.bf16.msra.mxu0 0
      %4844 = vmatprep.subr.bf16.mxu0 0
      %4845 = vmatpush1.bf16.msra.mxu0 0
      %4846 = vmatprep.subr.bf16.mxu0 0
      %4847 = vmatpush1.bf16.msra.mxu0 0
      %4848 = vmatprep.subr.bf16.mxu0 0
      %4849 = vmatpush1.bf16.msra.mxu0 0
      %4850 = vmatprep.subr.bf16.mxu0 0
      %4851 = vmatpush1.bf16.msra.mxu0 0
      %4852 = vmatprep.subr.bf16.mxu0 0
      %4853 = vmatpush1.bf16.msra.mxu0 0
      %4854 = vmatprep.subr.bf16.mxu0 0
      %4855 = vmatpush1.bf16.msra.mxu0 0
      %4856 = vmatprep.mubr.bf16.mxu0 0
      %4857 = vmatmul.mubr.bf16.gmra.mrb[0].mxu0 %v4819
      %v4858 = vpop.f32.mrb[0].mxu0
      %v4859 = vadd.f32 0.0, %v4858
      %v4860 = vpop.f32.mrb[0].mxu0
      %v4861 = vpop.f32.mrb[0].mxu0
      %v4862 = vpop.f32.mrb[0].mxu0
      %4863 = vdwg.mxu0
      %4864 = vrot.lane.b32.xlu0 %v1694, 40
      %v4865 = vpop.permute.xlu0 %4864
      %v4867 = vsel %vm1912, %v4574, 0
      %v4870 = vsel %vm1916, %v4865, 0
      %4872 = vmatprep.subr.bf16.mxu0 0
      %4873 = vmatpush1.bf16.msra.mxu0 %v4870
      %4874 = vmatprep.subr.bf16.mxu0 0
      %4875 = vmatpush1.bf16.msra.mxu0 0
      %4876 = vmatprep.subr.bf16.mxu0 0
      %4877 = vmatpush1.bf16.msra.mxu0 0
      %4878 = vmatprep.subr.bf16.mxu0 0
      %4879 = vmatpush1.bf16.msra.mxu0 0
      %4880 = vmatprep.subr.bf16.mxu0 0
      %4881 = vmatpush1.bf16.msra.mxu0 0
      %4882 = vmatprep.subr.bf16.mxu0 0
      %4883 = vmatpush1.bf16.msra.mxu0 0
      %4884 = vmatprep.subr.bf16.mxu0 0
      %4885 = vmatpush1.bf16.msra.mxu0 0
      %4886 = vmatprep.subr.bf16.mxu0 0
      %4887 = vmatpush1.bf16.msra.mxu0 0
      %4888 = vmatprep.subr.bf16.mxu0 0
      %4889 = vmatpush1.bf16.msra.mxu0 0
      %4890 = vmatprep.subr.bf16.mxu0 0
      %4891 = vmatpush1.bf16.msra.mxu0 0
      %4892 = vmatprep.subr.bf16.mxu0 0
      %4893 = vmatpush1.bf16.msra.mxu0 0
      %4894 = vmatprep.subr.bf16.mxu0 0
      %4895 = vmatpush1.bf16.msra.mxu0 0
      %4896 = vmatprep.subr.bf16.mxu0 0
      %4897 = vmatpush1.bf16.msra.mxu0 0
      %4898 = vmatprep.subr.bf16.mxu0 0
      %4899 = vmatpush1.bf16.msra.mxu0 0
      %4900 = vmatprep.subr.bf16.mxu0 0
      %4901 = vmatpush1.bf16.msra.mxu0 0
      %4902 = vmatprep.subr.bf16.mxu0 0
      %4903 = vmatpush1.bf16.msra.mxu0 0
      %4904 = vmatprep.mubr.bf16.mxu0 0
      %4905 = vmatmul.mubr.bf16.gmra.mrb[0].mxu0 %v4867
      %v4906 = vpop.f32.mrb[0].mxu0
      %v4907 = vadd.f32 0.0, %v4906
      %v4908 = vpop.f32.mrb[0].mxu0
      %v4909 = vpop.f32.mrb[0].mxu0
      %v4910 = vpop.f32.mrb[0].mxu0
      %4911 = vdwg.mxu0
      %4912 = vrot.lane.b32.xlu0 %v1756, 40
      %v4913 = vpop.permute.xlu0 %4912
      %v4915 = vsel %vm1912, %v4575, 0
      %v4918 = vsel %vm1916, %v4913, 0
      %4920 = vmatprep.subr.bf16.mxu0 0
      %4921 = vmatpush1.bf16.msra.mxu0 %v4918
      %4922 = vmatprep.subr.bf16.mxu0 0
      %4923 = vmatpush1.bf16.msra.mxu0 0
      %4924 = vmatprep.subr.bf16.mxu0 0
      %4925 = vmatpush1.bf16.msra.mxu0 0
      %4926 = vmatprep.subr.bf16.mxu0 0
      %4927 = vmatpush1.bf16.msra.mxu0 0
      %4928 = vmatprep.subr.bf16.mxu0 0
      %4929 = vmatpush1.bf16.msra.mxu0 0
      %4930 = vmatprep.subr.bf16.mxu0 0
      %4931 = vmatpush1.bf16.msra.mxu0 0
      %4932 = vmatprep.subr.bf16.mxu0 0
      %4933 = vmatpush1.bf16.msra.mxu0 0
      %4934 = vmatprep.subr.bf16.mxu0 0
      %4935 = vmatpush1.bf16.msra.mxu0 0
      %4936 = vmatprep.subr.bf16.mxu0 0
      %4937 = vmatpush1.bf16.msra.mxu0 0
      %4938 = vmatprep.subr.bf16.mxu0 0
      %4939 = vmatpush1.bf16.msra.mxu0 0
      %4940 = vmatprep.subr.bf16.mxu0 0
      %4941 = vmatpush1.bf16.msra.mxu0 0
      %4942 = vmatprep.subr.bf16.mxu0 0
      %4943 = vmatpush1.bf16.msra.mxu0 0
      %4944 = vmatprep.subr.bf16.mxu0 0
      %4945 = vmatpush1.bf16.msra.mxu0 0
      %4946 = vmatprep.subr.bf16.mxu0 0
      %4947 = vmatpush1.bf16.msra.mxu0 0
      %4948 = vmatprep.subr.bf16.mxu0 0
      %4949 = vmatpush1.bf16.msra.mxu0 0
      %4950 = vmatprep.subr.bf16.mxu0 0
      %4951 = vmatpush1.bf16.msra.mxu0 0
      %4952 = vmatprep.mubr.bf16.mxu0 0
      %4953 = vmatmul.mubr.bf16.gmra.mrb[0].mxu0 %v4915
      %v4954 = vpop.f32.mrb[0].mxu0
      %v4955 = vadd.f32 0.0, %v4954
      %v4956 = vpop.f32.mrb[0].mxu0
      %v4957 = vpop.f32.mrb[0].mxu0
      %v4958 = vpop.f32.mrb[0].mxu0
      %4959 = vdwg.mxu0
      %4968 = vrot.lane.b32.xlu0 %v2843, 8
      %v4969 = vpop.permute.xlu0 %4968
      %4970 = vrot.lane.b32.xlu0 %v2891, 8
      %v4971 = vpop.permute.xlu0 %4970
      %4972 = vrot.lane.b32.xlu0 %v2939, 8
      %v4973 = vpop.permute.xlu0 %4972
      %4974 = vrot.lane.b32.xlu0 %v2987, 8
      %v4975 = vpop.permute.xlu0 %4974
      %4976 = vrot.lane.b32.xlu0 %v3035, 8
      %v4977 = vpop.permute.xlu0 %4976
      %4978 = vrot.lane.b32.xlu0 %v3083, 8
      %v4979 = vpop.permute.xlu0 %4978
      %4980 = vrot.lane.b32.xlu0 %v3131, 8
      %v4981 = vpop.permute.xlu0 %4980
      %4982 = vrot.lane.b32.xlu0 %v3179, 8
      %v4983 = vpop.permute.xlu0 %4982
      %5000 = vrot.lane.b32.xlu0 %v3731, 16
      %v5001 = vpop.permute.xlu0 %5000
      %5002 = vrot.lane.b32.xlu0 %v3779, 16
      %v5003 = vpop.permute.xlu0 %5002
      %5004 = vrot.lane.b32.xlu0 %v3827, 16
      %v5005 = vpop.permute.xlu0 %5004
      %5006 = vrot.lane.b32.xlu0 %v3875, 16
      %v5007 = vpop.permute.xlu0 %5006
      %5008 = vrot.lane.b32.xlu0 %v3923, 16
      %v5009 = vpop.permute.xlu0 %5008
      %5010 = vrot.lane.b32.xlu0 %v3971, 16
      %v5011 = vpop.permute.xlu0 %5010
      %5012 = vrot.lane.b32.xlu0 %v4019, 16
      %v5013 = vpop.permute.xlu0 %5012
      %5014 = vrot.lane.b32.xlu0 %v4067, 16
      %v5015 = vpop.permute.xlu0 %5014
      %5032 = vrot.lane.b32.xlu0 %v4619, 24
      %v5033 = vpop.permute.xlu0 %5032
      %5034 = vrot.lane.b32.xlu0 %v4667, 24
      %v5035 = vpop.permute.xlu0 %5034
      %5036 = vrot.lane.b32.xlu0 %v4715, 24
      %v5037 = vpop.permute.xlu0 %5036
      %5038 = vrot.lane.b32.xlu0 %v4763, 24
      %v5039 = vpop.permute.xlu0 %5038
      %5040 = vrot.lane.b32.xlu0 %v4811, 24
      %v5041 = vpop.permute.xlu0 %5040
      %5042 = vrot.lane.b32.xlu0 %v4859, 24
      %v5043 = vpop.permute.xlu0 %5042
      %5044 = vrot.lane.b32.xlu0 %v4907, 24
      %v5045 = vpop.permute.xlu0 %5044
      %5046 = vrot.lane.b32.xlu0 %v4955, 24
      %v5047 = vpop.permute.xlu0 %5046
      %v5056 = vsel %vm1324, %v1955, %v4969
      %v5057 = vsel %vm1324, %v2003, %v4971
      %v5058 = vsel %vm1324, %v2051, %v4973
      %v5059 = vsel %vm1324, %v2099, %v4975
      %v5060 = vsel %vm1324, %v2147, %v4977
      %v5061 = vsel %vm1324, %v2195, %v4979
      %v5062 = vsel %vm1324, %v2243, %v4981
      %v5063 = vsel %vm1324, %v2291, %v4983
      %vm5064 = vcmask 130048
      %v5065 = vsel %vm5064, %v5056, %v5001
      %v5066 = vsel %vm5064, %v5057, %v5003
      %v5067 = vsel %vm5064, %v5058, %v5005
      %v5068 = vsel %vm5064, %v5059, %v5007
      %v5069 = vsel %vm5064, %v5060, %v5009
      %v5070 = vsel %vm5064, %v5061, %v5011
      %v5071 = vsel %vm5064, %v5062, %v5013
      %v5072 = vsel %vm5064, %v5063, %v5015
      %vm5073 = vcmask 195584
      %v5074 = vsel %vm5073, %v5065, %v5033
      %v5075 = vsel %vm5073, %v5066, %v5035
      %v5076 = vsel %vm5073, %v5067, %v5037
      %v5077 = vsel %vm5073, %v5068, %v5039
      %v5078 = vsel %vm5073, %v5069, %v5041
      %v5079 = vsel %vm5073, %v5070, %v5043
      %v5080 = vsel %vm5073, %v5071, %v5045
      %v5081 = vsel %vm5073, %v5072, %v5047
      %v5090 = vcombine.low %v5074, %v5075
      %v5091 = vcombine.low %v5076, %v5077
      %v5093 = vunpack.c.l.s4 1983009808
      %v5094 = vunpack.c.0.s8 %v5093
      %v5095 = vlaneseq
      %v5096 = vshrl.u32 %v5095, 7
      %v5097 = vsub.s32 %v5094, %v5096
      %v5098 = vrot.slane %v5090, %v5097
      %v5100 = vunpack.c.l.s4 1983009808
      %v5101 = vunpack.c.0.s8 %v5100
      %v5102 = vlaneseq
      %v5103 = vshrl.u32 %v5102, 7
      %v5104 = vsub.s32 %v5101, %v5103
      %v5105 = vrot.slane %v5091, %v5104
      %v5106 = vcombine.low %v5098, %v5105
      %v5107 = vcombine.low %v5078, %v5079
      %v5108 = vcombine.low %v5080, %v5081
      %v5110 = vunpack.c.l.s4 1983009808
      %v5111 = vunpack.c.0.s8 %v5110
      %v5112 = vlaneseq
      %v5113 = vshrl.u32 %v5112, 7
      %v5114 = vsub.s32 %v5111, %v5113
      %v5115 = vrot.slane %v5107, %v5114
      %v5117 = vunpack.c.l.s4 1983009808
      %v5118 = vunpack.c.0.s8 %v5117
      %v5119 = vlaneseq
      %v5120 = vshrl.u32 %v5119, 7
      %v5121 = vsub.s32 %v5118, %v5120
      %v5122 = vrot.slane %v5108, %v5121
      %v5123 = vcombine.low %v5115, %v5122
      %v5126 = vpack.c.bf16 %v5123, %v5106
      %v5127 = vld [vmem:[%s956] sm:$0xf]
      %v5128 = vld [vmem:[%s956 + $0x4] sm:$0xf]
      %v5129 = vld [vmem:[%s956 + $0x8] sm:$0xf]
      %v5130 = vld [vmem:[%s956 + $0xc] sm:$0xf]
      %v5135 = vunpack.c.l.b16 %v5127
      %v5136 = vunpack.c.l.b16 %v5128
      %v5137 = vunpack.c.l.b16 %v5129
      %v5138 = vunpack.c.l.b16 %v5130
      %v5139 = vpack.c.b16 %v5136, %v5135
      %v5140 = vpack.c.b16 %v5138, %v5137
      %v5144 = vsel %vm1145, %v5126, 0
      %5146 = vmatprep.subr.bf16.mxu0 0
      %5147 = vmatpush1.bf16.msra.mxu0 %v5139
      %5148 = vmatprep.subr.bf16.mxu0 0
      %5149 = vmatpush1.bf16.msra.mxu0 %v5140
      %5150 = vmatprep.subr.bf16.mxu0 0
      %5151 = vmatpush1.bf16.msra.mxu0 0
      %5152 = vmatprep.subr.bf16.mxu0 0
      %5153 = vmatpush1.bf16.msra.mxu0 0
      %5154 = vmatprep.subr.bf16.mxu0 0
      %5155 = vmatpush1.bf16.msra.mxu0 0
      %5156 = vmatprep.subr.bf16.mxu0 0
      %5157 = vmatpush1.bf16.msra.mxu0 0
      %5158 = vmatprep.subr.bf16.mxu0 0
      %5159 = vmatpush1.bf16.msra.mxu0 0
      %5160 = vmatprep.subr.bf16.mxu0 0
      %5161 = vmatpush1.bf16.msra.mxu0 0
      %5162 = vmatprep.subr.bf16.mxu0 0
      %5163 = vmatpush1.bf16.msra.mxu0 0
      %5164 = vmatprep.subr.bf16.mxu0 0
      %5165 = vmatpush1.bf16.msra.mxu0 0
      %5166 = vmatprep.subr.bf16.mxu0 0
      %5167 = vmatpush1.bf16.msra.mxu0 0
      %5168 = vmatprep.subr.bf16.mxu0 0
      %5169 = vmatpush1.bf16.msra.mxu0 0
      %5170 = vmatprep.subr.bf16.mxu0 0
      %5171 = vmatpush1.bf16.msra.mxu0 0
      %5172 = vmatprep.subr.bf16.mxu0 0
      %5173 = vmatpush1.bf16.msra.mxu0 0
      %5174 = vmatprep.subr.bf16.mxu0 0
      %5175 = vmatpush1.bf16.msra.mxu0 0
      %5176 = vmatprep.subr.bf16.mxu0 0
      %5177 = vmatpush1.bf16.msra.mxu0 0
      %5178 = vmatprep.mubr.bf16.mxu0 0
      %5179 = vmatmul.mubr.bf16.gmra.mrb[0].mxu0 %v5144
      %v5180 = vpop.f32.mrb[0].mxu0
      %v5181 = vadd.f32 0.0, %v5180
      %v5182 = vpop.f32.mrb[0].mxu0
      %v5183 = vpop.f32.mrb[0].mxu0
      %v5184 = vadd.f32 0.0, %v5183
      %v5185 = vpop.f32.mrb[0].mxu0
      %5186 = vdwg.mxu0
      %v5187 = vadd.f32 %v1141, %v5181
      %v5188 = vadd.f32 %v1142, %v5184
      %v5189 = vld [vmem:[%s959] sm:$0x1]
      %v5191 = vlaneseq
      %v5192 = vshrl.u32 %v5191, 7
      %v5193 = vsub.s32 0, %v5192
      %v5194 = vrot.slane %v5189, %v5193
      %v5196 = vadd.f32 %v5187, %v5194
      %v5197 = vadd.f32 %v5188, %v5194
      %v5198 = vld [vmem:[%s962] sm:$0x1]
      %v5199 = vld [vmem:[%s965] sm:$0x1]
      %v5200 = vsel %vm1145, %v5196, 0.0
      %5201 = vadd.xlane.f32.xlu0 %v5200
      %v5202 = vpop.xlane.xlu0 %5201
      %v5203 = vsel %vm1145, %v5197, 0.0
      %5204 = vadd.xlane.f32.xlu0 %v5203
      %v5205 = vpop.xlane.xlu0 %5204
      %v5206 = vmul.f32 %v5202, %v1152
      %v5207 = vmul.f32 %v5205, %v1152
      %v5208 = vsub.f32 %v5196, %v5206
      %v5209 = vsub.f32 %v5197, %v5207
      %v5210 = vmul.f32 %v5208, %v5208
      %v5211 = vmul.f32 %v5209, %v5209
      %v5212 = vsel %vm1145, %v5210, 0.0
      %5213 = vadd.xlane.f32.xlu0 %v5212
      %v5214 = vpop.xlane.xlu0 %5213
      %v5215 = vsel %vm1145, %v5211, 0.0
      %5216 = vadd.xlane.f32.xlu0 %v5215
      %v5217 = vpop.xlane.xlu0 %5216
      %v5218 = vmul.f32 %v5214, %v1152
      %v5219 = vmul.f32 %v5217, %v1152
      %v5220 = vadd.f32 %v5218, 1e-05
      %v5221 = vadd.f32 %v5219, 1e-05
      %v5222 = vrsqrt.pop %v5220
      %v5223 = vrsqrt.pop %v5221
      %v5224 = vmul.f32 %v5208, %v5222
      %v5225 = vmul.f32 %v5209, %v5223
      %v5227 = vlaneseq
      %v5228 = vshrl.u32 %v5227, 7
      %v5229 = vsub.s32 0, %v5228
      %v5230 = vrot.slane %v5198, %v5229
      %v5232 = vmul.f32 %v5224, %v5230
      %v5233 = vmul.f32 %v5225, %v5230
      %v5235 = vlaneseq
      %v5236 = vshrl.u32 %v5235, 7
      %v5237 = vsub.s32 0, %v5236
      %v5238 = vrot.slane %v5199, %v5237
      %v5240 = vadd.f32 %v5232, %v5238
      %v5241 = vadd.f32 %v5233, %v5238
      %v5242 = vpack.c.bf16 %v5241, %v5240
      %v5243 = vld [vmem:[%s970] sm:$0xf]
      %v5244 = vld [vmem:[%s970 + $0x4] sm:$0xf]
      %v5245 = vld [vmem:[%s970 + $0x8] sm:$0xf]
      %v5246 = vld [vmem:[%s970 + $0xc] sm:$0xf]
      %v5247 = vld [vmem:[%s973] sm:$0x1]
      %v5249 = vlaneseq
      %v5250 = vshrl.u32 %v5249, 7
      %v5251 = vsub.s32 0, %v5250
      %v5252 = vrot.slane %v5247, %v5251
      %v5258 = vunpack.c.l.b16 %v5243
      %v5259 = vunpack.c.l.b16 %v5244
      %v5260 = vunpack.c.l.b16 %v5245
      %v5261 = vunpack.c.l.b16 %v5246
      %v5262 = vpack.c.b16 %v5259, %v5258
      %v5263 = vpack.c.b16 %v5261, %v5260
      %v5267 = vsel %vm1145, %v5242, 0
      %5269 = vmatprep.subr.bf16.mxu0 0
      %5270 = vmatpush1.bf16.msra.mxu0 %v5262
      %5271 = vmatprep.subr.bf16.mxu0 0
      %5272 = vmatpush1.bf16.msra.mxu0 %v5263
      %5273 = vmatprep.subr.bf16.mxu0 0
      %5274 = vmatpush1.bf16.msra.mxu0 0
      %5275 = vmatprep.subr.bf16.mxu0 0
      %5276 = vmatpush1.bf16.msra.mxu0 0
      %5277 = vmatprep.subr.bf16.mxu0 0
      %5278 = vmatpush1.bf16.msra.mxu0 0
      %5279 = vmatprep.subr.bf16.mxu0 0
      %5280 = vmatpush1.bf16.msra.mxu0 0
      %5281 = vmatprep.subr.bf16.mxu0 0
      %5282 = vmatpush1.bf16.msra.mxu0 0
      %5283 = vmatprep.subr.bf16.mxu0 0
      %5284 = vmatpush1.bf16.msra.mxu0 0
      %5285 = vmatprep.subr.bf16.mxu0 0
      %5286 = vmatpush1.bf16.msra.mxu0 0
      %5287 = vmatprep.subr.bf16.mxu0 0
      %5288 = vmatpush1.bf16.msra.mxu0 0
      %5289 = vmatprep.subr.bf16.mxu0 0
      %5290 = vmatpush1.bf16.msra.mxu0 0
      %5291 = vmatprep.subr.bf16.mxu0 0
      %5292 = vmatpush1.bf16.msra.mxu0 0
      %5293 = vmatprep.subr.bf16.mxu0 0
      %5294 = vmatpush1.bf16.msra.mxu0 0
      %5295 = vmatprep.subr.bf16.mxu0 0
      %5296 = vmatpush1.bf16.msra.mxu0 0
      %5297 = vmatprep.subr.bf16.mxu0 0
      %5298 = vmatpush1.bf16.msra.mxu0 0
      %5299 = vmatprep.subr.bf16.mxu0 0
      %5300 = vmatpush1.bf16.msra.mxu0 0
      %5301 = vmatprep.mubr.bf16.mxu0 0
      %5302 = vmatmul.mubr.bf16.gmra.mrb[0].mxu0 %v5267
      %v5303 = vpop.f32.mrb[0].mxu0
      %v5304 = vadd.f32 %v5252, %v5303
      %v5305 = vpop.f32.mrb[0].mxu0
      %v5306 = vpop.f32.mrb[0].mxu0
      %v5307 = vadd.f32 %v5252, %v5306
      %v5308 = vpop.f32.mrb[0].mxu0
      %5309 = vdwg.mxu0
      %v5310 = vmul.f32 %v5304, 0.5
      %v5311 = vmul.f32 %v5307, 0.5
      %v5312 = vmul.f32 %v5304, 0.70710677
      %v5313 = vmul.f32 %v5307, 0.70710677
      %vm5314 = vcmp.lt.f32.partialorder %v5312, 0.0
      %vm5315 = vcmp.lt.f32.partialorder %v5313, 0.0
      %v5316 = vsel %vm5314, -1.0, 1.0
      %v5317 = vsel %vm5315, -1.0, 1.0
      %v5318 = vand.u32 2147483647, %v5312
      %v5319 = vand.u32 2147483647, %v5313
      %v5320 = vmul.f32 %v5318, 0.3275911
      %v5321 = vmul.f32 %v5319, 0.3275911
      %v5322 = vadd.f32 %v5320, 1.0
      %v5323 = vadd.f32 %v5321, 1.0
      %v5324 = vrcp.pop %v5322
      %v5325 = vmul.f32 1.0, %v5324
      %v5326 = vrcp.pop %v5323
      %v5327 = vmul.f32 1.0, %v5326
      %v5328 = vmul.f32 %v5325, 1.0614054
      %v5329 = vmul.f32 %v5327, 1.0614054
      %v5330 = vadd.f32 %v5328, -1.4531521
      %v5331 = vadd.f32 %v5329, -1.4531521
      %v5332 = vmul.f32 %v5330, %v5325
      %v5333 = vmul.f32 %v5331, %v5327
      %v5334 = vadd.f32 %v5332, 1.4214138
      %v5335 = vadd.f32 %v5333, 1.4214138
      %v5336 = vmul.f32 %v5334, %v5325
      %v5337 = vmul.f32 %v5335, %v5327
      %v5338 = vadd.f32 %v5336, -0.28449672
      %v5339 = vadd.f32 %v5337, -0.28449672
      %v5340 = vmul.f32 %v5338, %v5325
      %v5341 = vmul.f32 %v5339, %v5327
      %v5342 = vadd.f32 %v5340, 0.2548296
      %v5343 = vadd.f32 %v5341, 0.2548296
      %v5344 = vmul.f32 %v5342, %v5325
      %v5345 = vmul.f32 %v5343, %v5327
      %v5346 = vsub.f32 0.0, %v5318
      %v5347 = vsub.f32 0.0, %v5319
      %v5348 = vmul.f32 %v5346, %v5318
      %v5349 = vmul.f32 %v5347, %v5319
      %v5350 = vmul.f32 %v5348, 1.442695
      %v5351 = vpow.pop %v5350
      %v5352 = vmul.f32 %v5349, 1.442695
      %v5353 = vpow.pop %v5352
      %v5354 = vmul.f32 %v5344, %v5351
      %v5355 = vmul.f32 %v5345, %v5353
      %v5356 = vsub.f32 1.0, %v5354
      %v5357 = vsub.f32 1.0, %v5355
      %v5358 = vmul.f32 %v5316, %v5356
      %v5359 = vmul.f32 %v5317, %v5357
      %v5360 = vadd.f32 %v5358, 1.0
      %v5361 = vadd.f32 %v5359, 1.0
      %v5362 = vmul.f32 %v5310, %v5360
      %v5363 = vmul.f32 %v5311, %v5361
      %v5364 = vpack.c.bf16 %v5363, %v5362
      %v5365 = vld [vmem:[%s978] sm:$0xf]
      %v5366 = vld [vmem:[%s978 + $0x4] sm:$0xf]
      %v5367 = vld [vmem:[%s978 + $0x8] sm:$0xf]
      %v5368 = vld [vmem:[%s978 + $0xc] sm:$0xf]
      %v5369 = vld [vmem:[%s978 + $0x10] sm:$0xf]
      %v5370 = vld [vmem:[%s978 + $0x14] sm:$0xf]
      %v5371 = vld [vmem:[%s978 + $0x18] sm:$0xf]
      %v5372 = vld [vmem:[%s978 + $0x1c] sm:$0xf]
      %v5373 = vld [vmem:[%s978 + $0x20] sm:$0xf]
      %v5374 = vld [vmem:[%s978 + $0x24] sm:$0xf]
      %v5375 = vld [vmem:[%s978 + $0x28] sm:$0xf]
      %v5376 = vld [vmem:[%s978 + $0x2c] sm:$0xf]
      %v5377 = vld [vmem:[%s978 + $0x30] sm:$0xf]
      %v5378 = vld [vmem:[%s978 + $0x34] sm:$0xf]
      %v5379 = vld [vmem:[%s978 + $0x38] sm:$0xf]
      %v5380 = vld [vmem:[%s978 + $0x3c] sm:$0xf]
      %v5381 = vld [vmem:[%s981] sm:$0x1]
      %v5383 = vlaneseq
      %v5384 = vshrl.u32 %v5383, 7
      %v5385 = vsub.s32 0, %v5384
      %v5386 = vrot.slane %v5381, %v5385
      %v5404 = vunpack.c.l.b16 %v5365
      %v5405 = vunpack.c.l.b16 %v5366
      %v5406 = vunpack.c.l.b16 %v5367
      %v5407 = vunpack.c.l.b16 %v5368
      %v5408 = vunpack.c.l.b16 %v5369
      %v5409 = vunpack.c.l.b16 %v5370
      %v5410 = vunpack.c.l.b16 %v5371
      %v5411 = vunpack.c.l.b16 %v5372
      %v5412 = vunpack.c.l.b16 %v5373
      %v5413 = vunpack.c.l.b16 %v5374
      %v5414 = vunpack.c.l.b16 %v5375
      %v5415 = vunpack.c.l.b16 %v5376
      %v5416 = vunpack.c.l.b16 %v5377
      %v5417 = vunpack.c.l.b16 %v5378
      %v5418 = vunpack.c.l.b16 %v5379
      %v5419 = vunpack.c.l.b16 %v5380
      %v5420 = vpack.c.b16 %v5405, %v5404
      %v5421 = vpack.c.b16 %v5407, %v5406
      %v5422 = vpack.c.b16 %v5409, %v5408
      %v5423 = vpack.c.b16 %v5411, %v5410
      %v5424 = vpack.c.b16 %v5413, %v5412
      %v5425 = vpack.c.b16 %v5415, %v5414
      %v5426 = vpack.c.b16 %v5417, %v5416
      %v5427 = vpack.c.b16 %v5419, %v5418
      %5436 = vmatprep.subr.bf16.mxu0 0
      %5437 = vmatpush1.bf16.msra.mxu0 %v5420
      %5438 = vmatprep.subr.bf16.mxu0 0
      %5439 = vmatpush1.bf16.msra.mxu0 %v5421
      %5440 = vmatprep.subr.bf16.mxu0 0
      %5441 = vmatpush1.bf16.msra.mxu0 %v5422
      %5442 = vmatprep.subr.bf16.mxu0 0
      %5443 = vmatpush1.bf16.msra.mxu0 %v5423
      %5444 = vmatprep.subr.bf16.mxu0 0
      %5445 = vmatpush1.bf16.msra.mxu0 %v5424
      %5446 = vmatprep.subr.bf16.mxu0 0
      %5447 = vmatpush1.bf16.msra.mxu0 %v5425
      %5448 = vmatprep.subr.bf16.mxu0 0
      %5449 = vmatpush1.bf16.msra.mxu0 %v5426
      %5450 = vmatprep.subr.bf16.mxu0 0
      %5451 = vmatpush1.bf16.msra.mxu0 %v5427
      %5452 = vmatprep.subr.bf16.mxu0 0
      %5453 = vmatpush1.bf16.msra.mxu0 0
      %5454 = vmatprep.subr.bf16.mxu0 0
      %5455 = vmatpush1.bf16.msra.mxu0 0
      %5456 = vmatprep.subr.bf16.mxu0 0
      %5457 = vmatpush1.bf16.msra.mxu0 0
      %5458 = vmatprep.subr.bf16.mxu0 0
      %5459 = vmatpush1.bf16.msra.mxu0 0
      %5460 = vmatprep.subr.bf16.mxu0 0
      %5461 = vmatpush1.bf16.msra.mxu0 0
      %5462 = vmatprep.subr.bf16.mxu0 0
      %5463 = vmatpush1.bf16.msra.mxu0 0
      %5464 = vmatprep.subr.bf16.mxu0 0
      %5465 = vmatpush1.bf16.msra.mxu0 0
      %5466 = vmatprep.subr.bf16.mxu0 0
      %5467 = vmatpush1.bf16.msra.mxu0 0
      %5468 = vmatprep.mubr.bf16.mxu0 0
      %5469 = vmatmul.mubr.bf16.gmra.mrb[0].mxu0 %v5364
      %v5470 = vpop.f32.mrb[0].mxu0
      %v5471 = vadd.f32 %v5386, %v5470
      %v5472 = vpop.f32.mrb[0].mxu0
      %v5473 = vpop.f32.mrb[0].mxu0
      %v5474 = vadd.f32 %v5386, %v5473
      %v5475 = vpop.f32.mrb[0].mxu0
      %5476 = vdwg.mxu0
      %v5477 = vadd.f32 %v5196, %v5471
      %v5478 = vadd.f32 %v5197, %v5474
      %5479 = vst.msk [vmem:[#allocation2] sm:$0xff] %vm1145, %v5477
      %5480 = vst.msk [vmem:[#allocation2 + $0x8] sm:$0xff] %vm1145, %v5478
      %p5481 = scmp.eq.s32.totalorder %s44, 1
      // Predicated region
      $region133: #{tpu_custom_call.1} parent=127 // pred_check
        %p5482 = pneg %p5481
      $region134: #{tpu_custom_call.1} parent=127 // pred_check_branch
        %5484 = sbr.rel (%p5482) target = $region136
      $region135: #{tpu_custom_call.1} parent=127 // pred_region
        %v5485 = vld [vmem:[%s19] sm:$0x1]
        %v5486 = vld [vmem:[%s20] sm:$0x1]
        %vm5487 = vcmask 261126
        %v5488 = vsel %vm5487, %v5478, 0.0
        %5489 = vadd.xlane.f32.xlu0 %v5488
        %v5490 = vpop.xlane.xlu0 %5489
        %v5491 = vmul.f32 %v5490, %v1152
        %v5492 = vsub.f32 %v5478, %v5491
        %v5493 = vmul.f32 %v5492, %v5492
        %v5494 = vsel %vm5487, %v5493, 0.0
        %5495 = vadd.xlane.f32.xlu0 %v5494
        %v5496 = vpop.xlane.xlu0 %5495
        %v5497 = vmul.f32 %v5496, %v1152
        %v5498 = vadd.f32 %v5497, 1e-05
        %v5499 = vrsqrt.pop %v5498
        %v5500 = vmul.f32 %v5492, %v5499
        %v5502 = vlaneseq
        %v5503 = vshrl.u32 %v5502, 7
        %v5504 = vsub.s32 0, %v5503
        %v5505 = vrot.slane %v5485, %v5504
        %v5507 = vmul.f32 %v5500, %v5505
        %v5509 = vlaneseq
        %v5510 = vshrl.u32 %v5509, 7
        %v5511 = vsub.s32 0, %v5510
        %v5512 = vrot.slane %v5486, %v5511
        %v5514 = vadd.f32 %v5507, %v5512
        %v5515 = vpack.c.bf16 %v5514, %v5514
        %v5516 = vld [vmem:[%s21] sm:$0xf]
        %v5517 = vld [vmem:[%s21 + $0x4] sm:$0xf]
        %v5518 = vld [vmem:[%s21 + $0x8] sm:$0xf]
        %v5519 = vld [vmem:[%s21 + $0xc] sm:$0xf]
        %v5520 = vld [vmem:[%s22] sm:$0x1]
        %v5522 = vlaneseq
        %v5523 = vshrl.u32 %v5522, 7
        %v5524 = vsub.s32 0, %v5523
        %v5525 = vrot.slane %v5520, %v5524
        %v5528 = vrot.slane %v5515, 3
        %v5533 = vunpack.c.l.b16 %v5516
        %v5534 = vunpack.c.l.b16 %v5517
        %v5535 = vunpack.c.l.b16 %v5518
        %v5536 = vunpack.c.l.b16 %v5519
        %v5537 = vpack.c.b16 %v5534, %v5533
        %v5538 = vpack.c.b16 %v5536, %v5535
        %v5542 = vsel %vm1145, %v5528, 0
        %5544 = vmatprep.subr.bf16.mxu0 0
        %5545 = vmatpush1.bf16.msra.mxu0 %v5537
        %5546 = vmatprep.subr.bf16.mxu0 0
        %5547 = vmatpush1.bf16.msra.mxu0 %v5538
        %5548 = vmatprep.subr.bf16.mxu0 0
        %5549 = vmatpush1.bf16.msra.mxu0 0
        %5550 = vmatprep.subr.bf16.mxu0 0
        %5551 = vmatpush1.bf16.msra.mxu0 0
        %5552 = vmatprep.subr.bf16.mxu0 0
        %5553 = vmatpush1.bf16.msra.mxu0 0
        %5554 = vmatprep.subr.bf16.mxu0 0
        %5555 = vmatpush1.bf16.msra.mxu0 0
        %5556 = vmatprep.subr.bf16.mxu0 0
        %5557 = vmatpush1.bf16.msra.mxu0 0
        %5558 = vmatprep.subr.bf16.mxu0 0
        %5559 = vmatpush1.bf16.msra.mxu0 0
        %5560 = vmatprep.subr.bf16.mxu0 0
        %5561 = vmatpush1.bf16.msra.mxu0 0
        %5562 = vmatprep.subr.bf16.mxu0 0
        %5563 = vmatpush1.bf16.msra.mxu0 0
        %5564 = vmatprep.subr.bf16.mxu0 0
        %5565 = vmatpush1.bf16.msra.mxu0 0
        %5566 = vmatprep.subr.bf16.mxu0 0
        %5567 = vmatpush1.bf16.msra.mxu0 0
        %5568 = vmatprep.subr.bf16.mxu0 0
        %5569 = vmatpush1.bf16.msra.mxu0 0
        %5570 = vmatprep.subr.bf16.mxu0 0
        %5571 = vmatpush1.bf16.msra.mxu0 0
        %5572 = vmatprep.subr.bf16.mxu0 0
        %5573 = vmatpush1.bf16.msra.mxu0 0
        %5574 = vmatprep.subr.bf16.mxu0 0
        %5575 = vmatpush1.bf16.msra.mxu0 0
        %5576 = vmatprep.mubr.bf16.mxu0 0
        %5577 = vmatmul.mubr.bf16.gmra.mrb[0].mxu0 %v5542
        %v5578 = vpop.f32.mrb[0].mxu0
        %v5579 = vadd.f32 %v5525, %v5578
        %v5580 = vpop.f32.mrb[0].mxu0
        %v5581 = vpop.f32.mrb[0].mxu0
        %v5582 = vpop.f32.mrb[0].mxu0
        %5583 = vdwg.mxu0
        %v5584 = vmul.f32 %v5579, 0.5
        %v5585 = vmul.f32 %v5579, 0.70710677
        %vm5586 = vcmp.lt.f32.partialorder %v5585, 0.0
        %v5587 = vsel %vm5586, -1.0, 1.0
        %v5588 = vand.u32 2147483647, %v5585
        %v5589 = vmul.f32 %v5588, 0.3275911
        %v5590 = vadd.f32 %v5589, 1.0
        %v5591 = vrcp.pop %v5590
        %v5592 = vmul.f32 1.0, %v5591
        %v5593 = vmul.f32 %v5592, 1.0614054
        %v5594 = vadd.f32 %v5593, -1.4531521
        %v5595 = vmul.f32 %v5594, %v5592
        %v5596 = vadd.f32 %v5595, 1.4214138
        %v5597 = vmul.f32 %v5596, %v5592
        %v5598 = vadd.f32 %v5597, -0.28449672
        %v5599 = vmul.f32 %v5598, %v5592
        %v5600 = vadd.f32 %v5599, 0.2548296
        %v5601 = vmul.f32 %v5600, %v5592
        %v5602 = vsub.f32 0.0, %v5588
        %v5603 = vmul.f32 %v5602, %v5588
        %v5604 = vmul.f32 %v5603, 1.442695
        %v5605 = vpow.pop %v5604
        %v5606 = vmul.f32 %v5601, %v5605
        %v5607 = vsub.f32 1.0, %v5606
        %v5608 = vmul.f32 %v5587, %v5607
        %v5609 = vadd.f32 %v5608, 1.0
        %v5610 = vmul.f32 %v5584, %v5609
        %v5611 = vpack.c.bf16 %v5610, %v5610
        %v5612 = vld [vmem:[%s23] sm:$0xf]
        %v5613 = vld [vmem:[%s23 + $0x4] sm:$0xf]
        %v5614 = vld [vmem:[%s24] sm:$0x1]
        %v5616 = vlaneseq
        %v5617 = vshrl.u32 %v5616, 7
        %v5618 = vsub.s32 0, %v5617
        %v5619 = vrot.slane %v5614, %v5618
        %v5623 = vunpack.c.l.b16 %v5612
        %v5624 = vunpack.c.l.b16 %v5613
        %v5625 = vpack.c.b16 %v5624, %v5623
        %v5628 = vsel %vm5064, %v5611, 0
        %5630 = vmatprep.subr.bf16.mxu0 0
        %5631 = vmatpush1.bf16.msra.mxu0 %v5625
        %5632 = vmatprep.subr.bf16.mxu0 0
        %5633 = vmatpush1.bf16.msra.mxu0 0
        %5634 = vmatprep.subr.bf16.mxu0 0
        %5635 = vmatpush1.bf16.msra.mxu0 0
        %5636 = vmatprep.subr.bf16.mxu0 0
        %5637 = vmatpush1.bf16.msra.mxu0 0
        %5638 = vmatprep.subr.bf16.mxu0 0
        %5639 = vmatpush1.bf16.msra.mxu0 0
        %5640 = vmatprep.subr.bf16.mxu0 0
        %5641 = vmatpush1.bf16.msra.mxu0 0
        %5642 = vmatprep.subr.bf16.mxu0 0
        %5643 = vmatpush1.bf16.msra.mxu0 0
        %5644 = vmatprep.subr.bf16.mxu0 0
        %5645 = vmatpush1.bf16.msra.mxu0 0
        %5646 = vmatprep.subr.bf16.mxu0 0
        %5647 = vmatpush1.bf16.msra.mxu0 0
        %5648 = vmatprep.subr.bf16.mxu0 0
        %5649 = vmatpush1.bf16.msra.mxu0 0
        %5650 = vmatprep.subr.bf16.mxu0 0
        %5651 = vmatpush1.bf16.msra.mxu0 0
        %5652 = vmatprep.subr.bf16.mxu0 0
        %5653 = vmatpush1.bf16.msra.mxu0 0
        %5654 = vmatprep.subr.bf16.mxu0 0
        %5655 = vmatpush1.bf16.msra.mxu0 0
        %5656 = vmatprep.subr.bf16.mxu0 0
        %5657 = vmatpush1.bf16.msra.mxu0 0
        %5658 = vmatprep.subr.bf16.mxu0 0
        %5659 = vmatpush1.bf16.msra.mxu0 0
        %5660 = vmatprep.subr.bf16.mxu0 0
        %5661 = vmatpush1.bf16.msra.mxu0 0
        %5662 = vmatprep.mubr.bf16.mxu0 0
        %5663 = vmatmul.mubr.bf16.gmra.mrb[0].mxu0 %v5628
        %v5664 = vpop.f32.mrb[0].mxu0
        %v5665 = vadd.f32 %v5619, %v5664
        %v5666 = vpop.f32.mrb[0].mxu0
        %v5667 = vpop.f32.mrb[0].mxu0
        %v5668 = vpop.f32.mrb[0].mxu0
        %5669 = vdwg.mxu0
        %v5670 = vmul.f32 %v5665, 0.5
        %v5671 = vmul.f32 %v5665, 0.70710677
        %vm5672 = vcmp.lt.f32.partialorder %v5671, 0.0
        %v5673 = vsel %vm5672, -1.0, 1.0
        %v5674 = vand.u32 2147483647, %v5671
        %v5675 = vmul.f32 %v5674, 0.3275911
        %v5676 = vadd.f32 %v5675, 1.0
        %v5677 = vrcp.pop %v5676
        %v5678 = vmul.f32 1.0, %v5677
        %v5679 = vmul.f32 %v5678, 1.0614054
        %v5680 = vadd.f32 %v5679, -1.4531521
        %v5681 = vmul.f32 %v5680, %v5678
        %v5682 = vadd.f32 %v5681, 1.4214138
        %v5683 = vmul.f32 %v5682, %v5678
        %v5684 = vadd.f32 %v5683, -0.28449672
        %v5685 = vmul.f32 %v5684, %v5678
        %v5686 = vadd.f32 %v5685, 0.2548296
        %v5687 = vmul.f32 %v5686, %v5678
        %v5688 = vsub.f32 0.0, %v5674
        %v5689 = vmul.f32 %v5688, %v5674
        %v5690 = vmul.f32 %v5689, 1.442695
        %v5691 = vpow.pop %v5690
        %v5692 = vmul.f32 %v5687, %v5691
        %v5693 = vsub.f32 1.0, %v5692
        %v5694 = vmul.f32 %v5673, %v5693
        %v5695 = vadd.f32 %v5694, 1.0
        %v5696 = vmul.f32 %v5670, %v5695
        %v5697 = vld [vmem:[%s25] sm:$0x1]
        %v5699 = vlaneseq
        %v5700 = vshrl.u32 %v5699, 7
        %v5701 = vsub.s32 0, %v5700
        %v5702 = vrot.slane %v5697, %v5701
        %v5704 = vmul.f32 %v5696, %v5702
        %vm5705 = vcmask 58368
        %v5706 = vsel %vm5705, %v5704, 0.0
        %5707 = vadd.xlane.f32.xlu0 %v5706
        %v5708 = vpop.xlane.xlu0 %5707
        %v5709 = vld [vmem:[#allocation5] sm:$0x1]
        %v5711 = vlaneseq
        %v5712 = vshrl.u32 %v5711, 7
        %v5713 = vsub.s32 0, %v5712
        %v5714 = vrot.slane %v5709, %v5713
        %v5716 = vadd.f32 %v5708, %v5714
        %v5717 = vtanh.pop %v5716
        %vm5718 = vcmask 1024
        %5719 = vst.msk [vmem:[%s27] sm:$0x3] %vm5718, %v5717
      $region136: #{tpu_custom_call.1} parent=127 // pred_fallthru
        _
      // Predicated region
      $region137: #{tpu_custom_call.1} parent=127 // pred_check
        %p5720 = pneg %p684
      $region138: #{tpu_custom_call.1} parent=127 // pred_check_branch
        %5722 = sbr.rel (%p5720) target = $region140
      $region139: #{tpu_custom_call.1} parent=127 // pred_region
        _
      $region140: #{tpu_custom_call.1} parent=127 // pred_fallthru
        _
      // Predicated region
      $region141: #{tpu_custom_call.1} parent=127 // pred_check
        %p5723 = pneg %p684
      $region142: #{tpu_custom_call.1} parent=127 // pred_check_branch
        %5725 = sbr.rel (%p5723) target = $region144
      $region143: #{tpu_custom_call.1} parent=127 // pred_region
        _
      $region144: #{tpu_custom_call.1} parent=127 // pred_fallthru
        _
    $region128: #{tpu_custom_call.1} parent=5 // pred_fallthru
      _
    %p5726 = scmp.le.s32.totalorder 2, %s39
    // Predicated region
    $region145: #{tpu_custom_call.1} parent=5 // pred_check
      %p5727 = pneg %p5726
    $region146: #{tpu_custom_call.1} parent=5 // pred_check_branch
      %5729 = sbr.rel (%p5727) target = $region148
    $region147: #{tpu_custom_call.1} parent=5 // pred_region
      %s5730 = ssub.s32 %s39, 2
    $region148: #{tpu_custom_call.1} parent=5 // pred_fallthru
      _
  $region6: #{tpu_custom_call.1} parent=0 // loop_footer
    %s43 = sadd.s32 1, %s39
  $region7: #{tpu_custom_call.1} parent=0 // loop_footer_branch
    %38 = sbr.rel target = $region3
  $region8: #{tpu_custom_call.1} parent=0 // loop_exit
    _

</llo_original>
